<compile_context>
chip_gen: v5e
topology: v5e:2x2
jax: 0.10.0
libtpu: 0.0.40
codegen_flags: <defaults>
</compile_context>

<pallas_src>
import functools

import jax
import jax.numpy as jnp
from jax.experimental import pallas as pl
from jax.experimental.pallas import tpu as pltpu

EPS = 1e-5

# ---- model dimensions (small, consistent with the forward pass) -------------
B = 2                    # batch
SPATIAL = 16             # content / style image H = W
C1, C2, C3, C4 = 16, 32, 64, 64   # encoder channel progression
CLIP_DIM = 64            # stand-in CLIP embedding dim
MLP_HIDDEN = 64
MLP_OUT = 2 * C4         # chunk(2, dim=1) -> (gamma, beta), each C4 channels
CLIP_POOL_HW = (SPATIAL * 7) // 8   # upsample x7 then MaxPool(8) -> 14

CLIP_MEAN = jnp.array([0.48145466, 0.4578275, 0.40821073], jnp.float32)
CLIP_STD = jnp.array([0.26862954, 0.26130258, 0.27577711], jnp.float32)


# =============================== Pallas kernels ===============================

def _convmm_kernel(p_ref, w_ref, b_ref, o_ref, *, relu):
    # w: (Cout, K) bf16, p: (K, TM) bf16 -> lane-dense (Cout, TM) f32 output.
    y = jnp.dot(w_ref[...], p_ref[...], preferred_element_type=jnp.float32)
    y = y + b_ref[...]
    if relu:
        y = jnp.maximum(y, 0.0)
    o_ref[...] = y


def pallas_conv_mm(patches, w2, b, relu):
    """patches: (K, M) bf16, w2: (Cout, K) bf16, b: (Cout,) f32 -> (Cout, M) f32."""
    K, M = patches.shape
    Cout = w2.shape[0]
    # At most a 2-step grid on the lane axis: big tiles, still 2-way parallel
    # for v7x's two TensorCores.
    if M >= 512 and M % 256 == 0:
        TM = M // 2
    else:
        TM = M
    grid = (M // TM,)
    return pl.pallas_call(
        functools.partial(_convmm_kernel, relu=relu),
        out_shape=jax.ShapeDtypeStruct((Cout, M), jnp.float32),
        grid=grid,
        in_specs=[
            pl.BlockSpec((K, TM), lambda i: (0, i)),
            pl.BlockSpec((Cout, K), lambda i: (0, 0)),
            pl.BlockSpec((Cout, 1), lambda i: (0, 0)),
        ],
        out_specs=pl.BlockSpec((Cout, TM), lambda i: (0, i)),
        compiler_params=pltpu.CompilerParams(
            dimension_semantics=("parallel",)),
    )(patches, w2, b.reshape(Cout, 1).astype(jnp.float32))


def _maxpool_kernel(x_ref, o_ref):
    # x: (1, k*k, N) with N = C*B*Ho*Wo on lanes; reduce the window axis.
    o_ref[...] = jnp.max(x_ref[...], axis=1)


def pallas_maxpool2(x_cb):
    """MaxPool2d(2, stride=2) on a channels-major (C, B, H, W) feature."""
    C, Bn, H, W = x_cb.shape
    Ho, Wo = H // 2, W // 2
    N = C * Bn * Ho * Wo
    xr = (x_cb.reshape(C, Bn, Ho, 2, Wo, 2)
              .transpose(3, 5, 0, 1, 2, 4)           # (2, 2, C, B, Ho, Wo)
              .reshape(1, 4, N))
    out = pl.pallas_call(
        _maxpool_kernel,
        out_shape=jax.ShapeDtypeStruct((1, N), jnp.float32),
        grid=(1,),
        in_specs=[pl.BlockSpec((1, 4, N), lambda i: (0, 0, 0))],
        out_specs=pl.BlockSpec((1, N), lambda i: (0, 0)),
    )(xr)
    return out.reshape(C, Bn, Ho, Wo)


def _head_kernel(x_ref, m_ref, s_ref, wc_ref, bc_ref, w1_ref, b1_ref,
                 w2_ref, b2_ref, w3_ref, b3_ref, o_ref):
    # MaxPool(8) + CLIP normalize + CLIP image projection (no relu)
    # + 3-layer MLP (relu, relu, linear), all fused in one launch.
    pooled = jnp.max(x_ref[...], axis=1)              # (B, C*Ho*Wo)
    h = (pooled - m_ref[...]) / s_ref[...]
    h = jnp.dot(h, wc_ref[...], preferred_element_type=jnp.float32) + bc_ref[...]
    h = jnp.maximum(jnp.dot(h, w1_ref[...],
                            preferred_element_type=jnp.float32) + b1_ref[...], 0.0)
    h = jnp.maximum(jnp.dot(h, w2_ref[...],
                            preferred_element_type=jnp.float32) + b2_ref[...], 0.0)
    o_ref[...] = jnp.dot(h, w3_ref[...],
                         preferred_element_type=jnp.float32) + b3_ref[...]


def pallas_clip_head(up_nchw, params):
    """up: (B, 3, 112, 112) bicubic-upsampled style.

    Fuses MaxPool2d(8), CLIP mean/std normalize, the stand-in CLIP image
    projection and the 3-layer mapping MLP into a single kernel.
    """
    Bn, C, H, W = up_nchw.shape
    k = 8
    Ho, Wo = H // k, W // k
    L = C * Ho * Wo
    xr = (up_nchw.reshape(Bn, C, Ho, k, Wo, k)
                 .transpose(0, 3, 5, 1, 2, 4)         # (B, k, k, C, Ho, Wo)
                 .reshape(Bn, k * k, L)).astype(jnp.float32)
    m = jnp.broadcast_to(CLIP_MEAN.reshape(C, 1), (C, Ho * Wo)).reshape(1, L)
    s = jnp.broadcast_to(CLIP_STD.reshape(C, 1), (C, Ho * Wo)).reshape(1, L)

    wc, bc = params['clip_img']
    w1, b1 = params['mlp1']
    w2, b2 = params['mlp2']
    w3, b3 = params['mlp3']
    ins = [xr, m, s,
           wc, bc.reshape(1, -1), w1, b1.reshape(1, -1),
           w2, b2.reshape(1, -1), w3, b3.reshape(1, -1)]
    return pl.pallas_call(
        _head_kernel,
        out_shape=jax.ShapeDtypeStruct((Bn, MLP_OUT), jnp.float32),
        grid=(1,),
        in_specs=[pl.BlockSpec(a.shape, lambda i, _n=a.ndim: (0,) * _n)
                  for a in ins],
        out_specs=pl.BlockSpec((Bn, MLP_OUT), lambda i: (0, 0)),
    )(*ins)


def _adain_kernel(x_ref, g_ref, b_ref, o_ref):
    x = x_ref[...]                                    # (H*W, C*B) -> 128 lanes
    n = x.shape[0]
    mean = jnp.mean(x, axis=0, keepdims=True)
    var = jnp.sum((x - mean) ** 2, axis=0, keepdims=True) / (n - 1)  # torch .var()
    std = jnp.sqrt(var + EPS)
    o_ref[...] = (x - mean) / std * g_ref[...] + b_ref[...]


def pallas_adain(sc_cb, gamma_bc, beta_bc):
    """sc_cb: (C, B, H, W); gamma/beta: (B, C). Returns t as (H*W, C*B)."""
    C, Bn, H, W = sc_cb.shape
    x2 = sc_cb.reshape(C * Bn, H * W).T               # (H*W=4, C*B=128)
    g2 = gamma_bc.T.reshape(1, C * Bn)                # lanes ordered c*B + b
    b2 = beta_bc.T.reshape(1, C * Bn)
    return pl.pallas_call(
        _adain_kernel,
        out_shape=jax.ShapeDtypeStruct((H * W, C * Bn), jnp.float32),
        grid=(1,),
        in_specs=[pl.BlockSpec((H * W, C * Bn), lambda i: (0, 0)),
                  pl.BlockSpec((1, C * Bn), lambda i: (0, 0)),
                  pl.BlockSpec((1, C * Bn), lambda i: (0, 0))],
        out_specs=pl.BlockSpec((H * W, C * Bn), lambda i: (0, 0)),
    )(x2, g2, b2)


def _loss_kernel(g1, s1, g2, s2, g3, s3, g4, s4, t_ref, gam_ref, bet_ref,
                 lsa_ref, lc_ref, ls_ref, *, axes):
    """All losses in one launch: loss_s (4 layers), loss_s_a, loss_c."""
    def mean_std(x, ax):
        n = x.shape[ax]
        m = jnp.mean(x, axis=ax, keepdims=True)
        v = jnp.sum((x - m) ** 2, axis=ax, keepdims=True) / (n - 1)
        return m, jnp.sqrt(v + EPS)

    def mse(a, b):
        d = a - b
        return jnp.sum(d * d) / d.size

    loss_s = jnp.float32(0.0)
    s4_mean = s4_std = None
    for (g_ref, s_ref), ax in zip(((g1, s1), (g2, s2), (g3, s3), (g4, s4)), axes):
        gm, gs = mean_std(g_ref[...], ax)
        sm, ss = mean_std(s_ref[...], ax)
        loss_s = loss_s + mse(gm, sm) + mse(gs, ss)
        s4_mean, s4_std = sm, ss                      # last iter = deepest layer
    ls_ref[...] = loss_s.reshape(1, 1)
    lsa_ref[...] = (mse(bet_ref[...], s4_mean) +
                    mse(gam_ref[...], s4_std)).reshape(1, 1)
    lc_ref[...] = mse(g4[...], t_ref[...]).reshape(1, 1)


def _feat2d(f_cb, transpose):
    C, Bn, H, W = f_cb.shape
    x = f_cb.reshape(C * Bn, H * W)
    return x.T if transpose else x


def pallas_losses(g_feats, s_feats, t2d, gamma_bc, beta_bc):
    # Per-layer orientation so the long axis sits on lanes.
    trans = (False, False, True, True)
    axes = (1, 1, 0, 0)
    ins = []
    for i in range(4):
        ins.append(_feat2d(g_feats[i], trans[i]))
        ins.append(_feat2d(s_feats[i], trans[i]))
    C, Bn = g_feats[3].shape[0], g_feats[3].shape[1]
    ins += [t2d, gamma_bc.T.reshape(1, C * Bn), beta_bc.T.reshape(1, C * Bn)]
    ins = [a.astype(jnp.float32) for a in ins]
    lsa, lc, ls = pl.pallas_call(
        functools.partial(_loss_kernel, axes=axes),
        out_shape=tuple(jax.ShapeDtypeStruct((1, 1), jnp.float32) for _ in range(3)),
        grid=(1,),
        in_specs=[pl.BlockSpec(a.shape, lambda i: (0, 0)) for a in ins],
        out_specs=tuple(pl.BlockSpec((1, 1), lambda i: (0, 0)) for _ in range(3)),
    )(*ins)
    return lsa[0, 0], lc[0, 0], ls[0, 0]


# ============================ glue (plain JAX) ================================

def conv3x3(x_cb, w2, b, relu=True):
    """Conv2d(k=3, s=1, p=1) on channels-major (Cin, B, H, W) features.

    im2col is built in glue (tiny at these shapes); the matmul runs on the MXU
    in bf16 with a lane-dense (Cout, B*H*W) output that reshapes straight into
    the next layer's layout.
    """
    Cin, Bn, H, W = x_cb.shape
    Cout = w2.shape[0]
    xp = jnp.pad(x_cb, ((0, 0), (0, 0), (1, 1), (1, 1)))
    taps = [xp[:, :, i:i + H, j:j + W] for i in range(3) for j in range(3)]
    patches = jnp.stack(taps, axis=1).reshape(Cin * 9, Bn * H * W)
    y = pallas_conv_mm(patches.astype(jnp.bfloat16),
                       w2.astype(jnp.bfloat16), b, relu)
    return y.reshape(Cout, Bn, H, W)


def upsample2(x_cb):
    return jnp.repeat(jnp.repeat(x_cb, 2, axis=2), 2, axis=3)


def encode_with_intermediate(params, x_cb):
    f1 = conv3x3(x_cb, *params['enc1'], relu=True)
    f2 = conv3x3(pallas_maxpool2(f1), *params['enc2'], relu=True)
    f3 = conv3x3(pallas_maxpool2(f2), *params['enc3'], relu=True)
    f4 = conv3x3(pallas_maxpool2(f3), *params['enc4'], relu=True)
    return [f1, f2, f3, f4]


def decoder_forward(params, t_cb):
    x = conv3x3(upsample2(t_cb), *params['dec1'], relu=True)
    x = conv3x3(upsample2(x), *params['dec2'], relu=True)
    x = conv3x3(upsample2(x), *params['dec3'], relu=False)
    return x


def net_forward(params, content, style):
    """Net.forward(content, style, Istrain=True) -> (gt, loss_s_a, loss_c, loss_s)."""
    content_cb = jnp.transpose(content, (1, 0, 2, 3))   # NCHW -> (C, B, H, W)
    style_cb = jnp.transpose(style, (1, 0, 2, 3))

    # Content + style encoded in ONE batched pass (halves encoder launches,
    # doubles matmul M per conv), then split per-stream.
    cs_cb = jnp.concatenate([content_cb, style_cb], axis=1)   # (3, 2B, H, W)
    cs_feats = encode_with_intermediate(params, cs_cb)
    content_feats = [f[:, :B] for f in cs_feats]
    style_feats = [f[:, B:] for f in cs_feats]

    # CLIP path: upsample(x7, bicubic), then MaxPool(8)+normalize+projection+MLP
    # fused in one kernel. The normalized style is computed once (dedup of s_com).
    # TODO(synk): real CLIP ViT-B/32 image encoder is not translated; replaced
    # by a deterministic linear projection fused with the MLP mapping network.
    # TODO(synk): PyTorch bicubic with align_corners=True differs slightly from
    # jax.image.resize's bicubic.
    Bn, Cc, Hh0, Ww0 = style.shape
    up = jax.image.resize(style, (Bn, Cc, Hh0 * 7, Ww0 * 7), method='bicubic')
    s_clip1 = pallas_clip_head(up, params)              # (B, 2*C4)

    S_c = content_feats[-1]                             # == encode(content), reused
    gammar = s_clip1[:, :C4]                            # chunk(2, dim=1)
    beta = s_clip1[:, C4:]

    t2d = pallas_adain(S_c, gammar, beta)               # (H*W, C4*B)
    Hh, Ww = S_c.shape[2], S_c.shape[3]
    t_cb = t2d.T.reshape(C4, B, Hh, Ww)

    gt_cb = decoder_forward(params, t_cb)               # (3, B, 16, 16)
    g_t_feats = encode_with_intermediate(params, gt_cb)

    loss_s_a, loss_c, loss_s = pallas_losses(
        g_t_feats, style_feats, t2d, gammar, beta)

    gt = jnp.transpose(gt_cb, (1, 0, 2, 3))             # back to NCHW
    return gt, loss_s_a, loss_c, loss_s


net_forward_jit = jax.jit(net_forward)


# ============================ parameter init ==================================

def init_params(key):
    ks = jax.random.split(key, 11)

    def conv_p(k, cin, cout):
        k1, k2 = jax.random.split(k)
        w = jax.random.normal(k1, (cout, cin, 3, 3), jnp.float32) * 0.05
        b = jax.random.normal(k2, (cout,), jnp.float32) * 0.01
        return w.reshape(cout, cin * 9), b              # stored pre-flattened

    def lin_p(k, din, dout):
        k1, k2 = jax.random.split(k)
        return (jax.random.normal(k1, (din, dout), jnp.float32) * 0.05,
                jax.random.normal(k2, (dout,), jnp.float32) * 0.01)

    return {
        'enc1': conv_p(ks[0], 3, C1),
        'enc2': conv_p(ks[1], C1, C2),
        'enc3': conv_p(ks[2], C2, C3),
        'enc4': conv_p(ks[3], C3, C4),
        'dec1': conv_p(ks[4], C4, C3 // 2),
        'dec2': conv_p(ks[5], C3 // 2, C1),
        'dec3': conv_p(ks[6], C1, 3),
        'clip_img': lin_p(ks[7], 3 * CLIP_POOL_HW * CLIP_POOL_HW, CLIP_DIM),
        'mlp1': lin_p(ks[8], CLIP_DIM, MLP_HIDDEN),
        'mlp2': lin_p(ks[9], MLP_HIDDEN, MLP_HIDDEN),
        'mlp3': lin_p(ks[10], MLP_HIDDEN, MLP_OUT),
    }


# =================================== main =====================================

if __name__ == "__main__":
    root = jax.random.PRNGKey(0)
    k_params, k_content, k_style = jax.random.split(root, 3)

    params = init_params(k_params)
    content = jax.random.normal(k_content, (B, 3, SPATIAL, SPATIAL), jnp.float32)
    style = jax.random.normal(k_style, (B, 3, SPATIAL, SPATIAL), jnp.float32)

    gt, loss_s_a, loss_c, loss_s = net_forward_jit(params, content, style)
    jax.block_until_ready((gt, loss_s_a, loss_c, loss_s))
    assert gt.shape == (B, 3, SPATIAL, SPATIAL)
    print("KERNEL_OK")
</pallas_src>

<mosaic_0001>
module attributes {stable_mosaic.version = 11 : i64} {
  func.func @_convmm_kernel(%arg0: i32, %arg1: memref<27x512xbf16, #tpu.memory_space<vmem>>, %arg2: memref<16x27xbf16, #tpu.memory_space<vmem>>, %arg3: memref<16x1xf32, #tpu.memory_space<vmem>>, %arg4: memref<16x512xf32, #tpu.memory_space<vmem>>) attributes {dimension_semantics = [#tpu.dimension_semantics<parallel>], iteration_bounds = array<i64: 2>, scalar_prefetch = 0 : i64, scratch_operands = 0 : i64, tpu.core_type = #tpu.core_type<tc>, window_params = [{transform_indices = @transform_0, window_bounds = array<i64: 27, 512>}, {pipeline_mode = #tpu.pipeline_mode<synchronous>, transform_indices = @transform_1, window_bounds = array<i64: 16, 27>}, {pipeline_mode = #tpu.pipeline_mode<synchronous>, transform_indices = @transform_2, window_bounds = array<i64: 16, 1>}, {transform_indices = @transform_3, window_bounds = array<i64: 16, 512>}]} {
    %c0 = arith.constant 0 : index
    %c0_0 = arith.constant 0 : index
    %0 = vector.load %arg2[%c0, %c0_0] : memref<16x27xbf16, #tpu.memory_space<vmem>>, vector<16x27xbf16>
    %c0_1 = arith.constant 0 : index
    %c0_2 = arith.constant 0 : index
    %1 = vector.load %arg1[%c0_1, %c0_2] : memref<27x512xbf16, #tpu.memory_space<vmem>>, vector<27x512xbf16>
    %cst = arith.constant dense<0.000000e+00> : vector<16x512xf32>
    %2 = tpu.matmul %0, %1, %cst {dimension_numbers = #tpu.dot_dimension_numbers<[1], [0], [0], [1], [0, 0, 1, 1], [], []>} : vector<16x27xbf16>, vector<27x512xbf16>, vector<16x512xf32> -> vector<16x512xf32>
    %c0_3 = arith.constant 0 : index
    %c0_4 = arith.constant 0 : index
    %3 = vector.load %arg3[%c0_3, %c0_4] : memref<16x1xf32, #tpu.memory_space<vmem>>, vector<16x1xf32>
    %4 = vector.broadcast %3 : vector<16x1xf32> to vector<16x512xf32>
    %5 = arith.addf %2, %4 : vector<16x512xf32>
    %cst_5 = arith.constant 0.000000e+00 : f32
    %6 = vector.broadcast %cst_5 : f32 to vector<16x512xf32>
    %7 = arith.maximumf %5, %6 : vector<16x512xf32>
    %c0_6 = arith.constant 0 : index
    %c0_7 = arith.constant 0 : index
    %8 = vector.load %arg4[%c0_6, %c0_7] : memref<16x512xf32, #tpu.memory_space<vmem>>, vector<16x512xf32>
    tpu.vector_store %arg4[%c0_6, %c0_7], %7 {strides = array<i32>} : memref<16x512xf32, #tpu.memory_space<vmem>>, vector<16x512xf32>,
    return
  }
  func.func @transform_0(%arg0: i32) -> (i32, i32) {
    %c0_i32 = arith.constant 0 : i32
    %c0_i32_0 = arith.constant 0 : i32
    return %c0_i32, %arg0 : i32, i32
  }
  func.func @transform_1(%arg0: i32) -> (i32, i32) {
    %c0_i32 = arith.constant 0 : i32
    %c0_i32_0 = arith.constant 0 : i32
    %c0_i32_1 = arith.constant 0 : i32
    return %c0_i32, %c0_i32_0 : i32, i32
  }
  func.func @transform_2(%arg0: i32) -> (i32, i32) {
    %c0_i32 = arith.constant 0 : i32
    %c0_i32_0 = arith.constant 0 : i32
    %c0_i32_1 = arith.constant 0 : i32
    return %c0_i32, %c0_i32_0 : i32, i32
  }
  func.func @transform_3(%arg0: i32) -> (i32, i32) {
    %c0_i32 = arith.constant 0 : i32
    %c0_i32_0 = arith.constant 0 : i32
    return %c0_i32, %arg0 : i32, i32
  }
}

module attributes {stable_mosaic.version = 11 : i64} {
  func.func @_maxpool_kernel(%arg0: i32, %arg1: memref<1x4x4096xf32, #tpu.memory_space<vmem>>, %arg2: memref<1x4096xf32, #tpu.memory_space<vmem>>) attributes {dimension_semantics = [#tpu.dimension_semantics<arbitrary>], iteration_bounds = array<i64: 1>, scalar_prefetch = 0 : i64, scratch_operands = 0 : i64, tpu.core_type = #tpu.core_type<tc>, window_params = [{pipeline_mode = #tpu.pipeline_mode<synchronous>, transform_indices = @transform_0, window_bounds = array<i64: 1, 4, 4096>}, {pipeline_mode = #tpu.pipeline_mode<synchronous>, transform_indices = @transform_1, window_bounds = array<i64: 1, 4096>}]} {
    %c0 = arith.constant 0 : index
    %c0_0 = arith.constant 0 : index
    %c0_1 = arith.constant 0 : index
    %0 = vector.load %arg1[%c0, %c0_0, %c0_1] : memref<1x4x4096xf32, #tpu.memory_space<vmem>>, vector<1x4x4096xf32>
    %cst = arith.constant dense<0xFF800000> : vector<1x4096xf32>
    %1 = vector.multi_reduction <maximumf>, %0, %cst [1] : vector<1x4x4096xf32> to vector<1x4096xf32>
    %c0_2 = arith.constant 0 : index
    %c0_3 = arith.constant 0 : index
    %2 = vector.load %arg2[%c0_2, %c0_3] : memref<1x4096xf32, #tpu.memory_space<vmem>>, vector<1x4096xf32>
    tpu.vector_store %arg2[%c0_2, %c0_3], %1 {strides = array<i32>} : memref<1x4096xf32, #tpu.memory_space<vmem>>, vector<1x4096xf32>,
    return
  }
  func.func @transform_0(%arg0: i32) -> (i32, i32, i32) {
    %c0_i32 = arith.constant 0 : i32
    %c0_i32_0 = arith.constant 0 : i32
    %c0_i32_1 = arith.constant 0 : i32
    %c0_i32_2 = arith.constant 0 : i32
    return %c0_i32, %c0_i32_0, %c0_i32_1 : i32, i32, i32
  }
  func.func @transform_1(%arg0: i32) -> (i32, i32) {
    %c0_i32 = arith.constant 0 : i32
    %c0_i32_0 = arith.constant 0 : i32
    %c0_i32_1 = arith.constant 0 : i32
    return %c0_i32, %c0_i32_0 : i32, i32
  }
}

module attributes {stable_mosaic.version = 11 : i64} {
  func.func @_convmm_kernel(%arg0: i32, %arg1: memref<144x256xbf16, #tpu.memory_space<vmem>>, %arg2: memref<32x144xbf16, #tpu.memory_space<vmem>>, %arg3: memref<32x1xf32, #tpu.memory_space<vmem>>, %arg4: memref<32x256xf32, #tpu.memory_space<vmem>>) attributes {dimension_semantics = [#tpu.dimension_semantics<parallel>], iteration_bounds = array<i64: 1>, scalar_prefetch = 0 : i64, scratch_operands = 0 : i64, tpu.core_type = #tpu.core_type<tc>, window_params = [{transform_indices = @transform_0, window_bounds = array<i64: 144, 256>}, {pipeline_mode = #tpu.pipeline_mode<synchronous>, transform_indices = @transform_1, window_bounds = array<i64: 32, 144>}, {pipeline_mode = #tpu.pipeline_mode<synchronous>, transform_indices = @transform_2, window_bounds = array<i64: 32, 1>}, {transform_indices = @transform_3, window_bounds = array<i64: 32, 256>}]} {
    %c0 = arith.constant 0 : index
    %c0_0 = arith.constant 0 : index
    %0 = vector.load %arg2[%c0, %c0_0] : memref<32x144xbf16, #tpu.memory_space<vmem>>, vector<32x144xbf16>
    %c0_1 = arith.constant 0 : index
    %c0_2 = arith.constant 0 : index
    %1 = vector.load %arg1[%c0_1, %c0_2] : memref<144x256xbf16, #tpu.memory_space<vmem>>, vector<144x256xbf16>
    %cst = arith.constant dense<0.000000e+00> : vector<32x256xf32>
    %2 = tpu.matmul %0, %1, %cst {dimension_numbers = #tpu.dot_dimension_numbers<[1], [0], [0], [1], [0, 0, 1, 1], [], []>} : vector<32x144xbf16>, vector<144x256xbf16>, vector<32x256xf32> -> vector<32x256xf32>
    %c0_3 = arith.constant 0 : index
    %c0_4 = arith.constant 0 : index
    %3 = vector.load %arg3[%c0_3, %c0_4] : memref<32x1xf32, #tpu.memory_space<vmem>>, vector<32x1xf32>
    %4 = vector.broadcast %3 : vector<32x1xf32> to vector<32x256xf32>
    %5 = arith.addf %2, %4 : vector<32x256xf32>
    %cst_5 = arith.constant 0.000000e+00 : f32
    %6 = vector.broadcast %cst_5 : f32 to vector<32x256xf32>
    %7 = arith.maximumf %5, %6 : vector<32x256xf32>
    %c0_6 = arith.constant 0 : index
    %c0_7 = arith.constant 0 : index
    %8 = vector.load %arg4[%c0_6, %c0_7] : memref<32x256xf32, #tpu.memory_space<vmem>>, vector<32x256xf32>
    tpu.vector_store %arg4[%c0_6, %c0_7], %7 {strides = array<i32>} : memref<32x256xf32, #tpu.memory_space<vmem>>, vector<32x256xf32>,
    return
  }
  func.func @transform_0(%arg0: i32) -> (i32, i32) {
    %c0_i32 = arith.constant 0 : i32
    %c0_i32_0 = arith.constant 0 : i32
    return %c0_i32, %arg0 : i32, i32
  }
  func.func @transform_1(%arg0: i32) -> (i32, i32) {
    %c0_i32 = arith.constant 0 : i32
    %c0_i32_0 = arith.constant 0 : i32
    %c0_i32_1 = arith.constant 0 : i32
    return %c0_i32, %c0_i32_0 : i32, i32
  }
  func.func @transform_2(%arg0: i32) -> (i32, i32) {
    %c0_i32 = arith.constant 0 : i32
    %c0_i32_0 = arith.constant 0 : i32
    %c0_i32_1 = arith.constant 0 : i32
    return %c0_i32, %c0_i32_0 : i32, i32
  }
  func.func @transform_3(%arg0: i32) -> (i32, i32) {
    %c0_i32 = arith.constant 0 : i32
    %c0_i32_0 = arith.constant 0 : i32
    return %c0_i32, %arg0 : i32, i32
  }
}

module attributes {stable_mosaic.version = 11 : i64} {
  func.func @_maxpool_kernel(%arg0: i32, %arg1: memref<1x4x2048xf32, #tpu.memory_space<vmem>>, %arg2: memref<1x2048xf32, #tpu.memory_space<vmem>>) attributes {dimension_semantics = [#tpu.dimension_semantics<arbitrary>], iteration_bounds = array<i64: 1>, scalar_prefetch = 0 : i64, scratch_operands = 0 : i64, tpu.core_type = #tpu.core_type<tc>, window_params = [{pipeline_mode = #tpu.pipeline_mode<synchronous>, transform_indices = @transform_0, window_bounds = array<i64: 1, 4, 2048>}, {pipeline_mode = #tpu.pipeline_mode<synchronous>, transform_indices = @transform_1, window_bounds = array<i64: 1, 2048>}]} {
    %c0 = arith.constant 0 : index
    %c0_0 = arith.constant 0 : index
    %c0_1 = arith.constant 0 : index
    %0 = vector.load %arg1[%c0, %c0_0, %c0_1] : memref<1x4x2048xf32, #tpu.memory_space<vmem>>, vector<1x4x2048xf32>
    %cst = arith.constant dense<0xFF800000> : vector<1x2048xf32>
    %1 = vector.multi_reduction <maximumf>, %0, %cst [1] : vector<1x4x2048xf32> to vector<1x2048xf32>
    %c0_2 = arith.constant 0 : index
    %c0_3 = arith.constant 0 : index
    %2 = vector.load %arg2[%c0_2, %c0_3] : memref<1x2048xf32, #tpu.memory_space<vmem>>, vector<1x2048xf32>
    tpu.vector_store %arg2[%c0_2, %c0_3], %1 {strides = array<i32>} : memref<1x2048xf32, #tpu.memory_space<vmem>>, vector<1x2048xf32>,
    return
  }
  func.func @transform_0(%arg0: i32) -> (i32, i32, i32) {
    %c0_i32 = arith.constant 0 : i32
    %c0_i32_0 = arith.constant 0 : i32
    %c0_i32_1 = arith.constant 0 : i32
    %c0_i32_2 = arith.constant 0 : i32
    return %c0_i32, %c0_i32_0, %c0_i32_1 : i32, i32, i32
  }
  func.func @transform_1(%arg0: i32) -> (i32, i32) {
    %c0_i32 = arith.constant 0 : i32
    %c0_i32_0 = arith.constant 0 : i32
    %c0_i32_1 = arith.constant 0 : i32
    return %c0_i32, %c0_i32_0 : i32, i32
  }
}

module attributes {stable_mosaic.version = 11 : i64} {
  func.func @_convmm_kernel(%arg0: i32, %arg1: memref<288x64xbf16, #tpu.memory_space<vmem>>, %arg2: memref<64x288xbf16, #tpu.memory_space<vmem>>, %arg3: memref<64x1xf32, #tpu.memory_space<vmem>>, %arg4: memref<64x64xf32, #tpu.memory_space<vmem>>) attributes {dimension_semantics = [#tpu.dimension_semantics<parallel>], iteration_bounds = array<i64: 1>, scalar_prefetch = 0 : i64, scratch_operands = 0 : i64, tpu.core_type = #tpu.core_type<tc>, window_params = [{transform_indices = @transform_0, window_bounds = array<i64: 288, 64>}, {pipeline_mode = #tpu.pipeline_mode<synchronous>, transform_indices = @transform_1, window_bounds = array<i64: 64, 288>}, {pipeline_mode = #tpu.pipeline_mode<synchronous>, transform_indices = @transform_2, window_bounds = array<i64: 64, 1>}, {transform_indices = @transform_3, window_bounds = array<i64: 64, 64>}]} {
    %c0 = arith.constant 0 : index
    %c0_0 = arith.constant 0 : index
    %0 = vector.load %arg2[%c0, %c0_0] : memref<64x288xbf16, #tpu.memory_space<vmem>>, vector<64x288xbf16>
    %c0_1 = arith.constant 0 : index
    %c0_2 = arith.constant 0 : index
    %1 = vector.load %arg1[%c0_1, %c0_2] : memref<288x64xbf16, #tpu.memory_space<vmem>>, vector<288x64xbf16>
    %cst = arith.constant dense<0.000000e+00> : vector<64x64xf32>
    %2 = tpu.matmul %0, %1, %cst {dimension_numbers = #tpu.dot_dimension_numbers<[1], [0], [0], [1], [0, 0, 1, 1], [], []>} : vector<64x288xbf16>, vector<288x64xbf16>, vector<64x64xf32> -> vector<64x64xf32>
    %c0_3 = arith.constant 0 : index
    %c0_4 = arith.constant 0 : index
    %3 = vector.load %arg3[%c0_3, %c0_4] : memref<64x1xf32, #tpu.memory_space<vmem>>, vector<64x1xf32>
    %4 = vector.broadcast %3 : vector<64x1xf32> to vector<64x64xf32>
    %5 = arith.addf %2, %4 : vector<64x64xf32>
    %cst_5 = arith.constant 0.000000e+00 : f32
    %6 = vector.broadcast %cst_5 : f32 to vector<64x64xf32>
    %7 = arith.maximumf %5, %6 : vector<64x64xf32>
    %c0_6 = arith.constant 0 : index
    %c0_7 = arith.constant 0 : index
    %8 = vector.load %arg4[%c0_6, %c0_7] : memref<64x64xf32, #tpu.memory_space<vmem>>, vector<64x64xf32>
    tpu.vector_store %arg4[%c0_6, %c0_7], %7 {strides = array<i32>} : memref<64x64xf32, #tpu.memory_space<vmem>>, vector<64x64xf32>,
    return
  }
  func.func @transform_0(%arg0: i32) -> (i32, i32) {
    %c0_i32 = arith.constant 0 : i32
    %c0_i32_0 = arith.constant 0 : i32
    return %c0_i32, %arg0 : i32, i32
  }
  func.func @transform_1(%arg0: i32) -> (i32, i32) {
    %c0_i32 = arith.constant 0 : i32
    %c0_i32_0 = arith.constant 0 : i32
    %c0_i32_1 = arith.constant 0 : i32
    return %c0_i32, %c0_i32_0 : i32, i32
  }
  func.func @transform_2(%arg0: i32) -> (i32, i32) {
    %c0_i32 = arith.constant 0 : i32
    %c0_i32_0 = arith.constant 0 : i32
    %c0_i32_1 = arith.constant 0 : i32
    return %c0_i32, %c0_i32_0 : i32, i32
  }
  func.func @transform_3(%arg0: i32) -> (i32, i32) {
    %c0_i32 = arith.constant 0 : i32
    %c0_i32_0 = arith.constant 0 : i32
    return %c0_i32, %arg0 : i32, i32
  }
}

module attributes {stable_mosaic.version = 11 : i64} {
  func.func @_maxpool_kernel(%arg0: i32, %arg1: memref<1x4x1024xf32, #tpu.memory_space<vmem>>, %arg2: memref<1x1024xf32, #tpu.memory_space<vmem>>) attributes {dimension_semantics = [#tpu.dimension_semantics<arbitrary>], iteration_bounds = array<i64: 1>, scalar_prefetch = 0 : i64, scratch_operands = 0 : i64, tpu.core_type = #tpu.core_type<tc>, window_params = [{pipeline_mode = #tpu.pipeline_mode<synchronous>, transform_indices = @transform_0, window_bounds = array<i64: 1, 4, 1024>}, {pipeline_mode = #tpu.pipeline_mode<synchronous>, transform_indices = @transform_1, window_bounds = array<i64: 1, 1024>}]} {
    %c0 = arith.constant 0 : index
    %c0_0 = arith.constant 0 : index
    %c0_1 = arith.constant 0 : index
    %0 = vector.load %arg1[%c0, %c0_0, %c0_1] : memref<1x4x1024xf32, #tpu.memory_space<vmem>>, vector<1x4x1024xf32>
    %cst = arith.constant dense<0xFF800000> : vector<1x1024xf32>
    %1 = vector.multi_reduction <maximumf>, %0, %cst [1] : vector<1x4x1024xf32> to vector<1x1024xf32>
    %c0_2 = arith.constant 0 : index
    %c0_3 = arith.constant 0 : index
    %2 = vector.load %arg2[%c0_2, %c0_3] : memref<1x1024xf32, #tpu.memory_space<vmem>>, vector<1x1024xf32>
    tpu.vector_store %arg2[%c0_2, %c0_3], %1 {strides = array<i32>} : memref<1x1024xf32, #tpu.memory_space<vmem>>, vector<1x1024xf32>,
    return
  }
  func.func @transform_0(%arg0: i32) -> (i32, i32, i32) {
    %c0_i32 = arith.constant 0 : i32
    %c0_i32_0 = arith.constant 0 : i32
    %c0_i32_1 = arith.constant 0 : i32
    %c0_i32_2 = arith.constant 0 : i32
    return %c0_i32, %c0_i32_0, %c0_i32_1 : i32, i32, i32
  }
  func.func @transform_1(%arg0: i32) -> (i32, i32) {
    %c0_i32 = arith.constant 0 : i32
    %c0_i32_0 = arith.constant 0 : i32
    %c0_i32_1 = arith.constant 0 : i32
    return %c0_i32, %c0_i32_0 : i32, i32
  }
}

module attributes {stable_mosaic.version = 11 : i64} {
  func.func @_convmm_kernel(%arg0: i32, %arg1: memref<576x16xbf16, #tpu.memory_space<vmem>>, %arg2: memref<64x576xbf16, #tpu.memory_space<vmem>>, %arg3: memref<64x1xf32, #tpu.memory_space<vmem>>, %arg4: memref<64x16xf32, #tpu.memory_space<vmem>>) attributes {dimension_semantics = [#tpu.dimension_semantics<parallel>], iteration_bounds = array<i64: 1>, scalar_prefetch = 0 : i64, scratch_operands = 0 : i64, tpu.core_type = #tpu.core_type<tc>, window_params = [{transform_indices = @transform_0, window_bounds = array<i64: 576, 16>}, {pipeline_mode = #tpu.pipeline_mode<synchronous>, transform_indices = @transform_1, window_bounds = array<i64: 64, 576>}, {pipeline_mode = #tpu.pipeline_mode<synchronous>, transform_indices = @transform_2, window_bounds = array<i64: 64, 1>}, {transform_indices = @transform_3, window_bounds = array<i64: 64, 16>}]} {
    %c0 = arith.constant 0 : index
    %c0_0 = arith.constant 0 : index
    %0 = vector.load %arg2[%c0, %c0_0] : memref<64x576xbf16, #tpu.memory_space<vmem>>, vector<64x576xbf16>
    %c0_1 = arith.constant 0 : index
    %c0_2 = arith.constant 0 : index
    %1 = vector.load %arg1[%c0_1, %c0_2] : memref<576x16xbf16, #tpu.memory_space<vmem>>, vector<576x16xbf16>
    %cst = arith.constant dense<0.000000e+00> : vector<64x16xf32>
    %2 = tpu.matmul %0, %1, %cst {dimension_numbers = #tpu.dot_dimension_numbers<[1], [0], [0], [1], [0, 0, 1, 1], [], []>} : vector<64x576xbf16>, vector<576x16xbf16>, vector<64x16xf32> -> vector<64x16xf32>
    %c0_3 = arith.constant 0 : index
    %c0_4 = arith.constant 0 : index
    %3 = vector.load %arg3[%c0_3, %c0_4] : memref<64x1xf32, #tpu.memory_space<vmem>>, vector<64x1xf32>
    %4 = vector.broadcast %3 : vector<64x1xf32> to vector<64x16xf32>
    %5 = arith.addf %2, %4 : vector<64x16xf32>
    %cst_5 = arith.constant 0.000000e+00 : f32
    %6 = vector.broadcast %cst_5 : f32 to vector<64x16xf32>
    %7 = arith.maximumf %5, %6 : vector<64x16xf32>
    %c0_6 = arith.constant 0 : index
    %c0_7 = arith.constant 0 : index
    %8 = vector.load %arg4[%c0_6, %c0_7] : memref<64x16xf32, #tpu.memory_space<vmem>>, vector<64x16xf32>
    tpu.vector_store %arg4[%c0_6, %c0_7], %7 {strides = array<i32>} : memref<64x16xf32, #tpu.memory_space<vmem>>, vector<64x16xf32>,
    return
  }
  func.func @transform_0(%arg0: i32) -> (i32, i32) {
    %c0_i32 = arith.constant 0 : i32
    %c0_i32_0 = arith.constant 0 : i32
    return %c0_i32, %arg0 : i32, i32
  }
  func.func @transform_1(%arg0: i32) -> (i32, i32) {
    %c0_i32 = arith.constant 0 : i32
    %c0_i32_0 = arith.constant 0 : i32
    %c0_i32_1 = arith.constant 0 : i32
    return %c0_i32, %c0_i32_0 : i32, i32
  }
  func.func @transform_2(%arg0: i32) -> (i32, i32) {
    %c0_i32 = arith.constant 0 : i32
    %c0_i32_0 = arith.constant 0 : i32
    %c0_i32_1 = arith.constant 0 : i32
    return %c0_i32, %c0_i32_0 : i32, i32
  }
  func.func @transform_3(%arg0: i32) -> (i32, i32) {
    %c0_i32 = arith.constant 0 : i32
    %c0_i32_0 = arith.constant 0 : i32
    return %c0_i32, %arg0 : i32, i32
  }
}

module attributes {stable_mosaic.version = 11 : i64} {
  func.func @_head_kernel(%arg0: i32, %arg1: memref<2x64x588xf32, #tpu.memory_space<vmem>>, %arg2: memref<1x588xf32, #tpu.memory_space<vmem>>, %arg3: memref<1x588xf32, #tpu.memory_space<vmem>>, %arg4: memref<588x64xf32, #tpu.memory_space<vmem>>, %arg5: memref<1x64xf32, #tpu.memory_space<vmem>>, %arg6: memref<64x64xf32, #tpu.memory_space<vmem>>, %arg7: memref<1x64xf32, #tpu.memory_space<vmem>>, %arg8: memref<64x64xf32, #tpu.memory_space<vmem>>, %arg9: memref<1x64xf32, #tpu.memory_space<vmem>>, %arg10: memref<64x128xf32, #tpu.memory_space<vmem>>, %arg11: memref<1x128xf32, #tpu.memory_space<vmem>>, %arg12: memref<2x128xf32, #tpu.memory_space<vmem>>) attributes {dimension_semantics = [#tpu.dimension_semantics<arbitrary>], iteration_bounds = array<i64: 1>, scalar_prefetch = 0 : i64, scratch_operands = 0 : i64, tpu.core_type = #tpu.core_type<tc>, window_params = [{pipeline_mode = #tpu.pipeline_mode<synchronous>, transform_indices = @transform_0, window_bounds = array<i64: 2, 64, 588>}, {pipeline_mode = #tpu.pipeline_mode<synchronous>, transform_indices = @transform_1, window_bounds = array<i64: 1, 588>}, {pipeline_mode = #tpu.pipeline_mode<synchronous>, transform_indices = @transform_2, window_bounds = array<i64: 1, 588>}, {pipeline_mode = #tpu.pipeline_mode<synchronous>, transform_indices = @transform_3, window_bounds = array<i64: 588, 64>}, {pipeline_mode = #tpu.pipeline_mode<synchronous>, transform_indices = @transform_4, window_bounds = array<i64: 1, 64>}, {pipeline_mode = #tpu.pipeline_mode<synchronous>, transform_indices = @transform_5, window_bounds = array<i64: 64, 64>}, {pipeline_mode = #tpu.pipeline_mode<synchronous>, transform_indices = @transform_6, window_bounds = array<i64: 1, 64>}, {pipeline_mode = #tpu.pipeline_mode<synchronous>, transform_indices = @transform_7, window_bounds = array<i64: 64, 64>}, {pipeline_mode = #tpu.pipeline_mode<synchronous>, transform_indices = @transform_8, window_bounds = array<i64: 1, 64>}, {pipeline_mode = #tpu.pipeline_mode<synchronous>, transform_indices = @transform_9, window_bounds = array<i64: 64, 128>}, {pipeline_mode = #tpu.pipeline_mode<synchronous>, transform_indices = @transform_10, window_bounds = array<i64: 1, 128>}, {pipeline_mode = #tpu.pipeline_mode<synchronous>, transform_indices = @transform_11, window_bounds = array<i64: 2, 128>}]} {
    %c0 = arith.constant 0 : index
    %c0_0 = arith.constant 0 : index
    %c0_1 = arith.constant 0 : index
    %0 = vector.load %arg1[%c0, %c0_0, %c0_1] : memref<2x64x588xf32, #tpu.memory_space<vmem>>, vector<2x64x588xf32>
    %cst = arith.constant dense<0xFF800000> : vector<2x588xf32>
    %1 = vector.multi_reduction <maximumf>, %0, %cst [1] : vector<2x64x588xf32> to vector<2x588xf32>
    %c0_2 = arith.constant 0 : index
    %c0_3 = arith.constant 0 : index
    %2 = vector.load %arg2[%c0_2, %c0_3] : memref<1x588xf32, #tpu.memory_space<vmem>>, vector<1x588xf32>
    %3 = vector.broadcast %2 : vector<1x588xf32> to vector<2x588xf32>
    %4 = arith.subf %1, %3 : vector<2x588xf32>
    %c0_4 = arith.constant 0 : index
    %c0_5 = arith.constant 0 : index
    %5 = vector.load %arg3[%c0_4, %c0_5] : memref<1x588xf32, #tpu.memory_space<vmem>>, vector<1x588xf32>
    %6 = vector.broadcast %5 : vector<1x588xf32> to vector<2x588xf32>
    %7 = arith.divf %4, %6 : vector<2x588xf32>
    %c0_6 = arith.constant 0 : index
    %c0_7 = arith.constant 0 : index
    %8 = vector.load %arg4[%c0_6, %c0_7] : memref<588x64xf32, #tpu.memory_space<vmem>>, vector<588x64xf32>
    %cst_8 = arith.constant dense<0.000000e+00> : vector<2x64xf32>
    %9 = tpu.matmul %7, %8, %cst_8 {dimension_numbers = #tpu.dot_dimension_numbers<[1], [0], [0], [1], [0, 0, 1, 1], [], []>} : vector<2x588xf32>, vector<588x64xf32>, vector<2x64xf32> -> vector<2x64xf32>
    %c0_9 = arith.constant 0 : index
    %c0_10 = arith.constant 0 : index
    %10 = vector.load %arg5[%c0_9, %c0_10] : memref<1x64xf32, #tpu.memory_space<vmem>>, vector<1x64xf32>
    %11 = vector.broadcast %10 : vector<1x64xf32> to vector<2x64xf32>
    %12 = arith.addf %9, %11 : vector<2x64xf32>
    %c0_11 = arith.constant 0 : index
    %c0_12 = arith.constant 0 : index
    %13 = vector.load %arg6[%c0_11, %c0_12] : memref<64x64xf32, #tpu.memory_space<vmem>>, vector<64x64xf32>
    %cst_13 = arith.constant dense<0.000000e+00> : vector<2x64xf32>
    %14 = tpu.matmul %12, %13, %cst_13 {dimension_numbers = #tpu.dot_dimension_numbers<[1], [0], [0], [1], [0, 0, 1, 1], [], []>} : vector<2x64xf32>, vector<64x64xf32>, vector<2x64xf32> -> vector<2x64xf32>
    %c0_14 = arith.constant 0 : index
    %c0_15 = arith.constant 0 : index
    %15 = vector.load %arg7[%c0_14, %c0_15] : memref<1x64xf32, #tpu.memory_space<vmem>>, vector<1x64xf32>
    %16 = vector.broadcast %15 : vector<1x64xf32> to vector<2x64xf32>
    %17 = arith.addf %14, %16 : vector<2x64xf32>
    %cst_16 = arith.constant 0.000000e+00 : f32
    %18 = vector.broadcast %cst_16 : f32 to vector<2x64xf32>
    %19 = arith.maximumf %17, %18 : vector<2x64xf32>
    %c0_17 = arith.constant 0 : index
    %c0_18 = arith.constant 0 : index
    %20 = vector.load %arg8[%c0_17, %c0_18] : memref<64x64xf32, #tpu.memory_space<vmem>>, vector<64x64xf32>
    %cst_19 = arith.constant dense<0.000000e+00> : vector<2x64xf32>
    %21 = tpu.matmul %19, %20, %cst_19 {dimension_numbers = #tpu.dot_dimension_numbers<[1], [0], [0], [1], [0, 0, 1, 1], [], []>} : vector<2x64xf32>, vector<64x64xf32>, vector<2x64xf32> -> vector<2x64xf32>
    %c0_20 = arith.constant 0 : index
    %c0_21 = arith.constant 0 : index
    %22 = vector.load %arg9[%c0_20, %c0_21] : memref<1x64xf32, #tpu.memory_space<vmem>>, vector<1x64xf32>
    %23 = vector.broadcast %22 : vector<1x64xf32> to vector<2x64xf32>
    %24 = arith.addf %21, %23 : vector<2x64xf32>
    %cst_22 = arith.constant 0.000000e+00 : f32
    %25 = vector.broadcast %cst_22 : f32 to vector<2x64xf32>
    %26 = arith.maximumf %24, %25 : vector<2x64xf32>
    %c0_23 = arith.constant 0 : index
    %c0_24 = arith.constant 0 : index
    %27 = vector.load %arg10[%c0_23, %c0_24] : memref<64x128xf32, #tpu.memory_space<vmem>>, vector<64x128xf32>
    %cst_25 = arith.constant dense<0.000000e+00> : vector<2x128xf32>
    %28 = tpu.matmul %26, %27, %cst_25 {dimension_numbers = #tpu.dot_dimension_numbers<[1], [0], [0], [1], [0, 0, 1, 1], [], []>} : vector<2x64xf32>, vector<64x128xf32>, vector<2x128xf32> -> vector<2x128xf32>
    %c0_26 = arith.constant 0 : index
    %c0_27 = arith.constant 0 : index
    %29 = vector.load %arg11[%c0_26, %c0_27] : memref<1x128xf32, #tpu.memory_space<vmem>>, vector<1x128xf32>
    %30 = vector.broadcast %29 : vector<1x128xf32> to vector<2x128xf32>
    %31 = arith.addf %28, %30 : vector<2x128xf32>
    %c0_28 = arith.constant 0 : index
    %c0_29 = arith.constant 0 : index
    %32 = vector.load %arg12[%c0_28, %c0_29] : memref<2x128xf32, #tpu.memory_space<vmem>>, vector<2x128xf32>
    tpu.vector_store %arg12[%c0_28, %c0_29], %31 {strides = array<i32>} : memref<2x128xf32, #tpu.memory_space<vmem>>, vector<2x128xf32>,
    return
  }
  func.func @transform_0(%arg0: i32) -> (i32, i32, i32) {
    %c0_i32 = arith.constant 0 : i32
    %c0_i32_0 = arith.constant 0 : i32
    %c0_i32_1 = arith.constant 0 : i32
    %c0_i32_2 = arith.constant 0 : i32
    return %c0_i32, %c0_i32_0, %c0_i32_1 : i32, i32, i32
  }
  func.func @transform_1(%arg0: i32) -> (i32, i32) {
    %c0_i32 = arith.constant 0 : i32
    %c0_i32_0 = arith.constant 0 : i32
    %c0_i32_1 = arith.constant 0 : i32
    return %c0_i32, %c0_i32_0 : i32, i32
  }
  func.func @transform_2(%arg0: i32) -> (i32, i32) {
    %c0_i32 = arith.constant 0 : i32
    %c0_i32_0 = arith.constant 0 : i32
    %c0_i32_1 = arith.constant 0 : i32
    return %c0_i32, %c0_i32_0 : i32, i32
  }
  func.func @transform_3(%arg0: i32) -> (i32, i32) {
    %c0_i32 = arith.constant 0 : i32
    %c0_i32_0 = arith.constant 0 : i32
    %c0_i32_1 = arith.constant 0 : i32
    return %c0_i32, %c0_i32_0 : i32, i32
  }
  func.func @transform_4(%arg0: i32) -> (i32, i32) {
    %c0_i32 = arith.constant 0 : i32
    %c0_i32_0 = arith.constant 0 : i32
    %c0_i32_1 = arith.constant 0 : i32
    return %c0_i32, %c0_i32_0 : i32, i32
  }
  func.func @transform_5(%arg0: i32) -> (i32, i32) {
    %c0_i32 = arith.constant 0 : i32
    %c0_i32_0 = arith.constant 0 : i32
    %c0_i32_1 = arith.constant 0 : i32
    return %c0_i32, %c0_i32_0 : i32, i32
  }
  func.func @transform_6(%arg0: i32) -> (i32, i32) {
    %c0_i32 = arith.constant 0 : i32
    %c0_i32_0 = arith.constant 0 : i32
    %c0_i32_1 = arith.constant 0 : i32
    return %c0_i32, %c0_i32_0 : i32, i32
  }
  func.func @transform_7(%arg0: i32) -> (i32, i32) {
    %c0_i32 = arith.constant 0 : i32
    %c0_i32_0 = arith.constant 0 : i32
    %c0_i32_1 = arith.constant 0 : i32
    return %c0_i32, %c0_i32_0 : i32, i32
  }
  func.func @transform_8(%arg0: i32) -> (i32, i32) {
    %c0_i32 = arith.constant 0 : i32
    %c0_i32_0 = arith.constant 0 : i32
    %c0_i32_1 = arith.constant 0 : i32
    return %c0_i32, %c0_i32_0 : i32, i32
  }
  func.func @transform_9(%arg0: i32) -> (i32, i32) {
    %c0_i32 = arith.constant 0 : i32
    %c0_i32_0 = arith.constant 0 : i32
    %c0_i32_1 = arith.constant 0 : i32
    return %c0_i32, %c0_i32_0 : i32, i32
  }
  func.func @transform_10(%arg0: i32) -> (i32, i32) {
    %c0_i32 = arith.constant 0 : i32
    %c0_i32_0 = arith.constant 0 : i32
    %c0_i32_1 = arith.constant 0 : i32
    return %c0_i32, %c0_i32_0 : i32, i32
  }
  func.func @transform_11(%arg0: i32) -> (i32, i32) {
    %c0_i32 = arith.constant 0 : i32
    %c0_i32_0 = arith.constant 0 : i32
    %c0_i32_1 = arith.constant 0 : i32
    return %c0_i32, %c0_i32_0 : i32, i32
  }
}

module attributes {stable_mosaic.version = 11 : i64} {
  func.func @_adain_kernel(%arg0: i32, %arg1: memref<4x128xf32, #tpu.memory_space<vmem>>, %arg2: memref<1x128xf32, #tpu.memory_space<vmem>>, %arg3: memref<1x128xf32, #tpu.memory_space<vmem>>, %arg4: memref<4x128xf32, #tpu.memory_space<vmem>>) attributes {dimension_semantics = [#tpu.dimension_semantics<arbitrary>], iteration_bounds = array<i64: 1>, scalar_prefetch = 0 : i64, scratch_operands = 0 : i64, tpu.core_type = #tpu.core_type<tc>, window_params = [{pipeline_mode = #tpu.pipeline_mode<synchronous>, transform_indices = @transform_0, window_bounds = array<i64: 4, 128>}, {pipeline_mode = #tpu.pipeline_mode<synchronous>, transform_indices = @transform_1, window_bounds = array<i64: 1, 128>}, {pipeline_mode = #tpu.pipeline_mode<synchronous>, transform_indices = @transform_2, window_bounds = array<i64: 1, 128>}, {pipeline_mode = #tpu.pipeline_mode<synchronous>, transform_indices = @transform_3, window_bounds = array<i64: 4, 128>}]} {
    %c0 = arith.constant 0 : index
    %c0_0 = arith.constant 0 : index
    %0 = vector.load %arg1[%c0, %c0_0] : memref<4x128xf32, #tpu.memory_space<vmem>>, vector<4x128xf32>
    %cst = arith.constant dense<0.000000e+00> : vector<128xf32>
    %1 = vector.multi_reduction <add>, %0, %cst [0] : vector<4x128xf32> to vector<128xf32>
    %2 = vector.shape_cast %1 : vector<128xf32> to vector<1x128xf32>
    %cst_1 = arith.constant 4.000000e+00 : f32
    %3 = vector.broadcast %cst_1 : f32 to vector<1x128xf32>
    %4 = arith.divf %2, %3 : vector<1x128xf32>
    %5 = vector.broadcast %4 : vector<1x128xf32> to vector<4x128xf32>
    %6 = arith.subf %0, %5 : vector<4x128xf32>
    %7 = arith.mulf %6, %6 : vector<4x128xf32>
    %cst_2 = arith.constant dense<0.000000e+00> : vector<128xf32>
    %8 = vector.multi_reduction <add>, %7, %cst_2 [0] : vector<4x128xf32> to vector<128xf32>
    %9 = vector.shape_cast %8 : vector<128xf32> to vector<1x128xf32>
    %cst_3 = arith.constant 3.000000e+00 : f32
    %10 = vector.broadcast %cst_3 : f32 to vector<1x128xf32>
    %11 = arith.divf %9, %10 : vector<1x128xf32>
    %cst_4 = arith.constant 9.99999974E-6 : f32
    %12 = vector.broadcast %cst_4 : f32 to vector<1x128xf32>
    %13 = arith.addf %11, %12 : vector<1x128xf32>
    %14 = math.sqrt %13 : vector<1x128xf32>
    %15 = vector.broadcast %4 : vector<1x128xf32> to vector<4x128xf32>
    %16 = arith.subf %0, %15 : vector<4x128xf32>
    %17 = vector.broadcast %14 : vector<1x128xf32> to vector<4x128xf32>
    %18 = arith.divf %16, %17 : vector<4x128xf32>
    %c0_5 = arith.constant 0 : index
    %c0_6 = arith.constant 0 : index
    %19 = vector.load %arg2[%c0_5, %c0_6] : memref<1x128xf32, #tpu.memory_space<vmem>>, vector<1x128xf32>
    %20 = vector.broadcast %19 : vector<1x128xf32> to vector<4x128xf32>
    %21 = arith.mulf %18, %20 : vector<4x128xf32>
    %c0_7 = arith.constant 0 : index
    %c0_8 = arith.constant 0 : index
    %22 = vector.load %arg3[%c0_7, %c0_8] : memref<1x128xf32, #tpu.memory_space<vmem>>, vector<1x128xf32>
    %23 = vector.broadcast %22 : vector<1x128xf32> to vector<4x128xf32>
    %24 = arith.addf %21, %23 : vector<4x128xf32>
    %c0_9 = arith.constant 0 : index
    %c0_10 = arith.constant 0 : index
    %25 = vector.load %arg4[%c0_9, %c0_10] : memref<4x128xf32, #tpu.memory_space<vmem>>, vector<4x128xf32>
    tpu.vector_store %arg4[%c0_9, %c0_10], %24 {strides = array<i32>} : memref<4x128xf32, #tpu.memory_space<vmem>>, vector<4x128xf32>,
    return
  }
  func.func @transform_0(%arg0: i32) -> (i32, i32) {
    %c0_i32 = arith.constant 0 : i32
    %c0_i32_0 = arith.constant 0 : i32
    %c0_i32_1 = arith.constant 0 : i32
    return %c0_i32, %c0_i32_0 : i32, i32
  }
  func.func @transform_1(%arg0: i32) -> (i32, i32) {
    %c0_i32 = arith.constant 0 : i32
    %c0_i32_0 = arith.constant 0 : i32
    %c0_i32_1 = arith.constant 0 : i32
    return %c0_i32, %c0_i32_0 : i32, i32
  }
  func.func @transform_2(%arg0: i32) -> (i32, i32) {
    %c0_i32 = arith.constant 0 : i32
    %c0_i32_0 = arith.constant 0 : i32
    %c0_i32_1 = arith.constant 0 : i32
    return %c0_i32, %c0_i32_0 : i32, i32
  }
  func.func @transform_3(%arg0: i32) -> (i32, i32) {
    %c0_i32 = arith.constant 0 : i32
    %c0_i32_0 = arith.constant 0 : i32
    %c0_i32_1 = arith.constant 0 : i32
    return %c0_i32, %c0_i32_0 : i32, i32
  }
}

module attributes {stable_mosaic.version = 11 : i64} {
  func.func @_convmm_kernel(%arg0: i32, %arg1: memref<576x32xbf16, #tpu.memory_space<vmem>>, %arg2: memref<32x576xbf16, #tpu.memory_space<vmem>>, %arg3: memref<32x1xf32, #tpu.memory_space<vmem>>, %arg4: memref<32x32xf32, #tpu.memory_space<vmem>>) attributes {dimension_semantics = [#tpu.dimension_semantics<parallel>], iteration_bounds = array<i64: 1>, scalar_prefetch = 0 : i64, scratch_operands = 0 : i64, tpu.core_type = #tpu.core_type<tc>, window_params = [{transform_indices = @transform_0, window_bounds = array<i64: 576, 32>}, {pipeline_mode = #tpu.pipeline_mode<synchronous>, transform_indices = @transform_1, window_bounds = array<i64: 32, 576>}, {pipeline_mode = #tpu.pipeline_mode<synchronous>, transform_indices = @transform_2, window_bounds = array<i64: 32, 1>}, {transform_indices = @transform_3, window_bounds = array<i64: 32, 32>}]} {
    %c0 = arith.constant 0 : index
    %c0_0 = arith.constant 0 : index
    %0 = vector.load %arg2[%c0, %c0_0] : memref<32x576xbf16, #tpu.memory_space<vmem>>, vector<32x576xbf16>
    %c0_1 = arith.constant 0 : index
    %c0_2 = arith.constant 0 : index
    %1 = vector.load %arg1[%c0_1, %c0_2] : memref<576x32xbf16, #tpu.memory_space<vmem>>, vector<576x32xbf16>
    %cst = arith.constant dense<0.000000e+00> : vector<32x32xf32>
    %2 = tpu.matmul %0, %1, %cst {dimension_numbers = #tpu.dot_dimension_numbers<[1], [0], [0], [1], [0, 0, 1, 1], [], []>} : vector<32x576xbf16>, vector<576x32xbf16>, vector<32x32xf32> -> vector<32x32xf32>
    %c0_3 = arith.constant 0 : index
    %c0_4 = arith.constant 0 : index
    %3 = vector.load %arg3[%c0_3, %c0_4] : memref<32x1xf32, #tpu.memory_space<vmem>>, vector<32x1xf32>
    %4 = vector.broadcast %3 : vector<32x1xf32> to vector<32x32xf32>
    %5 = arith.addf %2, %4 : vector<32x32xf32>
    %cst_5 = arith.constant 0.000000e+00 : f32
    %6 = vector.broadcast %cst_5 : f32 to vector<32x32xf32>
    %7 = arith.maximumf %5, %6 : vector<32x32xf32>
    %c0_6 = arith.constant 0 : index
    %c0_7 = arith.constant 0 : index
    %8 = vector.load %arg4[%c0_6, %c0_7] : memref<32x32xf32, #tpu.memory_space<vmem>>, vector<32x32xf32>
    tpu.vector_store %arg4[%c0_6, %c0_7], %7 {strides = array<i32>} : memref<32x32xf32, #tpu.memory_space<vmem>>, vector<32x32xf32>,
    return
  }
  func.func @transform_0(%arg0: i32) -> (i32, i32) {
    %c0_i32 = arith.constant 0 : i32
    %c0_i32_0 = arith.constant 0 : i32
    return %c0_i32, %arg0 : i32, i32
  }
  func.func @transform_1(%arg0: i32) -> (i32, i32) {
    %c0_i32 = arith.constant 0 : i32
    %c0_i32_0 = arith.constant 0 : i32
    %c0_i32_1 = arith.constant 0 : i32
    return %c0_i32, %c0_i32_0 : i32, i32
  }
  func.func @transform_2(%arg0: i32) -> (i32, i32) {
    %c0_i32 = arith.constant 0 : i32
    %c0_i32_0 = arith.constant 0 : i32
    %c0_i32_1 = arith.constant 0 : i32
    return %c0_i32, %c0_i32_0 : i32, i32
  }
  func.func @transform_3(%arg0: i32) -> (i32, i32) {
    %c0_i32 = arith.constant 0 : i32
    %c0_i32_0 = arith.constant 0 : i32
    return %c0_i32, %arg0 : i32, i32
  }
}

module attributes {stable_mosaic.version = 11 : i64} {
  func.func @_convmm_kernel(%arg0: i32, %arg1: memref<288x128xbf16, #tpu.memory_space<vmem>>, %arg2: memref<16x288xbf16, #tpu.memory_space<vmem>>, %arg3: memref<16x1xf32, #tpu.memory_space<vmem>>, %arg4: memref<16x128xf32, #tpu.memory_space<vmem>>) attributes {dimension_semantics = [#tpu.dimension_semantics<parallel>], iteration_bounds = array<i64: 1>, scalar_prefetch = 0 : i64, scratch_operands = 0 : i64, tpu.core_type = #tpu.core_type<tc>, window_params = [{transform_indices = @transform_0, window_bounds = array<i64: 288, 128>}, {pipeline_mode = #tpu.pipeline_mode<synchronous>, transform_indices = @transform_1, window_bounds = array<i64: 16, 288>}, {pipeline_mode = #tpu.pipeline_mode<synchronous>, transform_indices = @transform_2, window_bounds = array<i64: 16, 1>}, {transform_indices = @transform_3, window_bounds = array<i64: 16, 128>}]} {
    %c0 = arith.constant 0 : index
    %c0_0 = arith.constant 0 : index
    %0 = vector.load %arg2[%c0, %c0_0] : memref<16x288xbf16, #tpu.memory_space<vmem>>, vector<16x288xbf16>
    %c0_1 = arith.constant 0 : index
    %c0_2 = arith.constant 0 : index
    %1 = vector.load %arg1[%c0_1, %c0_2] : memref<288x128xbf16, #tpu.memory_space<vmem>>, vector<288x128xbf16>
    %cst = arith.constant dense<0.000000e+00> : vector<16x128xf32>
    %2 = tpu.matmul %0, %1, %cst {dimension_numbers = #tpu.dot_dimension_numbers<[1], [0], [0], [1], [0, 0, 1, 1], [], []>} : vector<16x288xbf16>, vector<288x128xbf16>, vector<16x128xf32> -> vector<16x128xf32>
    %c0_3 = arith.constant 0 : index
    %c0_4 = arith.constant 0 : index
    %3 = vector.load %arg3[%c0_3, %c0_4] : memref<16x1xf32, #tpu.memory_space<vmem>>, vector<16x1xf32>
    %4 = vector.broadcast %3 : vector<16x1xf32> to vector<16x128xf32>
    %5 = arith.addf %2, %4 : vector<16x128xf32>
    %cst_5 = arith.constant 0.000000e+00 : f32
    %6 = vector.broadcast %cst_5 : f32 to vector<16x128xf32>
    %7 = arith.maximumf %5, %6 : vector<16x128xf32>
    %c0_6 = arith.constant 0 : index
    %c0_7 = arith.constant 0 : index
    %8 = vector.load %arg4[%c0_6, %c0_7] : memref<16x128xf32, #tpu.memory_space<vmem>>, vector<16x128xf32>
    tpu.vector_store %arg4[%c0_6, %c0_7], %7 {strides = array<i32>} : memref<16x128xf32, #tpu.memory_space<vmem>>, vector<16x128xf32>,
    return
  }
  func.func @transform_0(%arg0: i32) -> (i32, i32) {
    %c0_i32 = arith.constant 0 : i32
    %c0_i32_0 = arith.constant 0 : i32
    return %c0_i32, %arg0 : i32, i32
  }
  func.func @transform_1(%arg0: i32) -> (i32, i32) {
    %c0_i32 = arith.constant 0 : i32
    %c0_i32_0 = arith.constant 0 : i32
    %c0_i32_1 = arith.constant 0 : i32
    return %c0_i32, %c0_i32_0 : i32, i32
  }
  func.func @transform_2(%arg0: i32) -> (i32, i32) {
    %c0_i32 = arith.constant 0 : i32
    %c0_i32_0 = arith.constant 0 : i32
    %c0_i32_1 = arith.constant 0 : i32
    return %c0_i32, %c0_i32_0 : i32, i32
  }
  func.func @transform_3(%arg0: i32) -> (i32, i32) {
    %c0_i32 = arith.constant 0 : i32
    %c0_i32_0 = arith.constant 0 : i32
    return %c0_i32, %arg0 : i32, i32
  }
}

module attributes {stable_mosaic.version = 11 : i64} {
  func.func @_convmm_kernel(%arg0: i32, %arg1: memref<144x256xbf16, #tpu.memory_space<vmem>>, %arg2: memref<3x144xbf16, #tpu.memory_space<vmem>>, %arg3: memref<3x1xf32, #tpu.memory_space<vmem>>, %arg4: memref<3x256xf32, #tpu.memory_space<vmem>>) attributes {dimension_semantics = [#tpu.dimension_semantics<parallel>], iteration_bounds = array<i64: 2>, scalar_prefetch = 0 : i64, scratch_operands = 0 : i64, tpu.core_type = #tpu.core_type<tc>, window_params = [{transform_indices = @transform_0, window_bounds = array<i64: 144, 256>}, {pipeline_mode = #tpu.pipeline_mode<synchronous>, transform_indices = @transform_1, window_bounds = array<i64: 3, 144>}, {pipeline_mode = #tpu.pipeline_mode<synchronous>, transform_indices = @transform_2, window_bounds = array<i64: 3, 1>}, {transform_indices = @transform_3, window_bounds = array<i64: 3, 256>}]} {
    %c0 = arith.constant 0 : index
    %c0_0 = arith.constant 0 : index
    %0 = vector.load %arg2[%c0, %c0_0] : memref<3x144xbf16, #tpu.memory_space<vmem>>, vector<3x144xbf16>
    %c0_1 = arith.constant 0 : index
    %c0_2 = arith.constant 0 : index
    %1 = vector.load %arg1[%c0_1, %c0_2] : memref<144x256xbf16, #tpu.memory_space<vmem>>, vector<144x256xbf16>
    %cst = arith.constant dense<0.000000e+00> : vector<3x256xf32>
    %2 = tpu.matmul %0, %1, %cst {dimension_numbers = #tpu.dot_dimension_numbers<[1], [0], [0], [1], [0, 0, 1, 1], [], []>} : vector<3x144xbf16>, vector<144x256xbf16>, vector<3x256xf32> -> vector<3x256xf32>
    %c0_3 = arith.constant 0 : index
    %c0_4 = arith.constant 0 : index
    %3 = vector.load %arg3[%c0_3, %c0_4] : memref<3x1xf32, #tpu.memory_space<vmem>>, vector<3x1xf32>
    %4 = vector.broadcast %3 : vector<3x1xf32> to vector<3x256xf32>
    %5 = arith.addf %2, %4 : vector<3x256xf32>
    %c0_5 = arith.constant 0 : index
    %c0_6 = arith.constant 0 : index
    %6 = vector.load %arg4[%c0_5, %c0_6] : memref<3x256xf32, #tpu.memory_space<vmem>>, vector<3x256xf32>
    tpu.vector_store %arg4[%c0_5, %c0_6], %5 {strides = array<i32>} : memref<3x256xf32, #tpu.memory_space<vmem>>, vector<3x256xf32>,
    return
  }
  func.func @transform_0(%arg0: i32) -> (i32, i32) {
    %c0_i32 = arith.constant 0 : i32
    %c0_i32_0 = arith.constant 0 : i32
    return %c0_i32, %arg0 : i32, i32
  }
  func.func @transform_1(%arg0: i32) -> (i32, i32) {
    %c0_i32 = arith.constant 0 : i32
    %c0_i32_0 = arith.constant 0 : i32
    %c0_i32_1 = arith.constant 0 : i32
    return %c0_i32, %c0_i32_0 : i32, i32
  }
  func.func @transform_2(%arg0: i32) -> (i32, i32) {
    %c0_i32 = arith.constant 0 : i32
    %c0_i32_0 = arith.constant 0 : i32
    %c0_i32_1 = arith.constant 0 : i32
    return %c0_i32, %c0_i32_0 : i32, i32
  }
  func.func @transform_3(%arg0: i32) -> (i32, i32) {
    %c0_i32 = arith.constant 0 : i32
    %c0_i32_0 = arith.constant 0 : i32
    return %c0_i32, %arg0 : i32, i32
  }
}

module attributes {stable_mosaic.version = 11 : i64} {
  func.func @_convmm_kernel(%arg0: i32, %arg1: memref<27x256xbf16, #tpu.memory_space<vmem>>, %arg2: memref<16x27xbf16, #tpu.memory_space<vmem>>, %arg3: memref<16x1xf32, #tpu.memory_space<vmem>>, %arg4: memref<16x256xf32, #tpu.memory_space<vmem>>) attributes {dimension_semantics = [#tpu.dimension_semantics<parallel>], iteration_bounds = array<i64: 2>, scalar_prefetch = 0 : i64, scratch_operands = 0 : i64, tpu.core_type = #tpu.core_type<tc>, window_params = [{transform_indices = @transform_0, window_bounds = array<i64: 27, 256>}, {pipeline_mode = #tpu.pipeline_mode<synchronous>, transform_indices = @transform_1, window_bounds = array<i64: 16, 27>}, {pipeline_mode = #tpu.pipeline_mode<synchronous>, transform_indices = @transform_2, window_bounds = array<i64: 16, 1>}, {transform_indices = @transform_3, window_bounds = array<i64: 16, 256>}]} {
    %c0 = arith.constant 0 : index
    %c0_0 = arith.constant 0 : index
    %0 = vector.load %arg2[%c0, %c0_0] : memref<16x27xbf16, #tpu.memory_space<vmem>>, vector<16x27xbf16>
    %c0_1 = arith.constant 0 : index
    %c0_2 = arith.constant 0 : index
    %1 = vector.load %arg1[%c0_1, %c0_2] : memref<27x256xbf16, #tpu.memory_space<vmem>>, vector<27x256xbf16>
    %cst = arith.constant dense<0.000000e+00> : vector<16x256xf32>
    %2 = tpu.matmul %0, %1, %cst {dimension_numbers = #tpu.dot_dimension_numbers<[1], [0], [0], [1], [0, 0, 1, 1], [], []>} : vector<16x27xbf16>, vector<27x256xbf16>, vector<16x256xf32> -> vector<16x256xf32>
    %c0_3 = arith.constant 0 : index
    %c0_4 = arith.constant 0 : index
    %3 = vector.load %arg3[%c0_3, %c0_4] : memref<16x1xf32, #tpu.memory_space<vmem>>, vector<16x1xf32>
    %4 = vector.broadcast %3 : vector<16x1xf32> to vector<16x256xf32>
    %5 = arith.addf %2, %4 : vector<16x256xf32>
    %cst_5 = arith.constant 0.000000e+00 : f32
    %6 = vector.broadcast %cst_5 : f32 to vector<16x256xf32>
    %7 = arith.maximumf %5, %6 : vector<16x256xf32>
    %c0_6 = arith.constant 0 : index
    %c0_7 = arith.constant 0 : index
    %8 = vector.load %arg4[%c0_6, %c0_7] : memref<16x256xf32, #tpu.memory_space<vmem>>, vector<16x256xf32>
    tpu.vector_store %arg4[%c0_6, %c0_7], %7 {strides = array<i32>} : memref<16x256xf32, #tpu.memory_space<vmem>>, vector<16x256xf32>,
    return
  }
  func.func @transform_0(%arg0: i32) -> (i32, i32) {
    %c0_i32 = arith.constant 0 : i32
    %c0_i32_0 = arith.constant 0 : i32
    return %c0_i32, %arg0 : i32, i32
  }
  func.func @transform_1(%arg0: i32) -> (i32, i32) {
    %c0_i32 = arith.constant 0 : i32
    %c0_i32_0 = arith.constant 0 : i32
    %c0_i32_1 = arith.constant 0 : i32
    return %c0_i32, %c0_i32_0 : i32, i32
  }
  func.func @transform_2(%arg0: i32) -> (i32, i32) {
    %c0_i32 = arith.constant 0 : i32
    %c0_i32_0 = arith.constant 0 : i32
    %c0_i32_1 = arith.constant 0 : i32
    return %c0_i32, %c0_i32_0 : i32, i32
  }
  func.func @transform_3(%arg0: i32) -> (i32, i32) {
    %c0_i32 = arith.constant 0 : i32
    %c0_i32_0 = arith.constant 0 : i32
    return %c0_i32, %arg0 : i32, i32
  }
}

module attributes {stable_mosaic.version = 11 : i64} {
  func.func @_convmm_kernel(%arg0: i32, %arg1: memref<144x128xbf16, #tpu.memory_space<vmem>>, %arg2: memref<32x144xbf16, #tpu.memory_space<vmem>>, %arg3: memref<32x1xf32, #tpu.memory_space<vmem>>, %arg4: memref<32x128xf32, #tpu.memory_space<vmem>>) attributes {dimension_semantics = [#tpu.dimension_semantics<parallel>], iteration_bounds = array<i64: 1>, scalar_prefetch = 0 : i64, scratch_operands = 0 : i64, tpu.core_type = #tpu.core_type<tc>, window_params = [{transform_indices = @transform_0, window_bounds = array<i64: 144, 128>}, {pipeline_mode = #tpu.pipeline_mode<synchronous>, transform_indices = @transform_1, window_bounds = array<i64: 32, 144>}, {pipeline_mode = #tpu.pipeline_mode<synchronous>, transform_indices = @transform_2, window_bounds = array<i64: 32, 1>}, {transform_indices = @transform_3, window_bounds = array<i64: 32, 128>}]} {
    %c0 = arith.constant 0 : index
    %c0_0 = arith.constant 0 : index
    %0 = vector.load %arg2[%c0, %c0_0] : memref<32x144xbf16, #tpu.memory_space<vmem>>, vector<32x144xbf16>
    %c0_1 = arith.constant 0 : index
    %c0_2 = arith.constant 0 : index
    %1 = vector.load %arg1[%c0_1, %c0_2] : memref<144x128xbf16, #tpu.memory_space<vmem>>, vector<144x128xbf16>
    %cst = arith.constant dense<0.000000e+00> : vector<32x128xf32>
    %2 = tpu.matmul %0, %1, %cst {dimension_numbers = #tpu.dot_dimension_numbers<[1], [0], [0], [1], [0, 0, 1, 1], [], []>} : vector<32x144xbf16>, vector<144x128xbf16>, vector<32x128xf32> -> vector<32x128xf32>
    %c0_3 = arith.constant 0 : index
    %c0_4 = arith.constant 0 : index
    %3 = vector.load %arg3[%c0_3, %c0_4] : memref<32x1xf32, #tpu.memory_space<vmem>>, vector<32x1xf32>
    %4 = vector.broadcast %3 : vector<32x1xf32> to vector<32x128xf32>
    %5 = arith.addf %2, %4 : vector<32x128xf32>
    %cst_5 = arith.constant 0.000000e+00 : f32
    %6 = vector.broadcast %cst_5 : f32 to vector<32x128xf32>
    %7 = arith.maximumf %5, %6 : vector<32x128xf32>
    %c0_6 = arith.constant 0 : index
    %c0_7 = arith.constant 0 : index
    %8 = vector.load %arg4[%c0_6, %c0_7] : memref<32x128xf32, #tpu.memory_space<vmem>>, vector<32x128xf32>
    tpu.vector_store %arg4[%c0_6, %c0_7], %7 {strides = array<i32>} : memref<32x128xf32, #tpu.memory_space<vmem>>, vector<32x128xf32>,
    return
  }
  func.func @transform_0(%arg0: i32) -> (i32, i32) {
    %c0_i32 = arith.constant 0 : i32
    %c0_i32_0 = arith.constant 0 : i32
    return %c0_i32, %arg0 : i32, i32
  }
  func.func @transform_1(%arg0: i32) -> (i32, i32) {
    %c0_i32 = arith.constant 0 : i32
    %c0_i32_0 = arith.constant 0 : i32
    %c0_i32_1 = arith.constant 0 : i32
    return %c0_i32, %c0_i32_0 : i32, i32
  }
  func.func @transform_2(%arg0: i32) -> (i32, i32) {
    %c0_i32 = arith.constant 0 : i32
    %c0_i32_0 = arith.constant 0 : i32
    %c0_i32_1 = arith.constant 0 : i32
    return %c0_i32, %c0_i32_0 : i32, i32
  }
  func.func @transform_3(%arg0: i32) -> (i32, i32) {
    %c0_i32 = arith.constant 0 : i32
    %c0_i32_0 = arith.constant 0 : i32
    return %c0_i32, %arg0 : i32, i32
  }
}

module attributes {stable_mosaic.version = 11 : i64} {
  func.func @_convmm_kernel(%arg0: i32, %arg1: memref<288x32xbf16, #tpu.memory_space<vmem>>, %arg2: memref<64x288xbf16, #tpu.memory_space<vmem>>, %arg3: memref<64x1xf32, #tpu.memory_space<vmem>>, %arg4: memref<64x32xf32, #tpu.memory_space<vmem>>) attributes {dimension_semantics = [#tpu.dimension_semantics<parallel>], iteration_bounds = array<i64: 1>, scalar_prefetch = 0 : i64, scratch_operands = 0 : i64, tpu.core_type = #tpu.core_type<tc>, window_params = [{transform_indices = @transform_0, window_bounds = array<i64: 288, 32>}, {pipeline_mode = #tpu.pipeline_mode<synchronous>, transform_indices = @transform_1, window_bounds = array<i64: 64, 288>}, {pipeline_mode = #tpu.pipeline_mode<synchronous>, transform_indices = @transform_2, window_bounds = array<i64: 64, 1>}, {transform_indices = @transform_3, window_bounds = array<i64: 64, 32>}]} {
    %c0 = arith.constant 0 : index
    %c0_0 = arith.constant 0 : index
    %0 = vector.load %arg2[%c0, %c0_0] : memref<64x288xbf16, #tpu.memory_space<vmem>>, vector<64x288xbf16>
    %c0_1 = arith.constant 0 : index
    %c0_2 = arith.constant 0 : index
    %1 = vector.load %arg1[%c0_1, %c0_2] : memref<288x32xbf16, #tpu.memory_space<vmem>>, vector<288x32xbf16>
    %cst = arith.constant dense<0.000000e+00> : vector<64x32xf32>
    %2 = tpu.matmul %0, %1, %cst {dimension_numbers = #tpu.dot_dimension_numbers<[1], [0], [0], [1], [0, 0, 1, 1], [], []>} : vector<64x288xbf16>, vector<288x32xbf16>, vector<64x32xf32> -> vector<64x32xf32>
    %c0_3 = arith.constant 0 : index
    %c0_4 = arith.constant 0 : index
    %3 = vector.load %arg3[%c0_3, %c0_4] : memref<64x1xf32, #tpu.memory_space<vmem>>, vector<64x1xf32>
    %4 = vector.broadcast %3 : vector<64x1xf32> to vector<64x32xf32>
    %5 = arith.addf %2, %4 : vector<64x32xf32>
    %cst_5 = arith.constant 0.000000e+00 : f32
    %6 = vector.broadcast %cst_5 : f32 to vector<64x32xf32>
    %7 = arith.maximumf %5, %6 : vector<64x32xf32>
    %c0_6 = arith.constant 0 : index
    %c0_7 = arith.constant 0 : index
    %8 = vector.load %arg4[%c0_6, %c0_7] : memref<64x32xf32, #tpu.memory_space<vmem>>, vector<64x32xf32>
    tpu.vector_store %arg4[%c0_6, %c0_7], %7 {strides = array<i32>} : memref<64x32xf32, #tpu.memory_space<vmem>>, vector<64x32xf32>,
    return
  }
  func.func @transform_0(%arg0: i32) -> (i32, i32) {
    %c0_i32 = arith.constant 0 : i32
    %c0_i32_0 = arith.constant 0 : i32
    return %c0_i32, %arg0 : i32, i32
  }
  func.func @transform_1(%arg0: i32) -> (i32, i32) {
    %c0_i32 = arith.constant 0 : i32
    %c0_i32_0 = arith.constant 0 : i32
    %c0_i32_1 = arith.constant 0 : i32
    return %c0_i32, %c0_i32_0 : i32, i32
  }
  func.func @transform_2(%arg0: i32) -> (i32, i32) {
    %c0_i32 = arith.constant 0 : i32
    %c0_i32_0 = arith.constant 0 : i32
    %c0_i32_1 = arith.constant 0 : i32
    return %c0_i32, %c0_i32_0 : i32, i32
  }
  func.func @transform_3(%arg0: i32) -> (i32, i32) {
    %c0_i32 = arith.constant 0 : i32
    %c0_i32_0 = arith.constant 0 : i32
    return %c0_i32, %arg0 : i32, i32
  }
}

module attributes {stable_mosaic.version = 11 : i64} {
  func.func @_maxpool_kernel(%arg0: i32, %arg1: memref<1x4x512xf32, #tpu.memory_space<vmem>>, %arg2: memref<1x512xf32, #tpu.memory_space<vmem>>) attributes {dimension_semantics = [#tpu.dimension_semantics<arbitrary>], iteration_bounds = array<i64: 1>, scalar_prefetch = 0 : i64, scratch_operands = 0 : i64, tpu.core_type = #tpu.core_type<tc>, window_params = [{pipeline_mode = #tpu.pipeline_mode<synchronous>, transform_indices = @transform_0, window_bounds = array<i64: 1, 4, 512>}, {pipeline_mode = #tpu.pipeline_mode<synchronous>, transform_indices = @transform_1, window_bounds = array<i64: 1, 512>}]} {
    %c0 = arith.constant 0 : index
    %c0_0 = arith.constant 0 : index
    %c0_1 = arith.constant 0 : index
    %0 = vector.load %arg1[%c0, %c0_0, %c0_1] : memref<1x4x512xf32, #tpu.memory_space<vmem>>, vector<1x4x512xf32>
    %cst = arith.constant dense<0xFF800000> : vector<1x512xf32>
    %1 = vector.multi_reduction <maximumf>, %0, %cst [1] : vector<1x4x512xf32> to vector<1x512xf32>
    %c0_2 = arith.constant 0 : index
    %c0_3 = arith.constant 0 : index
    %2 = vector.load %arg2[%c0_2, %c0_3] : memref<1x512xf32, #tpu.memory_space<vmem>>, vector<1x512xf32>
    tpu.vector_store %arg2[%c0_2, %c0_3], %1 {strides = array<i32>} : memref<1x512xf32, #tpu.memory_space<vmem>>, vector<1x512xf32>,
    return
  }
  func.func @transform_0(%arg0: i32) -> (i32, i32, i32) {
    %c0_i32 = arith.constant 0 : i32
    %c0_i32_0 = arith.constant 0 : i32
    %c0_i32_1 = arith.constant 0 : i32
    %c0_i32_2 = arith.constant 0 : i32
    return %c0_i32, %c0_i32_0, %c0_i32_1 : i32, i32, i32
  }
  func.func @transform_1(%arg0: i32) -> (i32, i32) {
    %c0_i32 = arith.constant 0 : i32
    %c0_i32_0 = arith.constant 0 : i32
    %c0_i32_1 = arith.constant 0 : i32
    return %c0_i32, %c0_i32_0 : i32, i32
  }
}

module attributes {stable_mosaic.version = 11 : i64} {
  func.func @_convmm_kernel(%arg0: i32, %arg1: memref<576x8xbf16, #tpu.memory_space<vmem>>, %arg2: memref<64x576xbf16, #tpu.memory_space<vmem>>, %arg3: memref<64x1xf32, #tpu.memory_space<vmem>>, %arg4: memref<64x8xf32, #tpu.memory_space<vmem>>) attributes {dimension_semantics = [#tpu.dimension_semantics<parallel>], iteration_bounds = array<i64: 1>, scalar_prefetch = 0 : i64, scratch_operands = 0 : i64, tpu.core_type = #tpu.core_type<tc>, window_params = [{transform_indices = @transform_0, window_bounds = array<i64: 576, 8>}, {pipeline_mode = #tpu.pipeline_mode<synchronous>, transform_indices = @transform_1, window_bounds = array<i64: 64, 576>}, {pipeline_mode = #tpu.pipeline_mode<synchronous>, transform_indices = @transform_2, window_bounds = array<i64: 64, 1>}, {transform_indices = @transform_3, window_bounds = array<i64: 64, 8>}]} {
    %c0 = arith.constant 0 : index
    %c0_0 = arith.constant 0 : index
    %0 = vector.load %arg2[%c0, %c0_0] : memref<64x576xbf16, #tpu.memory_space<vmem>>, vector<64x576xbf16>
    %c0_1 = arith.constant 0 : index
    %c0_2 = arith.constant 0 : index
    %1 = vector.load %arg1[%c0_1, %c0_2] : memref<576x8xbf16, #tpu.memory_space<vmem>>, vector<576x8xbf16>
    %cst = arith.constant dense<0.000000e+00> : vector<64x8xf32>
    %2 = tpu.matmul %0, %1, %cst {dimension_numbers = #tpu.dot_dimension_numbers<[1], [0], [0], [1], [0, 0, 1, 1], [], []>} : vector<64x576xbf16>, vector<576x8xbf16>, vector<64x8xf32> -> vector<64x8xf32>
    %c0_3 = arith.constant 0 : index
    %c0_4 = arith.constant 0 : index
    %3 = vector.load %arg3[%c0_3, %c0_4] : memref<64x1xf32, #tpu.memory_space<vmem>>, vector<64x1xf32>
    %4 = vector.broadcast %3 : vector<64x1xf32> to vector<64x8xf32>
    %5 = arith.addf %2, %4 : vector<64x8xf32>
    %cst_5 = arith.constant 0.000000e+00 : f32
    %6 = vector.broadcast %cst_5 : f32 to vector<64x8xf32>
    %7 = arith.maximumf %5, %6 : vector<64x8xf32>
    %c0_6 = arith.constant 0 : index
    %c0_7 = arith.constant 0 : index
    %8 = vector.load %arg4[%c0_6, %c0_7] : memref<64x8xf32, #tpu.memory_space<vmem>>, vector<64x8xf32>
    tpu.vector_store %arg4[%c0_6, %c0_7], %7 {strides = array<i32>} : memref<64x8xf32, #tpu.memory_space<vmem>>, vector<64x8xf32>,
    return
  }
  func.func @transform_0(%arg0: i32) -> (i32, i32) {
    %c0_i32 = arith.constant 0 : i32
    %c0_i32_0 = arith.constant 0 : i32
    return %c0_i32, %arg0 : i32, i32
  }
  func.func @transform_1(%arg0: i32) -> (i32, i32) {
    %c0_i32 = arith.constant 0 : i32
    %c0_i32_0 = arith.constant 0 : i32
    %c0_i32_1 = arith.constant 0 : i32
    return %c0_i32, %c0_i32_0 : i32, i32
  }
  func.func @transform_2(%arg0: i32) -> (i32, i32) {
    %c0_i32 = arith.constant 0 : i32
    %c0_i32_0 = arith.constant 0 : i32
    %c0_i32_1 = arith.constant 0 : i32
    return %c0_i32, %c0_i32_0 : i32, i32
  }
  func.func @transform_3(%arg0: i32) -> (i32, i32) {
    %c0_i32 = arith.constant 0 : i32
    %c0_i32_0 = arith.constant 0 : i32
    return %c0_i32, %arg0 : i32, i32
  }
}

module attributes {stable_mosaic.version = 11 : i64} {
  func.func @_loss_kernel(%arg0: i32, %arg1: memref<32x256xf32, #tpu.memory_space<vmem>>, %arg2: memref<32x256xf32, #tpu.memory_space<vmem>>, %arg3: memref<64x64xf32, #tpu.memory_space<vmem>>, %arg4: memref<64x64xf32, #tpu.memory_space<vmem>>, %arg5: memref<16x128xf32, #tpu.memory_space<vmem>>, %arg6: memref<16x128xf32, #tpu.memory_space<vmem>>, %arg7: memref<4x128xf32, #tpu.memory_space<vmem>>, %arg8: memref<4x128xf32, #tpu.memory_space<vmem>>, %arg9: memref<4x128xf32, #tpu.memory_space<vmem>>, %arg10: memref<1x128xf32, #tpu.memory_space<vmem>>, %arg11: memref<1x128xf32, #tpu.memory_space<vmem>>, %arg12: memref<1x1xf32, #tpu.memory_space<vmem>>, %arg13: memref<1x1xf32, #tpu.memory_space<vmem>>, %arg14: memref<1x1xf32, #tpu.memory_space<vmem>>) attributes {dimension_semantics = [#tpu.dimension_semantics<arbitrary>], iteration_bounds = array<i64: 1>, scalar_prefetch = 0 : i64, scratch_operands = 0 : i64, tpu.core_type = #tpu.core_type<tc>, window_params = [{pipeline_mode = #tpu.pipeline_mode<synchronous>, transform_indices = @transform_0, window_bounds = array<i64: 32, 256>}, {pipeline_mode = #tpu.pipeline_mode<synchronous>, transform_indices = @transform_1, window_bounds = array<i64: 32, 256>}, {pipeline_mode = #tpu.pipeline_mode<synchronous>, transform_indices = @transform_2, window_bounds = array<i64: 64, 64>}, {pipeline_mode = #tpu.pipeline_mode<synchronous>, transform_indices = @transform_3, window_bounds = array<i64: 64, 64>}, {pipeline_mode = #tpu.pipeline_mode<synchronous>, transform_indices = @transform_4, window_bounds = array<i64: 16, 128>}, {pipeline_mode = #tpu.pipeline_mode<synchronous>, transform_indices = @transform_5, window_bounds = array<i64: 16, 128>}, {pipeline_mode = #tpu.pipeline_mode<synchronous>, transform_indices = @transform_6, window_bounds = array<i64: 4, 128>}, {pipeline_mode = #tpu.pipeline_mode<synchronous>, transform_indices = @transform_7, window_bounds = array<i64: 4, 128>}, {pipeline_mode = #tpu.pipeline_mode<synchronous>, transform_indices = @transform_8, window_bounds = array<i64: 4, 128>}, {pipeline_mode = #tpu.pipeline_mode<synchronous>, transform_indices = @transform_9, window_bounds = array<i64: 1, 128>}, {pipeline_mode = #tpu.pipeline_mode<synchronous>, transform_indices = @transform_10, window_bounds = array<i64: 1, 128>}, {pipeline_mode = #tpu.pipeline_mode<synchronous>, transform_indices = @transform_11, window_bounds = array<i64: 1, 1>}, {pipeline_mode = #tpu.pipeline_mode<synchronous>, transform_indices = @transform_12, window_bounds = array<i64: 1, 1>}, {pipeline_mode = #tpu.pipeline_mode<synchronous>, transform_indices = @transform_13, window_bounds = array<i64: 1, 1>}]} {
    %c0 = arith.constant 0 : index
    %c0_0 = arith.constant 0 : index
    %0 = vector.load %arg1[%c0, %c0_0] : memref<32x256xf32, #tpu.memory_space<vmem>>, vector<32x256xf32>
    %cst = arith.constant dense<0.000000e+00> : vector<32xf32>
    %1 = vector.multi_reduction <add>, %0, %cst [1] : vector<32x256xf32> to vector<32xf32>
    %2 = vector.shape_cast %1 : vector<32xf32> to vector<32x1xf32>
    %cst_1 = arith.constant 2.560000e+02 : f32
    %3 = vector.broadcast %cst_1 : f32 to vector<32x1xf32>
    %4 = arith.divf %2, %3 : vector<32x1xf32>
    %5 = vector.broadcast %4 : vector<32x1xf32> to vector<32x256xf32>
    %6 = arith.subf %0, %5 : vector<32x256xf32>
    %7 = arith.mulf %6, %6 : vector<32x256xf32>
    %cst_2 = arith.constant dense<0.000000e+00> : vector<32xf32>
    %8 = vector.multi_reduction <add>, %7, %cst_2 [1] : vector<32x256xf32> to vector<32xf32>
    %9 = vector.shape_cast %8 : vector<32xf32> to vector<32x1xf32>
    %cst_3 = arith.constant 2.550000e+02 : f32
    %10 = vector.broadcast %cst_3 : f32 to vector<32x1xf32>
    %11 = arith.divf %9, %10 : vector<32x1xf32>
    %cst_4 = arith.constant 9.99999974E-6 : f32
    %12 = vector.broadcast %cst_4 : f32 to vector<32x1xf32>
    %13 = arith.addf %11, %12 : vector<32x1xf32>
    %14 = math.sqrt %13 : vector<32x1xf32>
    %c0_5 = arith.constant 0 : index
    %c0_6 = arith.constant 0 : index
    %15 = vector.load %arg2[%c0_5, %c0_6] : memref<32x256xf32, #tpu.memory_space<vmem>>, vector<32x256xf32>
    %cst_7 = arith.constant dense<0.000000e+00> : vector<32xf32>
    %16 = vector.multi_reduction <add>, %15, %cst_7 [1] : vector<32x256xf32> to vector<32xf32>
    %17 = vector.shape_cast %16 : vector<32xf32> to vector<32x1xf32>
    %cst_8 = arith.constant 2.560000e+02 : f32
    %18 = vector.broadcast %cst_8 : f32 to vector<32x1xf32>
    %19 = arith.divf %17, %18 : vector<32x1xf32>
    %20 = vector.broadcast %19 : vector<32x1xf32> to vector<32x256xf32>
    %21 = arith.subf %15, %20 : vector<32x256xf32>
    %22 = arith.mulf %21, %21 : vector<32x256xf32>
    %cst_9 = arith.constant dense<0.000000e+00> : vector<32xf32>
    %23 = vector.multi_reduction <add>, %22, %cst_9 [1] : vector<32x256xf32> to vector<32xf32>
    %24 = vector.shape_cast %23 : vector<32xf32> to vector<32x1xf32>
    %cst_10 = arith.constant 2.550000e+02 : f32
    %25 = vector.broadcast %cst_10 : f32 to vector<32x1xf32>
    %26 = arith.divf %24, %25 : vector<32x1xf32>
    %cst_11 = arith.constant 9.99999974E-6 : f32
    %27 = vector.broadcast %cst_11 : f32 to vector<32x1xf32>
    %28 = arith.addf %26, %27 : vector<32x1xf32>
    %29 = math.sqrt %28 : vector<32x1xf32>
    %30 = arith.subf %4, %19 : vector<32x1xf32>
    %31 = arith.mulf %30, %30 : vector<32x1xf32>
    %32 = vector.shape_cast %31 : vector<32x1xf32> to vector<1x32x1xf32>
    %cst_12 = arith.constant dense<0.000000e+00> : vector<1xf32>
    %33 = vector.multi_reduction <add>, %32, %cst_12 [1, 2] : vector<1x32x1xf32> to vector<1xf32>
    %34 = vector.shape_cast %33 : vector<1xf32> to vector<1x1x1xf32>
    %35 = vector.extract %34[0, 0, 0] : f32 from vector<1x1x1xf32>
    %cst_13 = arith.constant 3.200000e+01 : f32
    %36 = arith.divf %35, %cst_13 : f32
    %cst_14 = arith.constant 0.000000e+00 : f32
    %37 = arith.addf %cst_14, %36 : f32
    %38 = arith.subf %14, %29 : vector<32x1xf32>
    %39 = arith.mulf %38, %38 : vector<32x1xf32>
    %40 = vector.shape_cast %39 : vector<32x1xf32> to vector<1x32x1xf32>
    %cst_15 = arith.constant dense<0.000000e+00> : vector<1xf32>
    %41 = vector.multi_reduction <add>, %40, %cst_15 [1, 2] : vector<1x32x1xf32> to vector<1xf32>
    %42 = vector.shape_cast %41 : vector<1xf32> to vector<1x1x1xf32>
    %43 = vector.extract %42[0, 0, 0] : f32 from vector<1x1x1xf32>
    %cst_16 = arith.constant 3.200000e+01 : f32
    %44 = arith.divf %43, %cst_16 : f32
    %45 = arith.addf %37, %44 : f32
    %c0_17 = arith.constant 0 : index
    %c0_18 = arith.constant 0 : index
    %46 = vector.load %arg3[%c0_17, %c0_18] : memref<64x64xf32, #tpu.memory_space<vmem>>, vector<64x64xf32>
    %cst_19 = arith.constant dense<0.000000e+00> : vector<64xf32>
    %47 = vector.multi_reduction <add>, %46, %cst_19 [1] : vector<64x64xf32> to vector<64xf32>
    %48 = vector.shape_cast %47 : vector<64xf32> to vector<64x1xf32>
    %cst_20 = arith.constant 6.400000e+01 : f32
    %49 = vector.broadcast %cst_20 : f32 to vector<64x1xf32>
    %50 = arith.divf %48, %49 : vector<64x1xf32>
    %51 = vector.broadcast %50 : vector<64x1xf32> to vector<64x64xf32>
    %52 = arith.subf %46, %51 : vector<64x64xf32>
    %53 = arith.mulf %52, %52 : vector<64x64xf32>
    %cst_21 = arith.constant dense<0.000000e+00> : vector<64xf32>
    %54 = vector.multi_reduction <add>, %53, %cst_21 [1] : vector<64x64xf32> to vector<64xf32>
    %55 = vector.shape_cast %54 : vector<64xf32> to vector<64x1xf32>
    %cst_22 = arith.constant 6.300000e+01 : f32
    %56 = vector.broadcast %cst_22 : f32 to vector<64x1xf32>
    %57 = arith.divf %55, %56 : vector<64x1xf32>
    %cst_23 = arith.constant 9.99999974E-6 : f32
    %58 = vector.broadcast %cst_23 : f32 to vector<64x1xf32>
    %59 = arith.addf %57, %58 : vector<64x1xf32>
    %60 = math.sqrt %59 : vector<64x1xf32>
    %c0_24 = arith.constant 0 : index
    %c0_25 = arith.constant 0 : index
    %61 = vector.load %arg4[%c0_24, %c0_25] : memref<64x64xf32, #tpu.memory_space<vmem>>, vector<64x64xf32>
    %cst_26 = arith.constant dense<0.000000e+00> : vector<64xf32>
    %62 = vector.multi_reduction <add>, %61, %cst_26 [1] : vector<64x64xf32> to vector<64xf32>
    %63 = vector.shape_cast %62 : vector<64xf32> to vector<64x1xf32>
    %cst_27 = arith.constant 6.400000e+01 : f32
    %64 = vector.broadcast %cst_27 : f32 to vector<64x1xf32>
    %65 = arith.divf %63, %64 : vector<64x1xf32>
    %66 = vector.broadcast %65 : vector<64x1xf32> to vector<64x64xf32>
    %67 = arith.subf %61, %66 : vector<64x64xf32>
    %68 = arith.mulf %67, %67 : vector<64x64xf32>
    %cst_28 = arith.constant dense<0.000000e+00> : vector<64xf32>
    %69 = vector.multi_reduction <add>, %68, %cst_28 [1] : vector<64x64xf32> to vector<64xf32>
    %70 = vector.shape_cast %69 : vector<64xf32> to vector<64x1xf32>
    %cst_29 = arith.constant 6.300000e+01 : f32
    %71 = vector.broadcast %cst_29 : f32 to vector<64x1xf32>
    %72 = arith.divf %70, %71 : vector<64x1xf32>
    %cst_30 = arith.constant 9.99999974E-6 : f32
    %73 = vector.broadcast %cst_30 : f32 to vector<64x1xf32>
    %74 = arith.addf %72, %73 : vector<64x1xf32>
    %75 = math.sqrt %74 : vector<64x1xf32>
    %76 = arith.subf %50, %65 : vector<64x1xf32>
    %77 = arith.mulf %76, %76 : vector<64x1xf32>
    %78 = vector.shape_cast %77 : vector<64x1xf32> to vector<1x64x1xf32>
    %cst_31 = arith.constant dense<0.000000e+00> : vector<1xf32>
    %79 = vector.multi_reduction <add>, %78, %cst_31 [1, 2] : vector<1x64x1xf32> to vector<1xf32>
    %80 = vector.shape_cast %79 : vector<1xf32> to vector<1x1x1xf32>
    %81 = vector.extract %80[0, 0, 0] : f32 from vector<1x1x1xf32>
    %cst_32 = arith.constant 6.400000e+01 : f32
    %82 = arith.divf %81, %cst_32 : f32
    %83 = arith.addf %45, %82 : f32
    %84 = arith.subf %60, %75 : vector<64x1xf32>
    %85 = arith.mulf %84, %84 : vector<64x1xf32>
    %86 = vector.shape_cast %85 : vector<64x1xf32> to vector<1x64x1xf32>
    %cst_33 = arith.constant dense<0.000000e+00> : vector<1xf32>
    %87 = vector.multi_reduction <add>, %86, %cst_33 [1, 2] : vector<1x64x1xf32> to vector<1xf32>
    %88 = vector.shape_cast %87 : vector<1xf32> to vector<1x1x1xf32>
    %89 = vector.extract %88[0, 0, 0] : f32 from vector<1x1x1xf32>
    %cst_34 = arith.constant 6.400000e+01 : f32
    %90 = arith.divf %89, %cst_34 : f32
    %91 = arith.addf %83, %90 : f32
    %c0_35 = arith.constant 0 : index
    %c0_36 = arith.constant 0 : index
    %92 = vector.load %arg5[%c0_35, %c0_36] : memref<16x128xf32, #tpu.memory_space<vmem>>, vector<16x128xf32>
    %cst_37 = arith.constant dense<0.000000e+00> : vector<128xf32>
    %93 = vector.multi_reduction <add>, %92, %cst_37 [0] : vector<16x128xf32> to vector<128xf32>
    %94 = vector.shape_cast %93 : vector<128xf32> to vector<1x128xf32>
    %cst_38 = arith.constant 1.600000e+01 : f32
    %95 = vector.broadcast %cst_38 : f32 to vector<1x128xf32>
    %96 = arith.divf %94, %95 : vector<1x128xf32>
    %97 = vector.broadcast %96 : vector<1x128xf32> to vector<16x128xf32>
    %98 = arith.subf %92, %97 : vector<16x128xf32>
    %99 = arith.mulf %98, %98 : vector<16x128xf32>
    %cst_39 = arith.constant dense<0.000000e+00> : vector<128xf32>
    %100 = vector.multi_reduction <add>, %99, %cst_39 [0] : vector<16x128xf32> to vector<128xf32>
    %101 = vector.shape_cast %100 : vector<128xf32> to vector<1x128xf32>
    %cst_40 = arith.constant 1.500000e+01 : f32
    %102 = vector.broadcast %cst_40 : f32 to vector<1x128xf32>
    %103 = arith.divf %101, %102 : vector<1x128xf32>
    %cst_41 = arith.constant 9.99999974E-6 : f32
    %104 = vector.broadcast %cst_41 : f32 to vector<1x128xf32>
    %105 = arith.addf %103, %104 : vector<1x128xf32>
    %106 = math.sqrt %105 : vector<1x128xf32>
    %c0_42 = arith.constant 0 : index
    %c0_43 = arith.constant 0 : index
    %107 = vector.load %arg6[%c0_42, %c0_43] : memref<16x128xf32, #tpu.memory_space<vmem>>, vector<16x128xf32>
    %cst_44 = arith.constant dense<0.000000e+00> : vector<128xf32>
    %108 = vector.multi_reduction <add>, %107, %cst_44 [0] : vector<16x128xf32> to vector<128xf32>
    %109 = vector.shape_cast %108 : vector<128xf32> to vector<1x128xf32>
    %cst_45 = arith.constant 1.600000e+01 : f32
    %110 = vector.broadcast %cst_45 : f32 to vector<1x128xf32>
    %111 = arith.divf %109, %110 : vector<1x128xf32>
    %112 = vector.broadcast %111 : vector<1x128xf32> to vector<16x128xf32>
    %113 = arith.subf %107, %112 : vector<16x128xf32>
    %114 = arith.mulf %113, %113 : vector<16x128xf32>
    %cst_46 = arith.constant dense<0.000000e+00> : vector<128xf32>
    %115 = vector.multi_reduction <add>, %114, %cst_46 [0] : vector<16x128xf32> to vector<128xf32>
    %116 = vector.shape_cast %115 : vector<128xf32> to vector<1x128xf32>
    %cst_47 = arith.constant 1.500000e+01 : f32
    %117 = vector.broadcast %cst_47 : f32 to vector<1x128xf32>
    %118 = arith.divf %116, %117 : vector<1x128xf32>
    %cst_48 = arith.constant 9.99999974E-6 : f32
    %119 = vector.broadcast %cst_48 : f32 to vector<1x128xf32>
    %120 = arith.addf %118, %119 : vector<1x128xf32>
    %121 = math.sqrt %120 : vector<1x128xf32>
    %122 = arith.subf %96, %111 : vector<1x128xf32>
    %123 = arith.mulf %122, %122 : vector<1x128xf32>
    %124 = vector.shape_cast %123 : vector<1x128xf32> to vector<1x1x128xf32>
    %cst_49 = arith.constant dense<0.000000e+00> : vector<1xf32>
    %125 = vector.multi_reduction <add>, %124, %cst_49 [1, 2] : vector<1x1x128xf32> to vector<1xf32>
    %126 = vector.shape_cast %125 : vector<1xf32> to vector<1x1x1xf32>
    %127 = vector.extract %126[0, 0, 0] : f32 from vector<1x1x1xf32>
    %cst_50 = arith.constant 1.280000e+02 : f32
    %128 = arith.divf %127, %cst_50 : f32
    %129 = arith.addf %91, %128 : f32
    %130 = arith.subf %106, %121 : vector<1x128xf32>
    %131 = arith.mulf %130, %130 : vector<1x128xf32>
    %132 = vector.shape_cast %131 : vector<1x128xf32> to vector<1x1x128xf32>
    %cst_51 = arith.constant dense<0.000000e+00> : vector<1xf32>
    %133 = vector.multi_reduction <add>, %132, %cst_51 [1, 2] : vector<1x1x128xf32> to vector<1xf32>
    %134 = vector.shape_cast %133 : vector<1xf32> to vector<1x1x1xf32>
    %135 = vector.extract %134[0, 0, 0] : f32 from vector<1x1x1xf32>
    %cst_52 = arith.constant 1.280000e+02 : f32
    %136 = arith.divf %135, %cst_52 : f32
    %137 = arith.addf %129, %136 : f32
    %c0_53 = arith.constant 0 : index
    %c0_54 = arith.constant 0 : index
    %138 = vector.load %arg7[%c0_53, %c0_54] : memref<4x128xf32, #tpu.memory_space<vmem>>, vector<4x128xf32>
    %cst_55 = arith.constant dense<0.000000e+00> : vector<128xf32>
    %139 = vector.multi_reduction <add>, %138, %cst_55 [0] : vector<4x128xf32> to vector<128xf32>
    %140 = vector.shape_cast %139 : vector<128xf32> to vector<1x128xf32>
    %cst_56 = arith.constant 4.000000e+00 : f32
    %141 = vector.broadcast %cst_56 : f32 to vector<1x128xf32>
    %142 = arith.divf %140, %141 : vector<1x128xf32>
    %143 = vector.broadcast %142 : vector<1x128xf32> to vector<4x128xf32>
    %144 = arith.subf %138, %143 : vector<4x128xf32>
    %145 = arith.mulf %144, %144 : vector<4x128xf32>
    %cst_57 = arith.constant dense<0.000000e+00> : vector<128xf32>
    %146 = vector.multi_reduction <add>, %145, %cst_57 [0] : vector<4x128xf32> to vector<128xf32>
    %147 = vector.shape_cast %146 : vector<128xf32> to vector<1x128xf32>
    %cst_58 = arith.constant 3.000000e+00 : f32
    %148 = vector.broadcast %cst_58 : f32 to vector<1x128xf32>
    %149 = arith.divf %147, %148 : vector<1x128xf32>
    %cst_59 = arith.constant 9.99999974E-6 : f32
    %150 = vector.broadcast %cst_59 : f32 to vector<1x128xf32>
    %151 = arith.addf %149, %150 : vector<1x128xf32>
    %152 = math.sqrt %151 : vector<1x128xf32>
    %c0_60 = arith.constant 0 : index
    %c0_61 = arith.constant 0 : index
    %153 = vector.load %arg8[%c0_60, %c0_61] : memref<4x128xf32, #tpu.memory_space<vmem>>, vector<4x128xf32>
    %cst_62 = arith.constant dense<0.000000e+00> : vector<128xf32>
    %154 = vector.multi_reduction <add>, %153, %cst_62 [0] : vector<4x128xf32> to vector<128xf32>
    %155 = vector.shape_cast %154 : vector<128xf32> to vector<1x128xf32>
    %cst_63 = arith.constant 4.000000e+00 : f32
    %156 = vector.broadcast %cst_63 : f32 to vector<1x128xf32>
    %157 = arith.divf %155, %156 : vector<1x128xf32>
    %158 = vector.broadcast %157 : vector<1x128xf32> to vector<4x128xf32>
    %159 = arith.subf %153, %158 : vector<4x128xf32>
    %160 = arith.mulf %159, %159 : vector<4x128xf32>
    %cst_64 = arith.constant dense<0.000000e+00> : vector<128xf32>
    %161 = vector.multi_reduction <add>, %160, %cst_64 [0] : vector<4x128xf32> to vector<128xf32>
    %162 = vector.shape_cast %161 : vector<128xf32> to vector<1x128xf32>
    %cst_65 = arith.constant 3.000000e+00 : f32
    %163 = vector.broadcast %cst_65 : f32 to vector<1x128xf32>
    %164 = arith.divf %162, %163 : vector<1x128xf32>
    %cst_66 = arith.constant 9.99999974E-6 : f32
    %165 = vector.broadcast %cst_66 : f32 to vector<1x128xf32>
    %166 = arith.addf %164, %165 : vector<1x128xf32>
    %167 = math.sqrt %166 : vector<1x128xf32>
    %168 = arith.subf %142, %157 : vector<1x128xf32>
    %169 = arith.mulf %168, %168 : vector<1x128xf32>
    %170 = vector.shape_cast %169 : vector<1x128xf32> to vector<1x1x128xf32>
    %cst_67 = arith.constant dense<0.000000e+00> : vector<1xf32>
    %171 = vector.multi_reduction <add>, %170, %cst_67 [1, 2] : vector<1x1x128xf32> to vector<1xf32>
    %172 = vector.shape_cast %171 : vector<1xf32> to vector<1x1x1xf32>
    %173 = vector.extract %172[0, 0, 0] : f32 from vector<1x1x1xf32>
    %cst_68 = arith.constant 1.280000e+02 : f32
    %174 = arith.divf %173, %cst_68 : f32
    %175 = arith.addf %137, %174 : f32
    %176 = arith.subf %152, %167 : vector<1x128xf32>
    %177 = arith.mulf %176, %176 : vector<1x128xf32>
    %178 = vector.shape_cast %177 : vector<1x128xf32> to vector<1x1x128xf32>
    %cst_69 = arith.constant dense<0.000000e+00> : vector<1xf32>
    %179 = vector.multi_reduction <add>, %178, %cst_69 [1, 2] : vector<1x1x128xf32> to vector<1xf32>
    %180 = vector.shape_cast %179 : vector<1xf32> to vector<1x1x1xf32>
    %181 = vector.extract %180[0, 0, 0] : f32 from vector<1x1x1xf32>
    %cst_70 = arith.constant 1.280000e+02 : f32
    %182 = arith.divf %181, %cst_70 : f32
    %183 = arith.addf %175, %182 : f32
    %184 = vector.broadcast %183 : f32 to vector<1x1xf32>
    %c0_71 = arith.constant 0 : index
    %c0_72 = arith.constant 0 : index
    %185 = vector.load %arg14[%c0_71, %c0_72] : memref<1x1xf32, #tpu.memory_space<vmem>>, vector<1x1xf32>
    tpu.vector_store %arg14[%c0_71, %c0_72], %184 {strides = array<i32>} : memref<1x1xf32, #tpu.memory_space<vmem>>, vector<1x1xf32>,
    %c0_73 = arith.constant 0 : index
    %c0_74 = arith.constant 0 : index
    %186 = vector.load %arg11[%c0_73, %c0_74] : memref<1x128xf32, #tpu.memory_space<vmem>>, vector<1x128xf32>
    %187 = arith.subf %186, %157 : vector<1x128xf32>
    %188 = arith.mulf %187, %187 : vector<1x128xf32>
    %189 = vector.shape_cast %188 : vector<1x128xf32> to vector<1x1x128xf32>
    %cst_75 = arith.constant dense<0.000000e+00> : vector<1xf32>
    %190 = vector.multi_reduction <add>, %189, %cst_75 [1, 2] : vector<1x1x128xf32> to vector<1xf32>
    %191 = vector.shape_cast %190 : vector<1xf32> to vector<1x1x1xf32>
    %192 = vector.extract %191[0, 0, 0] : f32 from vector<1x1x1xf32>
    %cst_76 = arith.constant 1.280000e+02 : f32
    %193 = arith.divf %192, %cst_76 : f32
    %c0_77 = arith.constant 0 : index
    %c0_78 = arith.constant 0 : index
    %194 = vector.load %arg10[%c0_77, %c0_78] : memref<1x128xf32, #tpu.memory_space<vmem>>, vector<1x128xf32>
    %195 = arith.subf %194, %167 : vector<1x128xf32>
    %196 = arith.mulf %195, %195 : vector<1x128xf32>
    %197 = vector.shape_cast %196 : vector<1x128xf32> to vector<1x1x128xf32>
    %cst_79 = arith.constant dense<0.000000e+00> : vector<1xf32>
    %198 = vector.multi_reduction <add>, %197, %cst_79 [1, 2] : vector<1x1x128xf32> to vector<1xf32>
    %199 = vector.shape_cast %198 : vector<1xf32> to vector<1x1x1xf32>
    %200 = vector.extract %199[0, 0, 0] : f32 from vector<1x1x1xf32>
    %cst_80 = arith.constant 1.280000e+02 : f32
    %201 = arith.divf %200, %cst_80 : f32
    %202 = arith.addf %193, %201 : f32
    %203 = vector.broadcast %202 : f32 to vector<1x1xf32>
    %c0_81 = arith.constant 0 : index
    %c0_82 = arith.constant 0 : index
    %204 = vector.load %arg12[%c0_81, %c0_82] : memref<1x1xf32, #tpu.memory_space<vmem>>, vector<1x1xf32>
    tpu.vector_store %arg12[%c0_81, %c0_82], %203 {strides = array<i32>} : memref<1x1xf32, #tpu.memory_space<vmem>>, vector<1x1xf32>,
    %c0_83 = arith.constant 0 : index
    %c0_84 = arith.constant 0 : index
    %205 = vector.load %arg7[%c0_83, %c0_84] : memref<4x128xf32, #tpu.memory_space<vmem>>, vector<4x128xf32>
    %c0_85 = arith.constant 0 : index
    %c0_86 = arith.constant 0 : index
    %206 = vector.load %arg9[%c0_85, %c0_86] : memref<4x128xf32, #tpu.memory_space<vmem>>, vector<4x128xf32>
    %207 = arith.subf %205, %206 : vector<4x128xf32>
    %208 = arith.mulf %207, %207 : vector<4x128xf32>
    %209 = vector.shape_cast %208 : vector<4x128xf32> to vector<1x4x128xf32>
    %cst_87 = arith.constant dense<0.000000e+00> : vector<1xf32>
    %210 = vector.multi_reduction <add>, %209, %cst_87 [1, 2] : vector<1x4x128xf32> to vector<1xf32>
    %211 = vector.shape_cast %210 : vector<1xf32> to vector<1x1x1xf32>
    %212 = vector.extract %211[0, 0, 0] : f32 from vector<1x1x1xf32>
    %cst_88 = arith.constant 5.120000e+02 : f32
    %213 = arith.divf %212, %cst_88 : f32
    %214 = vector.broadcast %213 : f32 to vector<1x1xf32>
    %c0_89 = arith.constant 0 : index
    %c0_90 = arith.constant 0 : index
    %215 = vector.load %arg13[%c0_89, %c0_90] : memref<1x1xf32, #tpu.memory_space<vmem>>, vector<1x1xf32>
    tpu.vector_store %arg13[%c0_89, %c0_90], %214 {strides = array<i32>} : memref<1x1xf32, #tpu.memory_space<vmem>>, vector<1x1xf32>,
    return
  }
  func.func @transform_0(%arg0: i32) -> (i32, i32) {
    %c0_i32 = arith.constant 0 : i32
    %c0_i32_0 = arith.constant 0 : i32
    %c0_i32_1 = arith.constant 0 : i32
    return %c0_i32, %c0_i32_0 : i32, i32
  }
  func.func @transform_1(%arg0: i32) -> (i32, i32) {
    %c0_i32 = arith.constant 0 : i32
    %c0_i32_0 = arith.constant 0 : i32
    %c0_i32_1 = arith.constant 0 : i32
    return %c0_i32, %c0_i32_0 : i32, i32
  }
  func.func @transform_2(%arg0: i32) -> (i32, i32) {
    %c0_i32 = arith.constant 0 : i32
    %c0_i32_0 = arith.constant 0 : i32
    %c0_i32_1 = arith.constant 0 : i32
    return %c0_i32, %c0_i32_0 : i32, i32
  }
  func.func @transform_3(%arg0: i32) -> (i32, i32) {
    %c0_i32 = arith.constant 0 : i32
    %c0_i32_0 = arith.constant 0 : i32
    %c0_i32_1 = arith.constant 0 : i32
    return %c0_i32, %c0_i32_0 : i32, i32
  }
  func.func @transform_4(%arg0: i32) -> (i32, i32) {
    %c0_i32 = arith.constant 0 : i32
    %c0_i32_0 = arith.constant 0 : i32
    %c0_i32_1 = arith.constant 0 : i32
    return %c0_i32, %c0_i32_0 : i32, i32
  }
  func.func @transform_5(%arg0: i32) -> (i32, i32) {
    %c0_i32 = arith.constant 0 : i32
    %c0_i32_0 = arith.constant 0 : i32
    %c0_i32_1 = arith.constant 0 : i32
    return %c0_i32, %c0_i32_0 : i32, i32
  }
  func.func @transform_6(%arg0: i32) -> (i32, i32) {
    %c0_i32 = arith.constant 0 : i32
    %c0_i32_0 = arith.constant 0 : i32
    %c0_i32_1 = arith.constant 0 : i32
    return %c0_i32, %c0_i32_0 : i32, i32
  }
  func.func @transform_7(%arg0: i32) -> (i32, i32) {
    %c0_i32 = arith.constant 0 : i32
    %c0_i32_0 = arith.constant 0 : i32
    %c0_i32_1 = arith.constant 0 : i32
    return %c0_i32, %c0_i32_0 : i32, i32
  }
  func.func @transform_8(%arg0: i32) -> (i32, i32) {
    %c0_i32 = arith.constant 0 : i32
    %c0_i32_0 = arith.constant 0 : i32
    %c0_i32_1 = arith.constant 0 : i32
    return %c0_i32, %c0_i32_0 : i32, i32
  }
  func.func @transform_9(%arg0: i32) -> (i32, i32) {
    %c0_i32 = arith.constant 0 : i32
    %c0_i32_0 = arith.constant 0 : i32
    %c0_i32_1 = arith.constant 0 : i32
    return %c0_i32, %c0_i32_0 : i32, i32
  }
  func.func @transform_10(%arg0: i32) -> (i32, i32) {
    %c0_i32 = arith.constant 0 : i32
    %c0_i32_0 = arith.constant 0 : i32
    %c0_i32_1 = arith.constant 0 : i32
    return %c0_i32, %c0_i32_0 : i32, i32
  }
  func.func @transform_11(%arg0: i32) -> (i32, i32) {
    %c0_i32 = arith.constant 0 : i32
    %c0_i32_0 = arith.constant 0 : i32
    %c0_i32_1 = arith.constant 0 : i32
    return %c0_i32, %c0_i32_0 : i32, i32
  }
  func.func @transform_12(%arg0: i32) -> (i32, i32) {
    %c0_i32 = arith.constant 0 : i32
    %c0_i32_0 = arith.constant 0 : i32
    %c0_i32_1 = arith.constant 0 : i32
    return %c0_i32, %c0_i32_0 : i32, i32
  }
  func.func @transform_13(%arg0: i32) -> (i32, i32) {
    %c0_i32 = arith.constant 0 : i32
    %c0_i32_0 = arith.constant 0 : i32
    %c0_i32_1 = arith.constant 0 : i32
    return %c0_i32, %c0_i32_0 : i32, i32
  }
}

</mosaic_0001>

<llo_original>
// kernel: net_forward.20
$region0: #{net_forward.20}
  #allocation0 [shape = 'u32[]', space=smem, size = 0x4, offset = 0x4, fixed_abs, tag = 'smem constant byte address 0x4 - core index']
  #allocation1 [shape = 'u32[72,128]{1,0:T(1,128)}', space=vmem, size = 0x9000, scoped, tag = 'internal scratch']
  %s0 = inlined_call_operand.vmem [shape: bf16[27,1024], index: 0, kind: input, shape index: {}]
  %s1 = inlined_call_operand.vmem [shape: bf16[16,27], index: 1, kind: input, shape index: {}]
  %s2 = inlined_call_operand.vmem [shape: f32[16,1], index: 2, kind: input, shape index: {}]
  %s3 = inlined_call_operand.vmem [shape: f32[16,1024], index: 3, kind: output, shape index: {}]
  %s4 = sld [smem:[#allocation0]]
  $region87: #{net_forward.20} parent=0
    _
  %s6 = ssub.s32 1, %s4
  %s7 = scalar_select 0, %s6, %s4
  $region1: #{net_forward.20} parent=0
    #allocation2 [shape = 'u8[65536]{0}', space=vmem, size = 0x10000, scoped, tag = 'input window, operand 0']
    #allocation3 [shape = 'u8[65536]{0}', space=vmem, size = 0x10000, scoped, tag = 'output window, operand 0']
    loop: start=0, step=1, limit=4
    $region2: #{net_forward.20} parent=1 // loop_pre_header
      _
    $region3: #{net_forward.20} parent=1 // loop_header
      %s9 = sphi 0, %s13
      %p10 = scmp.ge.s32.totalorder %s9, 4
      %s19 = sphi 0, %s21
      %s22 = sphi 0, %s19
      %s23 = sphi 0, %s22
      %s39 = sphi 0, %s23
      %s43 = sphi 0, %s43
      %s45 = sphi 0, %s43
      %s46 = sphi 0, %s45
      %s60 = sphi 0, %s46
      %s64 = sphi 0, %s64
      %s66 = sphi 0, %s64
      %s67 = sphi 0, %s66
      %s81 = sphi 0, %s67
      %s87 = sphi 0, %s89
      %s90 = sphi 0, %s87
      %s91 = sphi 0, %s90
      %s107 = sphi 0, %s91
    $region4: #{net_forward.20} parent=1 // loop_header_branch
      %12 = sbr.rel (%p10) target = $region8
    $region5: #{net_forward.20} parent=1 // loop_body
      %s14 = ssub.s32 %s9, 1
      %s15 = ssub.s32 %s9, 2
      %s16 = sadd.s32 %s9, 1
      %s17 = ssub.s32 %s9, %s16
      %p18 = scmp.eq.s32.totalorder %s17, 0
      %s20 = sadd.s32 %s19, 1
      %s21 = scalar_select %p18, %s19, %s20
      %p24 = pneg %p18
      %p25 = scmp.eq.s32.totalorder %s9, 1
      %p26 = por %p24, %p25
      %p27 = scmp.ne.s32.totalorder %s19, %s22
      %p28 = scmp.eq.s32.totalorder %s9, 0
      %p29 = por %p27, %p28
      %p30 = scmp.ne.s32.totalorder %s19, %s22
      %p31 = scmp.eq.s32.totalorder %s14, 1
      %p32 = por %p30, %p31
      %p33 = scmp.ne.s32.totalorder %s22, %s23
      %p34 = scmp.eq.s32.totalorder %s14, 0
      %p35 = por %p33, %p34
      %p36 = scmp.ne.s32.totalorder %s22, %s23
      %p37 = scmp.eq.s32.totalorder %s15, 1
      %p38 = por %p36, %p37
      %p40 = scmp.ne.s32.totalorder %s23, %s39
      %p41 = scmp.eq.s32.totalorder %s15, 0
      %p42 = por %p40, %p41
      %s44 = sadd.s32 %s43, 1
      %p47 = scmp.eq.s32.totalorder %s9, 1
      %p48 = scmp.ne.s32.totalorder %s43, %s45
      %p49 = scmp.eq.s32.totalorder %s9, 0
      %p50 = por %p48, %p49
      %p51 = scmp.ne.s32.totalorder %s43, %s45
      %p52 = scmp.eq.s32.totalorder %s14, 1
      %p53 = por %p51, %p52
      %p54 = scmp.ne.s32.totalorder %s45, %s46
      %p55 = scmp.eq.s32.totalorder %s14, 0
      %p56 = por %p54, %p55
      %p57 = scmp.ne.s32.totalorder %s45, %s46
      %p58 = scmp.eq.s32.totalorder %s15, 1
      %p59 = por %p57, %p58
      %p61 = scmp.ne.s32.totalorder %s46, %s60
      %p62 = scmp.eq.s32.totalorder %s15, 0
      %p63 = por %p61, %p62
      %s65 = sadd.s32 %s64, 1
      %p68 = scmp.eq.s32.totalorder %s9, 1
      %p69 = scmp.ne.s32.totalorder %s64, %s66
      %p70 = scmp.eq.s32.totalorder %s9, 0
      %p71 = por %p69, %p70
      %p72 = scmp.ne.s32.totalorder %s64, %s66
      %p73 = scmp.eq.s32.totalorder %s14, 1
      %p74 = por %p72, %p73
      %p75 = scmp.ne.s32.totalorder %s66, %s67
      %p76 = scmp.eq.s32.totalorder %s14, 0
      %p77 = por %p75, %p76
      %p78 = scmp.ne.s32.totalorder %s66, %s67
      %p79 = scmp.eq.s32.totalorder %s15, 1
      %p80 = por %p78, %p79
      %p82 = scmp.ne.s32.totalorder %s67, %s81
      %p83 = scmp.eq.s32.totalorder %s15, 0
      %p84 = por %p82, %p83
      %s85 = ssub.s32 %s9, %s16
      %p86 = scmp.eq.s32.totalorder %s85, 0
      %s88 = sadd.s32 %s87, 1
      %s89 = scalar_select %p86, %s87, %s88
      %p92 = pneg %p86
      %p93 = scmp.eq.s32.totalorder %s9, 1
      %p94 = por %p92, %p93
      %p95 = scmp.ne.s32.totalorder %s87, %s90
      %p96 = scmp.eq.s32.totalorder %s9, 0
      %p97 = por %p95, %p96
      %p98 = scmp.ne.s32.totalorder %s87, %s90
      %p99 = scmp.eq.s32.totalorder %s14, 1
      %p100 = por %p98, %p99
      %p101 = scmp.ne.s32.totalorder %s90, %s91
      %p102 = scmp.eq.s32.totalorder %s14, 0
      %p103 = por %p101, %p102
      %p104 = scmp.ne.s32.totalorder %s90, %s91
      %p105 = scmp.eq.s32.totalorder %s15, 1
      %p106 = por %p104, %p105
      %p108 = scmp.ne.s32.totalorder %s91, %s107
      %p109 = scmp.eq.s32.totalorder %s15, 0
      %p110 = por %p108, %p109
      %p111 = scmp.le.s32.totalorder 1, %s9
      %p112 = scmp.lt.s32.totalorder %s9, 3
      %p113 = pnand %p111, %p112
      %p114 = pneg %p113
      // Predicated region
      $region9: #{net_forward.20} parent=5 // pred_check
        _
      $region10: #{net_forward.20} parent=5 // pred_check_branch
        %116 = sbr.rel (%p113) target = $region12
      $region11: #{net_forward.20} parent=5 // pred_region
        %s117 = ssub.s32 %s9, 1
        // Predicated region
        $region13: #{net_forward.20} parent=11 // pred_check
          %p118 = pneg %p56
        $region14: #{net_forward.20} parent=11 // pred_check_branch
          %120 = sbr.rel (%p118) target = $region16
        $region15: #{net_forward.20} parent=11 // pred_region
          _
        $region16: #{net_forward.20} parent=11 // pred_fallthru
          _
        // Predicated region
        $region17: #{net_forward.20} parent=11 // pred_check
          %p121 = pneg %p77
        $region18: #{net_forward.20} parent=11 // pred_check_branch
          %123 = sbr.rel (%p121) target = $region20
        $region19: #{net_forward.20} parent=11 // pred_region
          _
        $region20: #{net_forward.20} parent=11 // pred_fallthru
          _
      $region12: #{net_forward.20} parent=5 // pred_fallthru
        _
      %p124 = scmp.lt.s32.totalorder %s9, 2
      // Predicated region
      $region21: #{net_forward.20} parent=5 // pred_check
        %p125 = pneg %p124
      $region22: #{net_forward.20} parent=5 // pred_check_branch
        %127 = sbr.rel (%p125) target = $region24
      $region23: #{net_forward.20} parent=5 // pred_region
        // Predicated region
        $region25: #{net_forward.20} parent=23 // pred_check
          %p128 = pneg %p29
        $region26: #{net_forward.20} parent=23 // pred_check_branch
          %130 = sbr.rel (%p128) target = $region28
        $region27: #{net_forward.20} parent=23 // pred_region
          %s131 = sand.u32 %s19, 1
          %s132 = sand.u32 %s19, 1
          %s133 = smul.addr %s132, 64
          %s134 = scalar_lea.vmem [#allocation2], %s133
          %s135 = smul.u32 4, %s9
          %s136 = smul.addr %s135, 4
          %s137 = scalar_lea.vmem %s0, %s136
          // Predicated region
          $region29: #{net_forward.20} parent=27 // pred_check
            _
          $region30: #{net_forward.20} parent=27 // pred_check_branch
            %139 = sbr.rel (0) target = $region32
          $region31: #{net_forward.20} parent=27 // pred_region
            // Predicated region
            $region33: #{net_forward.20} parent=31 // pred_check
              _
            $region34: #{net_forward.20} parent=31 // pred_check_branch
              %141 = sbr.rel (0) target = $region36
            $region35: #{net_forward.20} parent=31 // pred_region
              loop: start=0, step=1, limit=1
              $region37: #{net_forward.20} parent=35 // loop_pre_header
                _
              $region38: #{net_forward.20} parent=35 // loop_header
                %s143 = sphi 0, %s147
                %p144 = scmp.ge.s32.totalorder %s143, 1
                %s148 = sphi %s137, %s137
                %s149 = sphi %s134, %s134
              $region39: #{net_forward.20} parent=35 // loop_header_branch
                %146 = sbr.rel (%p144) target = $region43
              $region40: #{net_forward.20} parent=35 // loop_body
                %v150 = vld [vmem:[%s148] sm:$0xff]
                %151 = vst [vmem:[%s149] sm:$0xff] %v150
                %v152 = vld [vmem:[%s148 + $0x8] sm:$0xff]
                %153 = vst [vmem:[%s149 + $0x8] sm:$0xff] %v152
                %v154 = vld [vmem:[%s148 + $0x20] sm:$0xff]
                %155 = vst [vmem:[%s149 + $0x10] sm:$0xff] %v154
                %v156 = vld [vmem:[%s148 + $0x28] sm:$0xff]
                %157 = vst [vmem:[%s149 + $0x18] sm:$0xff] %v156
                %v158 = vld [vmem:[%s148 + $0x40] sm:$0xff]
                %159 = vst [vmem:[%s149 + $0x20] sm:$0xff] %v158
                %v160 = vld [vmem:[%s148 + $0x48] sm:$0xff]
                %161 = vst [vmem:[%s149 + $0x28] sm:$0xff] %v160
                %v162 = vld [vmem:[%s148 + $0x60] sm:$0xff]
                %163 = vst [vmem:[%s149 + $0x30] sm:$0xff] %v162
                %v164 = vld [vmem:[%s148 + $0x68] sm:$0xff]
                %165 = vst [vmem:[%s149 + $0x38] sm:$0xff] %v164
              $region41: #{net_forward.20} parent=35 // loop_footer
                %s147 = sadd.s32 1, %s143
              $region42: #{net_forward.20} parent=35 // loop_footer_branch
                %142 = sbr.rel target = $region38
              $region43: #{net_forward.20} parent=35 // loop_exit
                _
            $region36: #{net_forward.20} parent=31 // pred_fallthru
              _
            // Predicated region
            $region44: #{net_forward.20} parent=31 // pred_check
              _
            $region45: #{net_forward.20} parent=31 // pred_check_branch
              %167 = sbr.rel target = $region47
            $region46: #{net_forward.20} parent=31 // pred_region
              _
            $region47: #{net_forward.20} parent=31 // pred_fallthru
              _
          $region32: #{net_forward.20} parent=27 // pred_fallthru
            _
          %168 = vnop
        $region28: #{net_forward.20} parent=23 // pred_fallthru
          _
      $region24: #{net_forward.20} parent=5 // pred_fallthru
        _
      %p169 = scmp.le.s32.totalorder 1, %s9
      %p170 = scmp.lt.s32.totalorder %s9, 3
      %p171 = pnand %p169, %p170
      %p172 = pneg %p171
      // Predicated region
      $region48: #{net_forward.20} parent=5 // pred_check
        _
      $region49: #{net_forward.20} parent=5 // pred_check_branch
        %174 = sbr.rel (%p171) target = $region51
      $region50: #{net_forward.20} parent=5 // pred_region
        %s175 = ssub.s32 %s9, 1
        %s176 = sand.u32 %s22, 1
        %s177 = sand.u32 %s22, 1
        %s178 = smul.addr %s177, 64
        %s179 = scalar_lea.vmem [#allocation2], %s178
        // Predicated region
        $region52: #{net_forward.20} parent=50 // pred_check
          %p180 = pneg %p35
        $region53: #{net_forward.20} parent=50 // pred_check_branch
          %182 = sbr.rel (%p180) target = $region55
        $region54: #{net_forward.20} parent=50 // pred_region
          _
        $region55: #{net_forward.20} parent=50 // pred_fallthru
          _
        %s183 = sand.u32 %s22, 1
        %s184 = sand.u32 %s22, 1
        %s185 = smul.addr %s184, 64
        %s186 = scalar_lea.vmem [#allocation2], %s185
        %p187 = pneg %p35
        %p188 = pneg %p32
        %p189 = pneg %p56
        %p190 = pneg %p53
        %p191 = pneg %p77
        %p192 = pneg %p74
        %p193 = pneg %p103
        %p194 = pneg %p100
        %s195 = sand.u32 %s90, 1
        %s196 = sand.u32 %s90, 1
        %s197 = smul.addr %s196, 64
        %s198 = scalar_lea.vmem [#allocation3], %s197
        %s199 = smul.u32 4, %s14
        %s200 = smul.u32 4, %s14
        %v202 = vld [vmem:[%s1] sm:$0xf]
        %v203 = vld [vmem:[%s1 + $0x4] sm:$0xf]
        %v204 = vld [vmem:[%s179] sm:$0xff]
        %v205 = vld [vmem:[%s179 + $0x8] sm:$0xff]
        %v206 = vld [vmem:[%s179 + $0x10] sm:$0xff]
        %v207 = vld [vmem:[%s179 + $0x18] sm:$0xff]
        %v208 = vld [vmem:[%s179 + $0x20] sm:$0xff]
        %v209 = vld [vmem:[%s179 + $0x28] sm:$0xff]
        %v210 = vld [vmem:[%s179 + $0x30] sm:$0x33]
        %v211 = vld [vmem:[%s179 + $0x38] sm:$0x33]
        %v212 = vld [vmem:[%s2] sm:$0xff]
        %v213 = vld [vmem:[%s2 + $0x8] sm:$0xff]
        %215 = vset.pattern.permute.xlu0 0
        %216 = vperm.xlu0 %215, %v212
        %v217 = vpop.permute.xlu0 %216
        %220 = vset.pattern.permute.xlu0 0
        %221 = vperm.xlu0 %220, %v213
        %v222 = vpop.permute.xlu0 %221
        %v226 = vunpack.c.l.b16 %v202
        %v227 = vunpack.c.l.b16 %v203
        %v228 = vpack.c.b16 %v227, %v226
        %v237 = vunpack.c.l.b16 %v204
        %v238 = vunpack.c.h.b16 %v204
        %v239 = vunpack.c.l.b16 %v205
        %v240 = vunpack.c.h.b16 %v205
        %v241 = vunpack.c.l.b16 %v206
        %v242 = vunpack.c.h.b16 %v206
        %v243 = vunpack.c.l.b16 %v207
        %v244 = vunpack.c.h.b16 %v207
        %v245 = vunpack.c.l.b16 %v208
        %v246 = vunpack.c.h.b16 %v208
        %v247 = vunpack.c.l.b16 %v209
        %v248 = vunpack.c.h.b16 %v209
        %v249 = vunpack.c.l.b16 %v210
        %v250 = vunpack.c.h.b16 %v210
        %v251 = vunpack.c.l.b16 %v211
        %v252 = vunpack.c.h.b16 %v211
        %v253 = vpack.c.b16 %v241, %v237
        %v254 = vpack.c.b16 %v242, %v238
        %v255 = vpack.c.b16 %v243, %v239
        %v256 = vpack.c.b16 %v244, %v240
        %v257 = vpack.c.b16 %v249, %v245
        %v258 = vpack.c.b16 %v250, %v246
        %v259 = vpack.c.b16 %v251, %v247
        %v260 = vpack.c.b16 %v252, %v248
        %vm265 = vcmask 220160
        %v267 = vsel %vm265, %v228, 0
        %vm269 = vcmask 1044480
        %vm270 = vcmask 1045504
        %v271 = vsel %vm269, 4294967295, 65535
        %v272 = vsel %vm270, %v271, 0
        %v274 = vand.u32 %v257, %v272
        %v277 = vand.u32 %v258, %v272
        %v280 = vand.u32 %v259, %v272
        %v283 = vand.u32 %v260, %v272
        %285 = vmatpush.bf16.msra.mxu0 0
        %286 = vmatpush.bf16.msra.mxu0 0
        %287 = vmatpush.bf16.msra.mxu0 0
        %288 = vmatpush.bf16.msra.mxu0 0
        %289 = vmatpush.bf16.msra.mxu0 0
        %290 = vmatpush.bf16.msra.mxu0 0
        %291 = vmatpush.bf16.msra.mxu0 %v274
        %292 = vmatpush.bf16.msra.mxu0 %v253
        %293 = vmatmul.bf16.gmra.mxu0 %v267
        %v294 = vpop.f32.mrf.mxu0
        %v295 = vadd.f32 %v217, %v294
        %v296 = vpop.f32.mrf.mxu0
        %v297 = vadd.f32 %v222, %v296
        %298 = vdwg.mxu0
        %299 = vmatpush.bf16.msra.mxu0 0
        %300 = vmatpush.bf16.msra.mxu0 0
        %301 = vmatpush.bf16.msra.mxu0 0
        %302 = vmatpush.bf16.msra.mxu0 0
        %303 = vmatpush.bf16.msra.mxu0 0
        %304 = vmatpush.bf16.msra.mxu0 0
        %305 = vmatpush.bf16.msra.mxu0 %v277
        %306 = vmatpush.bf16.msra.mxu0 %v254
        %307 = vmatmul.bf16.gmra.mxu0 %v267
        %v308 = vpop.f32.mrf.mxu0
        %v309 = vadd.f32 %v217, %v308
        %v310 = vpop.f32.mrf.mxu0
        %v311 = vadd.f32 %v222, %v310
        %312 = vdwg.mxu0
        %313 = vmatpush.bf16.msra.mxu0 0
        %314 = vmatpush.bf16.msra.mxu0 0
        %315 = vmatpush.bf16.msra.mxu0 0
        %316 = vmatpush.bf16.msra.mxu0 0
        %317 = vmatpush.bf16.msra.mxu0 0
        %318 = vmatpush.bf16.msra.mxu0 0
        %319 = vmatpush.bf16.msra.mxu0 %v280
        %320 = vmatpush.bf16.msra.mxu0 %v255
        %321 = vmatmul.bf16.gmra.mxu0 %v267
        %v322 = vpop.f32.mrf.mxu0
        %v323 = vadd.f32 %v217, %v322
        %v324 = vpop.f32.mrf.mxu0
        %v325 = vadd.f32 %v222, %v324
        %326 = vdwg.mxu0
        %327 = vmatpush.bf16.msra.mxu0 0
        %328 = vmatpush.bf16.msra.mxu0 0
        %329 = vmatpush.bf16.msra.mxu0 0
        %330 = vmatpush.bf16.msra.mxu0 0
        %331 = vmatpush.bf16.msra.mxu0 0
        %332 = vmatpush.bf16.msra.mxu0 0
        %333 = vmatpush.bf16.msra.mxu0 %v283
        %334 = vmatpush.bf16.msra.mxu0 %v256
        %335 = vmatmul.bf16.gmra.mxu0 %v267
        %v336 = vpop.f32.mrf.mxu0
        %v337 = vadd.f32 %v217, %v336
        %v338 = vpop.f32.mrf.mxu0
        %v339 = vadd.f32 %v222, %v338
        %340 = vdwg.mxu0
        %v341 = vmax.f32 %v295, 0.0
        %v342 = vmax.f32 %v309, 0.0
        %v343 = vmax.f32 %v323, 0.0
        %v344 = vmax.f32 %v337, 0.0
        %v345 = vmax.f32 %v297, 0.0
        %v346 = vmax.f32 %v311, 0.0
        %v347 = vmax.f32 %v325, 0.0
        %v348 = vmax.f32 %v339, 0.0
        %349 = vst [vmem:[%s198] sm:$0xff] %v341
        %350 = vst [vmem:[%s198 + $0x8] sm:$0xff] %v342
        %351 = vst [vmem:[%s198 + $0x10] sm:$0xff] %v343
        %352 = vst [vmem:[%s198 + $0x18] sm:$0xff] %v344
        %353 = vst [vmem:[%s198 + $0x20] sm:$0xff] %v345
        %354 = vst [vmem:[%s198 + $0x28] sm:$0xff] %v346
        %355 = vst [vmem:[%s198 + $0x30] sm:$0xff] %v347
        %356 = vst [vmem:[%s198 + $0x38] sm:$0xff] %v348
        %s357 = sand.u32 %s90, 1
        %s358 = sand.u32 %s90, 1
        %s359 = smul.addr %s358, 64
        %s360 = scalar_lea.vmem [#allocation3], %s359
        // Predicated region
        $region56: #{net_forward.20} parent=50 // pred_check
          %p361 = pneg %p100
        $region57: #{net_forward.20} parent=50 // pred_check_branch
          %363 = sbr.rel (%p361) target = $region59
        $region58: #{net_forward.20} parent=50 // pred_region
          %s364 = smul.u32 4, %s14
          %s365 = smul.addr %s364, 8
          %s366 = scalar_lea.vmem %s3, %s365
          // Predicated region
          $region60: #{net_forward.20} parent=58 // pred_check
            _
          $region61: #{net_forward.20} parent=58 // pred_check_branch
            %368 = sbr.rel (0) target = $region63
          $region62: #{net_forward.20} parent=58 // pred_region
            // Predicated region
            $region64: #{net_forward.20} parent=62 // pred_check
              _
            $region65: #{net_forward.20} parent=62 // pred_check_branch
              %370 = sbr.rel (0) target = $region67
            $region66: #{net_forward.20} parent=62 // pred_region
              loop: start=0, step=1, limit=1
              $region68: #{net_forward.20} parent=66 // loop_pre_header
                _
              $region69: #{net_forward.20} parent=66 // loop_header
                %s372 = sphi 0, %s376
                %p373 = scmp.ge.s32.totalorder %s372, 1
                %s377 = sphi %s360, %s360
                %s378 = sphi %s366, %s366
              $region70: #{net_forward.20} parent=66 // loop_header_branch
                %375 = sbr.rel (%p373) target = $region74
              $region71: #{net_forward.20} parent=66 // loop_body
                %v379 = vld [vmem:[%s377] sm:$0xff]
                %380 = vst [vmem:[%s378] sm:$0xff] %v379
                %v381 = vld [vmem:[%s377 + $0x8] sm:$0xff]
                %382 = vst [vmem:[%s378 + $0x8] sm:$0xff] %v381
                %v383 = vld [vmem:[%s377 + $0x10] sm:$0xff]
                %384 = vst [vmem:[%s378 + $0x10] sm:$0xff] %v383
                %v385 = vld [vmem:[%s377 + $0x18] sm:$0xff]
                %386 = vst [vmem:[%s378 + $0x18] sm:$0xff] %v385
                %v387 = vld [vmem:[%s377 + $0x20] sm:$0xff]
                %388 = vst [vmem:[%s378 + $0x40] sm:$0xff] %v387
                %v389 = vld [vmem:[%s377 + $0x28] sm:$0xff]
                %390 = vst [vmem:[%s378 + $0x48] sm:$0xff] %v389
                %v391 = vld [vmem:[%s377 + $0x30] sm:$0xff]
                %392 = vst [vmem:[%s378 + $0x50] sm:$0xff] %v391
                %v393 = vld [vmem:[%s377 + $0x38] sm:$0xff]
                %394 = vst [vmem:[%s378 + $0x58] sm:$0xff] %v393
              $region72: #{net_forward.20} parent=66 // loop_footer
                %s376 = sadd.s32 1, %s372
              $region73: #{net_forward.20} parent=66 // loop_footer_branch
                %371 = sbr.rel target = $region69
              $region74: #{net_forward.20} parent=66 // loop_exit
                _
            $region67: #{net_forward.20} parent=62 // pred_fallthru
              _
            // Predicated region
            $region75: #{net_forward.20} parent=62 // pred_check
              _
            $region76: #{net_forward.20} parent=62 // pred_check_branch
              %396 = sbr.rel target = $region78
            $region77: #{net_forward.20} parent=62 // pred_region
              _
            $region78: #{net_forward.20} parent=62 // pred_fallthru
              _
          $region63: #{net_forward.20} parent=58 // pred_fallthru
            _
          %397 = vnop
        $region59: #{net_forward.20} parent=50 // pred_fallthru
          _
      $region51: #{net_forward.20} parent=5 // pred_fallthru
        _
      %p398 = scmp.le.s32.totalorder 2, %s9
      // Predicated region
      $region79: #{net_forward.20} parent=5 // pred_check
        %p399 = pneg %p398
      $region80: #{net_forward.20} parent=5 // pred_check_branch
        %401 = sbr.rel (%p399) target = $region82
      $region81: #{net_forward.20} parent=5 // pred_region
        %s402 = ssub.s32 %s9, 2
        // Predicated region
        $region83: #{net_forward.20} parent=81 // pred_check
          %p403 = pneg %p106
        $region84: #{net_forward.20} parent=81 // pred_check_branch
          %405 = sbr.rel (%p403) target = $region86
        $region85: #{net_forward.20} parent=81 // pred_region
          %s406 = sand.u32 %s91, 1
          %s407 = sand.u32 %s91, 1
          %s408 = smul.addr %s407, 64
          %s409 = scalar_lea.vmem [#allocation3], %s408
        $region86: #{net_forward.20} parent=81 // pred_fallthru
          _
      $region82: #{net_forward.20} parent=5 // pred_fallthru
        _
    $region6: #{net_forward.20} parent=1 // loop_footer
      %s13 = sadd.s32 1, %s9
    $region7: #{net_forward.20} parent=1 // loop_footer_branch
      %8 = sbr.rel target = $region3
    $region8: #{net_forward.20} parent=1 // loop_exit
      _

// kernel: net_forward.21
$region0: #{net_forward.21}
  #allocation0 [shape = 'u32[]', space=smem, size = 0x4, offset = 0x4, fixed_abs, tag = 'smem constant byte address 0x4 - core index']
  #allocation1 [shape = 'u32[72,128]{1,0:T(1,128)}', space=vmem, size = 0x9000, scoped, tag = 'internal scratch']
  %s0 = inlined_call_operand.vmem [shape: f32[1,4,4096], index: 0, kind: input, shape index: {}]
  %s1 = inlined_call_operand.vmem [shape: f32[1,4096], index: 1, kind: output, shape index: {}]
  %s2 = sld [smem:[#allocation0]]
  $region14: #{net_forward.21} parent=0
    _
  %s4 = ssub.s32 1, %s2
  %s5 = scalar_select 0, %s4, %s2
  // Predicated region
  $region2: #{net_forward.21} parent=0 // pred_check
    _
  $region3: #{net_forward.21} parent=0 // pred_check_branch
    %7 = sbr.rel (0) target = $region5
  $region4: #{net_forward.21} parent=0 // pred_region
    _
  $region5: #{net_forward.21} parent=0 // pred_fallthru
    _
  %v8 = vld [vmem:[%s0] sm:$0xff]
  %v9 = vld [vmem:[%s0 + $0x8] sm:$0xff]
  %v10 = vld [vmem:[%s0 + $0x10] sm:$0xff]
  %v11 = vld [vmem:[%s0 + $0x18] sm:$0xff]
  %v12 = vld [vmem:[%s0 + $0x20] sm:$0xff]
  %v13 = vld [vmem:[%s0 + $0x28] sm:$0xff]
  %v14 = vld [vmem:[%s0 + $0x30] sm:$0xff]
  %v15 = vld [vmem:[%s0 + $0x38] sm:$0xff]
  %v16 = vld [vmem:[%s0 + $0x40] sm:$0xff]
  %v17 = vld [vmem:[%s0 + $0x48] sm:$0xff]
  %v18 = vld [vmem:[%s0 + $0x50] sm:$0xff]
  %v19 = vld [vmem:[%s0 + $0x58] sm:$0xff]
  %v20 = vld [vmem:[%s0 + $0x60] sm:$0xff]
  %v21 = vld [vmem:[%s0 + $0x68] sm:$0xff]
  %v22 = vld [vmem:[%s0 + $0x70] sm:$0xff]
  %v23 = vld [vmem:[%s0 + $0x78] sm:$0xff]
  %40 = vst [vmem:[#allocation1] ss:$2 sm:$0xff] %v8
  %s41 = scalar_lea.vmem [#allocation1], 16
  %42 = vst [vmem:[%s41] ss:$2 sm:$0xff] %v9
  %s43 = scalar_lea.vmem [#allocation1], 32
  %44 = vst [vmem:[%s43] ss:$2 sm:$0xff] %v10
  %s45 = scalar_lea.vmem [#allocation1], 48
  %46 = vst [vmem:[%s45] ss:$2 sm:$0xff] %v11
  %v47 = vld.sshfl [vmem:[#allocation1] sm:$0xff pattern:$0x75316420]
  %v48 = vld.sshfl [vmem:[#allocation1 + $0x8] sm:$0xff pattern:$0x75316420]
  %v49 = vld.sshfl [vmem:[#allocation1 + $0x10] sm:$0xff pattern:$0x75316420]
  %v50 = vld.sshfl [vmem:[#allocation1 + $0x18] sm:$0xff pattern:$0x75316420]
  %v51 = vld.sshfl [vmem:[#allocation1 + $0x20] sm:$0xff pattern:$0x75316420]
  %v52 = vld.sshfl [vmem:[#allocation1 + $0x28] sm:$0xff pattern:$0x75316420]
  %v53 = vld.sshfl [vmem:[#allocation1 + $0x30] sm:$0xff pattern:$0x75316420]
  %v54 = vld.sshfl [vmem:[#allocation1 + $0x38] sm:$0xff pattern:$0x75316420]
  %55 = vst [vmem:[#allocation1] ss:$2 sm:$0xff] %v12
  %56 = vst [vmem:[%s41] ss:$2 sm:$0xff] %v13
  %57 = vst [vmem:[%s43] ss:$2 sm:$0xff] %v14
  %58 = vst [vmem:[%s45] ss:$2 sm:$0xff] %v15
  %v59 = vld.sshfl [vmem:[#allocation1] sm:$0xff pattern:$0x75316420]
  %v60 = vld.sshfl [vmem:[#allocation1 + $0x8] sm:$0xff pattern:$0x75316420]
  %v61 = vld.sshfl [vmem:[#allocation1 + $0x10] sm:$0xff pattern:$0x75316420]
  %v62 = vld.sshfl [vmem:[#allocation1 + $0x18] sm:$0xff pattern:$0x75316420]
  %v63 = vld.sshfl [vmem:[#allocation1 + $0x20] sm:$0xff pattern:$0x75316420]
  %v64 = vld.sshfl [vmem:[#allocation1 + $0x28] sm:$0xff pattern:$0x75316420]
  %v65 = vld.sshfl [vmem:[#allocation1 + $0x30] sm:$0xff pattern:$0x75316420]
  %v66 = vld.sshfl [vmem:[#allocation1 + $0x38] sm:$0xff pattern:$0x75316420]
  %67 = vst [vmem:[#allocation1] ss:$2 sm:$0xff] %v16
  %68 = vst [vmem:[%s41] ss:$2 sm:$0xff] %v17
  %69 = vst [vmem:[%s43] ss:$2 sm:$0xff] %v18
  %70 = vst [vmem:[%s45] ss:$2 sm:$0xff] %v19
  %v71 = vld.sshfl [vmem:[#allocation1] sm:$0xff pattern:$0x75316420]
  %v72 = vld.sshfl [vmem:[#allocation1 + $0x8] sm:$0xff pattern:$0x75316420]
  %v73 = vld.sshfl [vmem:[#allocation1 + $0x10] sm:$0xff pattern:$0x75316420]
  %v74 = vld.sshfl [vmem:[#allocation1 + $0x18] sm:$0xff pattern:$0x75316420]
  %v75 = vld.sshfl [vmem:[#allocation1 + $0x20] sm:$0xff pattern:$0x75316420]
  %v76 = vld.sshfl [vmem:[#allocation1 + $0x28] sm:$0xff pattern:$0x75316420]
  %v77 = vld.sshfl [vmem:[#allocation1 + $0x30] sm:$0xff pattern:$0x75316420]
  %v78 = vld.sshfl [vmem:[#allocation1 + $0x38] sm:$0xff pattern:$0x75316420]
  %79 = vst [vmem:[#allocation1] ss:$2 sm:$0xff] %v20
  %80 = vst [vmem:[%s41] ss:$2 sm:$0xff] %v21
  %81 = vst [vmem:[%s43] ss:$2 sm:$0xff] %v22
  %82 = vst [vmem:[%s45] ss:$2 sm:$0xff] %v23
  %v83 = vld.sshfl [vmem:[#allocation1] sm:$0xff pattern:$0x75316420]
  %v84 = vld.sshfl [vmem:[#allocation1 + $0x8] sm:$0xff pattern:$0x75316420]
  %v85 = vld.sshfl [vmem:[#allocation1 + $0x10] sm:$0xff pattern:$0x75316420]
  %v86 = vld.sshfl [vmem:[#allocation1 + $0x18] sm:$0xff pattern:$0x75316420]
  %v87 = vld.sshfl [vmem:[#allocation1 + $0x20] sm:$0xff pattern:$0x75316420]
  %v88 = vld.sshfl [vmem:[#allocation1 + $0x28] sm:$0xff pattern:$0x75316420]
  %v89 = vld.sshfl [vmem:[#allocation1 + $0x30] sm:$0xff pattern:$0x75316420]
  %v90 = vld.sshfl [vmem:[#allocation1 + $0x38] sm:$0xff pattern:$0x75316420]
  %vm123 = vcmask 1043456
  %v124 = vsel %vm123, %v47, -inf
  %v125 = vrot.slane %v124, 4
  %v126 = vmax.f32 %v124, %v125
  %v127 = vrot.slane %v126, 2
  %v128 = vmax.f32 %v126, %v127
  %v129 = vrot.slane %v128, 1
  %v130 = vmax.f32 %v128, %v129
  %v131 = vsel %vm123, %v48, -inf
  %v132 = vrot.slane %v131, 4
  %v133 = vmax.f32 %v131, %v132
  %v134 = vrot.slane %v133, 2
  %v135 = vmax.f32 %v133, %v134
  %v136 = vrot.slane %v135, 1
  %v137 = vmax.f32 %v135, %v136
  %v138 = vsel %vm123, %v49, -inf
  %v139 = vrot.slane %v138, 4
  %v140 = vmax.f32 %v138, %v139
  %v141 = vrot.slane %v140, 2
  %v142 = vmax.f32 %v140, %v141
  %v143 = vrot.slane %v142, 1
  %v144 = vmax.f32 %v142, %v143
  %v145 = vsel %vm123, %v50, -inf
  %v146 = vrot.slane %v145, 4
  %v147 = vmax.f32 %v145, %v146
  %v148 = vrot.slane %v147, 2
  %v149 = vmax.f32 %v147, %v148
  %v150 = vrot.slane %v149, 1
  %v151 = vmax.f32 %v149, %v150
  %v152 = vsel %vm123, %v51, -inf
  %v153 = vrot.slane %v152, 4
  %v154 = vmax.f32 %v152, %v153
  %v155 = vrot.slane %v154, 2
  %v156 = vmax.f32 %v154, %v155
  %v157 = vrot.slane %v156, 1
  %v158 = vmax.f32 %v156, %v157
  %v159 = vsel %vm123, %v52, -inf
  %v160 = vrot.slane %v159, 4
  %v161 = vmax.f32 %v159, %v160
  %v162 = vrot.slane %v161, 2
  %v163 = vmax.f32 %v161, %v162
  %v164 = vrot.slane %v163, 1
  %v165 = vmax.f32 %v163, %v164
  %v166 = vsel %vm123, %v53, -inf
  %v167 = vrot.slane %v166, 4
  %v168 = vmax.f32 %v166, %v167
  %v169 = vrot.slane %v168, 2
  %v170 = vmax.f32 %v168, %v169
  %v171 = vrot.slane %v170, 1
  %v172 = vmax.f32 %v170, %v171
  %v173 = vsel %vm123, %v54, -inf
  %v174 = vrot.slane %v173, 4
  %v175 = vmax.f32 %v173, %v174
  %v176 = vrot.slane %v175, 2
  %v177 = vmax.f32 %v175, %v176
  %v178 = vrot.slane %v177, 1
  %v179 = vmax.f32 %v177, %v178
  %v180 = vsel %vm123, %v59, -inf
  %v181 = vrot.slane %v180, 4
  %v182 = vmax.f32 %v180, %v181
  %v183 = vrot.slane %v182, 2
  %v184 = vmax.f32 %v182, %v183
  %v185 = vrot.slane %v184, 1
  %v186 = vmax.f32 %v184, %v185
  %v187 = vsel %vm123, %v60, -inf
  %v188 = vrot.slane %v187, 4
  %v189 = vmax.f32 %v187, %v188
  %v190 = vrot.slane %v189, 2
  %v191 = vmax.f32 %v189, %v190
  %v192 = vrot.slane %v191, 1
  %v193 = vmax.f32 %v191, %v192
  %v194 = vsel %vm123, %v61, -inf
  %v195 = vrot.slane %v194, 4
  %v196 = vmax.f32 %v194, %v195
  %v197 = vrot.slane %v196, 2
  %v198 = vmax.f32 %v196, %v197
  %v199 = vrot.slane %v198, 1
  %v200 = vmax.f32 %v198, %v199
  %v201 = vsel %vm123, %v62, -inf
  %v202 = vrot.slane %v201, 4
  %v203 = vmax.f32 %v201, %v202
  %v204 = vrot.slane %v203, 2
  %v205 = vmax.f32 %v203, %v204
  %v206 = vrot.slane %v205, 1
  %v207 = vmax.f32 %v205, %v206
  %v208 = vsel %vm123, %v63, -inf
  %v209 = vrot.slane %v208, 4
  %v210 = vmax.f32 %v208, %v209
  %v211 = vrot.slane %v210, 2
  %v212 = vmax.f32 %v210, %v211
  %v213 = vrot.slane %v212, 1
  %v214 = vmax.f32 %v212, %v213
  %v215 = vsel %vm123, %v64, -inf
  %v216 = vrot.slane %v215, 4
  %v217 = vmax.f32 %v215, %v216
  %v218 = vrot.slane %v217, 2
  %v219 = vmax.f32 %v217, %v218
  %v220 = vrot.slane %v219, 1
  %v221 = vmax.f32 %v219, %v220
  %v222 = vsel %vm123, %v65, -inf
  %v223 = vrot.slane %v222, 4
  %v224 = vmax.f32 %v222, %v223
  %v225 = vrot.slane %v224, 2
  %v226 = vmax.f32 %v224, %v225
  %v227 = vrot.slane %v226, 1
  %v228 = vmax.f32 %v226, %v227
  %v229 = vsel %vm123, %v66, -inf
  %v230 = vrot.slane %v229, 4
  %v231 = vmax.f32 %v229, %v230
  %v232 = vrot.slane %v231, 2
  %v233 = vmax.f32 %v231, %v232
  %v234 = vrot.slane %v233, 1
  %v235 = vmax.f32 %v233, %v234
  %v236 = vsel %vm123, %v71, -inf
  %v237 = vrot.slane %v236, 4
  %v238 = vmax.f32 %v236, %v237
  %v239 = vrot.slane %v238, 2
  %v240 = vmax.f32 %v238, %v239
  %v241 = vrot.slane %v240, 1
  %v242 = vmax.f32 %v240, %v241
  %v243 = vsel %vm123, %v72, -inf
  %v244 = vrot.slane %v243, 4
  %v245 = vmax.f32 %v243, %v244
  %v246 = vrot.slane %v245, 2
  %v247 = vmax.f32 %v245, %v246
  %v248 = vrot.slane %v247, 1
  %v249 = vmax.f32 %v247, %v248
  %v250 = vsel %vm123, %v73, -inf
  %v251 = vrot.slane %v250, 4
  %v252 = vmax.f32 %v250, %v251
  %v253 = vrot.slane %v252, 2
  %v254 = vmax.f32 %v252, %v253
  %v255 = vrot.slane %v254, 1
  %v256 = vmax.f32 %v254, %v255
  %v257 = vsel %vm123, %v74, -inf
  %v258 = vrot.slane %v257, 4
  %v259 = vmax.f32 %v257, %v258
  %v260 = vrot.slane %v259, 2
  %v261 = vmax.f32 %v259, %v260
  %v262 = vrot.slane %v261, 1
  %v263 = vmax.f32 %v261, %v262
  %v264 = vsel %vm123, %v75, -inf
  %v265 = vrot.slane %v264, 4
  %v266 = vmax.f32 %v264, %v265
  %v267 = vrot.slane %v266, 2
  %v268 = vmax.f32 %v266, %v267
  %v269 = vrot.slane %v268, 1
  %v270 = vmax.f32 %v268, %v269
  %v271 = vsel %vm123, %v76, -inf
  %v272 = vrot.slane %v271, 4
  %v273 = vmax.f32 %v271, %v272
  %v274 = vrot.slane %v273, 2
  %v275 = vmax.f32 %v273, %v274
  %v276 = vrot.slane %v275, 1
  %v277 = vmax.f32 %v275, %v276
  %v278 = vsel %vm123, %v77, -inf
  %v279 = vrot.slane %v278, 4
  %v280 = vmax.f32 %v278, %v279
  %v281 = vrot.slane %v280, 2
  %v282 = vmax.f32 %v280, %v281
  %v283 = vrot.slane %v282, 1
  %v284 = vmax.f32 %v282, %v283
  %v285 = vsel %vm123, %v78, -inf
  %v286 = vrot.slane %v285, 4
  %v287 = vmax.f32 %v285, %v286
  %v288 = vrot.slane %v287, 2
  %v289 = vmax.f32 %v287, %v288
  %v290 = vrot.slane %v289, 1
  %v291 = vmax.f32 %v289, %v290
  %v292 = vsel %vm123, %v83, -inf
  %v293 = vrot.slane %v292, 4
  %v294 = vmax.f32 %v292, %v293
  %v295 = vrot.slane %v294, 2
  %v296 = vmax.f32 %v294, %v295
  %v297 = vrot.slane %v296, 1
  %v298 = vmax.f32 %v296, %v297
  %v299 = vsel %vm123, %v84, -inf
  %v300 = vrot.slane %v299, 4
  %v301 = vmax.f32 %v299, %v300
  %v302 = vrot.slane %v301, 2
  %v303 = vmax.f32 %v301, %v302
  %v304 = vrot.slane %v303, 1
  %v305 = vmax.f32 %v303, %v304
  %v306 = vsel %vm123, %v85, -inf
  %v307 = vrot.slane %v306, 4
  %v308 = vmax.f32 %v306, %v307
  %v309 = vrot.slane %v308, 2
  %v310 = vmax.f32 %v308, %v309
  %v311 = vrot.slane %v310, 1
  %v312 = vmax.f32 %v310, %v311
  %v313 = vsel %vm123, %v86, -inf
  %v314 = vrot.slane %v313, 4
  %v315 = vmax.f32 %v313, %v314
  %v316 = vrot.slane %v315, 2
  %v317 = vmax.f32 %v315, %v316
  %v318 = vrot.slane %v317, 1
  %v319 = vmax.f32 %v317, %v318
  %v320 = vsel %vm123, %v87, -inf
  %v321 = vrot.slane %v320, 4
  %v322 = vmax.f32 %v320, %v321
  %v323 = vrot.slane %v322, 2
  %v324 = vmax.f32 %v322, %v323
  %v325 = vrot.slane %v324, 1
  %v326 = vmax.f32 %v324, %v325
  %v327 = vsel %vm123, %v88, -inf
  %v328 = vrot.slane %v327, 4
  %v329 = vmax.f32 %v327, %v328
  %v330 = vrot.slane %v329, 2
  %v331 = vmax.f32 %v329, %v330
  %v332 = vrot.slane %v331, 1
  %v333 = vmax.f32 %v331, %v332
  %v334 = vsel %vm123, %v89, -inf
  %v335 = vrot.slane %v334, 4
  %v336 = vmax.f32 %v334, %v335
  %v337 = vrot.slane %v336, 2
  %v338 = vmax.f32 %v336, %v337
  %v339 = vrot.slane %v338, 1
  %v340 = vmax.f32 %v338, %v339
  %v341 = vsel %vm123, %v90, -inf
  %v342 = vrot.slane %v341, 4
  %v343 = vmax.f32 %v341, %v342
  %v344 = vrot.slane %v343, 2
  %v345 = vmax.f32 %v343, %v344
  %v346 = vrot.slane %v345, 1
  %v347 = vmax.f32 %v345, %v346
  %v380 = vrot.slane %v137, 7
  %v381 = vrot.slane %v144, 6
  %v382 = vrot.slane %v151, 5
  %v383 = vrot.slane %v158, 4
  %v384 = vrot.slane %v165, 3
  %v385 = vrot.slane %v172, 2
  %v386 = vrot.slane %v179, 1
  %v387 = vrot.slane %v193, 7
  %v388 = vrot.slane %v200, 6
  %v389 = vrot.slane %v207, 5
  %v390 = vrot.slane %v214, 4
  %v391 = vrot.slane %v221, 3
  %v392 = vrot.slane %v228, 2
  %v393 = vrot.slane %v235, 1
  %v394 = vrot.slane %v249, 7
  %v395 = vrot.slane %v256, 6
  %v396 = vrot.slane %v263, 5
  %v397 = vrot.slane %v270, 4
  %v398 = vrot.slane %v277, 3
  %v399 = vrot.slane %v284, 2
  %v400 = vrot.slane %v291, 1
  %v401 = vrot.slane %v305, 7
  %v402 = vrot.slane %v312, 6
  %v403 = vrot.slane %v319, 5
  %v404 = vrot.slane %v326, 4
  %v405 = vrot.slane %v333, 3
  %v406 = vrot.slane %v340, 2
  %v407 = vrot.slane %v347, 1
  %vm408 = vcmask 1040384
  %v409 = vsel %vm408, %v130, %v380
  %vm410 = vcmask 1042434
  %v411 = vsel %vm410, %v381, %v382
  %vm412 = vcmask 1041408
  %v413 = vsel %vm412, %v409, %v411
  %vm414 = vcmask 1044484
  %v415 = vsel %vm414, %v383, %v384
  %vm416 = vcmask 1046534
  %v417 = vsel %vm416, %v385, %v386
  %vm418 = vcmask 1045508
  %v419 = vsel %vm418, %v415, %v417
  %v420 = vsel %vm123, %v413, %v419
  %v421 = vsel %vm408, %v186, %v387
  %v422 = vsel %vm410, %v388, %v389
  %v423 = vsel %vm412, %v421, %v422
  %v424 = vsel %vm414, %v390, %v391
  %v425 = vsel %vm416, %v392, %v393
  %v426 = vsel %vm418, %v424, %v425
  %v427 = vsel %vm123, %v423, %v426
  %v428 = vsel %vm408, %v242, %v394
  %v429 = vsel %vm410, %v395, %v396
  %v430 = vsel %vm412, %v428, %v429
  %v431 = vsel %vm414, %v397, %v398
  %v432 = vsel %vm416, %v399, %v400
  %v433 = vsel %vm418, %v431, %v432
  %v434 = vsel %vm123, %v430, %v433
  %v435 = vsel %vm408, %v298, %v401
  %v436 = vsel %vm410, %v402, %v403
  %v437 = vsel %vm412, %v435, %v436
  %v438 = vsel %vm414, %v404, %v405
  %v439 = vsel %vm416, %v406, %v407
  %v440 = vsel %vm418, %v438, %v439
  %v441 = vsel %vm123, %v437, %v440
  %446 = vst [vmem:[%s1] sm:$0xff] %v420
  %447 = vst [vmem:[%s1 + $0x8] sm:$0xff] %v427
  %448 = vst [vmem:[%s1 + $0x10] sm:$0xff] %v434
  %449 = vst [vmem:[%s1 + $0x18] sm:$0xff] %v441
  // Predicated region
  $region6: #{net_forward.21} parent=0 // pred_check
    _
  $region7: #{net_forward.21} parent=0 // pred_check_branch
    %451 = sbr.rel (0) target = $region9
  $region8: #{net_forward.21} parent=0 // pred_region
    _
  $region9: #{net_forward.21} parent=0 // pred_fallthru
    _
  // Predicated region
  $region10: #{net_forward.21} parent=0 // pred_check
    _
  $region11: #{net_forward.21} parent=0 // pred_check_branch
    %453 = sbr.rel (0) target = $region13
  $region12: #{net_forward.21} parent=0 // pred_region
    _
  $region13: #{net_forward.21} parent=0 // pred_fallthru
    _

// kernel: net_forward.22
$region0: #{net_forward.22}
  #allocation0 [shape = 'u32[]', space=smem, size = 0x4, offset = 0x4, fixed_abs, tag = 'smem constant byte address 0x4 - core index']
  #allocation1 [shape = 'u32[72,128]{1,0:T(1,128)}', space=vmem, size = 0x9000, scoped, tag = 'internal scratch']
  %s0 = inlined_call_operand.vmem [shape: bf16[144,256], index: 0, kind: input, shape index: {}]
  %s1 = inlined_call_operand.vmem [shape: bf16[32,144], index: 1, kind: input, shape index: {}]
  %s2 = inlined_call_operand.vmem [shape: f32[32,1], index: 2, kind: input, shape index: {}]
  %s3 = inlined_call_operand.vmem [shape: f32[32,256], index: 3, kind: output, shape index: {}]
  %s4 = sld [smem:[#allocation0]]
  $region22: #{net_forward.22} parent=0
    _
  %s6 = ssub.s32 1, %s4
  %s7 = scalar_select 0, %s6, %s4
  // Predicated region
  $region2: #{net_forward.22} parent=0 // pred_check
    _
  $region3: #{net_forward.22} parent=0 // pred_check_branch
    %9 = sbr.rel (0) target = $region5
  $region4: #{net_forward.22} parent=0 // pred_region
    _
  $region5: #{net_forward.22} parent=0 // pred_fallthru
    _
  // Predicated region
  $region6: #{net_forward.22} parent=0 // pred_check
    _
  $region7: #{net_forward.22} parent=0 // pred_check_branch
    %11 = sbr.rel (0) target = $region9
  $region8: #{net_forward.22} parent=0 // pred_region
    _
  $region9: #{net_forward.22} parent=0 // pred_fallthru
    _
  // Predicated region
  $region10: #{net_forward.22} parent=0 // pred_check
    _
  $region11: #{net_forward.22} parent=0 // pred_check_branch
    %13 = sbr.rel (0) target = $region13
  $region12: #{net_forward.22} parent=0 // pred_region
    _
  $region13: #{net_forward.22} parent=0 // pred_fallthru
    _
  %v15 = vld [vmem:[%s1] sm:$0xff]
  %v16 = vld [vmem:[%s1 + $0x8] sm:$0xff]
  %v17 = vld [vmem:[%s1 + $0x10] sm:$0xff]
  %v18 = vld [vmem:[%s1 + $0x18] sm:$0xff]
  %v19 = vld [vmem:[%s0] sm:$0xff]
  %v20 = vld [vmem:[%s0 + $0x8] sm:$0xff]
  %v21 = vld [vmem:[%s0 + $0x10] sm:$0xff]
  %v22 = vld [vmem:[%s0 + $0x18] sm:$0xff]
  %v23 = vld [vmem:[%s0 + $0x20] sm:$0xff]
  %v24 = vld [vmem:[%s0 + $0x28] sm:$0xff]
  %v25 = vld [vmem:[%s0 + $0x30] sm:$0xff]
  %v26 = vld [vmem:[%s0 + $0x38] sm:$0xff]
  %v27 = vld [vmem:[%s0 + $0x40] sm:$0xff]
  %v28 = vld [vmem:[%s0 + $0x48] sm:$0xff]
  %v29 = vld [vmem:[%s0 + $0x50] sm:$0xff]
  %v30 = vld [vmem:[%s0 + $0x58] sm:$0xff]
  %v31 = vld [vmem:[%s0 + $0x60] sm:$0xff]
  %v32 = vld [vmem:[%s0 + $0x68] sm:$0xff]
  %v33 = vld [vmem:[%s0 + $0x70] sm:$0xff]
  %v34 = vld [vmem:[%s0 + $0x78] sm:$0xff]
  %v35 = vld [vmem:[%s0 + $0x80] sm:$0xff]
  %v36 = vld [vmem:[%s0 + $0x88] sm:$0xff]
  %v37 = vld [vmem:[%s2] sm:$0xff]
  %v38 = vld [vmem:[%s2 + $0x8] sm:$0xff]
  %v39 = vld [vmem:[%s2 + $0x10] sm:$0xff]
  %v40 = vld [vmem:[%s2 + $0x18] sm:$0xff]
  %42 = vset.pattern.permute.xlu0 0
  %43 = vperm.xlu0 %42, %v37
  %v44 = vpop.permute.xlu0 %43
  %47 = vset.pattern.permute.xlu0 0
  %48 = vperm.xlu0 %47, %v38
  %v49 = vpop.permute.xlu0 %48
  %52 = vset.pattern.permute.xlu0 0
  %53 = vperm.xlu0 %52, %v39
  %v54 = vpop.permute.xlu0 %53
  %57 = vset.pattern.permute.xlu0 0
  %58 = vperm.xlu0 %57, %v40
  %v59 = vpop.permute.xlu0 %58
  %v65 = vunpack.c.l.b16 %v15
  %v66 = vunpack.c.h.b16 %v15
  %v67 = vunpack.c.l.b16 %v16
  %v68 = vunpack.c.h.b16 %v16
  %v69 = vunpack.c.l.b16 %v17
  %v70 = vunpack.c.h.b16 %v17
  %v71 = vunpack.c.l.b16 %v18
  %v72 = vunpack.c.h.b16 %v18
  %v73 = vpack.c.b16 %v67, %v65
  %v74 = vpack.c.b16 %v68, %v66
  %v75 = vpack.c.b16 %v71, %v69
  %v76 = vpack.c.b16 %v72, %v70
  %v97 = vunpack.c.l.b16 %v19
  %v98 = vunpack.c.h.b16 %v19
  %v99 = vunpack.c.l.b16 %v20
  %v100 = vunpack.c.h.b16 %v20
  %v101 = vunpack.c.l.b16 %v21
  %v102 = vunpack.c.h.b16 %v21
  %v103 = vunpack.c.l.b16 %v22
  %v104 = vunpack.c.h.b16 %v22
  %v105 = vunpack.c.l.b16 %v23
  %v106 = vunpack.c.h.b16 %v23
  %v107 = vunpack.c.l.b16 %v24
  %v108 = vunpack.c.h.b16 %v24
  %v109 = vunpack.c.l.b16 %v25
  %v110 = vunpack.c.h.b16 %v25
  %v111 = vunpack.c.l.b16 %v26
  %v112 = vunpack.c.h.b16 %v26
  %v113 = vunpack.c.l.b16 %v27
  %v114 = vunpack.c.h.b16 %v27
  %v115 = vunpack.c.l.b16 %v28
  %v116 = vunpack.c.h.b16 %v28
  %v117 = vunpack.c.l.b16 %v29
  %v118 = vunpack.c.h.b16 %v29
  %v119 = vunpack.c.l.b16 %v30
  %v120 = vunpack.c.h.b16 %v30
  %v121 = vunpack.c.l.b16 %v31
  %v122 = vunpack.c.h.b16 %v31
  %v123 = vunpack.c.l.b16 %v32
  %v124 = vunpack.c.h.b16 %v32
  %v125 = vunpack.c.l.b16 %v33
  %v126 = vunpack.c.h.b16 %v33
  %v127 = vunpack.c.l.b16 %v34
  %v128 = vunpack.c.h.b16 %v34
  %v129 = vunpack.c.l.b16 %v35
  %v130 = vunpack.c.h.b16 %v35
  %v131 = vunpack.c.l.b16 %v36
  %v132 = vunpack.c.h.b16 %v36
  %v133 = vpack.c.b16 %v99, %v97
  %v134 = vpack.c.b16 %v100, %v98
  %v135 = vpack.c.b16 %v103, %v101
  %v136 = vpack.c.b16 %v104, %v102
  %v137 = vpack.c.b16 %v107, %v105
  %v138 = vpack.c.b16 %v108, %v106
  %v139 = vpack.c.b16 %v111, %v109
  %v140 = vpack.c.b16 %v112, %v110
  %v141 = vpack.c.b16 %v115, %v113
  %v142 = vpack.c.b16 %v116, %v114
  %v143 = vpack.c.b16 %v119, %v117
  %v144 = vpack.c.b16 %v120, %v118
  %v145 = vpack.c.b16 %v123, %v121
  %v146 = vpack.c.b16 %v124, %v122
  %v147 = vpack.c.b16 %v127, %v125
  %v148 = vpack.c.b16 %v128, %v126
  %v149 = vpack.c.b16 %v131, %v129
  %v150 = vpack.c.b16 %v132, %v130
  %vm169 = vcmask 130048
  %v171 = vsel %vm169, %v74, 0
  %v174 = vsel %vm169, %v76, 0
  %176 = vmatpush.bf16.msra.mxu0 %v147
  %177 = vmatpush.bf16.msra.mxu0 %v145
  %178 = vmatpush.bf16.msra.mxu0 %v143
  %179 = vmatpush.bf16.msra.mxu0 %v141
  %180 = vmatpush.bf16.msra.mxu0 %v139
  %181 = vmatpush.bf16.msra.mxu0 %v137
  %182 = vmatpush.bf16.msra.mxu0 %v135
  %183 = vmatpush.bf16.msra.mxu0 %v133
  %184 = vmatmul.bf16.gmra.mxu0 %v73
  %v185 = vpop.f32.mrf.mxu0
  %v186 = vadd.f32 %v44, %v185
  %v187 = vpop.f32.mrf.mxu0
  %v188 = vadd.f32 %v49, %v187
  %189 = vmatmul.bf16.gmra.mxu0 %v75
  %v190 = vpop.f32.mrf.mxu0
  %v191 = vadd.f32 %v54, %v190
  %v192 = vpop.f32.mrf.mxu0
  %v193 = vadd.f32 %v59, %v192
  %194 = vdwg.mxu0
  %195 = vmatpush.bf16.msra.mxu0 0
  %196 = vmatpush.bf16.msra.mxu0 0
  %197 = vmatpush.bf16.msra.mxu0 0
  %198 = vmatpush.bf16.msra.mxu0 0
  %199 = vmatpush.bf16.msra.mxu0 0
  %200 = vmatpush.bf16.msra.mxu0 0
  %201 = vmatpush.bf16.msra.mxu0 0
  %202 = vmatpush.bf16.msra.mxu0 %v149
  %203 = vmatmul.bf16.gmra.mxu0 %v171
  %v204 = vpop.f32.mrf.mxu0
  %v205 = vadd.f32 %v186, %v204
  %v206 = vpop.f32.mrf.mxu0
  %v207 = vadd.f32 %v188, %v206
  %208 = vmatmul.bf16.gmra.mxu0 %v174
  %v209 = vpop.f32.mrf.mxu0
  %v210 = vadd.f32 %v191, %v209
  %v211 = vpop.f32.mrf.mxu0
  %v212 = vadd.f32 %v193, %v211
  %213 = vdwg.mxu0
  %214 = vmatpush.bf16.msra.mxu0 %v148
  %215 = vmatpush.bf16.msra.mxu0 %v146
  %216 = vmatpush.bf16.msra.mxu0 %v144
  %217 = vmatpush.bf16.msra.mxu0 %v142
  %218 = vmatpush.bf16.msra.mxu0 %v140
  %219 = vmatpush.bf16.msra.mxu0 %v138
  %220 = vmatpush.bf16.msra.mxu0 %v136
  %221 = vmatpush.bf16.msra.mxu0 %v134
  %222 = vmatmul.bf16.gmra.mxu0 %v73
  %v223 = vpop.f32.mrf.mxu0
  %v224 = vadd.f32 %v44, %v223
  %v225 = vpop.f32.mrf.mxu0
  %v226 = vadd.f32 %v49, %v225
  %227 = vmatmul.bf16.gmra.mxu0 %v75
  %v228 = vpop.f32.mrf.mxu0
  %v229 = vadd.f32 %v54, %v228
  %v230 = vpop.f32.mrf.mxu0
  %v231 = vadd.f32 %v59, %v230
  %232 = vdwg.mxu0
  %233 = vmatpush.bf16.msra.mxu0 0
  %234 = vmatpush.bf16.msra.mxu0 0
  %235 = vmatpush.bf16.msra.mxu0 0
  %236 = vmatpush.bf16.msra.mxu0 0
  %237 = vmatpush.bf16.msra.mxu0 0
  %238 = vmatpush.bf16.msra.mxu0 0
  %239 = vmatpush.bf16.msra.mxu0 0
  %240 = vmatpush.bf16.msra.mxu0 %v150
  %241 = vmatmul.bf16.gmra.mxu0 %v171
  %v242 = vpop.f32.mrf.mxu0
  %v243 = vadd.f32 %v224, %v242
  %v244 = vpop.f32.mrf.mxu0
  %v245 = vadd.f32 %v226, %v244
  %246 = vmatmul.bf16.gmra.mxu0 %v174
  %v247 = vpop.f32.mrf.mxu0
  %v248 = vadd.f32 %v229, %v247
  %v249 = vpop.f32.mrf.mxu0
  %v250 = vadd.f32 %v231, %v249
  %251 = vdwg.mxu0
  %v252 = vmax.f32 %v205, 0.0
  %v253 = vmax.f32 %v243, 0.0
  %v254 = vmax.f32 %v207, 0.0
  %v255 = vmax.f32 %v245, 0.0
  %v256 = vmax.f32 %v210, 0.0
  %v257 = vmax.f32 %v248, 0.0
  %v258 = vmax.f32 %v212, 0.0
  %v259 = vmax.f32 %v250, 0.0
  %260 = vst [vmem:[%s3] sm:$0xff] %v252
  %261 = vst [vmem:[%s3 + $0x8] sm:$0xff] %v253
  %262 = vst [vmem:[%s3 + $0x10] sm:$0xff] %v254
  %263 = vst [vmem:[%s3 + $0x18] sm:$0xff] %v255
  %264 = vst [vmem:[%s3 + $0x20] sm:$0xff] %v256
  %265 = vst [vmem:[%s3 + $0x28] sm:$0xff] %v257
  %266 = vst [vmem:[%s3 + $0x30] sm:$0xff] %v258
  %267 = vst [vmem:[%s3 + $0x38] sm:$0xff] %v259
  // Predicated region
  $region14: #{net_forward.22} parent=0 // pred_check
    _
  $region15: #{net_forward.22} parent=0 // pred_check_branch
    %269 = sbr.rel (0) target = $region17
  $region16: #{net_forward.22} parent=0 // pred_region
    _
  $region17: #{net_forward.22} parent=0 // pred_fallthru
    _
  // Predicated region
  $region18: #{net_forward.22} parent=0 // pred_check
    _
  $region19: #{net_forward.22} parent=0 // pred_check_branch
    %271 = sbr.rel (0) target = $region21
  $region20: #{net_forward.22} parent=0 // pred_region
    _
  $region21: #{net_forward.22} parent=0 // pred_fallthru
    _

// kernel: net_forward.23
$region0: #{net_forward.23}
  #allocation0 [shape = 'u32[]', space=smem, size = 0x4, offset = 0x4, fixed_abs, tag = 'smem constant byte address 0x4 - core index']
  #allocation1 [shape = 'u32[72,128]{1,0:T(1,128)}', space=vmem, size = 0x9000, scoped, tag = 'internal scratch']
  %s0 = inlined_call_operand.vmem [shape: f32[1,4,2048], index: 0, kind: input, shape index: {}]
  %s1 = inlined_call_operand.vmem [shape: f32[1,2048], index: 1, kind: output, shape index: {}]
  %s2 = sld [smem:[#allocation0]]
  $region14: #{net_forward.23} parent=0
    _
  %s4 = ssub.s32 1, %s2
  %s5 = scalar_select 0, %s4, %s2
  // Predicated region
  $region2: #{net_forward.23} parent=0 // pred_check
    _
  $region3: #{net_forward.23} parent=0 // pred_check_branch
    %7 = sbr.rel (0) target = $region5
  $region4: #{net_forward.23} parent=0 // pred_region
    _
  $region5: #{net_forward.23} parent=0 // pred_fallthru
    _
  %v8 = vld [vmem:[%s0] sm:$0xff]
  %v9 = vld [vmem:[%s0 + $0x8] sm:$0xff]
  %v10 = vld [vmem:[%s0 + $0x10] sm:$0xff]
  %v11 = vld [vmem:[%s0 + $0x18] sm:$0xff]
  %v12 = vld [vmem:[%s0 + $0x20] sm:$0xff]
  %v13 = vld [vmem:[%s0 + $0x28] sm:$0xff]
  %v14 = vld [vmem:[%s0 + $0x30] sm:$0xff]
  %v15 = vld [vmem:[%s0 + $0x38] sm:$0xff]
  %24 = vst [vmem:[#allocation1] ss:$2 sm:$0xff] %v8
  %s25 = scalar_lea.vmem [#allocation1], 16
  %26 = vst [vmem:[%s25] ss:$2 sm:$0xff] %v9
  %s27 = scalar_lea.vmem [#allocation1], 32
  %28 = vst [vmem:[%s27] ss:$2 sm:$0xff] %v10
  %s29 = scalar_lea.vmem [#allocation1], 48
  %30 = vst [vmem:[%s29] ss:$2 sm:$0xff] %v11
  %v31 = vld.sshfl [vmem:[#allocation1] sm:$0xff pattern:$0x75316420]
  %v32 = vld.sshfl [vmem:[#allocation1 + $0x8] sm:$0xff pattern:$0x75316420]
  %v33 = vld.sshfl [vmem:[#allocation1 + $0x10] sm:$0xff pattern:$0x75316420]
  %v34 = vld.sshfl [vmem:[#allocation1 + $0x18] sm:$0xff pattern:$0x75316420]
  %v35 = vld.sshfl [vmem:[#allocation1 + $0x20] sm:$0xff pattern:$0x75316420]
  %v36 = vld.sshfl [vmem:[#allocation1 + $0x28] sm:$0xff pattern:$0x75316420]
  %v37 = vld.sshfl [vmem:[#allocation1 + $0x30] sm:$0xff pattern:$0x75316420]
  %v38 = vld.sshfl [vmem:[#allocation1 + $0x38] sm:$0xff pattern:$0x75316420]
  %39 = vst [vmem:[#allocation1] ss:$2 sm:$0xff] %v12
  %40 = vst [vmem:[%s25] ss:$2 sm:$0xff] %v13
  %41 = vst [vmem:[%s27] ss:$2 sm:$0xff] %v14
  %42 = vst [vmem:[%s29] ss:$2 sm:$0xff] %v15
  %v43 = vld.sshfl [vmem:[#allocation1] sm:$0xff pattern:$0x75316420]
  %v44 = vld.sshfl [vmem:[#allocation1 + $0x8] sm:$0xff pattern:$0x75316420]
  %v45 = vld.sshfl [vmem:[#allocation1 + $0x10] sm:$0xff pattern:$0x75316420]
  %v46 = vld.sshfl [vmem:[#allocation1 + $0x18] sm:$0xff pattern:$0x75316420]
  %v47 = vld.sshfl [vmem:[#allocation1 + $0x20] sm:$0xff pattern:$0x75316420]
  %v48 = vld.sshfl [vmem:[#allocation1 + $0x28] sm:$0xff pattern:$0x75316420]
  %v49 = vld.sshfl [vmem:[#allocation1 + $0x30] sm:$0xff pattern:$0x75316420]
  %v50 = vld.sshfl [vmem:[#allocation1 + $0x38] sm:$0xff pattern:$0x75316420]
  %vm67 = vcmask 1043456
  %v68 = vsel %vm67, %v31, -inf
  %v69 = vrot.slane %v68, 4
  %v70 = vmax.f32 %v68, %v69
  %v71 = vrot.slane %v70, 2
  %v72 = vmax.f32 %v70, %v71
  %v73 = vrot.slane %v72, 1
  %v74 = vmax.f32 %v72, %v73
  %v75 = vsel %vm67, %v32, -inf
  %v76 = vrot.slane %v75, 4
  %v77 = vmax.f32 %v75, %v76
  %v78 = vrot.slane %v77, 2
  %v79 = vmax.f32 %v77, %v78
  %v80 = vrot.slane %v79, 1
  %v81 = vmax.f32 %v79, %v80
  %v82 = vsel %vm67, %v33, -inf
  %v83 = vrot.slane %v82, 4
  %v84 = vmax.f32 %v82, %v83
  %v85 = vrot.slane %v84, 2
  %v86 = vmax.f32 %v84, %v85
  %v87 = vrot.slane %v86, 1
  %v88 = vmax.f32 %v86, %v87
  %v89 = vsel %vm67, %v34, -inf
  %v90 = vrot.slane %v89, 4
  %v91 = vmax.f32 %v89, %v90
  %v92 = vrot.slane %v91, 2
  %v93 = vmax.f32 %v91, %v92
  %v94 = vrot.slane %v93, 1
  %v95 = vmax.f32 %v93, %v94
  %v96 = vsel %vm67, %v35, -inf
  %v97 = vrot.slane %v96, 4
  %v98 = vmax.f32 %v96, %v97
  %v99 = vrot.slane %v98, 2
  %v100 = vmax.f32 %v98, %v99
  %v101 = vrot.slane %v100, 1
  %v102 = vmax.f32 %v100, %v101
  %v103 = vsel %vm67, %v36, -inf
  %v104 = vrot.slane %v103, 4
  %v105 = vmax.f32 %v103, %v104
  %v106 = vrot.slane %v105, 2
  %v107 = vmax.f32 %v105, %v106
  %v108 = vrot.slane %v107, 1
  %v109 = vmax.f32 %v107, %v108
  %v110 = vsel %vm67, %v37, -inf
  %v111 = vrot.slane %v110, 4
  %v112 = vmax.f32 %v110, %v111
  %v113 = vrot.slane %v112, 2
  %v114 = vmax.f32 %v112, %v113
  %v115 = vrot.slane %v114, 1
  %v116 = vmax.f32 %v114, %v115
  %v117 = vsel %vm67, %v38, -inf
  %v118 = vrot.slane %v117, 4
  %v119 = vmax.f32 %v117, %v118
  %v120 = vrot.slane %v119, 2
  %v121 = vmax.f32 %v119, %v120
  %v122 = vrot.slane %v121, 1
  %v123 = vmax.f32 %v121, %v122
  %v124 = vsel %vm67, %v43, -inf
  %v125 = vrot.slane %v124, 4
  %v126 = vmax.f32 %v124, %v125
  %v127 = vrot.slane %v126, 2
  %v128 = vmax.f32 %v126, %v127
  %v129 = vrot.slane %v128, 1
  %v130 = vmax.f32 %v128, %v129
  %v131 = vsel %vm67, %v44, -inf
  %v132 = vrot.slane %v131, 4
  %v133 = vmax.f32 %v131, %v132
  %v134 = vrot.slane %v133, 2
  %v135 = vmax.f32 %v133, %v134
  %v136 = vrot.slane %v135, 1
  %v137 = vmax.f32 %v135, %v136
  %v138 = vsel %vm67, %v45, -inf
  %v139 = vrot.slane %v138, 4
  %v140 = vmax.f32 %v138, %v139
  %v141 = vrot.slane %v140, 2
  %v142 = vmax.f32 %v140, %v141
  %v143 = vrot.slane %v142, 1
  %v144 = vmax.f32 %v142, %v143
  %v145 = vsel %vm67, %v46, -inf
  %v146 = vrot.slane %v145, 4
  %v147 = vmax.f32 %v145, %v146
  %v148 = vrot.slane %v147, 2
  %v149 = vmax.f32 %v147, %v148
  %v150 = vrot.slane %v149, 1
  %v151 = vmax.f32 %v149, %v150
  %v152 = vsel %vm67, %v47, -inf
  %v153 = vrot.slane %v152, 4
  %v154 = vmax.f32 %v152, %v153
  %v155 = vrot.slane %v154, 2
  %v156 = vmax.f32 %v154, %v155
  %v157 = vrot.slane %v156, 1
  %v158 = vmax.f32 %v156, %v157
  %v159 = vsel %vm67, %v48, -inf
  %v160 = vrot.slane %v159, 4
  %v161 = vmax.f32 %v159, %v160
  %v162 = vrot.slane %v161, 2
  %v163 = vmax.f32 %v161, %v162
  %v164 = vrot.slane %v163, 1
  %v165 = vmax.f32 %v163, %v164
  %v166 = vsel %vm67, %v49, -inf
  %v167 = vrot.slane %v166, 4
  %v168 = vmax.f32 %v166, %v167
  %v169 = vrot.slane %v168, 2
  %v170 = vmax.f32 %v168, %v169
  %v171 = vrot.slane %v170, 1
  %v172 = vmax.f32 %v170, %v171
  %v173 = vsel %vm67, %v50, -inf
  %v174 = vrot.slane %v173, 4
  %v175 = vmax.f32 %v173, %v174
  %v176 = vrot.slane %v175, 2
  %v177 = vmax.f32 %v175, %v176
  %v178 = vrot.slane %v177, 1
  %v179 = vmax.f32 %v177, %v178
  %v196 = vrot.slane %v81, 7
  %v197 = vrot.slane %v88, 6
  %v198 = vrot.slane %v95, 5
  %v199 = vrot.slane %v102, 4
  %v200 = vrot.slane %v109, 3
  %v201 = vrot.slane %v116, 2
  %v202 = vrot.slane %v123, 1
  %v203 = vrot.slane %v137, 7
  %v204 = vrot.slane %v144, 6
  %v205 = vrot.slane %v151, 5
  %v206 = vrot.slane %v158, 4
  %v207 = vrot.slane %v165, 3
  %v208 = vrot.slane %v172, 2
  %v209 = vrot.slane %v179, 1
  %vm210 = vcmask 1040384
  %v211 = vsel %vm210, %v74, %v196
  %vm212 = vcmask 1042434
  %v213 = vsel %vm212, %v197, %v198
  %vm214 = vcmask 1041408
  %v215 = vsel %vm214, %v211, %v213
  %vm216 = vcmask 1044484
  %v217 = vsel %vm216, %v199, %v200
  %vm218 = vcmask 1046534
  %v219 = vsel %vm218, %v201, %v202
  %vm220 = vcmask 1045508
  %v221 = vsel %vm220, %v217, %v219
  %v222 = vsel %vm67, %v215, %v221
  %v223 = vsel %vm210, %v130, %v203
  %v224 = vsel %vm212, %v204, %v205
  %v225 = vsel %vm214, %v223, %v224
  %v226 = vsel %vm216, %v206, %v207
  %v227 = vsel %vm218, %v208, %v209
  %v228 = vsel %vm220, %v226, %v227
  %v229 = vsel %vm67, %v225, %v228
  %232 = vst [vmem:[%s1] sm:$0xff] %v222
  %233 = vst [vmem:[%s1 + $0x8] sm:$0xff] %v229
  // Predicated region
  $region6: #{net_forward.23} parent=0 // pred_check
    _
  $region7: #{net_forward.23} parent=0 // pred_check_branch
    %235 = sbr.rel (0) target = $region9
  $region8: #{net_forward.23} parent=0 // pred_region
    _
  $region9: #{net_forward.23} parent=0 // pred_fallthru
    _
  // Predicated region
  $region10: #{net_forward.23} parent=0 // pred_check
    _
  $region11: #{net_forward.23} parent=0 // pred_check_branch
    %237 = sbr.rel (0) target = $region13
  $region12: #{net_forward.23} parent=0 // pred_region
    _
  $region13: #{net_forward.23} parent=0 // pred_fallthru
    _

// kernel: net_forward.24
$region0: #{net_forward.24}
  #allocation0 [shape = 'u32[]', space=smem, size = 0x4, offset = 0x4, fixed_abs, tag = 'smem constant byte address 0x4 - core index']
  #allocation1 [shape = 'u32[72,128]{1,0:T(1,128)}', space=vmem, size = 0x9000, scoped, tag = 'internal scratch']
  %s0 = inlined_call_operand.vmem [shape: bf16[288,64], index: 0, kind: input, shape index: {}]
  %s1 = inlined_call_operand.vmem [shape: bf16[64,288], index: 1, kind: input, shape index: {}]
  %s2 = inlined_call_operand.vmem [shape: f32[64,1], index: 2, kind: input, shape index: {}]
  %s3 = inlined_call_operand.vmem [shape: f32[64,64], index: 3, kind: output, shape index: {}]
  %s4 = sld [smem:[#allocation0]]
  $region22: #{net_forward.24} parent=0
    _
  %s6 = ssub.s32 1, %s4
  %s7 = scalar_select 0, %s6, %s4
  // Predicated region
  $region2: #{net_forward.24} parent=0 // pred_check
    _
  $region3: #{net_forward.24} parent=0 // pred_check_branch
    %9 = sbr.rel (0) target = $region5
  $region4: #{net_forward.24} parent=0 // pred_region
    _
  $region5: #{net_forward.24} parent=0 // pred_fallthru
    _
  // Predicated region
  $region6: #{net_forward.24} parent=0 // pred_check
    _
  $region7: #{net_forward.24} parent=0 // pred_check_branch
    %11 = sbr.rel (0) target = $region9
  $region8: #{net_forward.24} parent=0 // pred_region
    _
  $region9: #{net_forward.24} parent=0 // pred_fallthru
    _
  // Predicated region
  $region10: #{net_forward.24} parent=0 // pred_check
    _
  $region11: #{net_forward.24} parent=0 // pred_check_branch
    %13 = sbr.rel (0) target = $region13
  $region12: #{net_forward.24} parent=0 // pred_region
    _
  $region13: #{net_forward.24} parent=0 // pred_fallthru
    _
  %v15 = vld [vmem:[%s1] sm:$0xff]
  %v16 = vld [vmem:[%s1 + $0x8] sm:$0xf]
  %v17 = vld [vmem:[%s1 + $0xc] sm:$0xff]
  %v18 = vld [vmem:[%s1 + $0x14] sm:$0xf]
  %v19 = vld [vmem:[%s1 + $0x18] sm:$0xff]
  %v20 = vld [vmem:[%s1 + $0x20] sm:$0xf]
  %v21 = vld [vmem:[%s1 + $0x24] sm:$0xff]
  %v22 = vld [vmem:[%s1 + $0x2c] sm:$0xf]
  %v23 = vld [vmem:[%s1 + $0x30] sm:$0xff]
  %v24 = vld [vmem:[%s1 + $0x38] sm:$0xf]
  %v25 = vld [vmem:[%s1 + $0x3c] sm:$0xff]
  %v26 = vld [vmem:[%s1 + $0x44] sm:$0xf]
  %v27 = vld [vmem:[%s1 + $0x48] sm:$0xff]
  %v28 = vld [vmem:[%s1 + $0x50] sm:$0xf]
  %v29 = vld [vmem:[%s1 + $0x54] sm:$0xff]
  %v30 = vld [vmem:[%s1 + $0x5c] sm:$0xf]
  %v31 = vld [vmem:[%s0] sm:$0xf]
  %v32 = vld [vmem:[%s0 + $0x4] sm:$0xf]
  %v33 = vld [vmem:[%s0 + $0x8] sm:$0xf]
  %v34 = vld [vmem:[%s0 + $0xc] sm:$0xf]
  %v35 = vld [vmem:[%s0 + $0x10] sm:$0xf]
  %v36 = vld [vmem:[%s0 + $0x14] sm:$0xf]
  %v37 = vld [vmem:[%s0 + $0x18] sm:$0xf]
  %v38 = vld [vmem:[%s0 + $0x1c] sm:$0xf]
  %v39 = vld [vmem:[%s0 + $0x20] sm:$0xf]
  %v40 = vld [vmem:[%s0 + $0x24] sm:$0xf]
  %v41 = vld [vmem:[%s0 + $0x28] sm:$0xf]
  %v42 = vld [vmem:[%s0 + $0x2c] sm:$0xf]
  %v43 = vld [vmem:[%s0 + $0x30] sm:$0xf]
  %v44 = vld [vmem:[%s0 + $0x34] sm:$0xf]
  %v45 = vld [vmem:[%s0 + $0x38] sm:$0xf]
  %v46 = vld [vmem:[%s0 + $0x3c] sm:$0xf]
  %v47 = vld [vmem:[%s0 + $0x40] sm:$0xf]
  %v48 = vld [vmem:[%s0 + $0x44] sm:$0xf]
  %v49 = vld [vmem:[%s0 + $0x48] sm:$0xf]
  %v50 = vld [vmem:[%s0 + $0x4c] sm:$0xf]
  %v51 = vld [vmem:[%s0 + $0x50] sm:$0xf]
  %v52 = vld [vmem:[%s0 + $0x54] sm:$0xf]
  %v53 = vld [vmem:[%s0 + $0x58] sm:$0xf]
  %v54 = vld [vmem:[%s0 + $0x5c] sm:$0xf]
  %v55 = vld [vmem:[%s0 + $0x60] sm:$0xf]
  %v56 = vld [vmem:[%s0 + $0x64] sm:$0xf]
  %v57 = vld [vmem:[%s0 + $0x68] sm:$0xf]
  %v58 = vld [vmem:[%s0 + $0x6c] sm:$0xf]
  %v59 = vld [vmem:[%s0 + $0x70] sm:$0xf]
  %v60 = vld [vmem:[%s0 + $0x74] sm:$0xf]
  %v61 = vld [vmem:[%s0 + $0x78] sm:$0xf]
  %v62 = vld [vmem:[%s0 + $0x7c] sm:$0xf]
  %v63 = vld [vmem:[%s0 + $0x80] sm:$0xf]
  %v64 = vld [vmem:[%s0 + $0x84] sm:$0xf]
  %v65 = vld [vmem:[%s0 + $0x88] sm:$0xf]
  %v66 = vld [vmem:[%s0 + $0x8c] sm:$0xf]
  %v67 = vld [vmem:[%s2] sm:$0xff]
  %v68 = vld [vmem:[%s2 + $0x8] sm:$0xff]
  %v69 = vld [vmem:[%s2 + $0x10] sm:$0xff]
  %v70 = vld [vmem:[%s2 + $0x18] sm:$0xff]
  %v71 = vld [vmem:[%s2 + $0x20] sm:$0xff]
  %v72 = vld [vmem:[%s2 + $0x28] sm:$0xff]
  %v73 = vld [vmem:[%s2 + $0x30] sm:$0xff]
  %v74 = vld [vmem:[%s2 + $0x38] sm:$0xff]
  %76 = vset.pattern.permute.xlu0 0
  %77 = vperm.xlu0 %76, %v67
  %v78 = vpop.permute.xlu0 %77
  %81 = vset.pattern.permute.xlu0 0
  %82 = vperm.xlu0 %81, %v68
  %v83 = vpop.permute.xlu0 %82
  %86 = vset.pattern.permute.xlu0 0
  %87 = vperm.xlu0 %86, %v69
  %v88 = vpop.permute.xlu0 %87
  %91 = vset.pattern.permute.xlu0 0
  %92 = vperm.xlu0 %91, %v70
  %v93 = vpop.permute.xlu0 %92
  %96 = vset.pattern.permute.xlu0 0
  %97 = vperm.xlu0 %96, %v71
  %v98 = vpop.permute.xlu0 %97
  %101 = vset.pattern.permute.xlu0 0
  %102 = vperm.xlu0 %101, %v72
  %v103 = vpop.permute.xlu0 %102
  %106 = vset.pattern.permute.xlu0 0
  %107 = vperm.xlu0 %106, %v73
  %v108 = vpop.permute.xlu0 %107
  %111 = vset.pattern.permute.xlu0 0
  %112 = vperm.xlu0 %111, %v74
  %v113 = vpop.permute.xlu0 %112
  %v131 = vunpack.c.l.b16 %v15
  %v132 = vunpack.c.h.b16 %v15
  %v133 = vunpack.c.l.b16 %v16
  %v134 = vunpack.c.l.b16 %v17
  %v135 = vunpack.c.h.b16 %v17
  %v136 = vunpack.c.l.b16 %v18
  %v137 = vunpack.c.l.b16 %v19
  %v138 = vunpack.c.h.b16 %v19
  %v139 = vunpack.c.l.b16 %v20
  %v140 = vunpack.c.l.b16 %v21
  %v141 = vunpack.c.h.b16 %v21
  %v142 = vunpack.c.l.b16 %v22
  %v143 = vunpack.c.l.b16 %v23
  %v144 = vunpack.c.h.b16 %v23
  %v145 = vunpack.c.l.b16 %v24
  %v146 = vunpack.c.l.b16 %v25
  %v147 = vunpack.c.h.b16 %v25
  %v148 = vunpack.c.l.b16 %v26
  %v149 = vunpack.c.l.b16 %v27
  %v150 = vunpack.c.h.b16 %v27
  %v151 = vunpack.c.l.b16 %v28
  %v152 = vunpack.c.l.b16 %v29
  %v153 = vunpack.c.h.b16 %v29
  %v154 = vunpack.c.l.b16 %v30
  %v155 = vpack.c.b16 %v134, %v131
  %v156 = vpack.c.b16 %v135, %v132
  %v157 = vpack.c.b16 %v136, %v133
  %v158 = vpack.c.b16 %v140, %v137
  %v159 = vpack.c.b16 %v141, %v138
  %v160 = vpack.c.b16 %v142, %v139
  %v161 = vpack.c.b16 %v146, %v143
  %v162 = vpack.c.b16 %v147, %v144
  %v163 = vpack.c.b16 %v148, %v145
  %v164 = vpack.c.b16 %v152, %v149
  %v165 = vpack.c.b16 %v153, %v150
  %v166 = vpack.c.b16 %v154, %v151
  %v211 = vunpack.c.l.b16 %v31
  %v212 = vunpack.c.l.b16 %v32
  %v213 = vunpack.c.l.b16 %v33
  %v214 = vunpack.c.l.b16 %v34
  %v215 = vunpack.c.l.b16 %v35
  %v216 = vunpack.c.l.b16 %v36
  %v217 = vunpack.c.l.b16 %v37
  %v218 = vunpack.c.l.b16 %v38
  %v219 = vunpack.c.l.b16 %v39
  %v220 = vunpack.c.l.b16 %v40
  %v221 = vunpack.c.l.b16 %v41
  %v222 = vunpack.c.l.b16 %v42
  %v223 = vunpack.c.l.b16 %v43
  %v224 = vunpack.c.l.b16 %v44
  %v225 = vunpack.c.l.b16 %v45
  %v226 = vunpack.c.l.b16 %v46
  %v227 = vunpack.c.l.b16 %v47
  %v228 = vunpack.c.l.b16 %v48
  %v229 = vunpack.c.l.b16 %v49
  %v230 = vunpack.c.l.b16 %v50
  %v231 = vunpack.c.l.b16 %v51
  %v232 = vunpack.c.l.b16 %v52
  %v233 = vunpack.c.l.b16 %v53
  %v234 = vunpack.c.l.b16 %v54
  %v235 = vunpack.c.l.b16 %v55
  %v236 = vunpack.c.l.b16 %v56
  %v237 = vunpack.c.l.b16 %v57
  %v238 = vunpack.c.l.b16 %v58
  %v239 = vunpack.c.l.b16 %v59
  %v240 = vunpack.c.l.b16 %v60
  %v241 = vunpack.c.l.b16 %v61
  %v242 = vunpack.c.l.b16 %v62
  %v243 = vunpack.c.l.b16 %v63
  %v244 = vunpack.c.l.b16 %v64
  %v245 = vunpack.c.l.b16 %v65
  %v246 = vunpack.c.l.b16 %v66
  %v247 = vpack.c.b16 %v212, %v211
  %v248 = vpack.c.b16 %v214, %v213
  %v249 = vpack.c.b16 %v216, %v215
  %v250 = vpack.c.b16 %v218, %v217
  %v251 = vpack.c.b16 %v220, %v219
  %v252 = vpack.c.b16 %v222, %v221
  %v253 = vpack.c.b16 %v224, %v223
  %v254 = vpack.c.b16 %v226, %v225
  %v255 = vpack.c.b16 %v228, %v227
  %v256 = vpack.c.b16 %v230, %v229
  %v257 = vpack.c.b16 %v232, %v231
  %v258 = vpack.c.b16 %v234, %v233
  %v259 = vpack.c.b16 %v236, %v235
  %v260 = vpack.c.b16 %v238, %v237
  %v261 = vpack.c.b16 %v240, %v239
  %v262 = vpack.c.b16 %v242, %v241
  %v263 = vpack.c.b16 %v244, %v243
  %v264 = vpack.c.b16 %v246, %v245
  %vm283 = vcmask 261120
  %v285 = vsel %vm283, %v157, 0
  %v288 = vsel %vm283, %v160, 0
  %v291 = vsel %vm283, %v163, 0
  %v294 = vsel %vm283, %v166, 0
  %296 = vmatpush.bf16.msra.mxu0 %v254
  %297 = vmatpush.bf16.msra.mxu0 %v253
  %298 = vmatpush.bf16.msra.mxu0 %v252
  %299 = vmatpush.bf16.msra.mxu0 %v251
  %300 = vmatpush.bf16.msra.mxu0 %v250
  %301 = vmatpush.bf16.msra.mxu0 %v249
  %302 = vmatpush.bf16.msra.mxu0 %v248
  %303 = vmatpush.bf16.msra.mxu0 %v247
  %304 = vmatmul.bf16.gmra.mxu0 %v155
  %v305 = vpop.f32.mrf.mxu0
  %v306 = vadd.f32 %v78, %v305
  %v307 = vpop.f32.mrf.mxu0
  %v308 = vadd.f32 %v83, %v307
  %309 = vmatmul.bf16.gmra.mxu0 %v158
  %v310 = vpop.f32.mrf.mxu0
  %v311 = vadd.f32 %v88, %v310
  %v312 = vpop.f32.mrf.mxu0
  %v313 = vadd.f32 %v93, %v312
  %314 = vmatmul.bf16.gmra.mxu0 %v161
  %v315 = vpop.f32.mrf.mxu0
  %v316 = vadd.f32 %v98, %v315
  %v317 = vpop.f32.mrf.mxu0
  %v318 = vadd.f32 %v103, %v317
  %319 = vmatmul.bf16.gmra.mxu0 %v164
  %v320 = vpop.f32.mrf.mxu0
  %v321 = vadd.f32 %v108, %v320
  %v322 = vpop.f32.mrf.mxu0
  %v323 = vadd.f32 %v113, %v322
  %324 = vdwg.mxu0
  %325 = vmatpush.bf16.msra.mxu0 %v262
  %326 = vmatpush.bf16.msra.mxu0 %v261
  %327 = vmatpush.bf16.msra.mxu0 %v260
  %328 = vmatpush.bf16.msra.mxu0 %v259
  %329 = vmatpush.bf16.msra.mxu0 %v258
  %330 = vmatpush.bf16.msra.mxu0 %v257
  %331 = vmatpush.bf16.msra.mxu0 %v256
  %332 = vmatpush.bf16.msra.mxu0 %v255
  %333 = vmatmul.bf16.gmra.mxu0 %v156
  %v334 = vpop.f32.mrf.mxu0
  %v335 = vadd.f32 %v306, %v334
  %v336 = vpop.f32.mrf.mxu0
  %v337 = vadd.f32 %v308, %v336
  %338 = vmatmul.bf16.gmra.mxu0 %v159
  %v339 = vpop.f32.mrf.mxu0
  %v340 = vadd.f32 %v311, %v339
  %v341 = vpop.f32.mrf.mxu0
  %v342 = vadd.f32 %v313, %v341
  %343 = vmatmul.bf16.gmra.mxu0 %v162
  %v344 = vpop.f32.mrf.mxu0
  %v345 = vadd.f32 %v316, %v344
  %v346 = vpop.f32.mrf.mxu0
  %v347 = vadd.f32 %v318, %v346
  %348 = vmatmul.bf16.gmra.mxu0 %v165
  %v349 = vpop.f32.mrf.mxu0
  %v350 = vadd.f32 %v321, %v349
  %v351 = vpop.f32.mrf.mxu0
  %v352 = vadd.f32 %v323, %v351
  %353 = vdwg.mxu0
  %354 = vmatpush.bf16.msra.mxu0 0
  %355 = vmatpush.bf16.msra.mxu0 0
  %356 = vmatpush.bf16.msra.mxu0 0
  %357 = vmatpush.bf16.msra.mxu0 0
  %358 = vmatpush.bf16.msra.mxu0 0
  %359 = vmatpush.bf16.msra.mxu0 0
  %360 = vmatpush.bf16.msra.mxu0 %v264
  %361 = vmatpush.bf16.msra.mxu0 %v263
  %362 = vmatmul.bf16.gmra.mxu0 %v285
  %v363 = vpop.f32.mrf.mxu0
  %v364 = vadd.f32 %v335, %v363
  %v365 = vpop.f32.mrf.mxu0
  %v366 = vadd.f32 %v337, %v365
  %367 = vmatmul.bf16.gmra.mxu0 %v288
  %v368 = vpop.f32.mrf.mxu0
  %v369 = vadd.f32 %v340, %v368
  %v370 = vpop.f32.mrf.mxu0
  %v371 = vadd.f32 %v342, %v370
  %372 = vmatmul.bf16.gmra.mxu0 %v291
  %v373 = vpop.f32.mrf.mxu0
  %v374 = vadd.f32 %v345, %v373
  %v375 = vpop.f32.mrf.mxu0
  %v376 = vadd.f32 %v347, %v375
  %377 = vmatmul.bf16.gmra.mxu0 %v294
  %v378 = vpop.f32.mrf.mxu0
  %v379 = vadd.f32 %v350, %v378
  %v380 = vpop.f32.mrf.mxu0
  %v381 = vadd.f32 %v352, %v380
  %382 = vdwg.mxu0
  %v383 = vmax.f32 %v364, 0.0
  %v384 = vmax.f32 %v366, 0.0
  %v385 = vmax.f32 %v369, 0.0
  %v386 = vmax.f32 %v371, 0.0
  %v387 = vmax.f32 %v374, 0.0
  %v388 = vmax.f32 %v376, 0.0
  %v389 = vmax.f32 %v379, 0.0
  %v390 = vmax.f32 %v381, 0.0
  %vm391 = vcmask 523264
  %392 = vst.msk [vmem:[%s3] sm:$0xff] %vm391, %v383
  %393 = vst.msk [vmem:[%s3 + $0x8] sm:$0xff] %vm391, %v384
  %394 = vst.msk [vmem:[%s3 + $0x10] sm:$0xff] %vm391, %v385
  %395 = vst.msk [vmem:[%s3 + $0x18] sm:$0xff] %vm391, %v386
  %396 = vst.msk [vmem:[%s3 + $0x20] sm:$0xff] %vm391, %v387
  %397 = vst.msk [vmem:[%s3 + $0x28] sm:$0xff] %vm391, %v388
  %398 = vst.msk [vmem:[%s3 + $0x30] sm:$0xff] %vm391, %v389
  %399 = vst.msk [vmem:[%s3 + $0x38] sm:$0xff] %vm391, %v390
  // Predicated region
  $region14: #{net_forward.24} parent=0 // pred_check
    _
  $region15: #{net_forward.24} parent=0 // pred_check_branch
    %401 = sbr.rel (0) target = $region17
  $region16: #{net_forward.24} parent=0 // pred_region
    _
  $region17: #{net_forward.24} parent=0 // pred_fallthru
    _
  // Predicated region
  $region18: #{net_forward.24} parent=0 // pred_check
    _
  $region19: #{net_forward.24} parent=0 // pred_check_branch
    %403 = sbr.rel (0) target = $region21
  $region20: #{net_forward.24} parent=0 // pred_region
    _
  $region21: #{net_forward.24} parent=0 // pred_fallthru
    _

// kernel: net_forward.25
$region0: #{net_forward.25}
  #allocation0 [shape = 'u32[]', space=smem, size = 0x4, offset = 0x4, fixed_abs, tag = 'smem constant byte address 0x4 - core index']
  #allocation1 [shape = 'u32[72,128]{1,0:T(1,128)}', space=vmem, size = 0x9000, scoped, tag = 'internal scratch']
  %s0 = inlined_call_operand.vmem [shape: f32[1,4,1024], index: 0, kind: input, shape index: {}]
  %s1 = inlined_call_operand.vmem [shape: f32[1,1024], index: 1, kind: output, shape index: {}]
  %s2 = sld [smem:[#allocation0]]
  $region14: #{net_forward.25} parent=0
    _
  %s4 = ssub.s32 1, %s2
  %s5 = scalar_select 0, %s4, %s2
  // Predicated region
  $region2: #{net_forward.25} parent=0 // pred_check
    _
  $region3: #{net_forward.25} parent=0 // pred_check_branch
    %7 = sbr.rel (0) target = $region5
  $region4: #{net_forward.25} parent=0 // pred_region
    _
  $region5: #{net_forward.25} parent=0 // pred_fallthru
    _
  %v8 = vld [vmem:[%s0] sm:$0xff]
  %v9 = vld [vmem:[%s0 + $0x8] sm:$0xff]
  %v10 = vld [vmem:[%s0 + $0x10] sm:$0xff]
  %v11 = vld [vmem:[%s0 + $0x18] sm:$0xff]
  %16 = vst [vmem:[#allocation1] ss:$2 sm:$0xff] %v8
  %s17 = scalar_lea.vmem [#allocation1], 16
  %18 = vst [vmem:[%s17] ss:$2 sm:$0xff] %v9
  %s19 = scalar_lea.vmem [#allocation1], 32
  %20 = vst [vmem:[%s19] ss:$2 sm:$0xff] %v10
  %s21 = scalar_lea.vmem [#allocation1], 48
  %22 = vst [vmem:[%s21] ss:$2 sm:$0xff] %v11
  %v23 = vld.sshfl [vmem:[#allocation1] sm:$0xff pattern:$0x75316420]
  %v24 = vld.sshfl [vmem:[#allocation1 + $0x8] sm:$0xff pattern:$0x75316420]
  %v25 = vld.sshfl [vmem:[#allocation1 + $0x10] sm:$0xff pattern:$0x75316420]
  %v26 = vld.sshfl [vmem:[#allocation1 + $0x18] sm:$0xff pattern:$0x75316420]
  %v27 = vld.sshfl [vmem:[#allocation1 + $0x20] sm:$0xff pattern:$0x75316420]
  %v28 = vld.sshfl [vmem:[#allocation1 + $0x28] sm:$0xff pattern:$0x75316420]
  %v29 = vld.sshfl [vmem:[#allocation1 + $0x30] sm:$0xff pattern:$0x75316420]
  %v30 = vld.sshfl [vmem:[#allocation1 + $0x38] sm:$0xff pattern:$0x75316420]
  %vm39 = vcmask 1043456
  %v40 = vsel %vm39, %v23, -inf
  %v41 = vrot.slane %v40, 4
  %v42 = vmax.f32 %v40, %v41
  %v43 = vrot.slane %v42, 2
  %v44 = vmax.f32 %v42, %v43
  %v45 = vrot.slane %v44, 1
  %v46 = vmax.f32 %v44, %v45
  %v47 = vsel %vm39, %v24, -inf
  %v48 = vrot.slane %v47, 4
  %v49 = vmax.f32 %v47, %v48
  %v50 = vrot.slane %v49, 2
  %v51 = vmax.f32 %v49, %v50
  %v52 = vrot.slane %v51, 1
  %v53 = vmax.f32 %v51, %v52
  %v54 = vsel %vm39, %v25, -inf
  %v55 = vrot.slane %v54, 4
  %v56 = vmax.f32 %v54, %v55
  %v57 = vrot.slane %v56, 2
  %v58 = vmax.f32 %v56, %v57
  %v59 = vrot.slane %v58, 1
  %v60 = vmax.f32 %v58, %v59
  %v61 = vsel %vm39, %v26, -inf
  %v62 = vrot.slane %v61, 4
  %v63 = vmax.f32 %v61, %v62
  %v64 = vrot.slane %v63, 2
  %v65 = vmax.f32 %v63, %v64
  %v66 = vrot.slane %v65, 1
  %v67 = vmax.f32 %v65, %v66
  %v68 = vsel %vm39, %v27, -inf
  %v69 = vrot.slane %v68, 4
  %v70 = vmax.f32 %v68, %v69
  %v71 = vrot.slane %v70, 2
  %v72 = vmax.f32 %v70, %v71
  %v73 = vrot.slane %v72, 1
  %v74 = vmax.f32 %v72, %v73
  %v75 = vsel %vm39, %v28, -inf
  %v76 = vrot.slane %v75, 4
  %v77 = vmax.f32 %v75, %v76
  %v78 = vrot.slane %v77, 2
  %v79 = vmax.f32 %v77, %v78
  %v80 = vrot.slane %v79, 1
  %v81 = vmax.f32 %v79, %v80
  %v82 = vsel %vm39, %v29, -inf
  %v83 = vrot.slane %v82, 4
  %v84 = vmax.f32 %v82, %v83
  %v85 = vrot.slane %v84, 2
  %v86 = vmax.f32 %v84, %v85
  %v87 = vrot.slane %v86, 1
  %v88 = vmax.f32 %v86, %v87
  %v89 = vsel %vm39, %v30, -inf
  %v90 = vrot.slane %v89, 4
  %v91 = vmax.f32 %v89, %v90
  %v92 = vrot.slane %v91, 2
  %v93 = vmax.f32 %v91, %v92
  %v94 = vrot.slane %v93, 1
  %v95 = vmax.f32 %v93, %v94
  %v104 = vrot.slane %v53, 7
  %v105 = vrot.slane %v60, 6
  %v106 = vrot.slane %v67, 5
  %v107 = vrot.slane %v74, 4
  %v108 = vrot.slane %v81, 3
  %v109 = vrot.slane %v88, 2
  %v110 = vrot.slane %v95, 1
  %vm111 = vcmask 1040384
  %v112 = vsel %vm111, %v46, %v104
  %vm113 = vcmask 1042434
  %v114 = vsel %vm113, %v105, %v106
  %vm115 = vcmask 1041408
  %v116 = vsel %vm115, %v112, %v114
  %vm117 = vcmask 1044484
  %v118 = vsel %vm117, %v107, %v108
  %vm119 = vcmask 1046534
  %v120 = vsel %vm119, %v109, %v110
  %vm121 = vcmask 1045508
  %v122 = vsel %vm121, %v118, %v120
  %v123 = vsel %vm39, %v116, %v122
  %125 = vst [vmem:[%s1] sm:$0xff] %v123
  // Predicated region
  $region6: #{net_forward.25} parent=0 // pred_check
    _
  $region7: #{net_forward.25} parent=0 // pred_check_branch
    %127 = sbr.rel (0) target = $region9
  $region8: #{net_forward.25} parent=0 // pred_region
    _
  $region9: #{net_forward.25} parent=0 // pred_fallthru
    _
  // Predicated region
  $region10: #{net_forward.25} parent=0 // pred_check
    _
  $region11: #{net_forward.25} parent=0 // pred_check_branch
    %129 = sbr.rel (0) target = $region13
  $region12: #{net_forward.25} parent=0 // pred_region
    _
  $region13: #{net_forward.25} parent=0 // pred_fallthru
    _

// kernel: net_forward.26
$region0: #{net_forward.26}
  #allocation0 [shape = 'u32[]', space=smem, size = 0x4, offset = 0x4, fixed_abs, tag = 'smem constant byte address 0x4 - core index']
  #allocation1 [shape = 'u32[72,128]{1,0:T(1,128)}', space=vmem, size = 0x9000, scoped, tag = 'internal scratch']
  %s0 = inlined_call_operand.vmem [shape: bf16[576,16], index: 0, kind: input, shape index: {}]
  %s1 = inlined_call_operand.vmem [shape: bf16[64,576], index: 1, kind: input, shape index: {}]
  %s2 = inlined_call_operand.vmem [shape: f32[64,1], index: 2, kind: input, shape index: {}]
  %s3 = inlined_call_operand.vmem [shape: f32[64,16], index: 3, kind: output, shape index: {}]
  %s4 = sld [smem:[#allocation0]]
  $region22: #{net_forward.26} parent=0
    _
  %s6 = ssub.s32 1, %s4
  %s7 = scalar_select 0, %s6, %s4
  // Predicated region
  $region2: #{net_forward.26} parent=0 // pred_check
    _
  $region3: #{net_forward.26} parent=0 // pred_check_branch
    %9 = sbr.rel (0) target = $region5
  $region4: #{net_forward.26} parent=0 // pred_region
    _
  $region5: #{net_forward.26} parent=0 // pred_fallthru
    _
  // Predicated region
  $region6: #{net_forward.26} parent=0 // pred_check
    _
  $region7: #{net_forward.26} parent=0 // pred_check_branch
    %11 = sbr.rel (0) target = $region9
  $region8: #{net_forward.26} parent=0 // pred_region
    _
  $region9: #{net_forward.26} parent=0 // pred_fallthru
    _
  // Predicated region
  $region10: #{net_forward.26} parent=0 // pred_check
    _
  $region11: #{net_forward.26} parent=0 // pred_check_branch
    %13 = sbr.rel (0) target = $region13
  $region12: #{net_forward.26} parent=0 // pred_region
    _
  $region13: #{net_forward.26} parent=0 // pred_fallthru
    _
  %v15 = vld [vmem:[%s1] sm:$0xff]
  %v16 = vld [vmem:[%s1 + $0x8] sm:$0xff]
  %v17 = vld [vmem:[%s1 + $0x10] sm:$0xf]
  %v18 = vld [vmem:[%s1 + $0x14] sm:$0xff]
  %v19 = vld [vmem:[%s1 + $0x1c] sm:$0xff]
  %v20 = vld [vmem:[%s1 + $0x24] sm:$0xf]
  %v21 = vld [vmem:[%s1 + $0x28] sm:$0xff]
  %v22 = vld [vmem:[%s1 + $0x30] sm:$0xff]
  %v23 = vld [vmem:[%s1 + $0x38] sm:$0xf]
  %v24 = vld [vmem:[%s1 + $0x3c] sm:$0xff]
  %v25 = vld [vmem:[%s1 + $0x44] sm:$0xff]
  %v26 = vld [vmem:[%s1 + $0x4c] sm:$0xf]
  %v27 = vld [vmem:[%s1 + $0x50] sm:$0xff]
  %v28 = vld [vmem:[%s1 + $0x58] sm:$0xff]
  %v29 = vld [vmem:[%s1 + $0x60] sm:$0xf]
  %v30 = vld [vmem:[%s1 + $0x64] sm:$0xff]
  %v31 = vld [vmem:[%s1 + $0x6c] sm:$0xff]
  %v32 = vld [vmem:[%s1 + $0x74] sm:$0xf]
  %v33 = vld [vmem:[%s1 + $0x78] sm:$0xff]
  %v34 = vld [vmem:[%s1 + $0x80] sm:$0xff]
  %v35 = vld [vmem:[%s1 + $0x88] sm:$0xf]
  %v36 = vld [vmem:[%s1 + $0x8c] sm:$0xff]
  %v37 = vld [vmem:[%s1 + $0x94] sm:$0xff]
  %v38 = vld [vmem:[%s1 + $0x9c] sm:$0xf]
  %v39 = vld [vmem:[%s0] sm:$0xf]
  %v40 = vld [vmem:[%s0 + $0x4] sm:$0xf]
  %v41 = vld [vmem:[%s0 + $0x8] sm:$0xf]
  %v42 = vld [vmem:[%s0 + $0xc] sm:$0xf]
  %v43 = vld [vmem:[%s0 + $0x10] sm:$0xf]
  %v44 = vld [vmem:[%s0 + $0x14] sm:$0xf]
  %v45 = vld [vmem:[%s0 + $0x18] sm:$0xf]
  %v46 = vld [vmem:[%s0 + $0x1c] sm:$0xf]
  %v47 = vld [vmem:[%s0 + $0x20] sm:$0xf]
  %v48 = vld [vmem:[%s0 + $0x24] sm:$0xf]
  %v49 = vld [vmem:[%s0 + $0x28] sm:$0xf]
  %v50 = vld [vmem:[%s0 + $0x2c] sm:$0xf]
  %v51 = vld [vmem:[%s0 + $0x30] sm:$0xf]
  %v52 = vld [vmem:[%s0 + $0x34] sm:$0xf]
  %v53 = vld [vmem:[%s0 + $0x38] sm:$0xf]
  %v54 = vld [vmem:[%s0 + $0x3c] sm:$0xf]
  %v55 = vld [vmem:[%s0 + $0x40] sm:$0xf]
  %v56 = vld [vmem:[%s0 + $0x44] sm:$0xf]
  %v57 = vld [vmem:[%s0 + $0x48] sm:$0xf]
  %v58 = vld [vmem:[%s0 + $0x4c] sm:$0xf]
  %v59 = vld [vmem:[%s0 + $0x50] sm:$0xf]
  %v60 = vld [vmem:[%s0 + $0x54] sm:$0xf]
  %v61 = vld [vmem:[%s0 + $0x58] sm:$0xf]
  %v62 = vld [vmem:[%s0 + $0x5c] sm:$0xf]
  %v63 = vld [vmem:[%s0 + $0x60] sm:$0xf]
  %v64 = vld [vmem:[%s0 + $0x64] sm:$0xf]
  %v65 = vld [vmem:[%s0 + $0x68] sm:$0xf]
  %v66 = vld [vmem:[%s0 + $0x6c] sm:$0xf]
  %v67 = vld [vmem:[%s0 + $0x70] sm:$0xf]
  %v68 = vld [vmem:[%s0 + $0x74] sm:$0xf]
  %v69 = vld [vmem:[%s0 + $0x78] sm:$0xf]
  %v70 = vld [vmem:[%s0 + $0x7c] sm:$0xf]
  %v71 = vld [vmem:[%s0 + $0x80] sm:$0xf]
  %v72 = vld [vmem:[%s0 + $0x84] sm:$0xf]
  %v73 = vld [vmem:[%s0 + $0x88] sm:$0xf]
  %v74 = vld [vmem:[%s0 + $0x8c] sm:$0xf]
  %v75 = vld [vmem:[%s0 + $0x90] sm:$0xf]
  %v76 = vld [vmem:[%s0 + $0x94] sm:$0xf]
  %v77 = vld [vmem:[%s0 + $0x98] sm:$0xf]
  %v78 = vld [vmem:[%s0 + $0x9c] sm:$0xf]
  %v79 = vld [vmem:[%s0 + $0xa0] sm:$0xf]
  %v80 = vld [vmem:[%s0 + $0xa4] sm:$0xf]
  %v81 = vld [vmem:[%s0 + $0xa8] sm:$0xf]
  %v82 = vld [vmem:[%s0 + $0xac] sm:$0xf]
  %v83 = vld [vmem:[%s0 + $0xb0] sm:$0xf]
  %v84 = vld [vmem:[%s0 + $0xb4] sm:$0xf]
  %v85 = vld [vmem:[%s0 + $0xb8] sm:$0xf]
  %v86 = vld [vmem:[%s0 + $0xbc] sm:$0xf]
  %v87 = vld [vmem:[%s0 + $0xc0] sm:$0xf]
  %v88 = vld [vmem:[%s0 + $0xc4] sm:$0xf]
  %v89 = vld [vmem:[%s0 + $0xc8] sm:$0xf]
  %v90 = vld [vmem:[%s0 + $0xcc] sm:$0xf]
  %v91 = vld [vmem:[%s0 + $0xd0] sm:$0xf]
  %v92 = vld [vmem:[%s0 + $0xd4] sm:$0xf]
  %v93 = vld [vmem:[%s0 + $0xd8] sm:$0xf]
  %v94 = vld [vmem:[%s0 + $0xdc] sm:$0xf]
  %v95 = vld [vmem:[%s0 + $0xe0] sm:$0xf]
  %v96 = vld [vmem:[%s0 + $0xe4] sm:$0xf]
  %v97 = vld [vmem:[%s0 + $0xe8] sm:$0xf]
  %v98 = vld [vmem:[%s0 + $0xec] sm:$0xf]
  %v99 = vld [vmem:[%s0 + $0xf0] sm:$0xf]
  %v100 = vld [vmem:[%s0 + $0xf4] sm:$0xf]
  %v101 = vld [vmem:[%s0 + $0xf8] sm:$0xf]
  %v102 = vld [vmem:[%s0 + $0xfc] sm:$0xf]
  %v103 = vld [vmem:[%s0 + $0x100] sm:$0xf]
  %v104 = vld [vmem:[%s0 + $0x104] sm:$0xf]
  %v105 = vld [vmem:[%s0 + $0x108] sm:$0xf]
  %v106 = vld [vmem:[%s0 + $0x10c] sm:$0xf]
  %v107 = vld [vmem:[%s0 + $0x110] sm:$0xf]
  %v108 = vld [vmem:[%s0 + $0x114] sm:$0xf]
  %v109 = vld [vmem:[%s0 + $0x118] sm:$0xf]
  %v110 = vld [vmem:[%s0 + $0x11c] sm:$0xf]
  %v111 = vld [vmem:[%s2] sm:$0xff]
  %v112 = vld [vmem:[%s2 + $0x8] sm:$0xff]
  %v113 = vld [vmem:[%s2 + $0x10] sm:$0xff]
  %v114 = vld [vmem:[%s2 + $0x18] sm:$0xff]
  %v115 = vld [vmem:[%s2 + $0x20] sm:$0xff]
  %v116 = vld [vmem:[%s2 + $0x28] sm:$0xff]
  %v117 = vld [vmem:[%s2 + $0x30] sm:$0xff]
  %v118 = vld [vmem:[%s2 + $0x38] sm:$0xff]
  %120 = vset.pattern.permute.xlu0 0
  %121 = vperm.xlu0 %120, %v111
  %v122 = vpop.permute.xlu0 %121
  %125 = vset.pattern.permute.xlu0 0
  %126 = vperm.xlu0 %125, %v112
  %v127 = vpop.permute.xlu0 %126
  %130 = vset.pattern.permute.xlu0 0
  %131 = vperm.xlu0 %130, %v113
  %v132 = vpop.permute.xlu0 %131
  %135 = vset.pattern.permute.xlu0 0
  %136 = vperm.xlu0 %135, %v114
  %v137 = vpop.permute.xlu0 %136
  %140 = vset.pattern.permute.xlu0 0
  %141 = vperm.xlu0 %140, %v115
  %v142 = vpop.permute.xlu0 %141
  %145 = vset.pattern.permute.xlu0 0
  %146 = vperm.xlu0 %145, %v116
  %v147 = vpop.permute.xlu0 %146
  %150 = vset.pattern.permute.xlu0 0
  %151 = vperm.xlu0 %150, %v117
  %v152 = vpop.permute.xlu0 %151
  %155 = vset.pattern.permute.xlu0 0
  %156 = vperm.xlu0 %155, %v118
  %v157 = vpop.permute.xlu0 %156
  %v183 = vunpack.c.l.b16 %v15
  %v184 = vunpack.c.h.b16 %v15
  %v185 = vunpack.c.l.b16 %v16
  %v186 = vunpack.c.h.b16 %v16
  %v187 = vunpack.c.l.b16 %v17
  %v188 = vunpack.c.l.b16 %v18
  %v189 = vunpack.c.h.b16 %v18
  %v190 = vunpack.c.l.b16 %v19
  %v191 = vunpack.c.h.b16 %v19
  %v192 = vunpack.c.l.b16 %v20
  %v193 = vunpack.c.l.b16 %v21
  %v194 = vunpack.c.h.b16 %v21
  %v195 = vunpack.c.l.b16 %v22
  %v196 = vunpack.c.h.b16 %v22
  %v197 = vunpack.c.l.b16 %v23
  %v198 = vunpack.c.l.b16 %v24
  %v199 = vunpack.c.h.b16 %v24
  %v200 = vunpack.c.l.b16 %v25
  %v201 = vunpack.c.h.b16 %v25
  %v202 = vunpack.c.l.b16 %v26
  %v203 = vunpack.c.l.b16 %v27
  %v204 = vunpack.c.h.b16 %v27
  %v205 = vunpack.c.l.b16 %v28
  %v206 = vunpack.c.h.b16 %v28
  %v207 = vunpack.c.l.b16 %v29
  %v208 = vunpack.c.l.b16 %v30
  %v209 = vunpack.c.h.b16 %v30
  %v210 = vunpack.c.l.b16 %v31
  %v211 = vunpack.c.h.b16 %v31
  %v212 = vunpack.c.l.b16 %v32
  %v213 = vunpack.c.l.b16 %v33
  %v214 = vunpack.c.h.b16 %v33
  %v215 = vunpack.c.l.b16 %v34
  %v216 = vunpack.c.h.b16 %v34
  %v217 = vunpack.c.l.b16 %v35
  %v218 = vunpack.c.l.b16 %v36
  %v219 = vunpack.c.h.b16 %v36
  %v220 = vunpack.c.l.b16 %v37
  %v221 = vunpack.c.h.b16 %v37
  %v222 = vunpack.c.l.b16 %v38
  %v223 = vpack.c.b16 %v188, %v183
  %v224 = vpack.c.b16 %v189, %v184
  %v225 = vpack.c.b16 %v190, %v185
  %v226 = vpack.c.b16 %v191, %v186
  %v227 = vpack.c.b16 %v192, %v187
  %v228 = vpack.c.b16 %v198, %v193
  %v229 = vpack.c.b16 %v199, %v194
  %v230 = vpack.c.b16 %v200, %v195
  %v231 = vpack.c.b16 %v201, %v196
  %v232 = vpack.c.b16 %v202, %v197
  %v233 = vpack.c.b16 %v208, %v203
  %v234 = vpack.c.b16 %v209, %v204
  %v235 = vpack.c.b16 %v210, %v205
  %v236 = vpack.c.b16 %v211, %v206
  %v237 = vpack.c.b16 %v212, %v207
  %v238 = vpack.c.b16 %v218, %v213
  %v239 = vpack.c.b16 %v219, %v214
  %v240 = vpack.c.b16 %v220, %v215
  %v241 = vpack.c.b16 %v221, %v216
  %v242 = vpack.c.b16 %v222, %v217
  %v331 = vunpack.c.l.b16 %v39
  %v332 = vunpack.c.l.b16 %v40
  %v333 = vunpack.c.l.b16 %v41
  %v334 = vunpack.c.l.b16 %v42
  %v335 = vunpack.c.l.b16 %v43
  %v336 = vunpack.c.l.b16 %v44
  %v337 = vunpack.c.l.b16 %v45
  %v338 = vunpack.c.l.b16 %v46
  %v339 = vunpack.c.l.b16 %v47
  %v340 = vunpack.c.l.b16 %v48
  %v341 = vunpack.c.l.b16 %v49
  %v342 = vunpack.c.l.b16 %v50
  %v343 = vunpack.c.l.b16 %v51
  %v344 = vunpack.c.l.b16 %v52
  %v345 = vunpack.c.l.b16 %v53
  %v346 = vunpack.c.l.b16 %v54
  %v347 = vunpack.c.l.b16 %v55
  %v348 = vunpack.c.l.b16 %v56
  %v349 = vunpack.c.l.b16 %v57
  %v350 = vunpack.c.l.b16 %v58
  %v351 = vunpack.c.l.b16 %v59
  %v352 = vunpack.c.l.b16 %v60
  %v353 = vunpack.c.l.b16 %v61
  %v354 = vunpack.c.l.b16 %v62
  %v355 = vunpack.c.l.b16 %v63
  %v356 = vunpack.c.l.b16 %v64
  %v357 = vunpack.c.l.b16 %v65
  %v358 = vunpack.c.l.b16 %v66
  %v359 = vunpack.c.l.b16 %v67
  %v360 = vunpack.c.l.b16 %v68
  %v361 = vunpack.c.l.b16 %v69
  %v362 = vunpack.c.l.b16 %v70
  %v363 = vunpack.c.l.b16 %v71
  %v364 = vunpack.c.l.b16 %v72
  %v365 = vunpack.c.l.b16 %v73
  %v366 = vunpack.c.l.b16 %v74
  %v367 = vunpack.c.l.b16 %v75
  %v368 = vunpack.c.l.b16 %v76
  %v369 = vunpack.c.l.b16 %v77
  %v370 = vunpack.c.l.b16 %v78
  %v371 = vunpack.c.l.b16 %v79
  %v372 = vunpack.c.l.b16 %v80
  %v373 = vunpack.c.l.b16 %v81
  %v374 = vunpack.c.l.b16 %v82
  %v375 = vunpack.c.l.b16 %v83
  %v376 = vunpack.c.l.b16 %v84
  %v377 = vunpack.c.l.b16 %v85
  %v378 = vunpack.c.l.b16 %v86
  %v379 = vunpack.c.l.b16 %v87
  %v380 = vunpack.c.l.b16 %v88
  %v381 = vunpack.c.l.b16 %v89
  %v382 = vunpack.c.l.b16 %v90
  %v383 = vunpack.c.l.b16 %v91
  %v384 = vunpack.c.l.b16 %v92
  %v385 = vunpack.c.l.b16 %v93
  %v386 = vunpack.c.l.b16 %v94
  %v387 = vunpack.c.l.b16 %v95
  %v388 = vunpack.c.l.b16 %v96
  %v389 = vunpack.c.l.b16 %v97
  %v390 = vunpack.c.l.b16 %v98
  %v391 = vunpack.c.l.b16 %v99
  %v392 = vunpack.c.l.b16 %v100
  %v393 = vunpack.c.l.b16 %v101
  %v394 = vunpack.c.l.b16 %v102
  %v395 = vunpack.c.l.b16 %v103
  %v396 = vunpack.c.l.b16 %v104
  %v397 = vunpack.c.l.b16 %v105
  %v398 = vunpack.c.l.b16 %v106
  %v399 = vunpack.c.l.b16 %v107
  %v400 = vunpack.c.l.b16 %v108
  %v401 = vunpack.c.l.b16 %v109
  %v402 = vunpack.c.l.b16 %v110
  %v403 = vpack.c.b16 %v332, %v331
  %v404 = vpack.c.b16 %v334, %v333
  %v405 = vpack.c.b16 %v336, %v335
  %v406 = vpack.c.b16 %v338, %v337
  %v407 = vpack.c.b16 %v340, %v339
  %v408 = vpack.c.b16 %v342, %v341
  %v409 = vpack.c.b16 %v344, %v343
  %v410 = vpack.c.b16 %v346, %v345
  %v411 = vpack.c.b16 %v348, %v347
  %v412 = vpack.c.b16 %v350, %v349
  %v413 = vpack.c.b16 %v352, %v351
  %v414 = vpack.c.b16 %v354, %v353
  %v415 = vpack.c.b16 %v356, %v355
  %v416 = vpack.c.b16 %v358, %v357
  %v417 = vpack.c.b16 %v360, %v359
  %v418 = vpack.c.b16 %v362, %v361
  %v419 = vpack.c.b16 %v364, %v363
  %v420 = vpack.c.b16 %v366, %v365
  %v421 = vpack.c.b16 %v368, %v367
  %v422 = vpack.c.b16 %v370, %v369
  %v423 = vpack.c.b16 %v372, %v371
  %v424 = vpack.c.b16 %v374, %v373
  %v425 = vpack.c.b16 %v376, %v375
  %v426 = vpack.c.b16 %v378, %v377
  %v427 = vpack.c.b16 %v380, %v379
  %v428 = vpack.c.b16 %v382, %v381
  %v429 = vpack.c.b16 %v384, %v383
  %v430 = vpack.c.b16 %v386, %v385
  %v431 = vpack.c.b16 %v388, %v387
  %v432 = vpack.c.b16 %v390, %v389
  %v433 = vpack.c.b16 %v392, %v391
  %v434 = vpack.c.b16 %v394, %v393
  %v435 = vpack.c.b16 %v396, %v395
  %v436 = vpack.c.b16 %v398, %v397
  %v437 = vpack.c.b16 %v400, %v399
  %v438 = vpack.c.b16 %v402, %v401
  %vm475 = vcmask 523264
  %v477 = vsel %vm475, %v227, 0
  %v480 = vsel %vm475, %v232, 0
  %v483 = vsel %vm475, %v237, 0
  %v486 = vsel %vm475, %v242, 0
  %488 = vmatpush.bf16.msra.mxu0 %v410
  %489 = vmatpush.bf16.msra.mxu0 %v409
  %490 = vmatpush.bf16.msra.mxu0 %v408
  %491 = vmatpush.bf16.msra.mxu0 %v407
  %492 = vmatpush.bf16.msra.mxu0 %v406
  %493 = vmatpush.bf16.msra.mxu0 %v405
  %494 = vmatpush.bf16.msra.mxu0 %v404
  %495 = vmatpush.bf16.msra.mxu0 %v403
  %496 = vmatmul.bf16.gmra.mxu0 %v223
  %v497 = vpop.f32.mrf.mxu0
  %v498 = vadd.f32 %v122, %v497
  %v499 = vpop.f32.mrf.mxu0
  %v500 = vadd.f32 %v127, %v499
  %501 = vmatmul.bf16.gmra.mxu0 %v228
  %v502 = vpop.f32.mrf.mxu0
  %v503 = vadd.f32 %v132, %v502
  %v504 = vpop.f32.mrf.mxu0
  %v505 = vadd.f32 %v137, %v504
  %506 = vmatmul.bf16.gmra.mxu0 %v233
  %v507 = vpop.f32.mrf.mxu0
  %v508 = vadd.f32 %v142, %v507
  %v509 = vpop.f32.mrf.mxu0
  %v510 = vadd.f32 %v147, %v509
  %511 = vmatmul.bf16.gmra.mxu0 %v238
  %v512 = vpop.f32.mrf.mxu0
  %v513 = vadd.f32 %v152, %v512
  %v514 = vpop.f32.mrf.mxu0
  %v515 = vadd.f32 %v157, %v514
  %516 = vdwg.mxu0
  %517 = vmatpush.bf16.msra.mxu0 %v418
  %518 = vmatpush.bf16.msra.mxu0 %v417
  %519 = vmatpush.bf16.msra.mxu0 %v416
  %520 = vmatpush.bf16.msra.mxu0 %v415
  %521 = vmatpush.bf16.msra.mxu0 %v414
  %522 = vmatpush.bf16.msra.mxu0 %v413
  %523 = vmatpush.bf16.msra.mxu0 %v412
  %524 = vmatpush.bf16.msra.mxu0 %v411
  %525 = vmatmul.bf16.gmra.mxu0 %v224
  %v526 = vpop.f32.mrf.mxu0
  %v527 = vadd.f32 %v498, %v526
  %v528 = vpop.f32.mrf.mxu0
  %v529 = vadd.f32 %v500, %v528
  %530 = vmatmul.bf16.gmra.mxu0 %v229
  %v531 = vpop.f32.mrf.mxu0
  %v532 = vadd.f32 %v503, %v531
  %v533 = vpop.f32.mrf.mxu0
  %v534 = vadd.f32 %v505, %v533
  %535 = vmatmul.bf16.gmra.mxu0 %v234
  %v536 = vpop.f32.mrf.mxu0
  %v537 = vadd.f32 %v508, %v536
  %v538 = vpop.f32.mrf.mxu0
  %v539 = vadd.f32 %v510, %v538
  %540 = vmatmul.bf16.gmra.mxu0 %v239
  %v541 = vpop.f32.mrf.mxu0
  %v542 = vadd.f32 %v513, %v541
  %v543 = vpop.f32.mrf.mxu0
  %v544 = vadd.f32 %v515, %v543
  %545 = vdwg.mxu0
  %546 = vmatpush.bf16.msra.mxu0 %v426
  %547 = vmatpush.bf16.msra.mxu0 %v425
  %548 = vmatpush.bf16.msra.mxu0 %v424
  %549 = vmatpush.bf16.msra.mxu0 %v423
  %550 = vmatpush.bf16.msra.mxu0 %v422
  %551 = vmatpush.bf16.msra.mxu0 %v421
  %552 = vmatpush.bf16.msra.mxu0 %v420
  %553 = vmatpush.bf16.msra.mxu0 %v419
  %554 = vmatmul.bf16.gmra.mxu0 %v225
  %v555 = vpop.f32.mrf.mxu0
  %v556 = vadd.f32 %v527, %v555
  %v557 = vpop.f32.mrf.mxu0
  %v558 = vadd.f32 %v529, %v557
  %559 = vmatmul.bf16.gmra.mxu0 %v230
  %v560 = vpop.f32.mrf.mxu0
  %v561 = vadd.f32 %v532, %v560
  %v562 = vpop.f32.mrf.mxu0
  %v563 = vadd.f32 %v534, %v562
  %564 = vmatmul.bf16.gmra.mxu0 %v235
  %v565 = vpop.f32.mrf.mxu0
  %v566 = vadd.f32 %v537, %v565
  %v567 = vpop.f32.mrf.mxu0
  %v568 = vadd.f32 %v539, %v567
  %569 = vmatmul.bf16.gmra.mxu0 %v240
  %v570 = vpop.f32.mrf.mxu0
  %v571 = vadd.f32 %v542, %v570
  %v572 = vpop.f32.mrf.mxu0
  %v573 = vadd.f32 %v544, %v572
  %574 = vdwg.mxu0
  %575 = vmatpush.bf16.msra.mxu0 %v434
  %576 = vmatpush.bf16.msra.mxu0 %v433
  %577 = vmatpush.bf16.msra.mxu0 %v432
  %578 = vmatpush.bf16.msra.mxu0 %v431
  %579 = vmatpush.bf16.msra.mxu0 %v430
  %580 = vmatpush.bf16.msra.mxu0 %v429
  %581 = vmatpush.bf16.msra.mxu0 %v428
  %582 = vmatpush.bf16.msra.mxu0 %v427
  %583 = vmatmul.bf16.gmra.mxu0 %v226
  %v584 = vpop.f32.mrf.mxu0
  %v585 = vadd.f32 %v556, %v584
  %v586 = vpop.f32.mrf.mxu0
  %v587 = vadd.f32 %v558, %v586
  %588 = vmatmul.bf16.gmra.mxu0 %v231
  %v589 = vpop.f32.mrf.mxu0
  %v590 = vadd.f32 %v561, %v589
  %v591 = vpop.f32.mrf.mxu0
  %v592 = vadd.f32 %v563, %v591
  %593 = vmatmul.bf16.gmra.mxu0 %v236
  %v594 = vpop.f32.mrf.mxu0
  %v595 = vadd.f32 %v566, %v594
  %v596 = vpop.f32.mrf.mxu0
  %v597 = vadd.f32 %v568, %v596
  %598 = vmatmul.bf16.gmra.mxu0 %v241
  %v599 = vpop.f32.mrf.mxu0
  %v600 = vadd.f32 %v571, %v599
  %v601 = vpop.f32.mrf.mxu0
  %v602 = vadd.f32 %v573, %v601
  %603 = vdwg.mxu0
  %604 = vmatpush.bf16.msra.mxu0 0
  %605 = vmatpush.bf16.msra.mxu0 0
  %606 = vmatpush.bf16.msra.mxu0 0
  %607 = vmatpush.bf16.msra.mxu0 0
  %608 = vmatpush.bf16.msra.mxu0 %v438
  %609 = vmatpush.bf16.msra.mxu0 %v437
  %610 = vmatpush.bf16.msra.mxu0 %v436
  %611 = vmatpush.bf16.msra.mxu0 %v435
  %612 = vmatmul.bf16.gmra.mxu0 %v477
  %v613 = vpop.f32.mrf.mxu0
  %v614 = vadd.f32 %v585, %v613
  %v615 = vpop.f32.mrf.mxu0
  %v616 = vadd.f32 %v587, %v615
  %617 = vmatmul.bf16.gmra.mxu0 %v480
  %v618 = vpop.f32.mrf.mxu0
  %v619 = vadd.f32 %v590, %v618
  %v620 = vpop.f32.mrf.mxu0
  %v621 = vadd.f32 %v592, %v620
  %622 = vmatmul.bf16.gmra.mxu0 %v483
  %v623 = vpop.f32.mrf.mxu0
  %v624 = vadd.f32 %v595, %v623
  %v625 = vpop.f32.mrf.mxu0
  %v626 = vadd.f32 %v597, %v625
  %627 = vmatmul.bf16.gmra.mxu0 %v486
  %v628 = vpop.f32.mrf.mxu0
  %v629 = vadd.f32 %v600, %v628
  %v630 = vpop.f32.mrf.mxu0
  %v631 = vadd.f32 %v602, %v630
  %632 = vdwg.mxu0
  %v633 = vmax.f32 %v614, 0.0
  %v634 = vmax.f32 %v616, 0.0
  %v635 = vmax.f32 %v619, 0.0
  %v636 = vmax.f32 %v621, 0.0
  %v637 = vmax.f32 %v624, 0.0
  %v638 = vmax.f32 %v626, 0.0
  %v639 = vmax.f32 %v629, 0.0
  %v640 = vmax.f32 %v631, 0.0
  %vm641 = vcmask 130048
  %642 = vst.msk [vmem:[%s3] sm:$0xff] %vm641, %v633
  %643 = vst.msk [vmem:[%s3 + $0x8] sm:$0xff] %vm641, %v634
  %644 = vst.msk [vmem:[%s3 + $0x10] sm:$0xff] %vm641, %v635
  %645 = vst.msk [vmem:[%s3 + $0x18] sm:$0xff] %vm641, %v636
  %646 = vst.msk [vmem:[%s3 + $0x20] sm:$0xff] %vm641, %v637
  %647 = vst.msk [vmem:[%s3 + $0x28] sm:$0xff] %vm641, %v638
  %648 = vst.msk [vmem:[%s3 + $0x30] sm:$0xff] %vm641, %v639
  %649 = vst.msk [vmem:[%s3 + $0x38] sm:$0xff] %vm641, %v640
  // Predicated region
  $region14: #{net_forward.26} parent=0 // pred_check
    _
  $region15: #{net_forward.26} parent=0 // pred_check_branch
    %651 = sbr.rel (0) target = $region17
  $region16: #{net_forward.26} parent=0 // pred_region
    _
  $region17: #{net_forward.26} parent=0 // pred_fallthru
    _
  // Predicated region
  $region18: #{net_forward.26} parent=0 // pred_check
    _
  $region19: #{net_forward.26} parent=0 // pred_check_branch
    %653 = sbr.rel (0) target = $region21
  $region20: #{net_forward.26} parent=0 // pred_region
    _
  $region21: #{net_forward.26} parent=0 // pred_fallthru
    _

// kernel: net_forward.27
$region0: #{net_forward.27}
  #allocation0 [shape = 'u32[]', space=smem, size = 0x4, offset = 0x4, fixed_abs, tag = 'smem constant byte address 0x4 - core index']
  #allocation1 [shape = 'u32[72,128]{1,0:T(1,128)}', space=vmem, size = 0x9000, scoped, tag = 'internal scratch']
  %s0 = inlined_call_operand.vmem [shape: f32[2,64,588], index: 0, kind: input, shape index: {}]
  %s1 = inlined_call_operand.vmem [shape: f32[1,588], index: 1, kind: input, shape index: {}]
  %s2 = inlined_call_operand.vmem [shape: f32[1,588], index: 2, kind: input, shape index: {}]
  %s3 = inlined_call_operand.vmem [shape: f32[588,64], index: 3, kind: input, shape index: {}]
  %s4 = inlined_call_operand.vmem [shape: f32[1,64], index: 4, kind: input, shape index: {}]
  %s5 = inlined_call_operand.vmem [shape: f32[64,64], index: 5, kind: input, shape index: {}]
  %s6 = inlined_call_operand.vmem [shape: f32[1,64], index: 6, kind: input, shape index: {}]
  %s7 = inlined_call_operand.vmem [shape: f32[64,64], index: 7, kind: input, shape index: {}]
  %s8 = inlined_call_operand.vmem [shape: f32[1,64], index: 8, kind: input, shape index: {}]
  %s9 = inlined_call_operand.vmem [shape: f32[64,128], index: 9, kind: input, shape index: {}]
  %s10 = inlined_call_operand.vmem [shape: f32[1,128], index: 10, kind: input, shape index: {}]
  %s11 = inlined_call_operand.vmem [shape: f32[2,128], index: 11, kind: output, shape index: {}]
  %s12 = sld [smem:[#allocation0]]
  $region54: #{net_forward.27} parent=0
    _
  %s14 = ssub.s32 1, %s12
  %s15 = scalar_select 0, %s14, %s12
  // Predicated region
  $region2: #{net_forward.27} parent=0 // pred_check
    _
  $region3: #{net_forward.27} parent=0 // pred_check_branch
    %17 = sbr.rel (0) target = $region5
  $region4: #{net_forward.27} parent=0 // pred_region
    _
  $region5: #{net_forward.27} parent=0 // pred_fallthru
    _
  // Predicated region
  $region6: #{net_forward.27} parent=0 // pred_check
    _
  $region7: #{net_forward.27} parent=0 // pred_check_branch
    %19 = sbr.rel (0) target = $region9
  $region8: #{net_forward.27} parent=0 // pred_region
    _
  $region9: #{net_forward.27} parent=0 // pred_fallthru
    _
  // Predicated region
  $region10: #{net_forward.27} parent=0 // pred_check
    _
  $region11: #{net_forward.27} parent=0 // pred_check_branch
    %21 = sbr.rel (0) target = $region13
  $region12: #{net_forward.27} parent=0 // pred_region
    _
  $region13: #{net_forward.27} parent=0 // pred_fallthru
    _
  // Predicated region
  $region14: #{net_forward.27} parent=0 // pred_check
    _
  $region15: #{net_forward.27} parent=0 // pred_check_branch
    %23 = sbr.rel (0) target = $region17
  $region16: #{net_forward.27} parent=0 // pred_region
    _
  $region17: #{net_forward.27} parent=0 // pred_fallthru
    _
  // Predicated region
  $region18: #{net_forward.27} parent=0 // pred_check
    _
  $region19: #{net_forward.27} parent=0 // pred_check_branch
    %25 = sbr.rel (0) target = $region21
  $region20: #{net_forward.27} parent=0 // pred_region
    _
  $region21: #{net_forward.27} parent=0 // pred_fallthru
    _
  // Predicated region
  $region22: #{net_forward.27} parent=0 // pred_check
    _
  $region23: #{net_forward.27} parent=0 // pred_check_branch
    %27 = sbr.rel (0) target = $region25
  $region24: #{net_forward.27} parent=0 // pred_region
    _
  $region25: #{net_forward.27} parent=0 // pred_fallthru
    _
  // Predicated region
  $region26: #{net_forward.27} parent=0 // pred_check
    _
  $region27: #{net_forward.27} parent=0 // pred_check_branch
    %29 = sbr.rel (0) target = $region29
  $region28: #{net_forward.27} parent=0 // pred_region
    _
  $region29: #{net_forward.27} parent=0 // pred_fallthru
    _
  // Predicated region
  $region30: #{net_forward.27} parent=0 // pred_check
    _
  $region31: #{net_forward.27} parent=0 // pred_check_branch
    %31 = sbr.rel (0) target = $region33
  $region32: #{net_forward.27} parent=0 // pred_region
    _
  $region33: #{net_forward.27} parent=0 // pred_fallthru
    _
  // Predicated region
  $region34: #{net_forward.27} parent=0 // pred_check
    _
  $region35: #{net_forward.27} parent=0 // pred_check_branch
    %33 = sbr.rel (0) target = $region37
  $region36: #{net_forward.27} parent=0 // pred_region
    _
  $region37: #{net_forward.27} parent=0 // pred_fallthru
    _
  // Predicated region
  $region38: #{net_forward.27} parent=0 // pred_check
    _
  $region39: #{net_forward.27} parent=0 // pred_check_branch
    %35 = sbr.rel (0) target = $region41
  $region40: #{net_forward.27} parent=0 // pred_region
    _
  $region41: #{net_forward.27} parent=0 // pred_fallthru
    _
  // Predicated region
  $region42: #{net_forward.27} parent=0 // pred_check
    _
  $region43: #{net_forward.27} parent=0 // pred_check_branch
    %37 = sbr.rel (0) target = $region45
  $region44: #{net_forward.27} parent=0 // pred_region
    _
  $region45: #{net_forward.27} parent=0 // pred_fallthru
    _
  %v38 = vld [vmem:[%s0] sm:$0xff]
  %v39 = vld [vmem:[%s0 + $0x8] sm:$0xff]
  %v40 = vld [vmem:[%s0 + $0x10] sm:$0xff]
  %v41 = vld [vmem:[%s0 + $0x18] sm:$0xff]
  %v42 = vld [vmem:[%s0 + $0x20] sm:$0xff]
  %v43 = vld [vmem:[%s0 + $0x28] sm:$0xff]
  %v44 = vld [vmem:[%s0 + $0x30] sm:$0xff]
  %v45 = vld [vmem:[%s0 + $0x38] sm:$0xff]
  %v46 = vld [vmem:[%s0 + $0x40] sm:$0xff]
  %v47 = vld [vmem:[%s0 + $0x48] sm:$0xff]
  %v48 = vld [vmem:[%s0 + $0x50] sm:$0xff]
  %v49 = vld [vmem:[%s0 + $0x58] sm:$0xff]
  %v50 = vld [vmem:[%s0 + $0x60] sm:$0xff]
  %v51 = vld [vmem:[%s0 + $0x68] sm:$0xff]
  %v52 = vld [vmem:[%s0 + $0x70] sm:$0xff]
  %v53 = vld [vmem:[%s0 + $0x78] sm:$0xff]
  %v54 = vld [vmem:[%s0 + $0x80] sm:$0xff]
  %v55 = vld [vmem:[%s0 + $0x88] sm:$0xff]
  %v56 = vld [vmem:[%s0 + $0x90] sm:$0xff]
  %v57 = vld [vmem:[%s0 + $0x98] sm:$0xff]
  %v58 = vld [vmem:[%s0 + $0xa0] sm:$0xff]
  %v59 = vld [vmem:[%s0 + $0xa8] sm:$0xff]
  %v60 = vld [vmem:[%s0 + $0xb0] sm:$0xff]
  %v61 = vld [vmem:[%s0 + $0xb8] sm:$0xff]
  %v62 = vld [vmem:[%s0 + $0xc0] sm:$0xff]
  %v63 = vld [vmem:[%s0 + $0xc8] sm:$0xff]
  %v64 = vld [vmem:[%s0 + $0xd0] sm:$0xff]
  %v65 = vld [vmem:[%s0 + $0xd8] sm:$0xff]
  %v66 = vld [vmem:[%s0 + $0xe0] sm:$0xff]
  %v67 = vld [vmem:[%s0 + $0xe8] sm:$0xff]
  %v68 = vld [vmem:[%s0 + $0xf0] sm:$0xff]
  %v69 = vld [vmem:[%s0 + $0xf8] sm:$0xff]
  %v70 = vld [vmem:[%s0 + $0x100] sm:$0xff]
  %v71 = vld [vmem:[%s0 + $0x108] sm:$0xff]
  %v72 = vld [vmem:[%s0 + $0x110] sm:$0xff]
  %v73 = vld [vmem:[%s0 + $0x118] sm:$0xff]
  %v74 = vld [vmem:[%s0 + $0x120] sm:$0xff]
  %v75 = vld [vmem:[%s0 + $0x128] sm:$0xff]
  %v76 = vld [vmem:[%s0 + $0x130] sm:$0xff]
  %v77 = vld [vmem:[%s0 + $0x138] sm:$0xff]
  %v78 = vld [vmem:[%s0 + $0x140] sm:$0xff]
  %v79 = vld [vmem:[%s0 + $0x148] sm:$0xff]
  %v80 = vld [vmem:[%s0 + $0x150] sm:$0xff]
  %v81 = vld [vmem:[%s0 + $0x158] sm:$0xff]
  %v82 = vld [vmem:[%s0 + $0x160] sm:$0xff]
  %v83 = vld [vmem:[%s0 + $0x168] sm:$0xff]
  %v84 = vld [vmem:[%s0 + $0x170] sm:$0xff]
  %v85 = vld [vmem:[%s0 + $0x178] sm:$0xff]
  %v86 = vld [vmem:[%s0 + $0x180] sm:$0xff]
  %v87 = vld [vmem:[%s0 + $0x188] sm:$0xff]
  %v88 = vld [vmem:[%s0 + $0x190] sm:$0xff]
  %v89 = vld [vmem:[%s0 + $0x198] sm:$0xff]
  %v90 = vld [vmem:[%s0 + $0x1a0] sm:$0xff]
  %v91 = vld [vmem:[%s0 + $0x1a8] sm:$0xff]
  %v92 = vld [vmem:[%s0 + $0x1b0] sm:$0xff]
  %v93 = vld [vmem:[%s0 + $0x1b8] sm:$0xff]
  %v94 = vld [vmem:[%s0 + $0x1c0] sm:$0xff]
  %v95 = vld [vmem:[%s0 + $0x1c8] sm:$0xff]
  %v96 = vld [vmem:[%s0 + $0x1d0] sm:$0xff]
  %v97 = vld [vmem:[%s0 + $0x1d8] sm:$0xff]
  %v98 = vld [vmem:[%s0 + $0x1e0] sm:$0xff]
  %v99 = vld [vmem:[%s0 + $0x1e8] sm:$0xff]
  %v100 = vld [vmem:[%s0 + $0x1f0] sm:$0xff]
  %v101 = vld [vmem:[%s0 + $0x1f8] sm:$0xff]
  %v102 = vld [vmem:[%s0 + $0x200] sm:$0xff]
  %v103 = vld [vmem:[%s0 + $0x208] sm:$0xff]
  %v104 = vld [vmem:[%s0 + $0x210] sm:$0xff]
  %v105 = vld [vmem:[%s0 + $0x218] sm:$0xff]
  %v106 = vld [vmem:[%s0 + $0x220] sm:$0xff]
  %v107 = vld [vmem:[%s0 + $0x228] sm:$0xff]
  %v108 = vld [vmem:[%s0 + $0x230] sm:$0xff]
  %v109 = vld [vmem:[%s0 + $0x238] sm:$0xff]
  %v110 = vld [vmem:[%s0 + $0x240] sm:$0xff]
  %v111 = vld [vmem:[%s0 + $0x248] sm:$0xff]
  %v112 = vld [vmem:[%s0 + $0x250] sm:$0xff]
  %v113 = vld [vmem:[%s0 + $0x258] sm:$0xff]
  %v114 = vld [vmem:[%s0 + $0x260] sm:$0xff]
  %v115 = vld [vmem:[%s0 + $0x268] sm:$0xff]
  %v116 = vld [vmem:[%s0 + $0x270] sm:$0xff]
  %v117 = vld [vmem:[%s0 + $0x278] sm:$0xff]
  %v118 = vmax.f32 %v38, %v43
  %v119 = vmax.f32 %v118, %v48
  %v120 = vmax.f32 %v119, %v53
  %v121 = vmax.f32 %v120, %v58
  %v122 = vmax.f32 %v121, %v63
  %v123 = vmax.f32 %v122, %v68
  %v124 = vmax.f32 %v123, %v73
  %v125 = vrot.slane %v124, 4
  %v126 = vmax.f32 %v124, %v125
  %v127 = vrot.slane %v126, 2
  %v128 = vmax.f32 %v126, %v127
  %v129 = vrot.slane %v128, 1
  %v130 = vmax.f32 %v128, %v129
  %v131 = vmax.f32 %v39, %v44
  %v132 = vmax.f32 %v131, %v49
  %v133 = vmax.f32 %v132, %v54
  %v134 = vmax.f32 %v133, %v59
  %v135 = vmax.f32 %v134, %v64
  %v136 = vmax.f32 %v135, %v69
  %v137 = vmax.f32 %v136, %v74
  %v138 = vrot.slane %v137, 4
  %v139 = vmax.f32 %v137, %v138
  %v140 = vrot.slane %v139, 2
  %v141 = vmax.f32 %v139, %v140
  %v142 = vrot.slane %v141, 1
  %v143 = vmax.f32 %v141, %v142
  %v144 = vmax.f32 %v40, %v45
  %v145 = vmax.f32 %v144, %v50
  %v146 = vmax.f32 %v145, %v55
  %v147 = vmax.f32 %v146, %v60
  %v148 = vmax.f32 %v147, %v65
  %v149 = vmax.f32 %v148, %v70
  %v150 = vmax.f32 %v149, %v75
  %v151 = vrot.slane %v150, 4
  %v152 = vmax.f32 %v150, %v151
  %v153 = vrot.slane %v152, 2
  %v154 = vmax.f32 %v152, %v153
  %v155 = vrot.slane %v154, 1
  %v156 = vmax.f32 %v154, %v155
  %v157 = vmax.f32 %v41, %v46
  %v158 = vmax.f32 %v157, %v51
  %v159 = vmax.f32 %v158, %v56
  %v160 = vmax.f32 %v159, %v61
  %v161 = vmax.f32 %v160, %v66
  %v162 = vmax.f32 %v161, %v71
  %v163 = vmax.f32 %v162, %v76
  %v164 = vrot.slane %v163, 4
  %v165 = vmax.f32 %v163, %v164
  %v166 = vrot.slane %v165, 2
  %v167 = vmax.f32 %v165, %v166
  %v168 = vrot.slane %v167, 1
  %v169 = vmax.f32 %v167, %v168
  %vm170 = vcmask 621568
  %v171 = vsel %vm170, %v42, -inf
  %v172 = vsel %vm170, %v47, -inf
  %v173 = vmax.f32 %v171, %v172
  %v174 = vsel %vm170, %v52, -inf
  %v175 = vmax.f32 %v173, %v174
  %v176 = vsel %vm170, %v57, -inf
  %v177 = vmax.f32 %v175, %v176
  %v178 = vsel %vm170, %v62, -inf
  %v179 = vmax.f32 %v177, %v178
  %v180 = vsel %vm170, %v67, -inf
  %v181 = vmax.f32 %v179, %v180
  %v182 = vsel %vm170, %v72, -inf
  %v183 = vmax.f32 %v181, %v182
  %v184 = vsel %vm170, %v77, -inf
  %v185 = vmax.f32 %v183, %v184
  %v186 = vrot.slane %v185, 4
  %v187 = vmax.f32 %v185, %v186
  %v188 = vrot.slane %v187, 2
  %v189 = vmax.f32 %v187, %v188
  %v190 = vrot.slane %v189, 1
  %v191 = vmax.f32 %v189, %v190
  %v192 = vmax.f32 %v78, %v83
  %v193 = vmax.f32 %v192, %v88
  %v194 = vmax.f32 %v193, %v93
  %v195 = vmax.f32 %v194, %v98
  %v196 = vmax.f32 %v195, %v103
  %v197 = vmax.f32 %v196, %v108
  %v198 = vmax.f32 %v197, %v113
  %v199 = vrot.slane %v198, 4
  %v200 = vmax.f32 %v198, %v199
  %v201 = vrot.slane %v200, 2
  %v202 = vmax.f32 %v200, %v201
  %v203 = vrot.slane %v202, 1
  %v204 = vmax.f32 %v202, %v203
  %v205 = vmax.f32 %v79, %v84
  %v206 = vmax.f32 %v205, %v89
  %v207 = vmax.f32 %v206, %v94
  %v208 = vmax.f32 %v207, %v99
  %v209 = vmax.f32 %v208, %v104
  %v210 = vmax.f32 %v209, %v109
  %v211 = vmax.f32 %v210, %v114
  %v212 = vrot.slane %v211, 4
  %v213 = vmax.f32 %v211, %v212
  %v214 = vrot.slane %v213, 2
  %v215 = vmax.f32 %v213, %v214
  %v216 = vrot.slane %v215, 1
  %v217 = vmax.f32 %v215, %v216
  %v218 = vmax.f32 %v80, %v85
  %v219 = vmax.f32 %v218, %v90
  %v220 = vmax.f32 %v219, %v95
  %v221 = vmax.f32 %v220, %v100
  %v222 = vmax.f32 %v221, %v105
  %v223 = vmax.f32 %v222, %v110
  %v224 = vmax.f32 %v223, %v115
  %v225 = vrot.slane %v224, 4
  %v226 = vmax.f32 %v224, %v225
  %v227 = vrot.slane %v226, 2
  %v228 = vmax.f32 %v226, %v227
  %v229 = vrot.slane %v228, 1
  %v230 = vmax.f32 %v228, %v229
  %v231 = vmax.f32 %v81, %v86
  %v232 = vmax.f32 %v231, %v91
  %v233 = vmax.f32 %v232, %v96
  %v234 = vmax.f32 %v233, %v101
  %v235 = vmax.f32 %v234, %v106
  %v236 = vmax.f32 %v235, %v111
  %v237 = vmax.f32 %v236, %v116
  %v238 = vrot.slane %v237, 4
  %v239 = vmax.f32 %v237, %v238
  %v240 = vrot.slane %v239, 2
  %v241 = vmax.f32 %v239, %v240
  %v242 = vrot.slane %v241, 1
  %v243 = vmax.f32 %v241, %v242
  %v244 = vsel %vm170, %v82, -inf
  %v245 = vsel %vm170, %v87, -inf
  %v246 = vmax.f32 %v244, %v245
  %v247 = vsel %vm170, %v92, -inf
  %v248 = vmax.f32 %v246, %v247
  %v249 = vsel %vm170, %v97, -inf
  %v250 = vmax.f32 %v248, %v249
  %v251 = vsel %vm170, %v102, -inf
  %v252 = vmax.f32 %v250, %v251
  %v253 = vsel %vm170, %v107, -inf
  %v254 = vmax.f32 %v252, %v253
  %v255 = vsel %vm170, %v112, -inf
  %v256 = vmax.f32 %v254, %v255
  %v257 = vsel %vm170, %v117, -inf
  %v258 = vmax.f32 %v256, %v257
  %v259 = vrot.slane %v258, 4
  %v260 = vmax.f32 %v258, %v259
  %v261 = vrot.slane %v260, 2
  %v262 = vmax.f32 %v260, %v261
  %v263 = vrot.slane %v262, 1
  %v264 = vmax.f32 %v262, %v263
  %v265 = vld [vmem:[%s1] sm:$0x1f]
  %v267 = vperm.slane %v265, 0
  %v268 = vperm.slane %v265, 1
  %v269 = vperm.slane %v265, 2
  %v270 = vperm.slane %v265, 3
  %v271 = vperm.slane %v265, 4
  %v277 = vsub.f32 %v130, %v267
  %v278 = vsub.f32 %v143, %v268
  %v279 = vsub.f32 %v156, %v269
  %v280 = vsub.f32 %v169, %v270
  %v281 = vsub.f32 %v191, %v271
  %v282 = vsub.f32 %v204, %v267
  %v283 = vsub.f32 %v217, %v268
  %v284 = vsub.f32 %v230, %v269
  %v285 = vsub.f32 %v243, %v270
  %v286 = vsub.f32 %v264, %v271
  %v287 = vld [vmem:[%s2] sm:$0x1f]
  %v289 = vperm.slane %v287, 0
  %v290 = vperm.slane %v287, 1
  %v291 = vperm.slane %v287, 2
  %v292 = vperm.slane %v287, 3
  %v293 = vperm.slane %v287, 4
  %v299 = vrcp.pop %v289
  %v300 = vmul.f32 %v289, %v299
  %v301 = vsub.f32 1.0, %v300
  %v302 = vmul.f32 %v299, %v301
  %v303 = vadd.f32 %v299, %v302
  %vm304 = vweird.f32 %v289
  %vm305 = vweird.f32 %v299
  %vm306 = vmor %vm304, %vm305
  %v307 = vsel %vm306, %v299, %v303
  %v308 = vand.u32 2147483647, %v289
  %vm309 = vcmp.eq.f32.partialorder %v308, 8.507059e+37
  %v310 = vand.u32 %v289, 2147483648
  %v311 = vor.u32 1.1754944e-38, %v310
  %v312 = vsel %vm309, %v311, %v307
  %v313 = vmul.f32 %v277, %v312
  %v314 = vrcp.pop %v290
  %v315 = vmul.f32 %v290, %v314
  %v316 = vsub.f32 1.0, %v315
  %v317 = vmul.f32 %v314, %v316
  %v318 = vadd.f32 %v314, %v317
  %vm319 = vweird.f32 %v290
  %vm320 = vweird.f32 %v314
  %vm321 = vmor %vm319, %vm320
  %v322 = vsel %vm321, %v314, %v318
  %v323 = vand.u32 2147483647, %v290
  %vm324 = vcmp.eq.f32.partialorder %v323, 8.507059e+37
  %v325 = vand.u32 %v290, 2147483648
  %v326 = vor.u32 1.1754944e-38, %v325
  %v327 = vsel %vm324, %v326, %v322
  %v328 = vmul.f32 %v278, %v327
  %v329 = vrcp.pop %v291
  %v330 = vmul.f32 %v291, %v329
  %v331 = vsub.f32 1.0, %v330
  %v332 = vmul.f32 %v329, %v331
  %v333 = vadd.f32 %v329, %v332
  %vm334 = vweird.f32 %v291
  %vm335 = vweird.f32 %v329
  %vm336 = vmor %vm334, %vm335
  %v337 = vsel %vm336, %v329, %v333
  %v338 = vand.u32 2147483647, %v291
  %vm339 = vcmp.eq.f32.partialorder %v338, 8.507059e+37
  %v340 = vand.u32 %v291, 2147483648
  %v341 = vor.u32 1.1754944e-38, %v340
  %v342 = vsel %vm339, %v341, %v337
  %v343 = vmul.f32 %v279, %v342
  %v344 = vrcp.pop %v292
  %v345 = vmul.f32 %v292, %v344
  %v346 = vsub.f32 1.0, %v345
  %v347 = vmul.f32 %v344, %v346
  %v348 = vadd.f32 %v344, %v347
  %vm349 = vweird.f32 %v292
  %vm350 = vweird.f32 %v344
  %vm351 = vmor %vm349, %vm350
  %v352 = vsel %vm351, %v344, %v348
  %v353 = vand.u32 2147483647, %v292
  %vm354 = vcmp.eq.f32.partialorder %v353, 8.507059e+37
  %v355 = vand.u32 %v292, 2147483648
  %v356 = vor.u32 1.1754944e-38, %v355
  %v357 = vsel %vm354, %v356, %v352
  %v358 = vmul.f32 %v280, %v357
  %v359 = vrcp.pop %v293
  %v360 = vmul.f32 %v293, %v359
  %v361 = vsub.f32 1.0, %v360
  %v362 = vmul.f32 %v359, %v361
  %v363 = vadd.f32 %v359, %v362
  %vm364 = vweird.f32 %v293
  %vm365 = vweird.f32 %v359
  %vm366 = vmor %vm364, %vm365
  %v367 = vsel %vm366, %v359, %v363
  %v368 = vand.u32 2147483647, %v293
  %vm369 = vcmp.eq.f32.partialorder %v368, 8.507059e+37
  %v370 = vand.u32 %v293, 2147483648
  %v371 = vor.u32 1.1754944e-38, %v370
  %v372 = vsel %vm369, %v371, %v367
  %v373 = vmul.f32 %v281, %v372
  %v374 = vmul.f32 %v282, %v312
  %v375 = vmul.f32 %v283, %v327
  %v376 = vmul.f32 %v284, %v342
  %v377 = vmul.f32 %v285, %v357
  %v378 = vmul.f32 %v286, %v372
  %v379 = vld [vmem:[%s3] sm:$0xff]
  %v380 = vld [vmem:[%s3 + $0x8] sm:$0xff]
  %v381 = vld [vmem:[%s3 + $0x10] sm:$0xff]
  %v382 = vld [vmem:[%s3 + $0x18] sm:$0xff]
  %v383 = vld [vmem:[%s3 + $0x20] sm:$0xff]
  %v384 = vld [vmem:[%s3 + $0x28] sm:$0xff]
  %v385 = vld [vmem:[%s3 + $0x30] sm:$0xff]
  %v386 = vld [vmem:[%s3 + $0x38] sm:$0xff]
  %v387 = vld [vmem:[%s3 + $0x40] sm:$0xff]
  %v388 = vld [vmem:[%s3 + $0x48] sm:$0xff]
  %v389 = vld [vmem:[%s3 + $0x50] sm:$0xff]
  %v390 = vld [vmem:[%s3 + $0x58] sm:$0xff]
  %v391 = vld [vmem:[%s3 + $0x60] sm:$0xff]
  %v392 = vld [vmem:[%s3 + $0x68] sm:$0xff]
  %v393 = vld [vmem:[%s3 + $0x70] sm:$0xff]
  %v394 = vld [vmem:[%s3 + $0x78] sm:$0xff]
  %v395 = vld [vmem:[%s3 + $0x80] sm:$0xff]
  %v396 = vld [vmem:[%s3 + $0x88] sm:$0xff]
  %v397 = vld [vmem:[%s3 + $0x90] sm:$0xff]
  %v398 = vld [vmem:[%s3 + $0x98] sm:$0xff]
  %v399 = vld [vmem:[%s3 + $0xa0] sm:$0xff]
  %v400 = vld [vmem:[%s3 + $0xa8] sm:$0xff]
  %v401 = vld [vmem:[%s3 + $0xb0] sm:$0xff]
  %v402 = vld [vmem:[%s3 + $0xb8] sm:$0xff]
  %v403 = vld [vmem:[%s3 + $0xc0] sm:$0xff]
  %v404 = vld [vmem:[%s3 + $0xc8] sm:$0xff]
  %v405 = vld [vmem:[%s3 + $0xd0] sm:$0xff]
  %v406 = vld [vmem:[%s3 + $0xd8] sm:$0xff]
  %v407 = vld [vmem:[%s3 + $0xe0] sm:$0xff]
  %v408 = vld [vmem:[%s3 + $0xe8] sm:$0xff]
  %v409 = vld [vmem:[%s3 + $0xf0] sm:$0xff]
  %v410 = vld [vmem:[%s3 + $0xf8] sm:$0xff]
  %v411 = vld [vmem:[%s3 + $0x100] sm:$0xff]
  %v412 = vld [vmem:[%s3 + $0x108] sm:$0xff]
  %v413 = vld [vmem:[%s3 + $0x110] sm:$0xff]
  %v414 = vld [vmem:[%s3 + $0x118] sm:$0xff]
  %v415 = vld [vmem:[%s3 + $0x120] sm:$0xff]
  %v416 = vld [vmem:[%s3 + $0x128] sm:$0xff]
  %v417 = vld [vmem:[%s3 + $0x130] sm:$0xff]
  %v418 = vld [vmem:[%s3 + $0x138] sm:$0xff]
  %v419 = vld [vmem:[%s3 + $0x140] sm:$0xff]
  %v420 = vld [vmem:[%s3 + $0x148] sm:$0xff]
  %v421 = vld [vmem:[%s3 + $0x150] sm:$0xff]
  %v422 = vld [vmem:[%s3 + $0x158] sm:$0xff]
  %v423 = vld [vmem:[%s3 + $0x160] sm:$0xff]
  %v424 = vld [vmem:[%s3 + $0x168] sm:$0xff]
  %v425 = vld [vmem:[%s3 + $0x170] sm:$0xff]
  %v426 = vld [vmem:[%s3 + $0x178] sm:$0xff]
  %v427 = vld [vmem:[%s3 + $0x180] sm:$0xff]
  %v428 = vld [vmem:[%s3 + $0x188] sm:$0xff]
  %v429 = vld [vmem:[%s3 + $0x190] sm:$0xff]
  %v430 = vld [vmem:[%s3 + $0x198] sm:$0xff]
  %v431 = vld [vmem:[%s3 + $0x1a0] sm:$0xff]
  %v432 = vld [vmem:[%s3 + $0x1a8] sm:$0xff]
  %v433 = vld [vmem:[%s3 + $0x1b0] sm:$0xff]
  %v434 = vld [vmem:[%s3 + $0x1b8] sm:$0xff]
  %v435 = vld [vmem:[%s3 + $0x1c0] sm:$0xff]
  %v436 = vld [vmem:[%s3 + $0x1c8] sm:$0xff]
  %v437 = vld [vmem:[%s3 + $0x1d0] sm:$0xff]
  %v438 = vld [vmem:[%s3 + $0x1d8] sm:$0xff]
  %v439 = vld [vmem:[%s3 + $0x1e0] sm:$0xff]
  %v440 = vld [vmem:[%s3 + $0x1e8] sm:$0xff]
  %v441 = vld [vmem:[%s3 + $0x1f0] sm:$0xff]
  %v442 = vld [vmem:[%s3 + $0x1f8] sm:$0xff]
  %v443 = vld [vmem:[%s3 + $0x200] sm:$0xff]
  %v444 = vld [vmem:[%s3 + $0x208] sm:$0xff]
  %v445 = vld [vmem:[%s3 + $0x210] sm:$0xff]
  %v446 = vld [vmem:[%s3 + $0x218] sm:$0xff]
  %v447 = vld [vmem:[%s3 + $0x220] sm:$0xff]
  %v448 = vld [vmem:[%s3 + $0x228] sm:$0xff]
  %v449 = vld [vmem:[%s3 + $0x230] sm:$0xff]
  %v450 = vld [vmem:[%s3 + $0x238] sm:$0xff]
  %v451 = vld [vmem:[%s3 + $0x240] sm:$0xff]
  %v452 = vld [vmem:[%s3 + $0x248] sm:$0xf]
  %v453 = vld [vmem:[%s4] sm:$0x1]
  %v455 = vperm.slane %v453, 0
  %v467 = vrot.slane %v374, 7
  %vm468 = vcmask 1041409
  %v469 = vsel %vm468, %v467, %v313
  %v470 = vrot.slane %v375, 7
  %v471 = vsel %vm468, %v470, %v328
  %v472 = vrot.slane %v376, 7
  %v473 = vsel %vm468, %v472, %v343
  %v474 = vrot.slane %v377, 7
  %v475 = vsel %vm468, %v474, %v358
  %v476 = vrot.slane %v378, 7
  %v477 = vsel %vm468, %v476, %v373
  %v482 = vsel %vm170, %v477, 0
  %vm484 = vcmask 1043456
  %v486 = vsel %vm484, %v452, 0
  %488 = vmatpush.msra.mxu0 %v394
  %489 = vmatpush.msra.mxu0 %v393
  %490 = vmatpush.msra.mxu0 %v392
  %491 = vmatpush.msra.mxu0 %v391
  %492 = vmatpush.msra.mxu0 %v390
  %493 = vmatpush.msra.mxu0 %v389
  %494 = vmatpush.msra.mxu0 %v388
  %495 = vmatpush.msra.mxu0 %v387
  %496 = vmatpush.msra.mxu0 %v386
  %497 = vmatpush.msra.mxu0 %v385
  %498 = vmatpush.msra.mxu0 %v384
  %499 = vmatpush.msra.mxu0 %v383
  %500 = vmatpush.msra.mxu0 %v382
  %501 = vmatpush.msra.mxu0 %v381
  %502 = vmatpush.msra.mxu0 %v380
  %503 = vmatpush.msra.mxu0 %v379
  %504 = vmatmul.f32.gmra.mxu0 %v469
  %v505 = vpop.f32.mrf.mxu0
  %v506 = vadd.f32 %v455, %v505
  %507 = vdwg.mxu0
  %508 = vmatpush.msra.mxu0 %v410
  %509 = vmatpush.msra.mxu0 %v409
  %510 = vmatpush.msra.mxu0 %v408
  %511 = vmatpush.msra.mxu0 %v407
  %512 = vmatpush.msra.mxu0 %v406
  %513 = vmatpush.msra.mxu0 %v405
  %514 = vmatpush.msra.mxu0 %v404
  %515 = vmatpush.msra.mxu0 %v403
  %516 = vmatpush.msra.mxu0 %v402
  %517 = vmatpush.msra.mxu0 %v401
  %518 = vmatpush.msra.mxu0 %v400
  %519 = vmatpush.msra.mxu0 %v399
  %520 = vmatpush.msra.mxu0 %v398
  %521 = vmatpush.msra.mxu0 %v397
  %522 = vmatpush.msra.mxu0 %v396
  %523 = vmatpush.msra.mxu0 %v395
  %524 = vmatmul.f32.gmra.mxu0 %v471
  %v525 = vpop.f32.mrf.mxu0
  %v526 = vadd.f32 %v506, %v525
  %527 = vdwg.mxu0
  %528 = vmatpush.msra.mxu0 %v426
  %529 = vmatpush.msra.mxu0 %v425
  %530 = vmatpush.msra.mxu0 %v424
  %531 = vmatpush.msra.mxu0 %v423
  %532 = vmatpush.msra.mxu0 %v422
  %533 = vmatpush.msra.mxu0 %v421
  %534 = vmatpush.msra.mxu0 %v420
  %535 = vmatpush.msra.mxu0 %v419
  %536 = vmatpush.msra.mxu0 %v418
  %537 = vmatpush.msra.mxu0 %v417
  %538 = vmatpush.msra.mxu0 %v416
  %539 = vmatpush.msra.mxu0 %v415
  %540 = vmatpush.msra.mxu0 %v414
  %541 = vmatpush.msra.mxu0 %v413
  %542 = vmatpush.msra.mxu0 %v412
  %543 = vmatpush.msra.mxu0 %v411
  %544 = vmatmul.f32.gmra.mxu0 %v473
  %v545 = vpop.f32.mrf.mxu0
  %v546 = vadd.f32 %v526, %v545
  %547 = vdwg.mxu0
  %548 = vmatpush.msra.mxu0 %v442
  %549 = vmatpush.msra.mxu0 %v441
  %550 = vmatpush.msra.mxu0 %v440
  %551 = vmatpush.msra.mxu0 %v439
  %552 = vmatpush.msra.mxu0 %v438
  %553 = vmatpush.msra.mxu0 %v437
  %554 = vmatpush.msra.mxu0 %v436
  %555 = vmatpush.msra.mxu0 %v435
  %556 = vmatpush.msra.mxu0 %v434
  %557 = vmatpush.msra.mxu0 %v433
  %558 = vmatpush.msra.mxu0 %v432
  %559 = vmatpush.msra.mxu0 %v431
  %560 = vmatpush.msra.mxu0 %v430
  %561 = vmatpush.msra.mxu0 %v429
  %562 = vmatpush.msra.mxu0 %v428
  %563 = vmatpush.msra.mxu0 %v427
  %564 = vmatmul.f32.gmra.mxu0 %v475
  %v565 = vpop.f32.mrf.mxu0
  %v566 = vadd.f32 %v546, %v565
  %567 = vdwg.mxu0
  %568 = vmatpush.msra.mxu0 0.0
  %569 = vmatpush.msra.mxu0 0.0
  %570 = vmatpush.msra.mxu0 0.0
  %571 = vmatpush.msra.mxu0 0.0
  %572 = vmatpush.msra.mxu0 0.0
  %573 = vmatpush.msra.mxu0 0.0
  %574 = vmatpush.msra.mxu0 %v486
  %575 = vmatpush.msra.mxu0 %v451
  %576 = vmatpush.msra.mxu0 %v450
  %577 = vmatpush.msra.mxu0 %v449
  %578 = vmatpush.msra.mxu0 %v448
  %579 = vmatpush.msra.mxu0 %v447
  %580 = vmatpush.msra.mxu0 %v446
  %581 = vmatpush.msra.mxu0 %v445
  %582 = vmatpush.msra.mxu0 %v444
  %583 = vmatpush.msra.mxu0 %v443
  %584 = vmatmul.f32.gmra.mxu0 %v482
  %v585 = vpop.f32.mrf.mxu0
  %v586 = vadd.f32 %v566, %v585
  %587 = vdwg.mxu0
  %v588 = vld [vmem:[%s5] sm:$0xff]
  %v589 = vld [vmem:[%s5 + $0x8] sm:$0xff]
  %v590 = vld [vmem:[%s5 + $0x10] sm:$0xff]
  %v591 = vld [vmem:[%s5 + $0x18] sm:$0xff]
  %v592 = vld [vmem:[%s5 + $0x20] sm:$0xff]
  %v593 = vld [vmem:[%s5 + $0x28] sm:$0xff]
  %v594 = vld [vmem:[%s5 + $0x30] sm:$0xff]
  %v595 = vld [vmem:[%s5 + $0x38] sm:$0xff]
  %v596 = vld [vmem:[%s6] sm:$0x1]
  %v598 = vperm.slane %v596, 0
  %vm600 = vcmask 523264
  %v602 = vsel %vm600, %v586, 0
  %604 = vmatpush.msra.mxu0 0.0
  %605 = vmatpush.msra.mxu0 0.0
  %606 = vmatpush.msra.mxu0 0.0
  %607 = vmatpush.msra.mxu0 0.0
  %608 = vmatpush.msra.mxu0 0.0
  %609 = vmatpush.msra.mxu0 0.0
  %610 = vmatpush.msra.mxu0 0.0
  %611 = vmatpush.msra.mxu0 0.0
  %612 = vmatpush.msra.mxu0 %v595
  %613 = vmatpush.msra.mxu0 %v594
  %614 = vmatpush.msra.mxu0 %v593
  %615 = vmatpush.msra.mxu0 %v592
  %616 = vmatpush.msra.mxu0 %v591
  %617 = vmatpush.msra.mxu0 %v590
  %618 = vmatpush.msra.mxu0 %v589
  %619 = vmatpush.msra.mxu0 %v588
  %620 = vmatmul.f32.gmra.mxu0 %v602
  %v621 = vpop.f32.mrf.mxu0
  %v622 = vadd.f32 %v598, %v621
  %623 = vdwg.mxu0
  %v624 = vmax.f32 %v622, 0.0
  %v625 = vld [vmem:[%s7] sm:$0xff]
  %v626 = vld [vmem:[%s7 + $0x8] sm:$0xff]
  %v627 = vld [vmem:[%s7 + $0x10] sm:$0xff]
  %v628 = vld [vmem:[%s7 + $0x18] sm:$0xff]
  %v629 = vld [vmem:[%s7 + $0x20] sm:$0xff]
  %v630 = vld [vmem:[%s7 + $0x28] sm:$0xff]
  %v631 = vld [vmem:[%s7 + $0x30] sm:$0xff]
  %v632 = vld [vmem:[%s7 + $0x38] sm:$0xff]
  %v633 = vld [vmem:[%s8] sm:$0x1]
  %v635 = vperm.slane %v633, 0
  %v638 = vsel %vm600, %v624, 0
  %640 = vmatpush.msra.mxu0 0.0
  %641 = vmatpush.msra.mxu0 0.0
  %642 = vmatpush.msra.mxu0 0.0
  %643 = vmatpush.msra.mxu0 0.0
  %644 = vmatpush.msra.mxu0 0.0
  %645 = vmatpush.msra.mxu0 0.0
  %646 = vmatpush.msra.mxu0 0.0
  %647 = vmatpush.msra.mxu0 0.0
  %648 = vmatpush.msra.mxu0 %v632
  %649 = vmatpush.msra.mxu0 %v631
  %650 = vmatpush.msra.mxu0 %v630
  %651 = vmatpush.msra.mxu0 %v629
  %652 = vmatpush.msra.mxu0 %v628
  %653 = vmatpush.msra.mxu0 %v627
  %654 = vmatpush.msra.mxu0 %v626
  %655 = vmatpush.msra.mxu0 %v625
  %656 = vmatmul.f32.gmra.mxu0 %v638
  %v657 = vpop.f32.mrf.mxu0
  %v658 = vadd.f32 %v635, %v657
  %659 = vdwg.mxu0
  %v660 = vmax.f32 %v658, 0.0
  %v661 = vld [vmem:[%s9] sm:$0xff]
  %v662 = vld [vmem:[%s9 + $0x8] sm:$0xff]
  %v663 = vld [vmem:[%s9 + $0x10] sm:$0xff]
  %v664 = vld [vmem:[%s9 + $0x18] sm:$0xff]
  %v665 = vld [vmem:[%s9 + $0x20] sm:$0xff]
  %v666 = vld [vmem:[%s9 + $0x28] sm:$0xff]
  %v667 = vld [vmem:[%s9 + $0x30] sm:$0xff]
  %v668 = vld [vmem:[%s9 + $0x38] sm:$0xff]
  %v669 = vld [vmem:[%s10] sm:$0x1]
  %v671 = vperm.slane %v669, 0
  %v674 = vsel %vm600, %v660, 0
  %676 = vmatpush.msra.mxu0 0.0
  %677 = vmatpush.msra.mxu0 0.0
  %678 = vmatpush.msra.mxu0 0.0
  %679 = vmatpush.msra.mxu0 0.0
  %680 = vmatpush.msra.mxu0 0.0
  %681 = vmatpush.msra.mxu0 0.0
  %682 = vmatpush.msra.mxu0 0.0
  %683 = vmatpush.msra.mxu0 0.0
  %684 = vmatpush.msra.mxu0 %v668
  %685 = vmatpush.msra.mxu0 %v667
  %686 = vmatpush.msra.mxu0 %v666
  %687 = vmatpush.msra.mxu0 %v665
  %688 = vmatpush.msra.mxu0 %v664
  %689 = vmatpush.msra.mxu0 %v663
  %690 = vmatpush.msra.mxu0 %v662
  %691 = vmatpush.msra.mxu0 %v661
  %692 = vmatmul.f32.gmra.mxu0 %v674
  %v693 = vpop.f32.mrf.mxu0
  %v694 = vadd.f32 %v671, %v693
  %695 = vdwg.mxu0
  %696 = vst [vmem:[%s11] sm:$0x3] %v694
  // Predicated region
  $region46: #{net_forward.27} parent=0 // pred_check
    _
  $region47: #{net_forward.27} parent=0 // pred_check_branch
    %698 = sbr.rel (0) target = $region49
  $region48: #{net_forward.27} parent=0 // pred_region
    _
  $region49: #{net_forward.27} parent=0 // pred_fallthru
    _
  // Predicated region
  $region50: #{net_forward.27} parent=0 // pred_check
    _
  $region51: #{net_forward.27} parent=0 // pred_check_branch
    %700 = sbr.rel (0) target = $region53
  $region52: #{net_forward.27} parent=0 // pred_region
    _
  $region53: #{net_forward.27} parent=0 // pred_fallthru
    _

// kernel: net_forward.28
$region0: #{net_forward.28}
  #allocation0 [shape = 'u32[]', space=smem, size = 0x4, offset = 0x4, fixed_abs, tag = 'smem constant byte address 0x4 - core index']
  #allocation1 [shape = 'u32[72,128]{1,0:T(1,128)}', space=vmem, size = 0x9000, scoped, tag = 'internal scratch']
  %s0 = inlined_call_operand.vmem [shape: f32[4,128], index: 0, kind: input, shape index: {}]
  %s1 = inlined_call_operand.vmem [shape: f32[1,128], index: 1, kind: input, shape index: {}]
  %s2 = inlined_call_operand.vmem [shape: f32[1,128], index: 2, kind: input, shape index: {}]
  %s3 = inlined_call_operand.vmem [shape: f32[4,128], index: 3, kind: output, shape index: {}]
  %s4 = sld [smem:[#allocation0]]
  $region22: #{net_forward.28} parent=0
    _
  %s6 = ssub.s32 1, %s4
  %s7 = scalar_select 0, %s6, %s4
  // Predicated region
  $region2: #{net_forward.28} parent=0 // pred_check
    _
  $region3: #{net_forward.28} parent=0 // pred_check_branch
    %9 = sbr.rel (0) target = $region5
  $region4: #{net_forward.28} parent=0 // pred_region
    _
  $region5: #{net_forward.28} parent=0 // pred_fallthru
    _
  // Predicated region
  $region6: #{net_forward.28} parent=0 // pred_check
    _
  $region7: #{net_forward.28} parent=0 // pred_check_branch
    %11 = sbr.rel (0) target = $region9
  $region8: #{net_forward.28} parent=0 // pred_region
    _
  $region9: #{net_forward.28} parent=0 // pred_fallthru
    _
  // Predicated region
  $region10: #{net_forward.28} parent=0 // pred_check
    _
  $region11: #{net_forward.28} parent=0 // pred_check_branch
    %13 = sbr.rel (0) target = $region13
  $region12: #{net_forward.28} parent=0 // pred_region
    _
  $region13: #{net_forward.28} parent=0 // pred_fallthru
    _
  %v14 = vld [vmem:[%s0] sm:$0xf]
  %vm15 = vcmask 1043456
  %v16 = vsel %vm15, %v14, 0.0
  %v17 = vrot.slane %v16, 4
  %v18 = vadd.f32 %v16, %v17
  %v19 = vrot.slane %v18, 2
  %v20 = vadd.f32 %v18, %v19
  %v21 = vrot.slane %v20, 1
  %v22 = vadd.f32 %v20, %v21
  %v23 = vrcp.pop 4.0
  %v24 = vmul.f32 4.0, %v23
  %v25 = vsub.f32 1.0, %v24
  %v26 = vmul.f32 %v23, %v25
  %v27 = vadd.f32 %v23, %v26
  %vm28 = vweird.f32 %v23
  %v29 = vsel %vm28, %v23, %v27
  %v30 = vmul.f32 %v22, %v29
  %v31 = vsub.f32 %v14, %v30
  %v32 = vmul.f32 %v31, %v31
  %v33 = vsel %vm15, %v32, 0.0
  %v34 = vrot.slane %v33, 4
  %v35 = vadd.f32 %v33, %v34
  %v36 = vrot.slane %v35, 2
  %v37 = vadd.f32 %v35, %v36
  %v38 = vrot.slane %v37, 1
  %v39 = vadd.f32 %v37, %v38
  %v40 = vrcp.pop 3.0
  %v41 = vmul.f32 3.0, %v40
  %v42 = vsub.f32 1.0, %v41
  %v43 = vmul.f32 %v40, %v42
  %v44 = vadd.f32 %v40, %v43
  %vm45 = vweird.f32 %v40
  %v46 = vsel %vm45, %v40, %v44
  %v47 = vmul.f32 %v39, %v46
  %v48 = vadd.f32 %v47, 1e-05
  %v49 = vrsqrt.pop %v48
  %v50 = vmul.f32 %v49, %v48
  %v51 = vmul.f32 %v50, %v49
  %v52 = vmul.f32 0.5, %v51
  %v53 = vsub.f32 1.5, %v52
  %v54 = vmul.f32 %v49, %v53
  %v55 = vmul.f32 %v48, %v54
  %vm56 = vcmp.eq.f32.partialorder %v48, inf
  %v57 = vsel %vm56, %v48, %v55
  %vm58 = vcmp.eq.f32.partialorder %v48, 0.0
  %v59 = vand.u32 %v48, 2147483648
  %v60 = vsel %vm58, %v59, %v57
  %v61 = vrcp.pop %v60
  %v62 = vmul.f32 %v60, %v61
  %v63 = vsub.f32 1.0, %v62
  %v64 = vmul.f32 %v61, %v63
  %v65 = vadd.f32 %v61, %v64
  %vm66 = vweird.f32 %v60
  %vm67 = vweird.f32 %v61
  %vm68 = vmor %vm66, %vm67
  %v69 = vsel %vm68, %v61, %v65
  %v70 = vand.u32 2147483647, %v60
  %vm71 = vcmp.eq.f32.partialorder %v70, 8.507059e+37
  %v72 = vand.u32 %v60, 2147483648
  %v73 = vor.u32 1.1754944e-38, %v72
  %v74 = vsel %vm71, %v73, %v69
  %v75 = vmul.f32 %v31, %v74
  %v76 = vld [vmem:[%s1] sm:$0x1]
  %v78 = vperm.slane %v76, 0
  %v80 = vmul.f32 %v75, %v78
  %v81 = vld [vmem:[%s2] sm:$0x1]
  %v83 = vperm.slane %v81, 0
  %v85 = vadd.f32 %v80, %v83
  %86 = vst [vmem:[%s3] sm:$0xf] %v85
  // Predicated region
  $region14: #{net_forward.28} parent=0 // pred_check
    _
  $region15: #{net_forward.28} parent=0 // pred_check_branch
    %88 = sbr.rel (0) target = $region17
  $region16: #{net_forward.28} parent=0 // pred_region
    _
  $region17: #{net_forward.28} parent=0 // pred_fallthru
    _
  // Predicated region
  $region18: #{net_forward.28} parent=0 // pred_check
    _
  $region19: #{net_forward.28} parent=0 // pred_check_branch
    %90 = sbr.rel (0) target = $region21
  $region20: #{net_forward.28} parent=0 // pred_region
    _
  $region21: #{net_forward.28} parent=0 // pred_fallthru
    _

// kernel: net_forward.29
$region0: #{net_forward.29}
  #allocation0 [shape = 'u32[]', space=smem, size = 0x4, offset = 0x4, fixed_abs, tag = 'smem constant byte address 0x4 - core index']
  #allocation1 [shape = 'u32[72,128]{1,0:T(1,128)}', space=vmem, size = 0x9000, scoped, tag = 'internal scratch']
  %s0 = inlined_call_operand.vmem [shape: bf16[576,32], index: 0, kind: input, shape index: {}]
  %s1 = inlined_call_operand.vmem [shape: bf16[32,576], index: 1, kind: input, shape index: {}]
  %s2 = inlined_call_operand.vmem [shape: f32[32,1], index: 2, kind: input, shape index: {}]
  %s3 = inlined_call_operand.vmem [shape: f32[32,32], index: 3, kind: output, shape index: {}]
  %s4 = sld [smem:[#allocation0]]
  $region22: #{net_forward.29} parent=0
    _
  %s6 = ssub.s32 1, %s4
  %s7 = scalar_select 0, %s6, %s4
  // Predicated region
  $region2: #{net_forward.29} parent=0 // pred_check
    _
  $region3: #{net_forward.29} parent=0 // pred_check_branch
    %9 = sbr.rel (0) target = $region5
  $region4: #{net_forward.29} parent=0 // pred_region
    _
  $region5: #{net_forward.29} parent=0 // pred_fallthru
    _
  // Predicated region
  $region6: #{net_forward.29} parent=0 // pred_check
    _
  $region7: #{net_forward.29} parent=0 // pred_check_branch
    %11 = sbr.rel (0) target = $region9
  $region8: #{net_forward.29} parent=0 // pred_region
    _
  $region9: #{net_forward.29} parent=0 // pred_fallthru
    _
  // Predicated region
  $region10: #{net_forward.29} parent=0 // pred_check
    _
  $region11: #{net_forward.29} parent=0 // pred_check_branch
    %13 = sbr.rel (0) target = $region13
  $region12: #{net_forward.29} parent=0 // pred_region
    _
  $region13: #{net_forward.29} parent=0 // pred_fallthru
    _
  %v15 = vld [vmem:[%s1] sm:$0xff]
  %v16 = vld [vmem:[%s1 + $0x8] sm:$0xff]
  %v17 = vld [vmem:[%s1 + $0x10] sm:$0xf]
  %v18 = vld [vmem:[%s1 + $0x14] sm:$0xff]
  %v19 = vld [vmem:[%s1 + $0x1c] sm:$0xff]
  %v20 = vld [vmem:[%s1 + $0x24] sm:$0xf]
  %v21 = vld [vmem:[%s1 + $0x28] sm:$0xff]
  %v22 = vld [vmem:[%s1 + $0x30] sm:$0xff]
  %v23 = vld [vmem:[%s1 + $0x38] sm:$0xf]
  %v24 = vld [vmem:[%s1 + $0x3c] sm:$0xff]
  %v25 = vld [vmem:[%s1 + $0x44] sm:$0xff]
  %v26 = vld [vmem:[%s1 + $0x4c] sm:$0xf]
  %v27 = vld [vmem:[%s0] sm:$0xf]
  %v28 = vld [vmem:[%s0 + $0x4] sm:$0xf]
  %v29 = vld [vmem:[%s0 + $0x8] sm:$0xf]
  %v30 = vld [vmem:[%s0 + $0xc] sm:$0xf]
  %v31 = vld [vmem:[%s0 + $0x10] sm:$0xf]
  %v32 = vld [vmem:[%s0 + $0x14] sm:$0xf]
  %v33 = vld [vmem:[%s0 + $0x18] sm:$0xf]
  %v34 = vld [vmem:[%s0 + $0x1c] sm:$0xf]
  %v35 = vld [vmem:[%s0 + $0x20] sm:$0xf]
  %v36 = vld [vmem:[%s0 + $0x24] sm:$0xf]
  %v37 = vld [vmem:[%s0 + $0x28] sm:$0xf]
  %v38 = vld [vmem:[%s0 + $0x2c] sm:$0xf]
  %v39 = vld [vmem:[%s0 + $0x30] sm:$0xf]
  %v40 = vld [vmem:[%s0 + $0x34] sm:$0xf]
  %v41 = vld [vmem:[%s0 + $0x38] sm:$0xf]
  %v42 = vld [vmem:[%s0 + $0x3c] sm:$0xf]
  %v43 = vld [vmem:[%s0 + $0x40] sm:$0xf]
  %v44 = vld [vmem:[%s0 + $0x44] sm:$0xf]
  %v45 = vld [vmem:[%s0 + $0x48] sm:$0xf]
  %v46 = vld [vmem:[%s0 + $0x4c] sm:$0xf]
  %v47 = vld [vmem:[%s0 + $0x50] sm:$0xf]
  %v48 = vld [vmem:[%s0 + $0x54] sm:$0xf]
  %v49 = vld [vmem:[%s0 + $0x58] sm:$0xf]
  %v50 = vld [vmem:[%s0 + $0x5c] sm:$0xf]
  %v51 = vld [vmem:[%s0 + $0x60] sm:$0xf]
  %v52 = vld [vmem:[%s0 + $0x64] sm:$0xf]
  %v53 = vld [vmem:[%s0 + $0x68] sm:$0xf]
  %v54 = vld [vmem:[%s0 + $0x6c] sm:$0xf]
  %v55 = vld [vmem:[%s0 + $0x70] sm:$0xf]
  %v56 = vld [vmem:[%s0 + $0x74] sm:$0xf]
  %v57 = vld [vmem:[%s0 + $0x78] sm:$0xf]
  %v58 = vld [vmem:[%s0 + $0x7c] sm:$0xf]
  %v59 = vld [vmem:[%s0 + $0x80] sm:$0xf]
  %v60 = vld [vmem:[%s0 + $0x84] sm:$0xf]
  %v61 = vld [vmem:[%s0 + $0x88] sm:$0xf]
  %v62 = vld [vmem:[%s0 + $0x8c] sm:$0xf]
  %v63 = vld [vmem:[%s0 + $0x90] sm:$0xf]
  %v64 = vld [vmem:[%s0 + $0x94] sm:$0xf]
  %v65 = vld [vmem:[%s0 + $0x98] sm:$0xf]
  %v66 = vld [vmem:[%s0 + $0x9c] sm:$0xf]
  %v67 = vld [vmem:[%s0 + $0xa0] sm:$0xf]
  %v68 = vld [vmem:[%s0 + $0xa4] sm:$0xf]
  %v69 = vld [vmem:[%s0 + $0xa8] sm:$0xf]
  %v70 = vld [vmem:[%s0 + $0xac] sm:$0xf]
  %v71 = vld [vmem:[%s0 + $0xb0] sm:$0xf]
  %v72 = vld [vmem:[%s0 + $0xb4] sm:$0xf]
  %v73 = vld [vmem:[%s0 + $0xb8] sm:$0xf]
  %v74 = vld [vmem:[%s0 + $0xbc] sm:$0xf]
  %v75 = vld [vmem:[%s0 + $0xc0] sm:$0xf]
  %v76 = vld [vmem:[%s0 + $0xc4] sm:$0xf]
  %v77 = vld [vmem:[%s0 + $0xc8] sm:$0xf]
  %v78 = vld [vmem:[%s0 + $0xcc] sm:$0xf]
  %v79 = vld [vmem:[%s0 + $0xd0] sm:$0xf]
  %v80 = vld [vmem:[%s0 + $0xd4] sm:$0xf]
  %v81 = vld [vmem:[%s0 + $0xd8] sm:$0xf]
  %v82 = vld [vmem:[%s0 + $0xdc] sm:$0xf]
  %v83 = vld [vmem:[%s0 + $0xe0] sm:$0xf]
  %v84 = vld [vmem:[%s0 + $0xe4] sm:$0xf]
  %v85 = vld [vmem:[%s0 + $0xe8] sm:$0xf]
  %v86 = vld [vmem:[%s0 + $0xec] sm:$0xf]
  %v87 = vld [vmem:[%s0 + $0xf0] sm:$0xf]
  %v88 = vld [vmem:[%s0 + $0xf4] sm:$0xf]
  %v89 = vld [vmem:[%s0 + $0xf8] sm:$0xf]
  %v90 = vld [vmem:[%s0 + $0xfc] sm:$0xf]
  %v91 = vld [vmem:[%s0 + $0x100] sm:$0xf]
  %v92 = vld [vmem:[%s0 + $0x104] sm:$0xf]
  %v93 = vld [vmem:[%s0 + $0x108] sm:$0xf]
  %v94 = vld [vmem:[%s0 + $0x10c] sm:$0xf]
  %v95 = vld [vmem:[%s0 + $0x110] sm:$0xf]
  %v96 = vld [vmem:[%s0 + $0x114] sm:$0xf]
  %v97 = vld [vmem:[%s0 + $0x118] sm:$0xf]
  %v98 = vld [vmem:[%s0 + $0x11c] sm:$0xf]
  %v99 = vld [vmem:[%s2] sm:$0xff]
  %v100 = vld [vmem:[%s2 + $0x8] sm:$0xff]
  %v101 = vld [vmem:[%s2 + $0x10] sm:$0xff]
  %v102 = vld [vmem:[%s2 + $0x18] sm:$0xff]
  %104 = vset.pattern.permute.xlu0 0
  %105 = vperm.xlu0 %104, %v99
  %v106 = vpop.permute.xlu0 %105
  %109 = vset.pattern.permute.xlu0 0
  %110 = vperm.xlu0 %109, %v100
  %v111 = vpop.permute.xlu0 %110
  %114 = vset.pattern.permute.xlu0 0
  %115 = vperm.xlu0 %114, %v101
  %v116 = vpop.permute.xlu0 %115
  %119 = vset.pattern.permute.xlu0 0
  %120 = vperm.xlu0 %119, %v102
  %v121 = vpop.permute.xlu0 %120
  %v135 = vunpack.c.l.b16 %v15
  %v136 = vunpack.c.h.b16 %v15
  %v137 = vunpack.c.l.b16 %v16
  %v138 = vunpack.c.h.b16 %v16
  %v139 = vunpack.c.l.b16 %v17
  %v140 = vunpack.c.l.b16 %v18
  %v141 = vunpack.c.h.b16 %v18
  %v142 = vunpack.c.l.b16 %v19
  %v143 = vunpack.c.h.b16 %v19
  %v144 = vunpack.c.l.b16 %v20
  %v145 = vunpack.c.l.b16 %v21
  %v146 = vunpack.c.h.b16 %v21
  %v147 = vunpack.c.l.b16 %v22
  %v148 = vunpack.c.h.b16 %v22
  %v149 = vunpack.c.l.b16 %v23
  %v150 = vunpack.c.l.b16 %v24
  %v151 = vunpack.c.h.b16 %v24
  %v152 = vunpack.c.l.b16 %v25
  %v153 = vunpack.c.h.b16 %v25
  %v154 = vunpack.c.l.b16 %v26
  %v155 = vpack.c.b16 %v140, %v135
  %v156 = vpack.c.b16 %v141, %v136
  %v157 = vpack.c.b16 %v142, %v137
  %v158 = vpack.c.b16 %v143, %v138
  %v159 = vpack.c.b16 %v144, %v139
  %v160 = vpack.c.b16 %v150, %v145
  %v161 = vpack.c.b16 %v151, %v146
  %v162 = vpack.c.b16 %v152, %v147
  %v163 = vpack.c.b16 %v153, %v148
  %v164 = vpack.c.b16 %v154, %v149
  %v245 = vunpack.c.l.b16 %v27
  %v246 = vunpack.c.l.b16 %v28
  %v247 = vunpack.c.l.b16 %v29
  %v248 = vunpack.c.l.b16 %v30
  %v249 = vunpack.c.l.b16 %v31
  %v250 = vunpack.c.l.b16 %v32
  %v251 = vunpack.c.l.b16 %v33
  %v252 = vunpack.c.l.b16 %v34
  %v253 = vunpack.c.l.b16 %v35
  %v254 = vunpack.c.l.b16 %v36
  %v255 = vunpack.c.l.b16 %v37
  %v256 = vunpack.c.l.b16 %v38
  %v257 = vunpack.c.l.b16 %v39
  %v258 = vunpack.c.l.b16 %v40
  %v259 = vunpack.c.l.b16 %v41
  %v260 = vunpack.c.l.b16 %v42
  %v261 = vunpack.c.l.b16 %v43
  %v262 = vunpack.c.l.b16 %v44
  %v263 = vunpack.c.l.b16 %v45
  %v264 = vunpack.c.l.b16 %v46
  %v265 = vunpack.c.l.b16 %v47
  %v266 = vunpack.c.l.b16 %v48
  %v267 = vunpack.c.l.b16 %v49
  %v268 = vunpack.c.l.b16 %v50
  %v269 = vunpack.c.l.b16 %v51
  %v270 = vunpack.c.l.b16 %v52
  %v271 = vunpack.c.l.b16 %v53
  %v272 = vunpack.c.l.b16 %v54
  %v273 = vunpack.c.l.b16 %v55
  %v274 = vunpack.c.l.b16 %v56
  %v275 = vunpack.c.l.b16 %v57
  %v276 = vunpack.c.l.b16 %v58
  %v277 = vunpack.c.l.b16 %v59
  %v278 = vunpack.c.l.b16 %v60
  %v279 = vunpack.c.l.b16 %v61
  %v280 = vunpack.c.l.b16 %v62
  %v281 = vunpack.c.l.b16 %v63
  %v282 = vunpack.c.l.b16 %v64
  %v283 = vunpack.c.l.b16 %v65
  %v284 = vunpack.c.l.b16 %v66
  %v285 = vunpack.c.l.b16 %v67
  %v286 = vunpack.c.l.b16 %v68
  %v287 = vunpack.c.l.b16 %v69
  %v288 = vunpack.c.l.b16 %v70
  %v289 = vunpack.c.l.b16 %v71
  %v290 = vunpack.c.l.b16 %v72
  %v291 = vunpack.c.l.b16 %v73
  %v292 = vunpack.c.l.b16 %v74
  %v293 = vunpack.c.l.b16 %v75
  %v294 = vunpack.c.l.b16 %v76
  %v295 = vunpack.c.l.b16 %v77
  %v296 = vunpack.c.l.b16 %v78
  %v297 = vunpack.c.l.b16 %v79
  %v298 = vunpack.c.l.b16 %v80
  %v299 = vunpack.c.l.b16 %v81
  %v300 = vunpack.c.l.b16 %v82
  %v301 = vunpack.c.l.b16 %v83
  %v302 = vunpack.c.l.b16 %v84
  %v303 = vunpack.c.l.b16 %v85
  %v304 = vunpack.c.l.b16 %v86
  %v305 = vunpack.c.l.b16 %v87
  %v306 = vunpack.c.l.b16 %v88
  %v307 = vunpack.c.l.b16 %v89
  %v308 = vunpack.c.l.b16 %v90
  %v309 = vunpack.c.l.b16 %v91
  %v310 = vunpack.c.l.b16 %v92
  %v311 = vunpack.c.l.b16 %v93
  %v312 = vunpack.c.l.b16 %v94
  %v313 = vunpack.c.l.b16 %v95
  %v314 = vunpack.c.l.b16 %v96
  %v315 = vunpack.c.l.b16 %v97
  %v316 = vunpack.c.l.b16 %v98
  %v317 = vpack.c.b16 %v246, %v245
  %v318 = vpack.c.b16 %v248, %v247
  %v319 = vpack.c.b16 %v250, %v249
  %v320 = vpack.c.b16 %v252, %v251
  %v321 = vpack.c.b16 %v254, %v253
  %v322 = vpack.c.b16 %v256, %v255
  %v323 = vpack.c.b16 %v258, %v257
  %v324 = vpack.c.b16 %v260, %v259
  %v325 = vpack.c.b16 %v262, %v261
  %v326 = vpack.c.b16 %v264, %v263
  %v327 = vpack.c.b16 %v266, %v265
  %v328 = vpack.c.b16 %v268, %v267
  %v329 = vpack.c.b16 %v270, %v269
  %v330 = vpack.c.b16 %v272, %v271
  %v331 = vpack.c.b16 %v274, %v273
  %v332 = vpack.c.b16 %v276, %v275
  %v333 = vpack.c.b16 %v278, %v277
  %v334 = vpack.c.b16 %v280, %v279
  %v335 = vpack.c.b16 %v282, %v281
  %v336 = vpack.c.b16 %v284, %v283
  %v337 = vpack.c.b16 %v286, %v285
  %v338 = vpack.c.b16 %v288, %v287
  %v339 = vpack.c.b16 %v290, %v289
  %v340 = vpack.c.b16 %v292, %v291
  %v341 = vpack.c.b16 %v294, %v293
  %v342 = vpack.c.b16 %v296, %v295
  %v343 = vpack.c.b16 %v298, %v297
  %v344 = vpack.c.b16 %v300, %v299
  %v345 = vpack.c.b16 %v302, %v301
  %v346 = vpack.c.b16 %v304, %v303
  %v347 = vpack.c.b16 %v306, %v305
  %v348 = vpack.c.b16 %v308, %v307
  %v349 = vpack.c.b16 %v310, %v309
  %v350 = vpack.c.b16 %v312, %v311
  %v351 = vpack.c.b16 %v314, %v313
  %v352 = vpack.c.b16 %v316, %v315
  %vm389 = vcmask 523264
  %v391 = vsel %vm389, %v159, 0
  %v394 = vsel %vm389, %v164, 0
  %396 = vmatpush.bf16.msra.mxu0 %v324
  %397 = vmatpush.bf16.msra.mxu0 %v323
  %398 = vmatpush.bf16.msra.mxu0 %v322
  %399 = vmatpush.bf16.msra.mxu0 %v321
  %400 = vmatpush.bf16.msra.mxu0 %v320
  %401 = vmatpush.bf16.msra.mxu0 %v319
  %402 = vmatpush.bf16.msra.mxu0 %v318
  %403 = vmatpush.bf16.msra.mxu0 %v317
  %404 = vmatmul.bf16.gmra.mxu0 %v155
  %v405 = vpop.f32.mrf.mxu0
  %v406 = vadd.f32 %v106, %v405
  %v407 = vpop.f32.mrf.mxu0
  %v408 = vadd.f32 %v111, %v407
  %409 = vmatmul.bf16.gmra.mxu0 %v160
  %v410 = vpop.f32.mrf.mxu0
  %v411 = vadd.f32 %v116, %v410
  %v412 = vpop.f32.mrf.mxu0
  %v413 = vadd.f32 %v121, %v412
  %414 = vdwg.mxu0
  %415 = vmatpush.bf16.msra.mxu0 %v332
  %416 = vmatpush.bf16.msra.mxu0 %v331
  %417 = vmatpush.bf16.msra.mxu0 %v330
  %418 = vmatpush.bf16.msra.mxu0 %v329
  %419 = vmatpush.bf16.msra.mxu0 %v328
  %420 = vmatpush.bf16.msra.mxu0 %v327
  %421 = vmatpush.bf16.msra.mxu0 %v326
  %422 = vmatpush.bf16.msra.mxu0 %v325
  %423 = vmatmul.bf16.gmra.mxu0 %v156
  %v424 = vpop.f32.mrf.mxu0
  %v425 = vadd.f32 %v406, %v424
  %v426 = vpop.f32.mrf.mxu0
  %v427 = vadd.f32 %v408, %v426
  %428 = vmatmul.bf16.gmra.mxu0 %v161
  %v429 = vpop.f32.mrf.mxu0
  %v430 = vadd.f32 %v411, %v429
  %v431 = vpop.f32.mrf.mxu0
  %v432 = vadd.f32 %v413, %v431
  %433 = vdwg.mxu0
  %434 = vmatpush.bf16.msra.mxu0 %v340
  %435 = vmatpush.bf16.msra.mxu0 %v339
  %436 = vmatpush.bf16.msra.mxu0 %v338
  %437 = vmatpush.bf16.msra.mxu0 %v337
  %438 = vmatpush.bf16.msra.mxu0 %v336
  %439 = vmatpush.bf16.msra.mxu0 %v335
  %440 = vmatpush.bf16.msra.mxu0 %v334
  %441 = vmatpush.bf16.msra.mxu0 %v333
  %442 = vmatmul.bf16.gmra.mxu0 %v157
  %v443 = vpop.f32.mrf.mxu0
  %v444 = vadd.f32 %v425, %v443
  %v445 = vpop.f32.mrf.mxu0
  %v446 = vadd.f32 %v427, %v445
  %447 = vmatmul.bf16.gmra.mxu0 %v162
  %v448 = vpop.f32.mrf.mxu0
  %v449 = vadd.f32 %v430, %v448
  %v450 = vpop.f32.mrf.mxu0
  %v451 = vadd.f32 %v432, %v450
  %452 = vdwg.mxu0
  %453 = vmatpush.bf16.msra.mxu0 %v348
  %454 = vmatpush.bf16.msra.mxu0 %v347
  %455 = vmatpush.bf16.msra.mxu0 %v346
  %456 = vmatpush.bf16.msra.mxu0 %v345
  %457 = vmatpush.bf16.msra.mxu0 %v344
  %458 = vmatpush.bf16.msra.mxu0 %v343
  %459 = vmatpush.bf16.msra.mxu0 %v342
  %460 = vmatpush.bf16.msra.mxu0 %v341
  %461 = vmatmul.bf16.gmra.mxu0 %v158
  %v462 = vpop.f32.mrf.mxu0
  %v463 = vadd.f32 %v444, %v462
  %v464 = vpop.f32.mrf.mxu0
  %v465 = vadd.f32 %v446, %v464
  %466 = vmatmul.bf16.gmra.mxu0 %v163
  %v467 = vpop.f32.mrf.mxu0
  %v468 = vadd.f32 %v449, %v467
  %v469 = vpop.f32.mrf.mxu0
  %v470 = vadd.f32 %v451, %v469
  %471 = vdwg.mxu0
  %472 = vmatpush.bf16.msra.mxu0 0
  %473 = vmatpush.bf16.msra.mxu0 0
  %474 = vmatpush.bf16.msra.mxu0 0
  %475 = vmatpush.bf16.msra.mxu0 0
  %476 = vmatpush.bf16.msra.mxu0 %v352
  %477 = vmatpush.bf16.msra.mxu0 %v351
  %478 = vmatpush.bf16.msra.mxu0 %v350
  %479 = vmatpush.bf16.msra.mxu0 %v349
  %480 = vmatmul.bf16.gmra.mxu0 %v391
  %v481 = vpop.f32.mrf.mxu0
  %v482 = vadd.f32 %v463, %v481
  %v483 = vpop.f32.mrf.mxu0
  %v484 = vadd.f32 %v465, %v483
  %485 = vmatmul.bf16.gmra.mxu0 %v394
  %v486 = vpop.f32.mrf.mxu0
  %v487 = vadd.f32 %v468, %v486
  %v488 = vpop.f32.mrf.mxu0
  %v489 = vadd.f32 %v470, %v488
  %490 = vdwg.mxu0
  %v491 = vmax.f32 %v482, 0.0
  %v492 = vmax.f32 %v484, 0.0
  %v493 = vmax.f32 %v487, 0.0
  %v494 = vmax.f32 %v489, 0.0
  %vm495 = vcmask 261120
  %496 = vst.msk [vmem:[%s3] sm:$0xff] %vm495, %v491
  %497 = vst.msk [vmem:[%s3 + $0x8] sm:$0xff] %vm495, %v492
  %498 = vst.msk [vmem:[%s3 + $0x10] sm:$0xff] %vm495, %v493
  %499 = vst.msk [vmem:[%s3 + $0x18] sm:$0xff] %vm495, %v494
  // Predicated region
  $region14: #{net_forward.29} parent=0 // pred_check
    _
  $region15: #{net_forward.29} parent=0 // pred_check_branch
    %501 = sbr.rel (0) target = $region17
  $region16: #{net_forward.29} parent=0 // pred_region
    _
  $region17: #{net_forward.29} parent=0 // pred_fallthru
    _
  // Predicated region
  $region18: #{net_forward.29} parent=0 // pred_check
    _
  $region19: #{net_forward.29} parent=0 // pred_check_branch
    %503 = sbr.rel (0) target = $region21
  $region20: #{net_forward.29} parent=0 // pred_region
    _
  $region21: #{net_forward.29} parent=0 // pred_fallthru
    _

// kernel: net_forward.30
$region0: #{net_forward.30}
  #allocation0 [shape = 'u32[]', space=smem, size = 0x4, offset = 0x4, fixed_abs, tag = 'smem constant byte address 0x4 - core index']
  #allocation1 [shape = 'u32[72,128]{1,0:T(1,128)}', space=vmem, size = 0x9000, scoped, tag = 'internal scratch']
  %s0 = inlined_call_operand.vmem [shape: bf16[288,128], index: 0, kind: input, shape index: {}]
  %s1 = inlined_call_operand.vmem [shape: bf16[16,288], index: 1, kind: input, shape index: {}]
  %s2 = inlined_call_operand.vmem [shape: f32[16,1], index: 2, kind: input, shape index: {}]
  %s3 = inlined_call_operand.vmem [shape: f32[16,128], index: 3, kind: output, shape index: {}]
  %s4 = sld [smem:[#allocation0]]
  $region22: #{net_forward.30} parent=0
    _
  %s6 = ssub.s32 1, %s4
  %s7 = scalar_select 0, %s6, %s4
  // Predicated region
  $region2: #{net_forward.30} parent=0 // pred_check
    _
  $region3: #{net_forward.30} parent=0 // pred_check_branch
    %9 = sbr.rel (0) target = $region5
  $region4: #{net_forward.30} parent=0 // pred_region
    _
  $region5: #{net_forward.30} parent=0 // pred_fallthru
    _
  // Predicated region
  $region6: #{net_forward.30} parent=0 // pred_check
    _
  $region7: #{net_forward.30} parent=0 // pred_check_branch
    %11 = sbr.rel (0) target = $region9
  $region8: #{net_forward.30} parent=0 // pred_region
    _
  $region9: #{net_forward.30} parent=0 // pred_fallthru
    _
  // Predicated region
  $region10: #{net_forward.30} parent=0 // pred_check
    _
  $region11: #{net_forward.30} parent=0 // pred_check_branch
    %13 = sbr.rel (0) target = $region13
  $region12: #{net_forward.30} parent=0 // pred_region
    _
  $region13: #{net_forward.30} parent=0 // pred_fallthru
    _
  %v15 = vld [vmem:[%s1] sm:$0xff]
  %v16 = vld [vmem:[%s1 + $0x8] sm:$0xf]
  %v17 = vld [vmem:[%s1 + $0xc] sm:$0xff]
  %v18 = vld [vmem:[%s1 + $0x14] sm:$0xf]
  %v19 = vld [vmem:[%s0] sm:$0xf]
  %v20 = vld [vmem:[%s0 + $0x4] sm:$0xf]
  %v21 = vld [vmem:[%s0 + $0x8] sm:$0xf]
  %v22 = vld [vmem:[%s0 + $0xc] sm:$0xf]
  %v23 = vld [vmem:[%s0 + $0x10] sm:$0xf]
  %v24 = vld [vmem:[%s0 + $0x14] sm:$0xf]
  %v25 = vld [vmem:[%s0 + $0x18] sm:$0xf]
  %v26 = vld [vmem:[%s0 + $0x1c] sm:$0xf]
  %v27 = vld [vmem:[%s0 + $0x20] sm:$0xf]
  %v28 = vld [vmem:[%s0 + $0x24] sm:$0xf]
  %v29 = vld [vmem:[%s0 + $0x28] sm:$0xf]
  %v30 = vld [vmem:[%s0 + $0x2c] sm:$0xf]
  %v31 = vld [vmem:[%s0 + $0x30] sm:$0xf]
  %v32 = vld [vmem:[%s0 + $0x34] sm:$0xf]
  %v33 = vld [vmem:[%s0 + $0x38] sm:$0xf]
  %v34 = vld [vmem:[%s0 + $0x3c] sm:$0xf]
  %v35 = vld [vmem:[%s0 + $0x40] sm:$0xf]
  %v36 = vld [vmem:[%s0 + $0x44] sm:$0xf]
  %v37 = vld [vmem:[%s0 + $0x48] sm:$0xf]
  %v38 = vld [vmem:[%s0 + $0x4c] sm:$0xf]
  %v39 = vld [vmem:[%s0 + $0x50] sm:$0xf]
  %v40 = vld [vmem:[%s0 + $0x54] sm:$0xf]
  %v41 = vld [vmem:[%s0 + $0x58] sm:$0xf]
  %v42 = vld [vmem:[%s0 + $0x5c] sm:$0xf]
  %v43 = vld [vmem:[%s0 + $0x60] sm:$0xf]
  %v44 = vld [vmem:[%s0 + $0x64] sm:$0xf]
  %v45 = vld [vmem:[%s0 + $0x68] sm:$0xf]
  %v46 = vld [vmem:[%s0 + $0x6c] sm:$0xf]
  %v47 = vld [vmem:[%s0 + $0x70] sm:$0xf]
  %v48 = vld [vmem:[%s0 + $0x74] sm:$0xf]
  %v49 = vld [vmem:[%s0 + $0x78] sm:$0xf]
  %v50 = vld [vmem:[%s0 + $0x7c] sm:$0xf]
  %v51 = vld [vmem:[%s0 + $0x80] sm:$0xf]
  %v52 = vld [vmem:[%s0 + $0x84] sm:$0xf]
  %v53 = vld [vmem:[%s0 + $0x88] sm:$0xf]
  %v54 = vld [vmem:[%s0 + $0x8c] sm:$0xf]
  %v55 = vld [vmem:[%s2] sm:$0xff]
  %v56 = vld [vmem:[%s2 + $0x8] sm:$0xff]
  %58 = vset.pattern.permute.xlu0 0
  %59 = vperm.xlu0 %58, %v55
  %v60 = vpop.permute.xlu0 %59
  %63 = vset.pattern.permute.xlu0 0
  %64 = vperm.xlu0 %63, %v56
  %v65 = vpop.permute.xlu0 %64
  %v71 = vunpack.c.l.b16 %v15
  %v72 = vunpack.c.h.b16 %v15
  %v73 = vunpack.c.l.b16 %v16
  %v74 = vunpack.c.l.b16 %v17
  %v75 = vunpack.c.h.b16 %v17
  %v76 = vunpack.c.l.b16 %v18
  %v77 = vpack.c.b16 %v74, %v71
  %v78 = vpack.c.b16 %v75, %v72
  %v79 = vpack.c.b16 %v76, %v73
  %v118 = vunpack.c.l.b16 %v19
  %v119 = vunpack.c.l.b16 %v20
  %v120 = vunpack.c.l.b16 %v21
  %v121 = vunpack.c.l.b16 %v22
  %v122 = vunpack.c.l.b16 %v23
  %v123 = vunpack.c.l.b16 %v24
  %v124 = vunpack.c.l.b16 %v25
  %v125 = vunpack.c.l.b16 %v26
  %v126 = vunpack.c.l.b16 %v27
  %v127 = vunpack.c.l.b16 %v28
  %v128 = vunpack.c.l.b16 %v29
  %v129 = vunpack.c.l.b16 %v30
  %v130 = vunpack.c.l.b16 %v31
  %v131 = vunpack.c.l.b16 %v32
  %v132 = vunpack.c.l.b16 %v33
  %v133 = vunpack.c.l.b16 %v34
  %v134 = vunpack.c.l.b16 %v35
  %v135 = vunpack.c.l.b16 %v36
  %v136 = vunpack.c.l.b16 %v37
  %v137 = vunpack.c.l.b16 %v38
  %v138 = vunpack.c.l.b16 %v39
  %v139 = vunpack.c.l.b16 %v40
  %v140 = vunpack.c.l.b16 %v41
  %v141 = vunpack.c.l.b16 %v42
  %v142 = vunpack.c.l.b16 %v43
  %v143 = vunpack.c.l.b16 %v44
  %v144 = vunpack.c.l.b16 %v45
  %v145 = vunpack.c.l.b16 %v46
  %v146 = vunpack.c.l.b16 %v47
  %v147 = vunpack.c.l.b16 %v48
  %v148 = vunpack.c.l.b16 %v49
  %v149 = vunpack.c.l.b16 %v50
  %v150 = vunpack.c.l.b16 %v51
  %v151 = vunpack.c.l.b16 %v52
  %v152 = vunpack.c.l.b16 %v53
  %v153 = vunpack.c.l.b16 %v54
  %v154 = vpack.c.b16 %v119, %v118
  %v155 = vpack.c.b16 %v121, %v120
  %v156 = vpack.c.b16 %v123, %v122
  %v157 = vpack.c.b16 %v125, %v124
  %v158 = vpack.c.b16 %v127, %v126
  %v159 = vpack.c.b16 %v129, %v128
  %v160 = vpack.c.b16 %v131, %v130
  %v161 = vpack.c.b16 %v133, %v132
  %v162 = vpack.c.b16 %v135, %v134
  %v163 = vpack.c.b16 %v137, %v136
  %v164 = vpack.c.b16 %v139, %v138
  %v165 = vpack.c.b16 %v141, %v140
  %v166 = vpack.c.b16 %v143, %v142
  %v167 = vpack.c.b16 %v145, %v144
  %v168 = vpack.c.b16 %v147, %v146
  %v169 = vpack.c.b16 %v149, %v148
  %v170 = vpack.c.b16 %v151, %v150
  %v171 = vpack.c.b16 %v153, %v152
  %vm190 = vcmask 261120
  %v192 = vsel %vm190, %v79, 0
  %194 = vmatpush.bf16.msra.mxu0 %v161
  %195 = vmatpush.bf16.msra.mxu0 %v160
  %196 = vmatpush.bf16.msra.mxu0 %v159
  %197 = vmatpush.bf16.msra.mxu0 %v158
  %198 = vmatpush.bf16.msra.mxu0 %v157
  %199 = vmatpush.bf16.msra.mxu0 %v156
  %200 = vmatpush.bf16.msra.mxu0 %v155
  %201 = vmatpush.bf16.msra.mxu0 %v154
  %202 = vmatmul.bf16.gmra.mxu0 %v77
  %v203 = vpop.f32.mrf.mxu0
  %v204 = vadd.f32 %v60, %v203
  %v205 = vpop.f32.mrf.mxu0
  %v206 = vadd.f32 %v65, %v205
  %207 = vdwg.mxu0
  %208 = vmatpush.bf16.msra.mxu0 %v169
  %209 = vmatpush.bf16.msra.mxu0 %v168
  %210 = vmatpush.bf16.msra.mxu0 %v167
  %211 = vmatpush.bf16.msra.mxu0 %v166
  %212 = vmatpush.bf16.msra.mxu0 %v165
  %213 = vmatpush.bf16.msra.mxu0 %v164
  %214 = vmatpush.bf16.msra.mxu0 %v163
  %215 = vmatpush.bf16.msra.mxu0 %v162
  %216 = vmatmul.bf16.gmra.mxu0 %v78
  %v217 = vpop.f32.mrf.mxu0
  %v218 = vadd.f32 %v204, %v217
  %v219 = vpop.f32.mrf.mxu0
  %v220 = vadd.f32 %v206, %v219
  %221 = vdwg.mxu0
  %222 = vmatpush.bf16.msra.mxu0 0
  %223 = vmatpush.bf16.msra.mxu0 0
  %224 = vmatpush.bf16.msra.mxu0 0
  %225 = vmatpush.bf16.msra.mxu0 0
  %226 = vmatpush.bf16.msra.mxu0 0
  %227 = vmatpush.bf16.msra.mxu0 0
  %228 = vmatpush.bf16.msra.mxu0 %v171
  %229 = vmatpush.bf16.msra.mxu0 %v170
  %230 = vmatmul.bf16.gmra.mxu0 %v192
  %v231 = vpop.f32.mrf.mxu0
  %v232 = vadd.f32 %v218, %v231
  %v233 = vpop.f32.mrf.mxu0
  %v234 = vadd.f32 %v220, %v233
  %235 = vdwg.mxu0
  %v236 = vmax.f32 %v232, 0.0
  %v237 = vmax.f32 %v234, 0.0
  %238 = vst [vmem:[%s3] sm:$0xff] %v236
  %239 = vst [vmem:[%s3 + $0x8] sm:$0xff] %v237
  // Predicated region
  $region14: #{net_forward.30} parent=0 // pred_check
    _
  $region15: #{net_forward.30} parent=0 // pred_check_branch
    %241 = sbr.rel (0) target = $region17
  $region16: #{net_forward.30} parent=0 // pred_region
    _
  $region17: #{net_forward.30} parent=0 // pred_fallthru
    _
  // Predicated region
  $region18: #{net_forward.30} parent=0 // pred_check
    _
  $region19: #{net_forward.30} parent=0 // pred_check_branch
    %243 = sbr.rel (0) target = $region21
  $region20: #{net_forward.30} parent=0 // pred_region
    _
  $region21: #{net_forward.30} parent=0 // pred_fallthru
    _

// kernel: net_forward.31
$region0: #{net_forward.31}
  #allocation0 [shape = 'u32[]', space=smem, size = 0x4, offset = 0x4, fixed_abs, tag = 'smem constant byte address 0x4 - core index']
  #allocation1 [shape = 'u32[72,128]{1,0:T(1,128)}', space=vmem, size = 0x9000, scoped, tag = 'internal scratch']
  %s0 = inlined_call_operand.vmem [shape: bf16[144,512], index: 0, kind: input, shape index: {}]
  %s1 = inlined_call_operand.vmem [shape: bf16[3,144], index: 1, kind: input, shape index: {}]
  %s2 = inlined_call_operand.vmem [shape: f32[3,1], index: 2, kind: input, shape index: {}]
  %s3 = inlined_call_operand.vmem [shape: f32[3,512], index: 3, kind: output, shape index: {}]
  %s4 = sld [smem:[#allocation0]]
  $region83: #{net_forward.31} parent=0
    _
  %s6 = ssub.s32 1, %s4
  %s7 = scalar_select 0, %s6, %s4
  $region1: #{net_forward.31} parent=0
    #allocation2 [shape = 'u8[147456]{0}', space=vmem, size = 0x24000, scoped, tag = 'input window, operand 0']
    loop: start=0, step=1, limit=4
    $region2: #{net_forward.31} parent=1 // loop_pre_header
      _
    $region3: #{net_forward.31} parent=1 // loop_header
      %s9 = sphi 0, %s13
      %p10 = scmp.ge.s32.totalorder %s9, 4
      %s19 = sphi 0, %s21
      %s22 = sphi 0, %s19
      %s23 = sphi 0, %s22
      %s39 = sphi 0, %s23
      %s43 = sphi 0, %s43
      %s45 = sphi 0, %s43
      %s46 = sphi 0, %s45
      %s60 = sphi 0, %s46
      %s64 = sphi 0, %s64
      %s66 = sphi 0, %s64
      %s67 = sphi 0, %s66
      %s81 = sphi 0, %s67
      %s87 = sphi 0, %s89
      %s90 = sphi 0, %s87
      %s91 = sphi 0, %s90
      %s107 = sphi 0, %s91
    $region4: #{net_forward.31} parent=1 // loop_header_branch
      %12 = sbr.rel (%p10) target = $region8
    $region5: #{net_forward.31} parent=1 // loop_body
      %s14 = ssub.s32 %s9, 1
      %s15 = ssub.s32 %s9, 2
      %s16 = sadd.s32 %s9, 1
      %s17 = ssub.s32 %s9, %s16
      %p18 = scmp.eq.s32.totalorder %s17, 0
      %s20 = sadd.s32 %s19, 1
      %s21 = scalar_select %p18, %s19, %s20
      %p24 = pneg %p18
      %p25 = scmp.eq.s32.totalorder %s9, 1
      %p26 = por %p24, %p25
      %p27 = scmp.ne.s32.totalorder %s19, %s22
      %p28 = scmp.eq.s32.totalorder %s9, 0
      %p29 = por %p27, %p28
      %p30 = scmp.ne.s32.totalorder %s19, %s22
      %p31 = scmp.eq.s32.totalorder %s14, 1
      %p32 = por %p30, %p31
      %p33 = scmp.ne.s32.totalorder %s22, %s23
      %p34 = scmp.eq.s32.totalorder %s14, 0
      %p35 = por %p33, %p34
      %p36 = scmp.ne.s32.totalorder %s22, %s23
      %p37 = scmp.eq.s32.totalorder %s15, 1
      %p38 = por %p36, %p37
      %p40 = scmp.ne.s32.totalorder %s23, %s39
      %p41 = scmp.eq.s32.totalorder %s15, 0
      %p42 = por %p40, %p41
      %s44 = sadd.s32 %s43, 1
      %p47 = scmp.eq.s32.totalorder %s9, 1
      %p48 = scmp.ne.s32.totalorder %s43, %s45
      %p49 = scmp.eq.s32.totalorder %s9, 0
      %p50 = por %p48, %p49
      %p51 = scmp.ne.s32.totalorder %s43, %s45
      %p52 = scmp.eq.s32.totalorder %s14, 1
      %p53 = por %p51, %p52
      %p54 = scmp.ne.s32.totalorder %s45, %s46
      %p55 = scmp.eq.s32.totalorder %s14, 0
      %p56 = por %p54, %p55
      %p57 = scmp.ne.s32.totalorder %s45, %s46
      %p58 = scmp.eq.s32.totalorder %s15, 1
      %p59 = por %p57, %p58
      %p61 = scmp.ne.s32.totalorder %s46, %s60
      %p62 = scmp.eq.s32.totalorder %s15, 0
      %p63 = por %p61, %p62
      %s65 = sadd.s32 %s64, 1
      %p68 = scmp.eq.s32.totalorder %s9, 1
      %p69 = scmp.ne.s32.totalorder %s64, %s66
      %p70 = scmp.eq.s32.totalorder %s9, 0
      %p71 = por %p69, %p70
      %p72 = scmp.ne.s32.totalorder %s64, %s66
      %p73 = scmp.eq.s32.totalorder %s14, 1
      %p74 = por %p72, %p73
      %p75 = scmp.ne.s32.totalorder %s66, %s67
      %p76 = scmp.eq.s32.totalorder %s14, 0
      %p77 = por %p75, %p76
      %p78 = scmp.ne.s32.totalorder %s66, %s67
      %p79 = scmp.eq.s32.totalorder %s15, 1
      %p80 = por %p78, %p79
      %p82 = scmp.ne.s32.totalorder %s67, %s81
      %p83 = scmp.eq.s32.totalorder %s15, 0
      %p84 = por %p82, %p83
      %s85 = ssub.s32 %s9, %s16
      %p86 = scmp.eq.s32.totalorder %s85, 0
      %s88 = sadd.s32 %s87, 1
      %s89 = scalar_select %p86, %s87, %s88
      %p92 = pneg %p86
      %p93 = scmp.eq.s32.totalorder %s9, 1
      %p94 = por %p92, %p93
      %p95 = scmp.ne.s32.totalorder %s87, %s90
      %p96 = scmp.eq.s32.totalorder %s9, 0
      %p97 = por %p95, %p96
      %p98 = scmp.ne.s32.totalorder %s87, %s90
      %p99 = scmp.eq.s32.totalorder %s14, 1
      %p100 = por %p98, %p99
      %p101 = scmp.ne.s32.totalorder %s90, %s91
      %p102 = scmp.eq.s32.totalorder %s14, 0
      %p103 = por %p101, %p102
      %p104 = scmp.ne.s32.totalorder %s90, %s91
      %p105 = scmp.eq.s32.totalorder %s15, 1
      %p106 = por %p104, %p105
      %p108 = scmp.ne.s32.totalorder %s91, %s107
      %p109 = scmp.eq.s32.totalorder %s15, 0
      %p110 = por %p108, %p109
      %p111 = scmp.le.s32.totalorder 1, %s9
      %p112 = scmp.lt.s32.totalorder %s9, 3
      %p113 = pnand %p111, %p112
      %p114 = pneg %p113
      // Predicated region
      $region9: #{net_forward.31} parent=5 // pred_check
        _
      $region10: #{net_forward.31} parent=5 // pred_check_branch
        %116 = sbr.rel (%p113) target = $region12
      $region11: #{net_forward.31} parent=5 // pred_region
        %s117 = ssub.s32 %s9, 1
        // Predicated region
        $region13: #{net_forward.31} parent=11 // pred_check
          %p118 = pneg %p56
        $region14: #{net_forward.31} parent=11 // pred_check_branch
          %120 = sbr.rel (%p118) target = $region16
        $region15: #{net_forward.31} parent=11 // pred_region
          _
        $region16: #{net_forward.31} parent=11 // pred_fallthru
          _
        // Predicated region
        $region17: #{net_forward.31} parent=11 // pred_check
          %p121 = pneg %p77
        $region18: #{net_forward.31} parent=11 // pred_check_branch
          %123 = sbr.rel (%p121) target = $region20
        $region19: #{net_forward.31} parent=11 // pred_region
          _
        $region20: #{net_forward.31} parent=11 // pred_fallthru
          _
      $region12: #{net_forward.31} parent=5 // pred_fallthru
        _
      %p124 = scmp.lt.s32.totalorder %s9, 2
      // Predicated region
      $region21: #{net_forward.31} parent=5 // pred_check
        %p125 = pneg %p124
      $region22: #{net_forward.31} parent=5 // pred_check_branch
        %127 = sbr.rel (%p125) target = $region24
      $region23: #{net_forward.31} parent=5 // pred_region
        // Predicated region
        $region25: #{net_forward.31} parent=23 // pred_check
          %p128 = pneg %p29
        $region26: #{net_forward.31} parent=23 // pred_check_branch
          %130 = sbr.rel (%p128) target = $region28
        $region27: #{net_forward.31} parent=23 // pred_region
          %s131 = sand.u32 %s19, 1
          %s132 = sand.u32 %s19, 1
          %s133 = smul.addr %s132, 144
          %s134 = scalar_lea.vmem [#allocation2], %s133
          %s135 = smul.u32 2, %s9
          %s136 = smul.addr %s135, 4
          %s137 = scalar_lea.vmem %s0, %s136
          // Predicated region
          $region29: #{net_forward.31} parent=27 // pred_check
            _
          $region30: #{net_forward.31} parent=27 // pred_check_branch
            %139 = sbr.rel (0) target = $region32
          $region31: #{net_forward.31} parent=27 // pred_region
            // Predicated region
            $region33: #{net_forward.31} parent=31 // pred_check
              _
            $region34: #{net_forward.31} parent=31 // pred_check_branch
              %141 = sbr.rel (0) target = $region36
            $region35: #{net_forward.31} parent=31 // pred_region
              // Predicated region
              $region48: #{net_forward.31} parent=35 // pred_check
                _
              $region49: #{net_forward.31} parent=35 // pred_check_branch
                %191 = sbr.rel (0) target = $region51
              $region50: #{net_forward.31} parent=35 // pred_region
                loop: start=0, step=1, limit=1
                $region52: #{net_forward.31} parent=50 // loop_pre_header
                  _
                $region53: #{net_forward.31} parent=50 // loop_header
                  %s193 = sphi 0, %s197
                  %p194 = scmp.ge.s32.totalorder %s193, 1
                  %s198 = sphi %s137, %s137
                  %s199 = sphi %s134, %s134
                $region54: #{net_forward.31} parent=50 // loop_header_branch
                  %196 = sbr.rel (%p194) target = $region58
                $region55: #{net_forward.31} parent=50 // loop_body
                  %v200 = vld [vmem:[%s198] sm:$0xff]
                  %201 = vst [vmem:[%s199] sm:$0xff] %v200
                  %v202 = vld [vmem:[%s198 + $0x10] sm:$0xff]
                  %203 = vst [vmem:[%s199 + $0x8] sm:$0xff] %v202
                  %v204 = vld [vmem:[%s198 + $0x20] sm:$0xff]
                  %205 = vst [vmem:[%s199 + $0x10] sm:$0xff] %v204
                  %v206 = vld [vmem:[%s198 + $0x30] sm:$0xff]
                  %207 = vst [vmem:[%s199 + $0x18] sm:$0xff] %v206
                  %v208 = vld [vmem:[%s198 + $0x40] sm:$0xff]
                  %209 = vst [vmem:[%s199 + $0x20] sm:$0xff] %v208
                  %v210 = vld [vmem:[%s198 + $0x50] sm:$0xff]
                  %211 = vst [vmem:[%s199 + $0x28] sm:$0xff] %v210
                  %v212 = vld [vmem:[%s198 + $0x60] sm:$0xff]
                  %213 = vst [vmem:[%s199 + $0x30] sm:$0xff] %v212
                  %v214 = vld [vmem:[%s198 + $0x70] sm:$0xff]
                  %215 = vst [vmem:[%s199 + $0x38] sm:$0xff] %v214
                  %v216 = vld [vmem:[%s198 + $0x80] sm:$0xff]
                  %217 = vst [vmem:[%s199 + $0x40] sm:$0xff] %v216
                  %v218 = vld [vmem:[%s198 + $0x90] sm:$0xff]
                  %219 = vst [vmem:[%s199 + $0x48] sm:$0xff] %v218
                  %v220 = vld [vmem:[%s198 + $0xa0] sm:$0xff]
                  %221 = vst [vmem:[%s199 + $0x50] sm:$0xff] %v220
                  %v222 = vld [vmem:[%s198 + $0xb0] sm:$0xff]
                  %223 = vst [vmem:[%s199 + $0x58] sm:$0xff] %v222
                  %v224 = vld [vmem:[%s198 + $0xc0] sm:$0xff]
                  %225 = vst [vmem:[%s199 + $0x60] sm:$0xff] %v224
                  %v226 = vld [vmem:[%s198 + $0xd0] sm:$0xff]
                  %227 = vst [vmem:[%s199 + $0x68] sm:$0xff] %v226
                  %v228 = vld [vmem:[%s198 + $0xe0] sm:$0xff]
                  %229 = vst [vmem:[%s199 + $0x70] sm:$0xff] %v228
                  %v230 = vld [vmem:[%s198 + $0xf0] sm:$0xff]
                  %231 = vst [vmem:[%s199 + $0x78] sm:$0xff] %v230
                  %v232 = vld [vmem:[%s198 + $0x100] sm:$0xff]
                  %233 = vst [vmem:[%s199 + $0x80] sm:$0xff] %v232
                  %v234 = vld [vmem:[%s198 + $0x110] sm:$0xff]
                  %235 = vst [vmem:[%s199 + $0x88] sm:$0xff] %v234
                $region56: #{net_forward.31} parent=50 // loop_footer
                  %s197 = sadd.s32 1, %s193
                $region57: #{net_forward.31} parent=50 // loop_footer_branch
                  %192 = sbr.rel target = $region53
                $region58: #{net_forward.31} parent=50 // loop_exit
                  _
              $region51: #{net_forward.31} parent=35 // pred_fallthru
                _
              // Predicated region
              $region59: #{net_forward.31} parent=35 // pred_check
                _
              $region60: #{net_forward.31} parent=35 // pred_check_branch
                %237 = sbr.rel target = $region62
              $region61: #{net_forward.31} parent=35 // pred_region
                _
              $region62: #{net_forward.31} parent=35 // pred_fallthru
                _
            $region36: #{net_forward.31} parent=31 // pred_fallthru
              _
            // Predicated region
            $region37: #{net_forward.31} parent=31 // pred_check
              _
            $region38: #{net_forward.31} parent=31 // pred_check_branch
              %143 = sbr.rel target = $region40
            $region39: #{net_forward.31} parent=31 // pred_region
              %s145 = ssub.s32 256, 1
              loop: start=0, step=1, limit=1
              $region41: #{net_forward.31} parent=39 // loop_pre_header
                _
              $region42: #{net_forward.31} parent=39 // loop_header
                %s147 = sphi 0, %s151
                %p148 = scmp.ge.s32.totalorder %s147, 1
                %s152 = sphi %s137, %s137
                %s153 = sphi %s134, %s134
              $region43: #{net_forward.31} parent=39 // loop_header_branch
                %150 = sbr.rel (%p148) target = $region47
              $region44: #{net_forward.31} parent=39 // loop_body
                %v154 = vld [vmem:[%s152] sm:%s145]
                %155 = vst [vmem:[%s153] sm:%s145] %v154
                %v156 = vld [vmem:[%s152 + $0x10] sm:%s145]
                %157 = vst [vmem:[%s153 + $0x8] sm:%s145] %v156
                %v158 = vld [vmem:[%s152 + $0x20] sm:%s145]
                %159 = vst [vmem:[%s153 + $0x10] sm:%s145] %v158
                %v160 = vld [vmem:[%s152 + $0x30] sm:%s145]
                %161 = vst [vmem:[%s153 + $0x18] sm:%s145] %v160
                %v162 = vld [vmem:[%s152 + $0x40] sm:%s145]
                %163 = vst [vmem:[%s153 + $0x20] sm:%s145] %v162
                %v164 = vld [vmem:[%s152 + $0x50] sm:%s145]
                %165 = vst [vmem:[%s153 + $0x28] sm:%s145] %v164
                %v166 = vld [vmem:[%s152 + $0x60] sm:%s145]
                %167 = vst [vmem:[%s153 + $0x30] sm:%s145] %v166
                %v168 = vld [vmem:[%s152 + $0x70] sm:%s145]
                %169 = vst [vmem:[%s153 + $0x38] sm:%s145] %v168
                %v170 = vld [vmem:[%s152 + $0x80] sm:%s145]
                %171 = vst [vmem:[%s153 + $0x40] sm:%s145] %v170
                %v172 = vld [vmem:[%s152 + $0x90] sm:%s145]
                %173 = vst [vmem:[%s153 + $0x48] sm:%s145] %v172
                %v174 = vld [vmem:[%s152 + $0xa0] sm:%s145]
                %175 = vst [vmem:[%s153 + $0x50] sm:%s145] %v174
                %v176 = vld [vmem:[%s152 + $0xb0] sm:%s145]
                %177 = vst [vmem:[%s153 + $0x58] sm:%s145] %v176
                %v178 = vld [vmem:[%s152 + $0xc0] sm:%s145]
                %179 = vst [vmem:[%s153 + $0x60] sm:%s145] %v178
                %v180 = vld [vmem:[%s152 + $0xd0] sm:%s145]
                %181 = vst [vmem:[%s153 + $0x68] sm:%s145] %v180
                %v182 = vld [vmem:[%s152 + $0xe0] sm:%s145]
                %183 = vst [vmem:[%s153 + $0x70] sm:%s145] %v182
                %v184 = vld [vmem:[%s152 + $0xf0] sm:%s145]
                %185 = vst [vmem:[%s153 + $0x78] sm:%s145] %v184
                %v186 = vld [vmem:[%s152 + $0x100] sm:%s145]
                %187 = vst [vmem:[%s153 + $0x80] sm:%s145] %v186
                %v188 = vld [vmem:[%s152 + $0x110] sm:%s145]
                %189 = vst [vmem:[%s153 + $0x88] sm:%s145] %v188
              $region45: #{net_forward.31} parent=39 // loop_footer
                %s151 = sadd.s32 1, %s147
              $region46: #{net_forward.31} parent=39 // loop_footer_branch
                %146 = sbr.rel target = $region42
              $region47: #{net_forward.31} parent=39 // loop_exit
                _
            $region40: #{net_forward.31} parent=31 // pred_fallthru
              _
          $region32: #{net_forward.31} parent=27 // pred_fallthru
            _
          %238 = vnop
        $region28: #{net_forward.31} parent=23 // pred_fallthru
          _
      $region24: #{net_forward.31} parent=5 // pred_fallthru
        _
      %p239 = scmp.le.s32.totalorder 1, %s9
      %p240 = scmp.lt.s32.totalorder %s9, 3
      %p241 = pnand %p239, %p240
      %p242 = pneg %p241
      // Predicated region
      $region63: #{net_forward.31} parent=5 // pred_check
        _
      $region64: #{net_forward.31} parent=5 // pred_check_branch
        %244 = sbr.rel (%p241) target = $region66
      $region65: #{net_forward.31} parent=5 // pred_region
        %s245 = ssub.s32 %s9, 1
        %s246 = sand.u32 %s22, 1
        %s247 = sand.u32 %s22, 1
        %s248 = smul.addr %s247, 144
        %s249 = scalar_lea.vmem [#allocation2], %s248
        // Predicated region
        $region67: #{net_forward.31} parent=65 // pred_check
          %p250 = pneg %p35
        $region68: #{net_forward.31} parent=65 // pred_check_branch
          %252 = sbr.rel (%p250) target = $region70
        $region69: #{net_forward.31} parent=65 // pred_region
          _
        $region70: #{net_forward.31} parent=65 // pred_fallthru
          _
        %s253 = sand.u32 %s22, 1
        %s254 = sand.u32 %s22, 1
        %s255 = smul.addr %s254, 144
        %s256 = scalar_lea.vmem [#allocation2], %s255
        %p257 = pneg %p35
        %p258 = pneg %p32
        %p259 = pneg %p56
        %p260 = pneg %p53
        %p261 = pneg %p77
        %p262 = pneg %p74
        %p263 = pneg %p103
        %p264 = pneg %p100
        %s265 = smul.u32 2, %s14
        %p266 = scmp.lt.s32.totalorder %s265, 3
        %s267 = scalar_select %p266, %s265, 3
        %s268 = smul.addr %s267, 4
        %s269 = scalar_lea.vmem %s3, %s268
        %s270 = smul.u32 2, %s14
        %s271 = smul.u32 2, %s14
        %p272 = scmp.lt.s32.totalorder %s271, 3
        %s273 = scalar_select %p272, %s271, 3
        %s274 = smul.addr %s273, 4
        %s275 = scalar_lea.vmem %s3, %s274
        %s276 = smul.u32 2, %s14
        %v278 = vld [vmem:[%s1] sm:$0xf]
        %v279 = vld [vmem:[%s249] sm:$0xff]
        %v280 = vld [vmem:[%s249 + $0x8] sm:$0xff]
        %v281 = vld [vmem:[%s249 + $0x10] sm:$0xff]
        %v282 = vld [vmem:[%s249 + $0x18] sm:$0xff]
        %v283 = vld [vmem:[%s249 + $0x20] sm:$0xff]
        %v284 = vld [vmem:[%s249 + $0x28] sm:$0xff]
        %v285 = vld [vmem:[%s249 + $0x30] sm:$0xff]
        %v286 = vld [vmem:[%s249 + $0x38] sm:$0xff]
        %v287 = vld [vmem:[%s249 + $0x40] sm:$0xff]
        %v288 = vld [vmem:[%s249 + $0x48] sm:$0xff]
        %v289 = vld [vmem:[%s249 + $0x50] sm:$0xff]
        %v290 = vld [vmem:[%s249 + $0x58] sm:$0xff]
        %v291 = vld [vmem:[%s249 + $0x60] sm:$0xff]
        %v292 = vld [vmem:[%s249 + $0x68] sm:$0xff]
        %v293 = vld [vmem:[%s249 + $0x70] sm:$0xff]
        %v294 = vld [vmem:[%s249 + $0x78] sm:$0xff]
        %v295 = vld [vmem:[%s249 + $0x80] sm:$0xff]
        %v296 = vld [vmem:[%s249 + $0x88] sm:$0xff]
        %v297 = vld [vmem:[%s2] sm:$0x7]
        %299 = vset.pattern.permute.xlu0 0
        %300 = vperm.xlu0 %299, %v297
        %v301 = vpop.permute.xlu0 %300
        %304 = vst [vmem:[#allocation1] ss:$4 sm:$0xff] %v278
        %v305 = vld.sshfl [vmem:[#allocation1] sm:$0xff pattern:$0x73625140]
        %v306 = vld.sshfl [vmem:[#allocation1 + $0x8] sm:$0xff pattern:$0x73625140]
        %v326 = vunpack.c.l.b16 %v279
        %v327 = vunpack.c.h.b16 %v279
        %v328 = vunpack.c.l.b16 %v280
        %v329 = vunpack.c.h.b16 %v280
        %v330 = vunpack.c.l.b16 %v281
        %v331 = vunpack.c.h.b16 %v281
        %v332 = vunpack.c.l.b16 %v282
        %v333 = vunpack.c.h.b16 %v282
        %v334 = vunpack.c.l.b16 %v283
        %v335 = vunpack.c.h.b16 %v283
        %v336 = vunpack.c.l.b16 %v284
        %v337 = vunpack.c.h.b16 %v284
        %v338 = vunpack.c.l.b16 %v285
        %v339 = vunpack.c.h.b16 %v285
        %v340 = vunpack.c.l.b16 %v286
        %v341 = vunpack.c.h.b16 %v286
        %v342 = vunpack.c.l.b16 %v287
        %v343 = vunpack.c.h.b16 %v287
        %v344 = vunpack.c.l.b16 %v288
        %v345 = vunpack.c.h.b16 %v288
        %v346 = vunpack.c.l.b16 %v289
        %v347 = vunpack.c.h.b16 %v289
        %v348 = vunpack.c.l.b16 %v290
        %v349 = vunpack.c.h.b16 %v290
        %v350 = vunpack.c.l.b16 %v291
        %v351 = vunpack.c.h.b16 %v291
        %v352 = vunpack.c.l.b16 %v292
        %v353 = vunpack.c.h.b16 %v292
        %v354 = vunpack.c.l.b16 %v293
        %v355 = vunpack.c.h.b16 %v293
        %v356 = vunpack.c.l.b16 %v294
        %v357 = vunpack.c.h.b16 %v294
        %v358 = vunpack.c.l.b16 %v295
        %v359 = vunpack.c.h.b16 %v295
        %v360 = vunpack.c.l.b16 %v296
        %v361 = vunpack.c.h.b16 %v296
        %v362 = vpack.c.b16 %v328, %v326
        %v363 = vpack.c.b16 %v329, %v327
        %v364 = vpack.c.b16 %v332, %v330
        %v365 = vpack.c.b16 %v333, %v331
        %v366 = vpack.c.b16 %v336, %v334
        %v367 = vpack.c.b16 %v337, %v335
        %v368 = vpack.c.b16 %v340, %v338
        %v369 = vpack.c.b16 %v341, %v339
        %v370 = vpack.c.b16 %v344, %v342
        %v371 = vpack.c.b16 %v345, %v343
        %v372 = vpack.c.b16 %v348, %v346
        %v373 = vpack.c.b16 %v349, %v347
        %v374 = vpack.c.b16 %v352, %v350
        %v375 = vpack.c.b16 %v353, %v351
        %v376 = vpack.c.b16 %v356, %v354
        %v377 = vpack.c.b16 %v357, %v355
        %v378 = vpack.c.b16 %v360, %v358
        %v379 = vpack.c.b16 %v361, %v359
        %vm398 = vcmask 130048
        %v399 = vsel %vm398, %v306, 0
        %401 = vmatpush.bf16.msra.mxu0 %v376
        %402 = vmatpush.bf16.msra.mxu0 %v374
        %403 = vmatpush.bf16.msra.mxu0 %v372
        %404 = vmatpush.bf16.msra.mxu0 %v370
        %405 = vmatpush.bf16.msra.mxu0 %v368
        %406 = vmatpush.bf16.msra.mxu0 %v366
        %407 = vmatpush.bf16.msra.mxu0 %v364
        %408 = vmatpush.bf16.msra.mxu0 %v362
        %409 = vmatmul.bf16.gmra.mxu0 %v305
        %v410 = vpop.f32.mrf.mxu0
        %v411 = vadd.f32 %v301, %v410
        %v412 = vpop.f32.mrf.mxu0
        %413 = vdwg.mxu0
        %414 = vmatpush.bf16.msra.mxu0 0
        %415 = vmatpush.bf16.msra.mxu0 0
        %416 = vmatpush.bf16.msra.mxu0 0
        %417 = vmatpush.bf16.msra.mxu0 0
        %418 = vmatpush.bf16.msra.mxu0 0
        %419 = vmatpush.bf16.msra.mxu0 0
        %420 = vmatpush.bf16.msra.mxu0 0
        %421 = vmatpush.bf16.msra.mxu0 %v378
        %422 = vmatmul.bf16.gmra.mxu0 %v399
        %v423 = vpop.f32.mrf.mxu0
        %v424 = vadd.f32 %v411, %v423
        %v425 = vpop.f32.mrf.mxu0
        %426 = vdwg.mxu0
        %427 = vmatpush.bf16.msra.mxu0 %v377
        %428 = vmatpush.bf16.msra.mxu0 %v375
        %429 = vmatpush.bf16.msra.mxu0 %v373
        %430 = vmatpush.bf16.msra.mxu0 %v371
        %431 = vmatpush.bf16.msra.mxu0 %v369
        %432 = vmatpush.bf16.msra.mxu0 %v367
        %433 = vmatpush.bf16.msra.mxu0 %v365
        %434 = vmatpush.bf16.msra.mxu0 %v363
        %435 = vmatmul.bf16.gmra.mxu0 %v305
        %v436 = vpop.f32.mrf.mxu0
        %v437 = vadd.f32 %v301, %v436
        %v438 = vpop.f32.mrf.mxu0
        %439 = vdwg.mxu0
        %440 = vmatpush.bf16.msra.mxu0 0
        %441 = vmatpush.bf16.msra.mxu0 0
        %442 = vmatpush.bf16.msra.mxu0 0
        %443 = vmatpush.bf16.msra.mxu0 0
        %444 = vmatpush.bf16.msra.mxu0 0
        %445 = vmatpush.bf16.msra.mxu0 0
        %446 = vmatpush.bf16.msra.mxu0 0
        %447 = vmatpush.bf16.msra.mxu0 %v379
        %448 = vmatmul.bf16.gmra.mxu0 %v399
        %v449 = vpop.f32.mrf.mxu0
        %v450 = vadd.f32 %v437, %v449
        %v451 = vpop.f32.mrf.mxu0
        %452 = vdwg.mxu0
        %v455 = vrot.slane %v450, 4
        %vm456 = vcmask 1043456
        %v457 = vsel %vm456, %v424, %v455
        %459 = vst [vmem:[%s275] sm:$0x77] %v457
        %s460 = smul.u32 2, %s14
        %p461 = scmp.lt.s32.totalorder %s460, 3
        %s462 = scalar_select %p461, %s460, 3
        %s463 = smul.addr %s462, 4
        %s464 = scalar_lea.vmem %s3, %s463
        // Predicated region
        $region71: #{net_forward.31} parent=65 // pred_check
          %p465 = pneg %p100
        $region72: #{net_forward.31} parent=65 // pred_check_branch
          %467 = sbr.rel (%p465) target = $region74
        $region73: #{net_forward.31} parent=65 // pred_region
          %s468 = smul.u32 2, %s14
        $region74: #{net_forward.31} parent=65 // pred_fallthru
          _
      $region66: #{net_forward.31} parent=5 // pred_fallthru
        _
      %p469 = scmp.le.s32.totalorder 2, %s9
      // Predicated region
      $region75: #{net_forward.31} parent=5 // pred_check
        %p470 = pneg %p469
      $region76: #{net_forward.31} parent=5 // pred_check_branch
        %472 = sbr.rel (%p470) target = $region78
      $region77: #{net_forward.31} parent=5 // pred_region
        %s473 = ssub.s32 %s9, 2
        // Predicated region
        $region79: #{net_forward.31} parent=77 // pred_check
          %p474 = pneg %p106
        $region80: #{net_forward.31} parent=77 // pred_check_branch
          %476 = sbr.rel (%p474) target = $region82
        $region81: #{net_forward.31} parent=77 // pred_region
          %s477 = smul.u32 2, %s15
          %p478 = scmp.lt.s32.totalorder %s477, 3
          %s479 = scalar_select %p478, %s477, 3
          %s480 = smul.addr %s479, 4
          %s481 = scalar_lea.vmem %s3, %s480
        $region82: #{net_forward.31} parent=77 // pred_fallthru
          _
      $region78: #{net_forward.31} parent=5 // pred_fallthru
        _
    $region6: #{net_forward.31} parent=1 // loop_footer
      %s13 = sadd.s32 1, %s9
    $region7: #{net_forward.31} parent=1 // loop_footer_branch
      %8 = sbr.rel target = $region3
    $region8: #{net_forward.31} parent=1 // loop_exit
      _

// kernel: net_forward.32
$region0: #{net_forward.32}
  #allocation0 [shape = 'u32[]', space=smem, size = 0x4, offset = 0x4, fixed_abs, tag = 'smem constant byte address 0x4 - core index']
  #allocation1 [shape = 'u32[72,128]{1,0:T(1,128)}', space=vmem, size = 0x9000, scoped, tag = 'internal scratch']
  %s0 = inlined_call_operand.vmem [shape: bf16[27,512], index: 0, kind: input, shape index: {}]
  %s1 = inlined_call_operand.vmem [shape: bf16[16,27], index: 1, kind: input, shape index: {}]
  %s2 = inlined_call_operand.vmem [shape: f32[16,1], index: 2, kind: input, shape index: {}]
  %s3 = inlined_call_operand.vmem [shape: f32[16,512], index: 3, kind: output, shape index: {}]
  %s4 = sld [smem:[#allocation0]]
  $region102: #{net_forward.32} parent=0
    _
  %s6 = ssub.s32 1, %s4
  %s7 = scalar_select 0, %s6, %s4
  $region1: #{net_forward.32} parent=0
    #allocation2 [shape = 'u8[32768]{0}', space=vmem, size = 0x8000, scoped, tag = 'input window, operand 0']
    #allocation3 [shape = 'u8[32768]{0}', space=vmem, size = 0x8000, scoped, tag = 'output window, operand 0']
    loop: start=0, step=1, limit=4
    $region2: #{net_forward.32} parent=1 // loop_pre_header
      _
    $region3: #{net_forward.32} parent=1 // loop_header
      %s9 = sphi 0, %s13
      %p10 = scmp.ge.s32.totalorder %s9, 4
      %s19 = sphi 0, %s21
      %s22 = sphi 0, %s19
      %s23 = sphi 0, %s22
      %s39 = sphi 0, %s23
      %s43 = sphi 0, %s43
      %s45 = sphi 0, %s43
      %s46 = sphi 0, %s45
      %s60 = sphi 0, %s46
      %s64 = sphi 0, %s64
      %s66 = sphi 0, %s64
      %s67 = sphi 0, %s66
      %s81 = sphi 0, %s67
      %s87 = sphi 0, %s89
      %s90 = sphi 0, %s87
      %s91 = sphi 0, %s90
      %s107 = sphi 0, %s91
    $region4: #{net_forward.32} parent=1 // loop_header_branch
      %12 = sbr.rel (%p10) target = $region8
    $region5: #{net_forward.32} parent=1 // loop_body
      %s14 = ssub.s32 %s9, 1
      %s15 = ssub.s32 %s9, 2
      %s16 = sadd.s32 %s9, 1
      %s17 = ssub.s32 %s9, %s16
      %p18 = scmp.eq.s32.totalorder %s17, 0
      %s20 = sadd.s32 %s19, 1
      %s21 = scalar_select %p18, %s19, %s20
      %p24 = pneg %p18
      %p25 = scmp.eq.s32.totalorder %s9, 1
      %p26 = por %p24, %p25
      %p27 = scmp.ne.s32.totalorder %s19, %s22
      %p28 = scmp.eq.s32.totalorder %s9, 0
      %p29 = por %p27, %p28
      %p30 = scmp.ne.s32.totalorder %s19, %s22
      %p31 = scmp.eq.s32.totalorder %s14, 1
      %p32 = por %p30, %p31
      %p33 = scmp.ne.s32.totalorder %s22, %s23
      %p34 = scmp.eq.s32.totalorder %s14, 0
      %p35 = por %p33, %p34
      %p36 = scmp.ne.s32.totalorder %s22, %s23
      %p37 = scmp.eq.s32.totalorder %s15, 1
      %p38 = por %p36, %p37
      %p40 = scmp.ne.s32.totalorder %s23, %s39
      %p41 = scmp.eq.s32.totalorder %s15, 0
      %p42 = por %p40, %p41
      %s44 = sadd.s32 %s43, 1
      %p47 = scmp.eq.s32.totalorder %s9, 1
      %p48 = scmp.ne.s32.totalorder %s43, %s45
      %p49 = scmp.eq.s32.totalorder %s9, 0
      %p50 = por %p48, %p49
      %p51 = scmp.ne.s32.totalorder %s43, %s45
      %p52 = scmp.eq.s32.totalorder %s14, 1
      %p53 = por %p51, %p52
      %p54 = scmp.ne.s32.totalorder %s45, %s46
      %p55 = scmp.eq.s32.totalorder %s14, 0
      %p56 = por %p54, %p55
      %p57 = scmp.ne.s32.totalorder %s45, %s46
      %p58 = scmp.eq.s32.totalorder %s15, 1
      %p59 = por %p57, %p58
      %p61 = scmp.ne.s32.totalorder %s46, %s60
      %p62 = scmp.eq.s32.totalorder %s15, 0
      %p63 = por %p61, %p62
      %s65 = sadd.s32 %s64, 1
      %p68 = scmp.eq.s32.totalorder %s9, 1
      %p69 = scmp.ne.s32.totalorder %s64, %s66
      %p70 = scmp.eq.s32.totalorder %s9, 0
      %p71 = por %p69, %p70
      %p72 = scmp.ne.s32.totalorder %s64, %s66
      %p73 = scmp.eq.s32.totalorder %s14, 1
      %p74 = por %p72, %p73
      %p75 = scmp.ne.s32.totalorder %s66, %s67
      %p76 = scmp.eq.s32.totalorder %s14, 0
      %p77 = por %p75, %p76
      %p78 = scmp.ne.s32.totalorder %s66, %s67
      %p79 = scmp.eq.s32.totalorder %s15, 1
      %p80 = por %p78, %p79
      %p82 = scmp.ne.s32.totalorder %s67, %s81
      %p83 = scmp.eq.s32.totalorder %s15, 0
      %p84 = por %p82, %p83
      %s85 = ssub.s32 %s9, %s16
      %p86 = scmp.eq.s32.totalorder %s85, 0
      %s88 = sadd.s32 %s87, 1
      %s89 = scalar_select %p86, %s87, %s88
      %p92 = pneg %p86
      %p93 = scmp.eq.s32.totalorder %s9, 1
      %p94 = por %p92, %p93
      %p95 = scmp.ne.s32.totalorder %s87, %s90
      %p96 = scmp.eq.s32.totalorder %s9, 0
      %p97 = por %p95, %p96
      %p98 = scmp.ne.s32.totalorder %s87, %s90
      %p99 = scmp.eq.s32.totalorder %s14, 1
      %p100 = por %p98, %p99
      %p101 = scmp.ne.s32.totalorder %s90, %s91
      %p102 = scmp.eq.s32.totalorder %s14, 0
      %p103 = por %p101, %p102
      %p104 = scmp.ne.s32.totalorder %s90, %s91
      %p105 = scmp.eq.s32.totalorder %s15, 1
      %p106 = por %p104, %p105
      %p108 = scmp.ne.s32.totalorder %s91, %s107
      %p109 = scmp.eq.s32.totalorder %s15, 0
      %p110 = por %p108, %p109
      %p111 = scmp.le.s32.totalorder 1, %s9
      %p112 = scmp.lt.s32.totalorder %s9, 3
      %p113 = pnand %p111, %p112
      %p114 = pneg %p113
      // Predicated region
      $region9: #{net_forward.32} parent=5 // pred_check
        _
      $region10: #{net_forward.32} parent=5 // pred_check_branch
        %116 = sbr.rel (%p113) target = $region12
      $region11: #{net_forward.32} parent=5 // pred_region
        %s117 = ssub.s32 %s9, 1
        // Predicated region
        $region13: #{net_forward.32} parent=11 // pred_check
          %p118 = pneg %p56
        $region14: #{net_forward.32} parent=11 // pred_check_branch
          %120 = sbr.rel (%p118) target = $region16
        $region15: #{net_forward.32} parent=11 // pred_region
          _
        $region16: #{net_forward.32} parent=11 // pred_fallthru
          _
        // Predicated region
        $region17: #{net_forward.32} parent=11 // pred_check
          %p121 = pneg %p77
        $region18: #{net_forward.32} parent=11 // pred_check_branch
          %123 = sbr.rel (%p121) target = $region20
        $region19: #{net_forward.32} parent=11 // pred_region
          _
        $region20: #{net_forward.32} parent=11 // pred_fallthru
          _
      $region12: #{net_forward.32} parent=5 // pred_fallthru
        _
      %p124 = scmp.lt.s32.totalorder %s9, 2
      // Predicated region
      $region21: #{net_forward.32} parent=5 // pred_check
        %p125 = pneg %p124
      $region22: #{net_forward.32} parent=5 // pred_check_branch
        %127 = sbr.rel (%p125) target = $region24
      $region23: #{net_forward.32} parent=5 // pred_region
        // Predicated region
        $region25: #{net_forward.32} parent=23 // pred_check
          %p128 = pneg %p29
        $region26: #{net_forward.32} parent=23 // pred_check_branch
          %130 = sbr.rel (%p128) target = $region28
        $region27: #{net_forward.32} parent=23 // pred_region
          %s131 = sand.u32 %s19, 1
          %s132 = sand.u32 %s19, 1
          %s133 = smul.addr %s132, 32
          %s134 = scalar_lea.vmem [#allocation2], %s133
          %s135 = smul.u32 2, %s9
          %s136 = smul.addr %s135, 4
          %s137 = scalar_lea.vmem %s0, %s136
          // Predicated region
          $region29: #{net_forward.32} parent=27 // pred_check
            _
          $region30: #{net_forward.32} parent=27 // pred_check_branch
            %139 = sbr.rel (0) target = $region32
          $region31: #{net_forward.32} parent=27 // pred_region
            // Predicated region
            $region33: #{net_forward.32} parent=31 // pred_check
              _
            $region34: #{net_forward.32} parent=31 // pred_check_branch
              %141 = sbr.rel (0) target = $region36
            $region35: #{net_forward.32} parent=31 // pred_region
              // Predicated region
              $region48: #{net_forward.32} parent=35 // pred_check
                _
              $region49: #{net_forward.32} parent=35 // pred_check_branch
                %163 = sbr.rel (0) target = $region51
              $region50: #{net_forward.32} parent=35 // pred_region
                loop: start=0, step=1, limit=1
                $region52: #{net_forward.32} parent=50 // loop_pre_header
                  _
                $region53: #{net_forward.32} parent=50 // loop_header
                  %s165 = sphi 0, %s169
                  %p166 = scmp.ge.s32.totalorder %s165, 1
                  %s170 = sphi %s137, %s137
                  %s171 = sphi %s134, %s134
                $region54: #{net_forward.32} parent=50 // loop_header_branch
                  %168 = sbr.rel (%p166) target = $region58
                $region55: #{net_forward.32} parent=50 // loop_body
                  %v172 = vld [vmem:[%s170] sm:$0xff]
                  %173 = vst [vmem:[%s171] sm:$0xff] %v172
                  %v174 = vld [vmem:[%s170 + $0x10] sm:$0xff]
                  %175 = vst [vmem:[%s171 + $0x8] sm:$0xff] %v174
                  %v176 = vld [vmem:[%s170 + $0x20] sm:$0xff]
                  %177 = vst [vmem:[%s171 + $0x10] sm:$0xff] %v176
                  %v178 = vld [vmem:[%s170 + $0x30] sm:$0xff]
                  %179 = vst [vmem:[%s171 + $0x18] sm:$0xff] %v178
                $region56: #{net_forward.32} parent=50 // loop_footer
                  %s169 = sadd.s32 1, %s165
                $region57: #{net_forward.32} parent=50 // loop_footer_branch
                  %164 = sbr.rel target = $region53
                $region58: #{net_forward.32} parent=50 // loop_exit
                  _
              $region51: #{net_forward.32} parent=35 // pred_fallthru
                _
              // Predicated region
              $region59: #{net_forward.32} parent=35 // pred_check
                _
              $region60: #{net_forward.32} parent=35 // pred_check_branch
                %181 = sbr.rel target = $region62
              $region61: #{net_forward.32} parent=35 // pred_region
                _
              $region62: #{net_forward.32} parent=35 // pred_fallthru
                _
            $region36: #{net_forward.32} parent=31 // pred_fallthru
              _
            // Predicated region
            $region37: #{net_forward.32} parent=31 // pred_check
              _
            $region38: #{net_forward.32} parent=31 // pred_check_branch
              %143 = sbr.rel target = $region40
            $region39: #{net_forward.32} parent=31 // pred_region
              %s145 = ssub.s32 256, 1
              loop: start=0, step=1, limit=1
              $region41: #{net_forward.32} parent=39 // loop_pre_header
                _
              $region42: #{net_forward.32} parent=39 // loop_header
                %s147 = sphi 0, %s151
                %p148 = scmp.ge.s32.totalorder %s147, 1
                %s152 = sphi %s137, %s137
                %s153 = sphi %s134, %s134
              $region43: #{net_forward.32} parent=39 // loop_header_branch
                %150 = sbr.rel (%p148) target = $region47
              $region44: #{net_forward.32} parent=39 // loop_body
                %v154 = vld [vmem:[%s152] sm:%s145]
                %155 = vst [vmem:[%s153] sm:%s145] %v154
                %v156 = vld [vmem:[%s152 + $0x10] sm:%s145]
                %157 = vst [vmem:[%s153 + $0x8] sm:%s145] %v156
                %v158 = vld [vmem:[%s152 + $0x20] sm:%s145]
                %159 = vst [vmem:[%s153 + $0x10] sm:%s145] %v158
                %v160 = vld [vmem:[%s152 + $0x30] sm:%s145]
                %161 = vst [vmem:[%s153 + $0x18] sm:%s145] %v160
              $region45: #{net_forward.32} parent=39 // loop_footer
                %s151 = sadd.s32 1, %s147
              $region46: #{net_forward.32} parent=39 // loop_footer_branch
                %146 = sbr.rel target = $region42
              $region47: #{net_forward.32} parent=39 // loop_exit
                _
            $region40: #{net_forward.32} parent=31 // pred_fallthru
              _
          $region32: #{net_forward.32} parent=27 // pred_fallthru
            _
          %182 = vnop
        $region28: #{net_forward.32} parent=23 // pred_fallthru
          _
      $region24: #{net_forward.32} parent=5 // pred_fallthru
        _
      %p183 = scmp.le.s32.totalorder 1, %s9
      %p184 = scmp.lt.s32.totalorder %s9, 3
      %p185 = pnand %p183, %p184
      %p186 = pneg %p185
      // Predicated region
      $region63: #{net_forward.32} parent=5 // pred_check
        _
      $region64: #{net_forward.32} parent=5 // pred_check_branch
        %188 = sbr.rel (%p185) target = $region66
      $region65: #{net_forward.32} parent=5 // pred_region
        %s189 = ssub.s32 %s9, 1
        %s190 = sand.u32 %s22, 1
        %s191 = sand.u32 %s22, 1
        %s192 = smul.addr %s191, 32
        %s193 = scalar_lea.vmem [#allocation2], %s192
        // Predicated region
        $region67: #{net_forward.32} parent=65 // pred_check
          %p194 = pneg %p35
        $region68: #{net_forward.32} parent=65 // pred_check_branch
          %196 = sbr.rel (%p194) target = $region70
        $region69: #{net_forward.32} parent=65 // pred_region
          _
        $region70: #{net_forward.32} parent=65 // pred_fallthru
          _
        %s197 = sand.u32 %s22, 1
        %s198 = sand.u32 %s22, 1
        %s199 = smul.addr %s198, 32
        %s200 = scalar_lea.vmem [#allocation2], %s199
        %p201 = pneg %p35
        %p202 = pneg %p32
        %p203 = pneg %p56
        %p204 = pneg %p53
        %p205 = pneg %p77
        %p206 = pneg %p74
        %p207 = pneg %p103
        %p208 = pneg %p100
        %s209 = sand.u32 %s90, 1
        %s210 = sand.u32 %s90, 1
        %s211 = smul.addr %s210, 32
        %s212 = scalar_lea.vmem [#allocation3], %s211
        %s213 = smul.u32 2, %s14
        %s214 = smul.u32 2, %s14
        %v216 = vld [vmem:[%s1] sm:$0xf]
        %v217 = vld [vmem:[%s1 + $0x4] sm:$0xf]
        %v218 = vld [vmem:[%s193] sm:$0xff]
        %v219 = vld [vmem:[%s193 + $0x8] sm:$0xff]
        %v220 = vld [vmem:[%s193 + $0x10] sm:$0xff]
        %v221 = vld [vmem:[%s193 + $0x18] sm:$0x33]
        %v222 = vld [vmem:[%s2] sm:$0xff]
        %v223 = vld [vmem:[%s2 + $0x8] sm:$0xff]
        %225 = vset.pattern.permute.xlu0 0
        %226 = vperm.xlu0 %225, %v222
        %v227 = vpop.permute.xlu0 %226
        %230 = vset.pattern.permute.xlu0 0
        %231 = vperm.xlu0 %230, %v223
        %v232 = vpop.permute.xlu0 %231
        %v236 = vunpack.c.l.b16 %v216
        %v237 = vunpack.c.l.b16 %v217
        %v238 = vpack.c.b16 %v237, %v236
        %v243 = vunpack.c.l.b16 %v218
        %v244 = vunpack.c.h.b16 %v218
        %v245 = vunpack.c.l.b16 %v219
        %v246 = vunpack.c.h.b16 %v219
        %v247 = vunpack.c.l.b16 %v220
        %v248 = vunpack.c.h.b16 %v220
        %v249 = vunpack.c.l.b16 %v221
        %v250 = vunpack.c.h.b16 %v221
        %v251 = vpack.c.b16 %v245, %v243
        %v252 = vpack.c.b16 %v246, %v244
        %v253 = vpack.c.b16 %v249, %v247
        %v254 = vpack.c.b16 %v250, %v248
        %vm257 = vcmask 220160
        %v259 = vsel %vm257, %v238, 0
        %vm261 = vcmask 1044480
        %vm262 = vcmask 1045504
        %v263 = vsel %vm261, 4294967295, 65535
        %v264 = vsel %vm262, %v263, 0
        %v266 = vand.u32 %v253, %v264
        %v269 = vand.u32 %v254, %v264
        %271 = vmatpush.bf16.msra.mxu0 0
        %272 = vmatpush.bf16.msra.mxu0 0
        %273 = vmatpush.bf16.msra.mxu0 0
        %274 = vmatpush.bf16.msra.mxu0 0
        %275 = vmatpush.bf16.msra.mxu0 0
        %276 = vmatpush.bf16.msra.mxu0 0
        %277 = vmatpush.bf16.msra.mxu0 %v266
        %278 = vmatpush.bf16.msra.mxu0 %v251
        %279 = vmatmul.bf16.gmra.mxu0 %v259
        %v280 = vpop.f32.mrf.mxu0
        %v281 = vadd.f32 %v227, %v280
        %v282 = vpop.f32.mrf.mxu0
        %v283 = vadd.f32 %v232, %v282
        %284 = vdwg.mxu0
        %285 = vmatpush.bf16.msra.mxu0 0
        %286 = vmatpush.bf16.msra.mxu0 0
        %287 = vmatpush.bf16.msra.mxu0 0
        %288 = vmatpush.bf16.msra.mxu0 0
        %289 = vmatpush.bf16.msra.mxu0 0
        %290 = vmatpush.bf16.msra.mxu0 0
        %291 = vmatpush.bf16.msra.mxu0 %v269
        %292 = vmatpush.bf16.msra.mxu0 %v252
        %293 = vmatmul.bf16.gmra.mxu0 %v259
        %v294 = vpop.f32.mrf.mxu0
        %v295 = vadd.f32 %v227, %v294
        %v296 = vpop.f32.mrf.mxu0
        %v297 = vadd.f32 %v232, %v296
        %298 = vdwg.mxu0
        %v299 = vmax.f32 %v281, 0.0
        %v300 = vmax.f32 %v295, 0.0
        %v301 = vmax.f32 %v283, 0.0
        %v302 = vmax.f32 %v297, 0.0
        %303 = vst [vmem:[%s212] sm:$0xff] %v299
        %304 = vst [vmem:[%s212 + $0x8] sm:$0xff] %v300
        %305 = vst [vmem:[%s212 + $0x10] sm:$0xff] %v301
        %306 = vst [vmem:[%s212 + $0x18] sm:$0xff] %v302
        %s307 = sand.u32 %s90, 1
        %s308 = sand.u32 %s90, 1
        %s309 = smul.addr %s308, 32
        %s310 = scalar_lea.vmem [#allocation3], %s309
        // Predicated region
        $region71: #{net_forward.32} parent=65 // pred_check
          %p311 = pneg %p100
        $region72: #{net_forward.32} parent=65 // pred_check_branch
          %313 = sbr.rel (%p311) target = $region74
        $region73: #{net_forward.32} parent=65 // pred_region
          %s314 = smul.u32 2, %s14
          %s315 = smul.addr %s314, 8
          %s316 = scalar_lea.vmem %s3, %s315
          // Predicated region
          $region75: #{net_forward.32} parent=73 // pred_check
            _
          $region76: #{net_forward.32} parent=73 // pred_check_branch
            %318 = sbr.rel (0) target = $region78
          $region77: #{net_forward.32} parent=73 // pred_region
            // Predicated region
            $region79: #{net_forward.32} parent=77 // pred_check
              _
            $region80: #{net_forward.32} parent=77 // pred_check_branch
              %320 = sbr.rel (0) target = $region82
            $region81: #{net_forward.32} parent=77 // pred_region
              loop: start=0, step=1, limit=1
              $region83: #{net_forward.32} parent=81 // loop_pre_header
                _
              $region84: #{net_forward.32} parent=81 // loop_header
                %s322 = sphi 0, %s326
                %p323 = scmp.ge.s32.totalorder %s322, 1
                %s327 = sphi %s310, %s310
                %s328 = sphi %s316, %s316
              $region85: #{net_forward.32} parent=81 // loop_header_branch
                %325 = sbr.rel (%p323) target = $region89
              $region86: #{net_forward.32} parent=81 // loop_body
                %v329 = vld [vmem:[%s327] sm:$0xff]
                %330 = vst [vmem:[%s328] sm:$0xff] %v329
                %v331 = vld [vmem:[%s327 + $0x8] sm:$0xff]
                %332 = vst [vmem:[%s328 + $0x8] sm:$0xff] %v331
                %v333 = vld [vmem:[%s327 + $0x10] sm:$0xff]
                %334 = vst [vmem:[%s328 + $0x20] sm:$0xff] %v333
                %v335 = vld [vmem:[%s327 + $0x18] sm:$0xff]
                %336 = vst [vmem:[%s328 + $0x28] sm:$0xff] %v335
              $region87: #{net_forward.32} parent=81 // loop_footer
                %s326 = sadd.s32 1, %s322
              $region88: #{net_forward.32} parent=81 // loop_footer_branch
                %321 = sbr.rel target = $region84
              $region89: #{net_forward.32} parent=81 // loop_exit
                _
            $region82: #{net_forward.32} parent=77 // pred_fallthru
              _
            // Predicated region
            $region90: #{net_forward.32} parent=77 // pred_check
              _
            $region91: #{net_forward.32} parent=77 // pred_check_branch
              %338 = sbr.rel target = $region93
            $region92: #{net_forward.32} parent=77 // pred_region
              _
            $region93: #{net_forward.32} parent=77 // pred_fallthru
              _
          $region78: #{net_forward.32} parent=73 // pred_fallthru
            _
          %339 = vnop
        $region74: #{net_forward.32} parent=65 // pred_fallthru
          _
      $region66: #{net_forward.32} parent=5 // pred_fallthru
        _
      %p340 = scmp.le.s32.totalorder 2, %s9
      // Predicated region
      $region94: #{net_forward.32} parent=5 // pred_check
        %p341 = pneg %p340
      $region95: #{net_forward.32} parent=5 // pred_check_branch
        %343 = sbr.rel (%p341) target = $region97
      $region96: #{net_forward.32} parent=5 // pred_region
        %s344 = ssub.s32 %s9, 2
        // Predicated region
        $region98: #{net_forward.32} parent=96 // pred_check
          %p345 = pneg %p106
        $region99: #{net_forward.32} parent=96 // pred_check_branch
          %347 = sbr.rel (%p345) target = $region101
        $region100: #{net_forward.32} parent=96 // pred_region
          %s348 = sand.u32 %s91, 1
          %s349 = sand.u32 %s91, 1
          %s350 = smul.addr %s349, 32
          %s351 = scalar_lea.vmem [#allocation3], %s350
        $region101: #{net_forward.32} parent=96 // pred_fallthru
          _
      $region97: #{net_forward.32} parent=5 // pred_fallthru
        _
    $region6: #{net_forward.32} parent=1 // loop_footer
      %s13 = sadd.s32 1, %s9
    $region7: #{net_forward.32} parent=1 // loop_footer_branch
      %8 = sbr.rel target = $region3
    $region8: #{net_forward.32} parent=1 // loop_exit
      _

// kernel: net_forward.34
$region0: #{net_forward.34}
  #allocation0 [shape = 'u32[]', space=smem, size = 0x4, offset = 0x4, fixed_abs, tag = 'smem constant byte address 0x4 - core index']
  #allocation1 [shape = 'u32[72,128]{1,0:T(1,128)}', space=vmem, size = 0x9000, scoped, tag = 'internal scratch']
  %s0 = inlined_call_operand.vmem [shape: bf16[144,128], index: 0, kind: input, shape index: {}]
  %s1 = inlined_call_operand.vmem [shape: bf16[32,144], index: 1, kind: input, shape index: {}]
  %s2 = inlined_call_operand.vmem [shape: f32[32,1], index: 2, kind: input, shape index: {}]
  %s3 = inlined_call_operand.vmem [shape: f32[32,128], index: 3, kind: output, shape index: {}]
  %s4 = sld [smem:[#allocation0]]
  $region22: #{net_forward.34} parent=0
    _
  %s6 = ssub.s32 1, %s4
  %s7 = scalar_select 0, %s6, %s4
  // Predicated region
  $region2: #{net_forward.34} parent=0 // pred_check
    _
  $region3: #{net_forward.34} parent=0 // pred_check_branch
    %9 = sbr.rel (0) target = $region5
  $region4: #{net_forward.34} parent=0 // pred_region
    _
  $region5: #{net_forward.34} parent=0 // pred_fallthru
    _
  // Predicated region
  $region6: #{net_forward.34} parent=0 // pred_check
    _
  $region7: #{net_forward.34} parent=0 // pred_check_branch
    %11 = sbr.rel (0) target = $region9
  $region8: #{net_forward.34} parent=0 // pred_region
    _
  $region9: #{net_forward.34} parent=0 // pred_fallthru
    _
  // Predicated region
  $region10: #{net_forward.34} parent=0 // pred_check
    _
  $region11: #{net_forward.34} parent=0 // pred_check_branch
    %13 = sbr.rel (0) target = $region13
  $region12: #{net_forward.34} parent=0 // pred_region
    _
  $region13: #{net_forward.34} parent=0 // pred_fallthru
    _
  %v15 = vld [vmem:[%s1] sm:$0xff]
  %v16 = vld [vmem:[%s1 + $0x8] sm:$0xff]
  %v17 = vld [vmem:[%s1 + $0x10] sm:$0xff]
  %v18 = vld [vmem:[%s1 + $0x18] sm:$0xff]
  %v19 = vld [vmem:[%s0] sm:$0xf]
  %v20 = vld [vmem:[%s0 + $0x4] sm:$0xf]
  %v21 = vld [vmem:[%s0 + $0x8] sm:$0xf]
  %v22 = vld [vmem:[%s0 + $0xc] sm:$0xf]
  %v23 = vld [vmem:[%s0 + $0x10] sm:$0xf]
  %v24 = vld [vmem:[%s0 + $0x14] sm:$0xf]
  %v25 = vld [vmem:[%s0 + $0x18] sm:$0xf]
  %v26 = vld [vmem:[%s0 + $0x1c] sm:$0xf]
  %v27 = vld [vmem:[%s0 + $0x20] sm:$0xf]
  %v28 = vld [vmem:[%s0 + $0x24] sm:$0xf]
  %v29 = vld [vmem:[%s0 + $0x28] sm:$0xf]
  %v30 = vld [vmem:[%s0 + $0x2c] sm:$0xf]
  %v31 = vld [vmem:[%s0 + $0x30] sm:$0xf]
  %v32 = vld [vmem:[%s0 + $0x34] sm:$0xf]
  %v33 = vld [vmem:[%s0 + $0x38] sm:$0xf]
  %v34 = vld [vmem:[%s0 + $0x3c] sm:$0xf]
  %v35 = vld [vmem:[%s0 + $0x40] sm:$0xf]
  %v36 = vld [vmem:[%s0 + $0x44] sm:$0xf]
  %v37 = vld [vmem:[%s2] sm:$0xff]
  %v38 = vld [vmem:[%s2 + $0x8] sm:$0xff]
  %v39 = vld [vmem:[%s2 + $0x10] sm:$0xff]
  %v40 = vld [vmem:[%s2 + $0x18] sm:$0xff]
  %42 = vset.pattern.permute.xlu0 0
  %43 = vperm.xlu0 %42, %v37
  %v44 = vpop.permute.xlu0 %43
  %47 = vset.pattern.permute.xlu0 0
  %48 = vperm.xlu0 %47, %v38
  %v49 = vpop.permute.xlu0 %48
  %52 = vset.pattern.permute.xlu0 0
  %53 = vperm.xlu0 %52, %v39
  %v54 = vpop.permute.xlu0 %53
  %57 = vset.pattern.permute.xlu0 0
  %58 = vperm.xlu0 %57, %v40
  %v59 = vpop.permute.xlu0 %58
  %v65 = vunpack.c.l.b16 %v15
  %v66 = vunpack.c.h.b16 %v15
  %v67 = vunpack.c.l.b16 %v16
  %v68 = vunpack.c.h.b16 %v16
  %v69 = vunpack.c.l.b16 %v17
  %v70 = vunpack.c.h.b16 %v17
  %v71 = vunpack.c.l.b16 %v18
  %v72 = vunpack.c.h.b16 %v18
  %v73 = vpack.c.b16 %v67, %v65
  %v74 = vpack.c.b16 %v68, %v66
  %v75 = vpack.c.b16 %v71, %v69
  %v76 = vpack.c.b16 %v72, %v70
  %v97 = vunpack.c.l.b16 %v19
  %v98 = vunpack.c.l.b16 %v20
  %v99 = vunpack.c.l.b16 %v21
  %v100 = vunpack.c.l.b16 %v22
  %v101 = vunpack.c.l.b16 %v23
  %v102 = vunpack.c.l.b16 %v24
  %v103 = vunpack.c.l.b16 %v25
  %v104 = vunpack.c.l.b16 %v26
  %v105 = vunpack.c.l.b16 %v27
  %v106 = vunpack.c.l.b16 %v28
  %v107 = vunpack.c.l.b16 %v29
  %v108 = vunpack.c.l.b16 %v30
  %v109 = vunpack.c.l.b16 %v31
  %v110 = vunpack.c.l.b16 %v32
  %v111 = vunpack.c.l.b16 %v33
  %v112 = vunpack.c.l.b16 %v34
  %v113 = vunpack.c.l.b16 %v35
  %v114 = vunpack.c.l.b16 %v36
  %v115 = vpack.c.b16 %v98, %v97
  %v116 = vpack.c.b16 %v100, %v99
  %v117 = vpack.c.b16 %v102, %v101
  %v118 = vpack.c.b16 %v104, %v103
  %v119 = vpack.c.b16 %v106, %v105
  %v120 = vpack.c.b16 %v108, %v107
  %v121 = vpack.c.b16 %v110, %v109
  %v122 = vpack.c.b16 %v112, %v111
  %v123 = vpack.c.b16 %v114, %v113
  %vm133 = vcmask 130048
  %v135 = vsel %vm133, %v74, 0
  %v138 = vsel %vm133, %v76, 0
  %140 = vmatpush.bf16.msra.mxu0 %v122
  %141 = vmatpush.bf16.msra.mxu0 %v121
  %142 = vmatpush.bf16.msra.mxu0 %v120
  %143 = vmatpush.bf16.msra.mxu0 %v119
  %144 = vmatpush.bf16.msra.mxu0 %v118
  %145 = vmatpush.bf16.msra.mxu0 %v117
  %146 = vmatpush.bf16.msra.mxu0 %v116
  %147 = vmatpush.bf16.msra.mxu0 %v115
  %148 = vmatmul.bf16.gmra.mxu0 %v73
  %v149 = vpop.f32.mrf.mxu0
  %v150 = vadd.f32 %v44, %v149
  %v151 = vpop.f32.mrf.mxu0
  %v152 = vadd.f32 %v49, %v151
  %153 = vmatmul.bf16.gmra.mxu0 %v75
  %v154 = vpop.f32.mrf.mxu0
  %v155 = vadd.f32 %v54, %v154
  %v156 = vpop.f32.mrf.mxu0
  %v157 = vadd.f32 %v59, %v156
  %158 = vdwg.mxu0
  %159 = vmatpush.bf16.msra.mxu0 0
  %160 = vmatpush.bf16.msra.mxu0 0
  %161 = vmatpush.bf16.msra.mxu0 0
  %162 = vmatpush.bf16.msra.mxu0 0
  %163 = vmatpush.bf16.msra.mxu0 0
  %164 = vmatpush.bf16.msra.mxu0 0
  %165 = vmatpush.bf16.msra.mxu0 0
  %166 = vmatpush.bf16.msra.mxu0 %v123
  %167 = vmatmul.bf16.gmra.mxu0 %v135
  %v168 = vpop.f32.mrf.mxu0
  %v169 = vadd.f32 %v150, %v168
  %v170 = vpop.f32.mrf.mxu0
  %v171 = vadd.f32 %v152, %v170
  %172 = vmatmul.bf16.gmra.mxu0 %v138
  %v173 = vpop.f32.mrf.mxu0
  %v174 = vadd.f32 %v155, %v173
  %v175 = vpop.f32.mrf.mxu0
  %v176 = vadd.f32 %v157, %v175
  %177 = vdwg.mxu0
  %v178 = vmax.f32 %v169, 0.0
  %v179 = vmax.f32 %v171, 0.0
  %v180 = vmax.f32 %v174, 0.0
  %v181 = vmax.f32 %v176, 0.0
  %182 = vst [vmem:[%s3] sm:$0xff] %v178
  %183 = vst [vmem:[%s3 + $0x8] sm:$0xff] %v179
  %184 = vst [vmem:[%s3 + $0x10] sm:$0xff] %v180
  %185 = vst [vmem:[%s3 + $0x18] sm:$0xff] %v181
  // Predicated region
  $region14: #{net_forward.34} parent=0 // pred_check
    _
  $region15: #{net_forward.34} parent=0 // pred_check_branch
    %187 = sbr.rel (0) target = $region17
  $region16: #{net_forward.34} parent=0 // pred_region
    _
  $region17: #{net_forward.34} parent=0 // pred_fallthru
    _
  // Predicated region
  $region18: #{net_forward.34} parent=0 // pred_check
    _
  $region19: #{net_forward.34} parent=0 // pred_check_branch
    %189 = sbr.rel (0) target = $region21
  $region20: #{net_forward.34} parent=0 // pred_region
    _
  $region21: #{net_forward.34} parent=0 // pred_fallthru
    _

// kernel: net_forward.36
$region0: #{net_forward.36}
  #allocation0 [shape = 'u32[]', space=smem, size = 0x4, offset = 0x4, fixed_abs, tag = 'smem constant byte address 0x4 - core index']
  #allocation1 [shape = 'u32[72,128]{1,0:T(1,128)}', space=vmem, size = 0x9000, scoped, tag = 'internal scratch']
  %s0 = inlined_call_operand.vmem [shape: bf16[288,32], index: 0, kind: input, shape index: {}]
  %s1 = inlined_call_operand.vmem [shape: bf16[64,288], index: 1, kind: input, shape index: {}]
  %s2 = inlined_call_operand.vmem [shape: f32[64,1], index: 2, kind: input, shape index: {}]
  %s3 = inlined_call_operand.vmem [shape: f32[64,32], index: 3, kind: output, shape index: {}]
  %s4 = sld [smem:[#allocation0]]
  $region22: #{net_forward.36} parent=0
    _
  %s6 = ssub.s32 1, %s4
  %s7 = scalar_select 0, %s6, %s4
  // Predicated region
  $region2: #{net_forward.36} parent=0 // pred_check
    _
  $region3: #{net_forward.36} parent=0 // pred_check_branch
    %9 = sbr.rel (0) target = $region5
  $region4: #{net_forward.36} parent=0 // pred_region
    _
  $region5: #{net_forward.36} parent=0 // pred_fallthru
    _
  // Predicated region
  $region6: #{net_forward.36} parent=0 // pred_check
    _
  $region7: #{net_forward.36} parent=0 // pred_check_branch
    %11 = sbr.rel (0) target = $region9
  $region8: #{net_forward.36} parent=0 // pred_region
    _
  $region9: #{net_forward.36} parent=0 // pred_fallthru
    _
  // Predicated region
  $region10: #{net_forward.36} parent=0 // pred_check
    _
  $region11: #{net_forward.36} parent=0 // pred_check_branch
    %13 = sbr.rel (0) target = $region13
  $region12: #{net_forward.36} parent=0 // pred_region
    _
  $region13: #{net_forward.36} parent=0 // pred_fallthru
    _
  %v15 = vld [vmem:[%s1] sm:$0xff]
  %v16 = vld [vmem:[%s1 + $0x8] sm:$0xf]
  %v17 = vld [vmem:[%s1 + $0xc] sm:$0xff]
  %v18 = vld [vmem:[%s1 + $0x14] sm:$0xf]
  %v19 = vld [vmem:[%s1 + $0x18] sm:$0xff]
  %v20 = vld [vmem:[%s1 + $0x20] sm:$0xf]
  %v21 = vld [vmem:[%s1 + $0x24] sm:$0xff]
  %v22 = vld [vmem:[%s1 + $0x2c] sm:$0xf]
  %v23 = vld [vmem:[%s1 + $0x30] sm:$0xff]
  %v24 = vld [vmem:[%s1 + $0x38] sm:$0xf]
  %v25 = vld [vmem:[%s1 + $0x3c] sm:$0xff]
  %v26 = vld [vmem:[%s1 + $0x44] sm:$0xf]
  %v27 = vld [vmem:[%s1 + $0x48] sm:$0xff]
  %v28 = vld [vmem:[%s1 + $0x50] sm:$0xf]
  %v29 = vld [vmem:[%s1 + $0x54] sm:$0xff]
  %v30 = vld [vmem:[%s1 + $0x5c] sm:$0xf]
  %v31 = vld [vmem:[%s0] sm:$0xf]
  %v32 = vld [vmem:[%s0 + $0x4] sm:$0xf]
  %v33 = vld [vmem:[%s0 + $0x8] sm:$0xf]
  %v34 = vld [vmem:[%s0 + $0xc] sm:$0xf]
  %v35 = vld [vmem:[%s0 + $0x10] sm:$0xf]
  %v36 = vld [vmem:[%s0 + $0x14] sm:$0xf]
  %v37 = vld [vmem:[%s0 + $0x18] sm:$0xf]
  %v38 = vld [vmem:[%s0 + $0x1c] sm:$0xf]
  %v39 = vld [vmem:[%s0 + $0x20] sm:$0xf]
  %v40 = vld [vmem:[%s0 + $0x24] sm:$0xf]
  %v41 = vld [vmem:[%s0 + $0x28] sm:$0xf]
  %v42 = vld [vmem:[%s0 + $0x2c] sm:$0xf]
  %v43 = vld [vmem:[%s0 + $0x30] sm:$0xf]
  %v44 = vld [vmem:[%s0 + $0x34] sm:$0xf]
  %v45 = vld [vmem:[%s0 + $0x38] sm:$0xf]
  %v46 = vld [vmem:[%s0 + $0x3c] sm:$0xf]
  %v47 = vld [vmem:[%s0 + $0x40] sm:$0xf]
  %v48 = vld [vmem:[%s0 + $0x44] sm:$0xf]
  %v49 = vld [vmem:[%s0 + $0x48] sm:$0xf]
  %v50 = vld [vmem:[%s0 + $0x4c] sm:$0xf]
  %v51 = vld [vmem:[%s0 + $0x50] sm:$0xf]
  %v52 = vld [vmem:[%s0 + $0x54] sm:$0xf]
  %v53 = vld [vmem:[%s0 + $0x58] sm:$0xf]
  %v54 = vld [vmem:[%s0 + $0x5c] sm:$0xf]
  %v55 = vld [vmem:[%s0 + $0x60] sm:$0xf]
  %v56 = vld [vmem:[%s0 + $0x64] sm:$0xf]
  %v57 = vld [vmem:[%s0 + $0x68] sm:$0xf]
  %v58 = vld [vmem:[%s0 + $0x6c] sm:$0xf]
  %v59 = vld [vmem:[%s0 + $0x70] sm:$0xf]
  %v60 = vld [vmem:[%s0 + $0x74] sm:$0xf]
  %v61 = vld [vmem:[%s0 + $0x78] sm:$0xf]
  %v62 = vld [vmem:[%s0 + $0x7c] sm:$0xf]
  %v63 = vld [vmem:[%s0 + $0x80] sm:$0xf]
  %v64 = vld [vmem:[%s0 + $0x84] sm:$0xf]
  %v65 = vld [vmem:[%s0 + $0x88] sm:$0xf]
  %v66 = vld [vmem:[%s0 + $0x8c] sm:$0xf]
  %v67 = vld [vmem:[%s2] sm:$0xff]
  %v68 = vld [vmem:[%s2 + $0x8] sm:$0xff]
  %v69 = vld [vmem:[%s2 + $0x10] sm:$0xff]
  %v70 = vld [vmem:[%s2 + $0x18] sm:$0xff]
  %v71 = vld [vmem:[%s2 + $0x20] sm:$0xff]
  %v72 = vld [vmem:[%s2 + $0x28] sm:$0xff]
  %v73 = vld [vmem:[%s2 + $0x30] sm:$0xff]
  %v74 = vld [vmem:[%s2 + $0x38] sm:$0xff]
  %76 = vset.pattern.permute.xlu0 0
  %77 = vperm.xlu0 %76, %v67
  %v78 = vpop.permute.xlu0 %77
  %81 = vset.pattern.permute.xlu0 0
  %82 = vperm.xlu0 %81, %v68
  %v83 = vpop.permute.xlu0 %82
  %86 = vset.pattern.permute.xlu0 0
  %87 = vperm.xlu0 %86, %v69
  %v88 = vpop.permute.xlu0 %87
  %91 = vset.pattern.permute.xlu0 0
  %92 = vperm.xlu0 %91, %v70
  %v93 = vpop.permute.xlu0 %92
  %96 = vset.pattern.permute.xlu0 0
  %97 = vperm.xlu0 %96, %v71
  %v98 = vpop.permute.xlu0 %97
  %101 = vset.pattern.permute.xlu0 0
  %102 = vperm.xlu0 %101, %v72
  %v103 = vpop.permute.xlu0 %102
  %106 = vset.pattern.permute.xlu0 0
  %107 = vperm.xlu0 %106, %v73
  %v108 = vpop.permute.xlu0 %107
  %111 = vset.pattern.permute.xlu0 0
  %112 = vperm.xlu0 %111, %v74
  %v113 = vpop.permute.xlu0 %112
  %v131 = vunpack.c.l.b16 %v15
  %v132 = vunpack.c.h.b16 %v15
  %v133 = vunpack.c.l.b16 %v16
  %v134 = vunpack.c.l.b16 %v17
  %v135 = vunpack.c.h.b16 %v17
  %v136 = vunpack.c.l.b16 %v18
  %v137 = vunpack.c.l.b16 %v19
  %v138 = vunpack.c.h.b16 %v19
  %v139 = vunpack.c.l.b16 %v20
  %v140 = vunpack.c.l.b16 %v21
  %v141 = vunpack.c.h.b16 %v21
  %v142 = vunpack.c.l.b16 %v22
  %v143 = vunpack.c.l.b16 %v23
  %v144 = vunpack.c.h.b16 %v23
  %v145 = vunpack.c.l.b16 %v24
  %v146 = vunpack.c.l.b16 %v25
  %v147 = vunpack.c.h.b16 %v25
  %v148 = vunpack.c.l.b16 %v26
  %v149 = vunpack.c.l.b16 %v27
  %v150 = vunpack.c.h.b16 %v27
  %v151 = vunpack.c.l.b16 %v28
  %v152 = vunpack.c.l.b16 %v29
  %v153 = vunpack.c.h.b16 %v29
  %v154 = vunpack.c.l.b16 %v30
  %v155 = vpack.c.b16 %v134, %v131
  %v156 = vpack.c.b16 %v135, %v132
  %v157 = vpack.c.b16 %v136, %v133
  %v158 = vpack.c.b16 %v140, %v137
  %v159 = vpack.c.b16 %v141, %v138
  %v160 = vpack.c.b16 %v142, %v139
  %v161 = vpack.c.b16 %v146, %v143
  %v162 = vpack.c.b16 %v147, %v144
  %v163 = vpack.c.b16 %v148, %v145
  %v164 = vpack.c.b16 %v152, %v149
  %v165 = vpack.c.b16 %v153, %v150
  %v166 = vpack.c.b16 %v154, %v151
  %v211 = vunpack.c.l.b16 %v31
  %v212 = vunpack.c.l.b16 %v32
  %v213 = vunpack.c.l.b16 %v33
  %v214 = vunpack.c.l.b16 %v34
  %v215 = vunpack.c.l.b16 %v35
  %v216 = vunpack.c.l.b16 %v36
  %v217 = vunpack.c.l.b16 %v37
  %v218 = vunpack.c.l.b16 %v38
  %v219 = vunpack.c.l.b16 %v39
  %v220 = vunpack.c.l.b16 %v40
  %v221 = vunpack.c.l.b16 %v41
  %v222 = vunpack.c.l.b16 %v42
  %v223 = vunpack.c.l.b16 %v43
  %v224 = vunpack.c.l.b16 %v44
  %v225 = vunpack.c.l.b16 %v45
  %v226 = vunpack.c.l.b16 %v46
  %v227 = vunpack.c.l.b16 %v47
  %v228 = vunpack.c.l.b16 %v48
  %v229 = vunpack.c.l.b16 %v49
  %v230 = vunpack.c.l.b16 %v50
  %v231 = vunpack.c.l.b16 %v51
  %v232 = vunpack.c.l.b16 %v52
  %v233 = vunpack.c.l.b16 %v53
  %v234 = vunpack.c.l.b16 %v54
  %v235 = vunpack.c.l.b16 %v55
  %v236 = vunpack.c.l.b16 %v56
  %v237 = vunpack.c.l.b16 %v57
  %v238 = vunpack.c.l.b16 %v58
  %v239 = vunpack.c.l.b16 %v59
  %v240 = vunpack.c.l.b16 %v60
  %v241 = vunpack.c.l.b16 %v61
  %v242 = vunpack.c.l.b16 %v62
  %v243 = vunpack.c.l.b16 %v63
  %v244 = vunpack.c.l.b16 %v64
  %v245 = vunpack.c.l.b16 %v65
  %v246 = vunpack.c.l.b16 %v66
  %v247 = vpack.c.b16 %v212, %v211
  %v248 = vpack.c.b16 %v214, %v213
  %v249 = vpack.c.b16 %v216, %v215
  %v250 = vpack.c.b16 %v218, %v217
  %v251 = vpack.c.b16 %v220, %v219
  %v252 = vpack.c.b16 %v222, %v221
  %v253 = vpack.c.b16 %v224, %v223
  %v254 = vpack.c.b16 %v226, %v225
  %v255 = vpack.c.b16 %v228, %v227
  %v256 = vpack.c.b16 %v230, %v229
  %v257 = vpack.c.b16 %v232, %v231
  %v258 = vpack.c.b16 %v234, %v233
  %v259 = vpack.c.b16 %v236, %v235
  %v260 = vpack.c.b16 %v238, %v237
  %v261 = vpack.c.b16 %v240, %v239
  %v262 = vpack.c.b16 %v242, %v241
  %v263 = vpack.c.b16 %v244, %v243
  %v264 = vpack.c.b16 %v246, %v245
  %vm283 = vcmask 261120
  %v285 = vsel %vm283, %v157, 0
  %v288 = vsel %vm283, %v160, 0
  %v291 = vsel %vm283, %v163, 0
  %v294 = vsel %vm283, %v166, 0
  %296 = vmatpush.bf16.msra.mxu0 %v254
  %297 = vmatpush.bf16.msra.mxu0 %v253
  %298 = vmatpush.bf16.msra.mxu0 %v252
  %299 = vmatpush.bf16.msra.mxu0 %v251
  %300 = vmatpush.bf16.msra.mxu0 %v250
  %301 = vmatpush.bf16.msra.mxu0 %v249
  %302 = vmatpush.bf16.msra.mxu0 %v248
  %303 = vmatpush.bf16.msra.mxu0 %v247
  %304 = vmatmul.bf16.gmra.mxu0 %v155
  %v305 = vpop.f32.mrf.mxu0
  %v306 = vadd.f32 %v78, %v305
  %v307 = vpop.f32.mrf.mxu0
  %v308 = vadd.f32 %v83, %v307
  %309 = vmatmul.bf16.gmra.mxu0 %v158
  %v310 = vpop.f32.mrf.mxu0
  %v311 = vadd.f32 %v88, %v310
  %v312 = vpop.f32.mrf.mxu0
  %v313 = vadd.f32 %v93, %v312
  %314 = vmatmul.bf16.gmra.mxu0 %v161
  %v315 = vpop.f32.mrf.mxu0
  %v316 = vadd.f32 %v98, %v315
  %v317 = vpop.f32.mrf.mxu0
  %v318 = vadd.f32 %v103, %v317
  %319 = vmatmul.bf16.gmra.mxu0 %v164
  %v320 = vpop.f32.mrf.mxu0
  %v321 = vadd.f32 %v108, %v320
  %v322 = vpop.f32.mrf.mxu0
  %v323 = vadd.f32 %v113, %v322
  %324 = vdwg.mxu0
  %325 = vmatpush.bf16.msra.mxu0 %v262
  %326 = vmatpush.bf16.msra.mxu0 %v261
  %327 = vmatpush.bf16.msra.mxu0 %v260
  %328 = vmatpush.bf16.msra.mxu0 %v259
  %329 = vmatpush.bf16.msra.mxu0 %v258
  %330 = vmatpush.bf16.msra.mxu0 %v257
  %331 = vmatpush.bf16.msra.mxu0 %v256
  %332 = vmatpush.bf16.msra.mxu0 %v255
  %333 = vmatmul.bf16.gmra.mxu0 %v156
  %v334 = vpop.f32.mrf.mxu0
  %v335 = vadd.f32 %v306, %v334
  %v336 = vpop.f32.mrf.mxu0
  %v337 = vadd.f32 %v308, %v336
  %338 = vmatmul.bf16.gmra.mxu0 %v159
  %v339 = vpop.f32.mrf.mxu0
  %v340 = vadd.f32 %v311, %v339
  %v341 = vpop.f32.mrf.mxu0
  %v342 = vadd.f32 %v313, %v341
  %343 = vmatmul.bf16.gmra.mxu0 %v162
  %v344 = vpop.f32.mrf.mxu0
  %v345 = vadd.f32 %v316, %v344
  %v346 = vpop.f32.mrf.mxu0
  %v347 = vadd.f32 %v318, %v346
  %348 = vmatmul.bf16.gmra.mxu0 %v165
  %v349 = vpop.f32.mrf.mxu0
  %v350 = vadd.f32 %v321, %v349
  %v351 = vpop.f32.mrf.mxu0
  %v352 = vadd.f32 %v323, %v351
  %353 = vdwg.mxu0
  %354 = vmatpush.bf16.msra.mxu0 0
  %355 = vmatpush.bf16.msra.mxu0 0
  %356 = vmatpush.bf16.msra.mxu0 0
  %357 = vmatpush.bf16.msra.mxu0 0
  %358 = vmatpush.bf16.msra.mxu0 0
  %359 = vmatpush.bf16.msra.mxu0 0
  %360 = vmatpush.bf16.msra.mxu0 %v264
  %361 = vmatpush.bf16.msra.mxu0 %v263
  %362 = vmatmul.bf16.gmra.mxu0 %v285
  %v363 = vpop.f32.mrf.mxu0
  %v364 = vadd.f32 %v335, %v363
  %v365 = vpop.f32.mrf.mxu0
  %v366 = vadd.f32 %v337, %v365
  %367 = vmatmul.bf16.gmra.mxu0 %v288
  %v368 = vpop.f32.mrf.mxu0
  %v369 = vadd.f32 %v340, %v368
  %v370 = vpop.f32.mrf.mxu0
  %v371 = vadd.f32 %v342, %v370
  %372 = vmatmul.bf16.gmra.mxu0 %v291
  %v373 = vpop.f32.mrf.mxu0
  %v374 = vadd.f32 %v345, %v373
  %v375 = vpop.f32.mrf.mxu0
  %v376 = vadd.f32 %v347, %v375
  %377 = vmatmul.bf16.gmra.mxu0 %v294
  %v378 = vpop.f32.mrf.mxu0
  %v379 = vadd.f32 %v350, %v378
  %v380 = vpop.f32.mrf.mxu0
  %v381 = vadd.f32 %v352, %v380
  %382 = vdwg.mxu0
  %v383 = vmax.f32 %v364, 0.0
  %v384 = vmax.f32 %v366, 0.0
  %v385 = vmax.f32 %v369, 0.0
  %v386 = vmax.f32 %v371, 0.0
  %v387 = vmax.f32 %v374, 0.0
  %v388 = vmax.f32 %v376, 0.0
  %v389 = vmax.f32 %v379, 0.0
  %v390 = vmax.f32 %v381, 0.0
  %391 = vst.msk [vmem:[%s3] sm:$0xff] %vm283, %v383
  %392 = vst.msk [vmem:[%s3 + $0x8] sm:$0xff] %vm283, %v384
  %393 = vst.msk [vmem:[%s3 + $0x10] sm:$0xff] %vm283, %v385
  %394 = vst.msk [vmem:[%s3 + $0x18] sm:$0xff] %vm283, %v386
  %395 = vst.msk [vmem:[%s3 + $0x20] sm:$0xff] %vm283, %v387
  %396 = vst.msk [vmem:[%s3 + $0x28] sm:$0xff] %vm283, %v388
  %397 = vst.msk [vmem:[%s3 + $0x30] sm:$0xff] %vm283, %v389
  %398 = vst.msk [vmem:[%s3 + $0x38] sm:$0xff] %vm283, %v390
  // Predicated region
  $region14: #{net_forward.36} parent=0 // pred_check
    _
  $region15: #{net_forward.36} parent=0 // pred_check_branch
    %400 = sbr.rel (0) target = $region17
  $region16: #{net_forward.36} parent=0 // pred_region
    _
  $region17: #{net_forward.36} parent=0 // pred_fallthru
    _
  // Predicated region
  $region18: #{net_forward.36} parent=0 // pred_check
    _
  $region19: #{net_forward.36} parent=0 // pred_check_branch
    %402 = sbr.rel (0) target = $region21
  $region20: #{net_forward.36} parent=0 // pred_region
    _
  $region21: #{net_forward.36} parent=0 // pred_fallthru
    _

// kernel: net_forward.37
$region0: #{net_forward.37}
  #allocation0 [shape = 'u32[]', space=smem, size = 0x4, offset = 0x4, fixed_abs, tag = 'smem constant byte address 0x4 - core index']
  #allocation1 [shape = 'u32[72,128]{1,0:T(1,128)}', space=vmem, size = 0x9000, scoped, tag = 'internal scratch']
  %s0 = inlined_call_operand.vmem [shape: f32[1,4,512], index: 0, kind: input, shape index: {}]
  %s1 = inlined_call_operand.vmem [shape: f32[1,512], index: 1, kind: output, shape index: {}]
  %s2 = sld [smem:[#allocation0]]
  $region14: #{net_forward.37} parent=0
    _
  %s4 = ssub.s32 1, %s2
  %s5 = scalar_select 0, %s4, %s2
  // Predicated region
  $region2: #{net_forward.37} parent=0 // pred_check
    _
  $region3: #{net_forward.37} parent=0 // pred_check_branch
    %7 = sbr.rel (0) target = $region5
  $region4: #{net_forward.37} parent=0 // pred_region
    _
  $region5: #{net_forward.37} parent=0 // pred_fallthru
    _
  %v8 = vld [vmem:[%s0] sm:$0xff]
  %v9 = vld [vmem:[%s0 + $0x8] sm:$0xff]
  %12 = vst [vmem:[#allocation1] ss:$2 sm:$0xff] %v8
  %s13 = scalar_lea.vmem [#allocation1], 16
  %14 = vst [vmem:[%s13] ss:$2 sm:$0xff] %v9
  %v15 = vld.sshfl [vmem:[#allocation1] sm:$0xff pattern:$0x75316420]
  %v16 = vld.sshfl [vmem:[#allocation1 + $0x8] sm:$0xff pattern:$0x75316420]
  %v17 = vld.sshfl [vmem:[#allocation1 + $0x10] sm:$0xff pattern:$0x75316420]
  %v18 = vld.sshfl [vmem:[#allocation1 + $0x18] sm:$0xff pattern:$0x75316420]
  %vm23 = vcmask 1043456
  %v24 = vsel %vm23, %v15, -inf
  %v25 = vrot.slane %v24, 4
  %v26 = vmax.f32 %v24, %v25
  %v27 = vrot.slane %v26, 2
  %v28 = vmax.f32 %v26, %v27
  %v29 = vrot.slane %v28, 1
  %v30 = vmax.f32 %v28, %v29
  %v31 = vsel %vm23, %v16, -inf
  %v32 = vrot.slane %v31, 4
  %v33 = vmax.f32 %v31, %v32
  %v34 = vrot.slane %v33, 2
  %v35 = vmax.f32 %v33, %v34
  %v36 = vrot.slane %v35, 1
  %v37 = vmax.f32 %v35, %v36
  %v38 = vsel %vm23, %v17, -inf
  %v39 = vrot.slane %v38, 4
  %v40 = vmax.f32 %v38, %v39
  %v41 = vrot.slane %v40, 2
  %v42 = vmax.f32 %v40, %v41
  %v43 = vrot.slane %v42, 1
  %v44 = vmax.f32 %v42, %v43
  %v45 = vsel %vm23, %v18, -inf
  %v46 = vrot.slane %v45, 4
  %v47 = vmax.f32 %v45, %v46
  %v48 = vrot.slane %v47, 2
  %v49 = vmax.f32 %v47, %v48
  %v50 = vrot.slane %v49, 1
  %v51 = vmax.f32 %v49, %v50
  %v56 = vrot.slane %v37, 7
  %v57 = vrot.slane %v44, 6
  %v58 = vrot.slane %v51, 5
  %vm59 = vcmask 1040384
  %v60 = vsel %vm59, %v30, %v56
  %vm61 = vcmask 1042434
  %v62 = vsel %vm61, %v57, %v58
  %vm63 = vcmask 1041408
  %v64 = vsel %vm63, %v60, %v62
  %v66 = vlaneseq
  %vm67 = vcmp.ge.s32.totalorder %v66, 0
  %vm68 = vcmp.lt.s32.totalorder %v66, 512
  %vm69 = vmand %vm67, %vm68
  %70 = vst.msk [vmem:[%s1] sm:$0xf] %vm69, %v64
  // Predicated region
  $region6: #{net_forward.37} parent=0 // pred_check
    _
  $region7: #{net_forward.37} parent=0 // pred_check_branch
    %72 = sbr.rel (0) target = $region9
  $region8: #{net_forward.37} parent=0 // pred_region
    _
  $region9: #{net_forward.37} parent=0 // pred_fallthru
    _
  // Predicated region
  $region10: #{net_forward.37} parent=0 // pred_check
    _
  $region11: #{net_forward.37} parent=0 // pred_check_branch
    %74 = sbr.rel (0) target = $region13
  $region12: #{net_forward.37} parent=0 // pred_region
    _
  $region13: #{net_forward.37} parent=0 // pred_fallthru
    _

// kernel: net_forward.38
$region0: #{net_forward.38}
  #allocation0 [shape = 'u32[]', space=smem, size = 0x4, offset = 0x4, fixed_abs, tag = 'smem constant byte address 0x4 - core index']
  #allocation1 [shape = 'u32[72,128]{1,0:T(1,128)}', space=vmem, size = 0x9000, scoped, tag = 'internal scratch']
  %s0 = inlined_call_operand.vmem [shape: bf16[576,8], index: 0, kind: input, shape index: {}]
  %s1 = inlined_call_operand.vmem [shape: bf16[64,576], index: 1, kind: input, shape index: {}]
  %s2 = inlined_call_operand.vmem [shape: f32[64,1], index: 2, kind: input, shape index: {}]
  %s3 = inlined_call_operand.vmem [shape: f32[64,8], index: 3, kind: output, shape index: {}]
  %s4 = sld [smem:[#allocation0]]
  $region22: #{net_forward.38} parent=0
    _
  %s6 = ssub.s32 1, %s4
  %s7 = scalar_select 0, %s6, %s4
  // Predicated region
  $region2: #{net_forward.38} parent=0 // pred_check
    _
  $region3: #{net_forward.38} parent=0 // pred_check_branch
    %9 = sbr.rel (0) target = $region5
  $region4: #{net_forward.38} parent=0 // pred_region
    _
  $region5: #{net_forward.38} parent=0 // pred_fallthru
    _
  // Predicated region
  $region6: #{net_forward.38} parent=0 // pred_check
    _
  $region7: #{net_forward.38} parent=0 // pred_check_branch
    %11 = sbr.rel (0) target = $region9
  $region8: #{net_forward.38} parent=0 // pred_region
    _
  $region9: #{net_forward.38} parent=0 // pred_fallthru
    _
  // Predicated region
  $region10: #{net_forward.38} parent=0 // pred_check
    _
  $region11: #{net_forward.38} parent=0 // pred_check_branch
    %13 = sbr.rel (0) target = $region13
  $region12: #{net_forward.38} parent=0 // pred_region
    _
  $region13: #{net_forward.38} parent=0 // pred_fallthru
    _
  %v15 = vld [vmem:[%s1] sm:$0xff]
  %v16 = vld [vmem:[%s1 + $0x8] sm:$0xff]
  %v17 = vld [vmem:[%s1 + $0x10] sm:$0xf]
  %v18 = vld [vmem:[%s1 + $0x14] sm:$0xff]
  %v19 = vld [vmem:[%s1 + $0x1c] sm:$0xff]
  %v20 = vld [vmem:[%s1 + $0x24] sm:$0xf]
  %v21 = vld [vmem:[%s1 + $0x28] sm:$0xff]
  %v22 = vld [vmem:[%s1 + $0x30] sm:$0xff]
  %v23 = vld [vmem:[%s1 + $0x38] sm:$0xf]
  %v24 = vld [vmem:[%s1 + $0x3c] sm:$0xff]
  %v25 = vld [vmem:[%s1 + $0x44] sm:$0xff]
  %v26 = vld [vmem:[%s1 + $0x4c] sm:$0xf]
  %v27 = vld [vmem:[%s1 + $0x50] sm:$0xff]
  %v28 = vld [vmem:[%s1 + $0x58] sm:$0xff]
  %v29 = vld [vmem:[%s1 + $0x60] sm:$0xf]
  %v30 = vld [vmem:[%s1 + $0x64] sm:$0xff]
  %v31 = vld [vmem:[%s1 + $0x6c] sm:$0xff]
  %v32 = vld [vmem:[%s1 + $0x74] sm:$0xf]
  %v33 = vld [vmem:[%s1 + $0x78] sm:$0xff]
  %v34 = vld [vmem:[%s1 + $0x80] sm:$0xff]
  %v35 = vld [vmem:[%s1 + $0x88] sm:$0xf]
  %v36 = vld [vmem:[%s1 + $0x8c] sm:$0xff]
  %v37 = vld [vmem:[%s1 + $0x94] sm:$0xff]
  %v38 = vld [vmem:[%s1 + $0x9c] sm:$0xf]
  %v39 = vld [vmem:[%s0] sm:$0xf]
  %v40 = vld [vmem:[%s0 + $0x4] sm:$0xf]
  %v41 = vld [vmem:[%s0 + $0x8] sm:$0xf]
  %v42 = vld [vmem:[%s0 + $0xc] sm:$0xf]
  %v43 = vld [vmem:[%s0 + $0x10] sm:$0xf]
  %v44 = vld [vmem:[%s0 + $0x14] sm:$0xf]
  %v45 = vld [vmem:[%s0 + $0x18] sm:$0xf]
  %v46 = vld [vmem:[%s0 + $0x1c] sm:$0xf]
  %v47 = vld [vmem:[%s0 + $0x20] sm:$0xf]
  %v48 = vld [vmem:[%s0 + $0x24] sm:$0xf]
  %v49 = vld [vmem:[%s0 + $0x28] sm:$0xf]
  %v50 = vld [vmem:[%s0 + $0x2c] sm:$0xf]
  %v51 = vld [vmem:[%s0 + $0x30] sm:$0xf]
  %v52 = vld [vmem:[%s0 + $0x34] sm:$0xf]
  %v53 = vld [vmem:[%s0 + $0x38] sm:$0xf]
  %v54 = vld [vmem:[%s0 + $0x3c] sm:$0xf]
  %v55 = vld [vmem:[%s0 + $0x40] sm:$0xf]
  %v56 = vld [vmem:[%s0 + $0x44] sm:$0xf]
  %v57 = vld [vmem:[%s0 + $0x48] sm:$0xf]
  %v58 = vld [vmem:[%s0 + $0x4c] sm:$0xf]
  %v59 = vld [vmem:[%s0 + $0x50] sm:$0xf]
  %v60 = vld [vmem:[%s0 + $0x54] sm:$0xf]
  %v61 = vld [vmem:[%s0 + $0x58] sm:$0xf]
  %v62 = vld [vmem:[%s0 + $0x5c] sm:$0xf]
  %v63 = vld [vmem:[%s0 + $0x60] sm:$0xf]
  %v64 = vld [vmem:[%s0 + $0x64] sm:$0xf]
  %v65 = vld [vmem:[%s0 + $0x68] sm:$0xf]
  %v66 = vld [vmem:[%s0 + $0x6c] sm:$0xf]
  %v67 = vld [vmem:[%s0 + $0x70] sm:$0xf]
  %v68 = vld [vmem:[%s0 + $0x74] sm:$0xf]
  %v69 = vld [vmem:[%s0 + $0x78] sm:$0xf]
  %v70 = vld [vmem:[%s0 + $0x7c] sm:$0xf]
  %v71 = vld [vmem:[%s0 + $0x80] sm:$0xf]
  %v72 = vld [vmem:[%s0 + $0x84] sm:$0xf]
  %v73 = vld [vmem:[%s0 + $0x88] sm:$0xf]
  %v74 = vld [vmem:[%s0 + $0x8c] sm:$0xf]
  %v75 = vld [vmem:[%s0 + $0x90] sm:$0xf]
  %v76 = vld [vmem:[%s0 + $0x94] sm:$0xf]
  %v77 = vld [vmem:[%s0 + $0x98] sm:$0xf]
  %v78 = vld [vmem:[%s0 + $0x9c] sm:$0xf]
  %v79 = vld [vmem:[%s0 + $0xa0] sm:$0xf]
  %v80 = vld [vmem:[%s0 + $0xa4] sm:$0xf]
  %v81 = vld [vmem:[%s0 + $0xa8] sm:$0xf]
  %v82 = vld [vmem:[%s0 + $0xac] sm:$0xf]
  %v83 = vld [vmem:[%s0 + $0xb0] sm:$0xf]
  %v84 = vld [vmem:[%s0 + $0xb4] sm:$0xf]
  %v85 = vld [vmem:[%s0 + $0xb8] sm:$0xf]
  %v86 = vld [vmem:[%s0 + $0xbc] sm:$0xf]
  %v87 = vld [vmem:[%s0 + $0xc0] sm:$0xf]
  %v88 = vld [vmem:[%s0 + $0xc4] sm:$0xf]
  %v89 = vld [vmem:[%s0 + $0xc8] sm:$0xf]
  %v90 = vld [vmem:[%s0 + $0xcc] sm:$0xf]
  %v91 = vld [vmem:[%s0 + $0xd0] sm:$0xf]
  %v92 = vld [vmem:[%s0 + $0xd4] sm:$0xf]
  %v93 = vld [vmem:[%s0 + $0xd8] sm:$0xf]
  %v94 = vld [vmem:[%s0 + $0xdc] sm:$0xf]
  %v95 = vld [vmem:[%s0 + $0xe0] sm:$0xf]
  %v96 = vld [vmem:[%s0 + $0xe4] sm:$0xf]
  %v97 = vld [vmem:[%s0 + $0xe8] sm:$0xf]
  %v98 = vld [vmem:[%s0 + $0xec] sm:$0xf]
  %v99 = vld [vmem:[%s0 + $0xf0] sm:$0xf]
  %v100 = vld [vmem:[%s0 + $0xf4] sm:$0xf]
  %v101 = vld [vmem:[%s0 + $0xf8] sm:$0xf]
  %v102 = vld [vmem:[%s0 + $0xfc] sm:$0xf]
  %v103 = vld [vmem:[%s0 + $0x100] sm:$0xf]
  %v104 = vld [vmem:[%s0 + $0x104] sm:$0xf]
  %v105 = vld [vmem:[%s0 + $0x108] sm:$0xf]
  %v106 = vld [vmem:[%s0 + $0x10c] sm:$0xf]
  %v107 = vld [vmem:[%s0 + $0x110] sm:$0xf]
  %v108 = vld [vmem:[%s0 + $0x114] sm:$0xf]
  %v109 = vld [vmem:[%s0 + $0x118] sm:$0xf]
  %v110 = vld [vmem:[%s0 + $0x11c] sm:$0xf]
  %v111 = vld [vmem:[%s2] sm:$0xff]
  %v112 = vld [vmem:[%s2 + $0x8] sm:$0xff]
  %v113 = vld [vmem:[%s2 + $0x10] sm:$0xff]
  %v114 = vld [vmem:[%s2 + $0x18] sm:$0xff]
  %v115 = vld [vmem:[%s2 + $0x20] sm:$0xff]
  %v116 = vld [vmem:[%s2 + $0x28] sm:$0xff]
  %v117 = vld [vmem:[%s2 + $0x30] sm:$0xff]
  %v118 = vld [vmem:[%s2 + $0x38] sm:$0xff]
  %120 = vset.pattern.permute.xlu0 0
  %121 = vperm.xlu0 %120, %v111
  %v122 = vpop.permute.xlu0 %121
  %125 = vset.pattern.permute.xlu0 0
  %126 = vperm.xlu0 %125, %v112
  %v127 = vpop.permute.xlu0 %126
  %130 = vset.pattern.permute.xlu0 0
  %131 = vperm.xlu0 %130, %v113
  %v132 = vpop.permute.xlu0 %131
  %135 = vset.pattern.permute.xlu0 0
  %136 = vperm.xlu0 %135, %v114
  %v137 = vpop.permute.xlu0 %136
  %140 = vset.pattern.permute.xlu0 0
  %141 = vperm.xlu0 %140, %v115
  %v142 = vpop.permute.xlu0 %141
  %145 = vset.pattern.permute.xlu0 0
  %146 = vperm.xlu0 %145, %v116
  %v147 = vpop.permute.xlu0 %146
  %150 = vset.pattern.permute.xlu0 0
  %151 = vperm.xlu0 %150, %v117
  %v152 = vpop.permute.xlu0 %151
  %155 = vset.pattern.permute.xlu0 0
  %156 = vperm.xlu0 %155, %v118
  %v157 = vpop.permute.xlu0 %156
  %v183 = vunpack.c.l.b16 %v15
  %v184 = vunpack.c.h.b16 %v15
  %v185 = vunpack.c.l.b16 %v16
  %v186 = vunpack.c.h.b16 %v16
  %v187 = vunpack.c.l.b16 %v17
  %v188 = vunpack.c.l.b16 %v18
  %v189 = vunpack.c.h.b16 %v18
  %v190 = vunpack.c.l.b16 %v19
  %v191 = vunpack.c.h.b16 %v19
  %v192 = vunpack.c.l.b16 %v20
  %v193 = vunpack.c.l.b16 %v21
  %v194 = vunpack.c.h.b16 %v21
  %v195 = vunpack.c.l.b16 %v22
  %v196 = vunpack.c.h.b16 %v22
  %v197 = vunpack.c.l.b16 %v23
  %v198 = vunpack.c.l.b16 %v24
  %v199 = vunpack.c.h.b16 %v24
  %v200 = vunpack.c.l.b16 %v25
  %v201 = vunpack.c.h.b16 %v25
  %v202 = vunpack.c.l.b16 %v26
  %v203 = vunpack.c.l.b16 %v27
  %v204 = vunpack.c.h.b16 %v27
  %v205 = vunpack.c.l.b16 %v28
  %v206 = vunpack.c.h.b16 %v28
  %v207 = vunpack.c.l.b16 %v29
  %v208 = vunpack.c.l.b16 %v30
  %v209 = vunpack.c.h.b16 %v30
  %v210 = vunpack.c.l.b16 %v31
  %v211 = vunpack.c.h.b16 %v31
  %v212 = vunpack.c.l.b16 %v32
  %v213 = vunpack.c.l.b16 %v33
  %v214 = vunpack.c.h.b16 %v33
  %v215 = vunpack.c.l.b16 %v34
  %v216 = vunpack.c.h.b16 %v34
  %v217 = vunpack.c.l.b16 %v35
  %v218 = vunpack.c.l.b16 %v36
  %v219 = vunpack.c.h.b16 %v36
  %v220 = vunpack.c.l.b16 %v37
  %v221 = vunpack.c.h.b16 %v37
  %v222 = vunpack.c.l.b16 %v38
  %v223 = vpack.c.b16 %v188, %v183
  %v224 = vpack.c.b16 %v189, %v184
  %v225 = vpack.c.b16 %v190, %v185
  %v226 = vpack.c.b16 %v191, %v186
  %v227 = vpack.c.b16 %v192, %v187
  %v228 = vpack.c.b16 %v198, %v193
  %v229 = vpack.c.b16 %v199, %v194
  %v230 = vpack.c.b16 %v200, %v195
  %v231 = vpack.c.b16 %v201, %v196
  %v232 = vpack.c.b16 %v202, %v197
  %v233 = vpack.c.b16 %v208, %v203
  %v234 = vpack.c.b16 %v209, %v204
  %v235 = vpack.c.b16 %v210, %v205
  %v236 = vpack.c.b16 %v211, %v206
  %v237 = vpack.c.b16 %v212, %v207
  %v238 = vpack.c.b16 %v218, %v213
  %v239 = vpack.c.b16 %v219, %v214
  %v240 = vpack.c.b16 %v220, %v215
  %v241 = vpack.c.b16 %v221, %v216
  %v242 = vpack.c.b16 %v222, %v217
  %v331 = vunpack.c.l.b16 %v39
  %v332 = vunpack.c.l.b16 %v40
  %v333 = vunpack.c.l.b16 %v41
  %v334 = vunpack.c.l.b16 %v42
  %v335 = vunpack.c.l.b16 %v43
  %v336 = vunpack.c.l.b16 %v44
  %v337 = vunpack.c.l.b16 %v45
  %v338 = vunpack.c.l.b16 %v46
  %v339 = vunpack.c.l.b16 %v47
  %v340 = vunpack.c.l.b16 %v48
  %v341 = vunpack.c.l.b16 %v49
  %v342 = vunpack.c.l.b16 %v50
  %v343 = vunpack.c.l.b16 %v51
  %v344 = vunpack.c.l.b16 %v52
  %v345 = vunpack.c.l.b16 %v53
  %v346 = vunpack.c.l.b16 %v54
  %v347 = vunpack.c.l.b16 %v55
  %v348 = vunpack.c.l.b16 %v56
  %v349 = vunpack.c.l.b16 %v57
  %v350 = vunpack.c.l.b16 %v58
  %v351 = vunpack.c.l.b16 %v59
  %v352 = vunpack.c.l.b16 %v60
  %v353 = vunpack.c.l.b16 %v61
  %v354 = vunpack.c.l.b16 %v62
  %v355 = vunpack.c.l.b16 %v63
  %v356 = vunpack.c.l.b16 %v64
  %v357 = vunpack.c.l.b16 %v65
  %v358 = vunpack.c.l.b16 %v66
  %v359 = vunpack.c.l.b16 %v67
  %v360 = vunpack.c.l.b16 %v68
  %v361 = vunpack.c.l.b16 %v69
  %v362 = vunpack.c.l.b16 %v70
  %v363 = vunpack.c.l.b16 %v71
  %v364 = vunpack.c.l.b16 %v72
  %v365 = vunpack.c.l.b16 %v73
  %v366 = vunpack.c.l.b16 %v74
  %v367 = vunpack.c.l.b16 %v75
  %v368 = vunpack.c.l.b16 %v76
  %v369 = vunpack.c.l.b16 %v77
  %v370 = vunpack.c.l.b16 %v78
  %v371 = vunpack.c.l.b16 %v79
  %v372 = vunpack.c.l.b16 %v80
  %v373 = vunpack.c.l.b16 %v81
  %v374 = vunpack.c.l.b16 %v82
  %v375 = vunpack.c.l.b16 %v83
  %v376 = vunpack.c.l.b16 %v84
  %v377 = vunpack.c.l.b16 %v85
  %v378 = vunpack.c.l.b16 %v86
  %v379 = vunpack.c.l.b16 %v87
  %v380 = vunpack.c.l.b16 %v88
  %v381 = vunpack.c.l.b16 %v89
  %v382 = vunpack.c.l.b16 %v90
  %v383 = vunpack.c.l.b16 %v91
  %v384 = vunpack.c.l.b16 %v92
  %v385 = vunpack.c.l.b16 %v93
  %v386 = vunpack.c.l.b16 %v94
  %v387 = vunpack.c.l.b16 %v95
  %v388 = vunpack.c.l.b16 %v96
  %v389 = vunpack.c.l.b16 %v97
  %v390 = vunpack.c.l.b16 %v98
  %v391 = vunpack.c.l.b16 %v99
  %v392 = vunpack.c.l.b16 %v100
  %v393 = vunpack.c.l.b16 %v101
  %v394 = vunpack.c.l.b16 %v102
  %v395 = vunpack.c.l.b16 %v103
  %v396 = vunpack.c.l.b16 %v104
  %v397 = vunpack.c.l.b16 %v105
  %v398 = vunpack.c.l.b16 %v106
  %v399 = vunpack.c.l.b16 %v107
  %v400 = vunpack.c.l.b16 %v108
  %v401 = vunpack.c.l.b16 %v109
  %v402 = vunpack.c.l.b16 %v110
  %v403 = vpack.c.b16 %v332, %v331
  %v404 = vpack.c.b16 %v334, %v333
  %v405 = vpack.c.b16 %v336, %v335
  %v406 = vpack.c.b16 %v338, %v337
  %v407 = vpack.c.b16 %v340, %v339
  %v408 = vpack.c.b16 %v342, %v341
  %v409 = vpack.c.b16 %v344, %v343
  %v410 = vpack.c.b16 %v346, %v345
  %v411 = vpack.c.b16 %v348, %v347
  %v412 = vpack.c.b16 %v350, %v349
  %v413 = vpack.c.b16 %v352, %v351
  %v414 = vpack.c.b16 %v354, %v353
  %v415 = vpack.c.b16 %v356, %v355
  %v416 = vpack.c.b16 %v358, %v357
  %v417 = vpack.c.b16 %v360, %v359
  %v418 = vpack.c.b16 %v362, %v361
  %v419 = vpack.c.b16 %v364, %v363
  %v420 = vpack.c.b16 %v366, %v365
  %v421 = vpack.c.b16 %v368, %v367
  %v422 = vpack.c.b16 %v370, %v369
  %v423 = vpack.c.b16 %v372, %v371
  %v424 = vpack.c.b16 %v374, %v373
  %v425 = vpack.c.b16 %v376, %v375
  %v426 = vpack.c.b16 %v378, %v377
  %v427 = vpack.c.b16 %v380, %v379
  %v428 = vpack.c.b16 %v382, %v381
  %v429 = vpack.c.b16 %v384, %v383
  %v430 = vpack.c.b16 %v386, %v385
  %v431 = vpack.c.b16 %v388, %v387
  %v432 = vpack.c.b16 %v390, %v389
  %v433 = vpack.c.b16 %v392, %v391
  %v434 = vpack.c.b16 %v394, %v393
  %v435 = vpack.c.b16 %v396, %v395
  %v436 = vpack.c.b16 %v398, %v397
  %v437 = vpack.c.b16 %v400, %v399
  %v438 = vpack.c.b16 %v402, %v401
  %vm475 = vcmask 523264
  %v477 = vsel %vm475, %v227, 0
  %v480 = vsel %vm475, %v232, 0
  %v483 = vsel %vm475, %v237, 0
  %v486 = vsel %vm475, %v242, 0
  %488 = vmatpush.bf16.msra.mxu0 %v410
  %489 = vmatpush.bf16.msra.mxu0 %v409
  %490 = vmatpush.bf16.msra.mxu0 %v408
  %491 = vmatpush.bf16.msra.mxu0 %v407
  %492 = vmatpush.bf16.msra.mxu0 %v406
  %493 = vmatpush.bf16.msra.mxu0 %v405
  %494 = vmatpush.bf16.msra.mxu0 %v404
  %495 = vmatpush.bf16.msra.mxu0 %v403
  %496 = vmatmul.bf16.gmra.mxu0 %v223
  %v497 = vpop.f32.mrf.mxu0
  %v498 = vadd.f32 %v122, %v497
  %v499 = vpop.f32.mrf.mxu0
  %v500 = vadd.f32 %v127, %v499
  %501 = vmatmul.bf16.gmra.mxu0 %v228
  %v502 = vpop.f32.mrf.mxu0
  %v503 = vadd.f32 %v132, %v502
  %v504 = vpop.f32.mrf.mxu0
  %v505 = vadd.f32 %v137, %v504
  %506 = vmatmul.bf16.gmra.mxu0 %v233
  %v507 = vpop.f32.mrf.mxu0
  %v508 = vadd.f32 %v142, %v507
  %v509 = vpop.f32.mrf.mxu0
  %v510 = vadd.f32 %v147, %v509
  %511 = vmatmul.bf16.gmra.mxu0 %v238
  %v512 = vpop.f32.mrf.mxu0
  %v513 = vadd.f32 %v152, %v512
  %v514 = vpop.f32.mrf.mxu0
  %v515 = vadd.f32 %v157, %v514
  %516 = vdwg.mxu0
  %517 = vmatpush.bf16.msra.mxu0 %v418
  %518 = vmatpush.bf16.msra.mxu0 %v417
  %519 = vmatpush.bf16.msra.mxu0 %v416
  %520 = vmatpush.bf16.msra.mxu0 %v415
  %521 = vmatpush.bf16.msra.mxu0 %v414
  %522 = vmatpush.bf16.msra.mxu0 %v413
  %523 = vmatpush.bf16.msra.mxu0 %v412
  %524 = vmatpush.bf16.msra.mxu0 %v411
  %525 = vmatmul.bf16.gmra.mxu0 %v224
  %v526 = vpop.f32.mrf.mxu0
  %v527 = vadd.f32 %v498, %v526
  %v528 = vpop.f32.mrf.mxu0
  %v529 = vadd.f32 %v500, %v528
  %530 = vmatmul.bf16.gmra.mxu0 %v229
  %v531 = vpop.f32.mrf.mxu0
  %v532 = vadd.f32 %v503, %v531
  %v533 = vpop.f32.mrf.mxu0
  %v534 = vadd.f32 %v505, %v533
  %535 = vmatmul.bf16.gmra.mxu0 %v234
  %v536 = vpop.f32.mrf.mxu0
  %v537 = vadd.f32 %v508, %v536
  %v538 = vpop.f32.mrf.mxu0
  %v539 = vadd.f32 %v510, %v538
  %540 = vmatmul.bf16.gmra.mxu0 %v239
  %v541 = vpop.f32.mrf.mxu0
  %v542 = vadd.f32 %v513, %v541
  %v543 = vpop.f32.mrf.mxu0
  %v544 = vadd.f32 %v515, %v543
  %545 = vdwg.mxu0
  %546 = vmatpush.bf16.msra.mxu0 %v426
  %547 = vmatpush.bf16.msra.mxu0 %v425
  %548 = vmatpush.bf16.msra.mxu0 %v424
  %549 = vmatpush.bf16.msra.mxu0 %v423
  %550 = vmatpush.bf16.msra.mxu0 %v422
  %551 = vmatpush.bf16.msra.mxu0 %v421
  %552 = vmatpush.bf16.msra.mxu0 %v420
  %553 = vmatpush.bf16.msra.mxu0 %v419
  %554 = vmatmul.bf16.gmra.mxu0 %v225
  %v555 = vpop.f32.mrf.mxu0
  %v556 = vadd.f32 %v527, %v555
  %v557 = vpop.f32.mrf.mxu0
  %v558 = vadd.f32 %v529, %v557
  %559 = vmatmul.bf16.gmra.mxu0 %v230
  %v560 = vpop.f32.mrf.mxu0
  %v561 = vadd.f32 %v532, %v560
  %v562 = vpop.f32.mrf.mxu0
  %v563 = vadd.f32 %v534, %v562
  %564 = vmatmul.bf16.gmra.mxu0 %v235
  %v565 = vpop.f32.mrf.mxu0
  %v566 = vadd.f32 %v537, %v565
  %v567 = vpop.f32.mrf.mxu0
  %v568 = vadd.f32 %v539, %v567
  %569 = vmatmul.bf16.gmra.mxu0 %v240
  %v570 = vpop.f32.mrf.mxu0
  %v571 = vadd.f32 %v542, %v570
  %v572 = vpop.f32.mrf.mxu0
  %v573 = vadd.f32 %v544, %v572
  %574 = vdwg.mxu0
  %575 = vmatpush.bf16.msra.mxu0 %v434
  %576 = vmatpush.bf16.msra.mxu0 %v433
  %577 = vmatpush.bf16.msra.mxu0 %v432
  %578 = vmatpush.bf16.msra.mxu0 %v431
  %579 = vmatpush.bf16.msra.mxu0 %v430
  %580 = vmatpush.bf16.msra.mxu0 %v429
  %581 = vmatpush.bf16.msra.mxu0 %v428
  %582 = vmatpush.bf16.msra.mxu0 %v427
  %583 = vmatmul.bf16.gmra.mxu0 %v226
  %v584 = vpop.f32.mrf.mxu0
  %v585 = vadd.f32 %v556, %v584
  %v586 = vpop.f32.mrf.mxu0
  %v587 = vadd.f32 %v558, %v586
  %588 = vmatmul.bf16.gmra.mxu0 %v231
  %v589 = vpop.f32.mrf.mxu0
  %v590 = vadd.f32 %v561, %v589
  %v591 = vpop.f32.mrf.mxu0
  %v592 = vadd.f32 %v563, %v591
  %593 = vmatmul.bf16.gmra.mxu0 %v236
  %v594 = vpop.f32.mrf.mxu0
  %v595 = vadd.f32 %v566, %v594
  %v596 = vpop.f32.mrf.mxu0
  %v597 = vadd.f32 %v568, %v596
  %598 = vmatmul.bf16.gmra.mxu0 %v241
  %v599 = vpop.f32.mrf.mxu0
  %v600 = vadd.f32 %v571, %v599
  %v601 = vpop.f32.mrf.mxu0
  %v602 = vadd.f32 %v573, %v601
  %603 = vdwg.mxu0
  %604 = vmatpush.bf16.msra.mxu0 0
  %605 = vmatpush.bf16.msra.mxu0 0
  %606 = vmatpush.bf16.msra.mxu0 0
  %607 = vmatpush.bf16.msra.mxu0 0
  %608 = vmatpush.bf16.msra.mxu0 %v438
  %609 = vmatpush.bf16.msra.mxu0 %v437
  %610 = vmatpush.bf16.msra.mxu0 %v436
  %611 = vmatpush.bf16.msra.mxu0 %v435
  %612 = vmatmul.bf16.gmra.mxu0 %v477
  %v613 = vpop.f32.mrf.mxu0
  %v614 = vadd.f32 %v585, %v613
  %v615 = vpop.f32.mrf.mxu0
  %v616 = vadd.f32 %v587, %v615
  %617 = vmatmul.bf16.gmra.mxu0 %v480
  %v618 = vpop.f32.mrf.mxu0
  %v619 = vadd.f32 %v590, %v618
  %v620 = vpop.f32.mrf.mxu0
  %v621 = vadd.f32 %v592, %v620
  %622 = vmatmul.bf16.gmra.mxu0 %v483
  %v623 = vpop.f32.mrf.mxu0
  %v624 = vadd.f32 %v595, %v623
  %v625 = vpop.f32.mrf.mxu0
  %v626 = vadd.f32 %v597, %v625
  %627 = vmatmul.bf16.gmra.mxu0 %v486
  %v628 = vpop.f32.mrf.mxu0
  %v629 = vadd.f32 %v600, %v628
  %v630 = vpop.f32.mrf.mxu0
  %v631 = vadd.f32 %v602, %v630
  %632 = vdwg.mxu0
  %v633 = vmax.f32 %v614, 0.0
  %v634 = vmax.f32 %v616, 0.0
  %v635 = vmax.f32 %v619, 0.0
  %v636 = vmax.f32 %v621, 0.0
  %v637 = vmax.f32 %v624, 0.0
  %v638 = vmax.f32 %v626, 0.0
  %v639 = vmax.f32 %v629, 0.0
  %v640 = vmax.f32 %v631, 0.0
  %vm641 = vcmask 64512
  %642 = vst.msk [vmem:[%s3] sm:$0xff] %vm641, %v633
  %643 = vst.msk [vmem:[%s3 + $0x8] sm:$0xff] %vm641, %v634
  %644 = vst.msk [vmem:[%s3 + $0x10] sm:$0xff] %vm641, %v635
  %645 = vst.msk [vmem:[%s3 + $0x18] sm:$0xff] %vm641, %v636
  %646 = vst.msk [vmem:[%s3 + $0x20] sm:$0xff] %vm641, %v637
  %647 = vst.msk [vmem:[%s3 + $0x28] sm:$0xff] %vm641, %v638
  %648 = vst.msk [vmem:[%s3 + $0x30] sm:$0xff] %vm641, %v639
  %649 = vst.msk [vmem:[%s3 + $0x38] sm:$0xff] %vm641, %v640
  // Predicated region
  $region14: #{net_forward.38} parent=0 // pred_check
    _
  $region15: #{net_forward.38} parent=0 // pred_check_branch
    %651 = sbr.rel (0) target = $region17
  $region16: #{net_forward.38} parent=0 // pred_region
    _
  $region17: #{net_forward.38} parent=0 // pred_fallthru
    _
  // Predicated region
  $region18: #{net_forward.38} parent=0 // pred_check
    _
  $region19: #{net_forward.38} parent=0 // pred_check_branch
    %653 = sbr.rel (0) target = $region21
  $region20: #{net_forward.38} parent=0 // pred_region
    _
  $region21: #{net_forward.38} parent=0 // pred_fallthru
    _

// kernel: net_forward.39
$region0: #{net_forward.39}
  #allocation0 [shape = 'u32[]', space=smem, size = 0x4, offset = 0x4, fixed_abs, tag = 'smem constant byte address 0x4 - core index']
  #allocation1 [shape = 'u32[72,128]{1,0:T(1,128)}', space=vmem, size = 0x9000, scoped, tag = 'internal scratch']
  %s0 = inlined_call_operand.vmem [shape: f32[32,256], index: 0, kind: input, shape index: {}]
  %s1 = inlined_call_operand.vmem [shape: f32[32,256], index: 1, kind: input, shape index: {}]
  %s2 = inlined_call_operand.vmem [shape: f32[64,64], index: 2, kind: input, shape index: {}]
  %s3 = inlined_call_operand.vmem [shape: f32[64,64], index: 3, kind: input, shape index: {}]
  %s4 = inlined_call_operand.vmem [shape: f32[16,128], index: 4, kind: input, shape index: {}]
  %s5 = inlined_call_operand.vmem [shape: f32[16,128], index: 5, kind: input, shape index: {}]
  %s6 = inlined_call_operand.vmem [shape: f32[4,128], index: 6, kind: input, shape index: {}]
  %s7 = inlined_call_operand.vmem [shape: f32[4,128], index: 7, kind: input, shape index: {}]
  %s8 = inlined_call_operand.vmem [shape: f32[4,128], index: 8, kind: input, shape index: {}]
  %s9 = inlined_call_operand.vmem [shape: f32[1,128], index: 9, kind: input, shape index: {}]
  %s10 = inlined_call_operand.vmem [shape: f32[1,128], index: 10, kind: input, shape index: {}]
  %s11 = inlined_call_operand.hbm [shape: f32[1,1], index: 11, kind: output, shape index: {0}]
  %s12 = inlined_call_operand.hbm [shape: f32[1,1], index: 12, kind: output, shape index: {1}]
  %s13 = inlined_call_operand.hbm [shape: f32[1,1], index: 13, kind: output, shape index: {2}]
  %14 = xla_tuple %s11, %s12, %s13
  %s15 = sld [smem:[#allocation0]]
  $region70: #{net_forward.39} parent=0
    _
  %s17 = ssub.s32 1, %s15
  %s18 = scalar_select 0, %s17, %s15
  $region1: #{net_forward.39} parent=0
    #allocation2 [shape = 'u8[512]{0}', space=vmem, size = 0x400, scoped, tag = 'output window, operand 0, single buffered']
    #allocation3 [shape = 's32[1]{0}', space=sflag, size = 0x4, scoped, tag = 'scoped memory for net_forward.39']
    #allocation4 [shape = 'u8[512]{0}', space=vmem, size = 0x400, scoped, tag = 'output window, operand 1, single buffered']
    #allocation5 [shape = 's32[1]{0}', space=sflag, size = 0x4, scoped, tag = 'scoped memory for net_forward.39']
    #allocation6 [shape = 'u8[512]{0}', space=vmem, size = 0x400, scoped, tag = 'output window, operand 2, single buffered']
    %19 = vsyncpa [#allocation3], 0
    %20 = vsyncpa [#allocation5], 0
    // Predicated region
    $region2: #{net_forward.39} parent=1 // pred_check
      _
    $region3: #{net_forward.39} parent=1 // pred_check_branch
      %22 = sbr.rel (0) target = $region5
    $region4: #{net_forward.39} parent=1 // pred_region
      _
    $region5: #{net_forward.39} parent=1 // pred_fallthru
      _
    // Predicated region
    $region6: #{net_forward.39} parent=1 // pred_check
      _
    $region7: #{net_forward.39} parent=1 // pred_check_branch
      %24 = sbr.rel (0) target = $region9
    $region8: #{net_forward.39} parent=1 // pred_region
      _
    $region9: #{net_forward.39} parent=1 // pred_fallthru
      _
    // Predicated region
    $region10: #{net_forward.39} parent=1 // pred_check
      _
    $region11: #{net_forward.39} parent=1 // pred_check_branch
      %26 = sbr.rel (0) target = $region13
    $region12: #{net_forward.39} parent=1 // pred_region
      _
    $region13: #{net_forward.39} parent=1 // pred_fallthru
      _
    // Predicated region
    $region14: #{net_forward.39} parent=1 // pred_check
      _
    $region15: #{net_forward.39} parent=1 // pred_check_branch
      %28 = sbr.rel (0) target = $region17
    $region16: #{net_forward.39} parent=1 // pred_region
      _
    $region17: #{net_forward.39} parent=1 // pred_fallthru
      _
    // Predicated region
    $region18: #{net_forward.39} parent=1 // pred_check
      _
    $region19: #{net_forward.39} parent=1 // pred_check_branch
      %30 = sbr.rel (0) target = $region21
    $region20: #{net_forward.39} parent=1 // pred_region
      _
    $region21: #{net_forward.39} parent=1 // pred_fallthru
      _
    // Predicated region
    $region22: #{net_forward.39} parent=1 // pred_check
      _
    $region23: #{net_forward.39} parent=1 // pred_check_branch
      %32 = sbr.rel (0) target = $region25
    $region24: #{net_forward.39} parent=1 // pred_region
      _
    $region25: #{net_forward.39} parent=1 // pred_fallthru
      _
    // Predicated region
    $region26: #{net_forward.39} parent=1 // pred_check
      _
    $region27: #{net_forward.39} parent=1 // pred_check_branch
      %34 = sbr.rel (0) target = $region29
    $region28: #{net_forward.39} parent=1 // pred_region
      _
    $region29: #{net_forward.39} parent=1 // pred_fallthru
      _
    // Predicated region
    $region30: #{net_forward.39} parent=1 // pred_check
      _
    $region31: #{net_forward.39} parent=1 // pred_check_branch
      %36 = sbr.rel (0) target = $region33
    $region32: #{net_forward.39} parent=1 // pred_region
      _
    $region33: #{net_forward.39} parent=1 // pred_fallthru
      _
    // Predicated region
    $region34: #{net_forward.39} parent=1 // pred_check
      _
    $region35: #{net_forward.39} parent=1 // pred_check_branch
      %38 = sbr.rel (0) target = $region37
    $region36: #{net_forward.39} parent=1 // pred_region
      _
    $region37: #{net_forward.39} parent=1 // pred_fallthru
      _
    // Predicated region
    $region38: #{net_forward.39} parent=1 // pred_check
      _
    $region39: #{net_forward.39} parent=1 // pred_check_branch
      %40 = sbr.rel (0) target = $region41
    $region40: #{net_forward.39} parent=1 // pred_region
      _
    $region41: #{net_forward.39} parent=1 // pred_fallthru
      _
    // Predicated region
    $region42: #{net_forward.39} parent=1 // pred_check
      _
    $region43: #{net_forward.39} parent=1 // pred_check_branch
      %42 = sbr.rel (0) target = $region45
    $region44: #{net_forward.39} parent=1 // pred_region
      _
    $region45: #{net_forward.39} parent=1 // pred_fallthru
      _
    %v43 = vld [vmem:[%s0] sm:$0xff]
    %v44 = vld [vmem:[%s0 + $0x8] sm:$0xff]
    %v45 = vld [vmem:[%s0 + $0x10] sm:$0xff]
    %v46 = vld [vmem:[%s0 + $0x18] sm:$0xff]
    %v47 = vld [vmem:[%s0 + $0x20] sm:$0xff]
    %v48 = vld [vmem:[%s0 + $0x28] sm:$0xff]
    %v49 = vld [vmem:[%s0 + $0x30] sm:$0xff]
    %v50 = vld [vmem:[%s0 + $0x38] sm:$0xff]
    %v51 = vadd.f32 %v43, %v44
    %52 = vadd.xlane.f32.xlu0 %v51
    %v53 = vpop.xlane.xlu0 %52
    %v54 = vadd.f32 %v45, %v46
    %55 = vadd.xlane.f32.xlu0 %v54
    %v56 = vpop.xlane.xlu0 %55
    %v57 = vadd.f32 %v47, %v48
    %58 = vadd.xlane.f32.xlu0 %v57
    %v59 = vpop.xlane.xlu0 %58
    %v60 = vadd.f32 %v49, %v50
    %61 = vadd.xlane.f32.xlu0 %v60
    %v62 = vpop.xlane.xlu0 %61
    %v63 = vrcp.pop 256.0
    %v64 = vmul.f32 256.0, %v63
    %v65 = vsub.f32 1.0, %v64
    %v66 = vmul.f32 %v63, %v65
    %v67 = vadd.f32 %v63, %v66
    %vm68 = vweird.f32 %v63
    %v69 = vsel %vm68, %v63, %v67
    %v70 = vmul.f32 %v53, %v69
    %v71 = vmul.f32 %v56, %v69
    %v72 = vmul.f32 %v59, %v69
    %v73 = vmul.f32 %v62, %v69
    %v74 = vsub.f32 %v43, %v70
    %v75 = vsub.f32 %v44, %v70
    %v76 = vsub.f32 %v45, %v71
    %v77 = vsub.f32 %v46, %v71
    %v78 = vsub.f32 %v47, %v72
    %v79 = vsub.f32 %v48, %v72
    %v80 = vsub.f32 %v49, %v73
    %v81 = vsub.f32 %v50, %v73
    %v82 = vmul.f32 %v74, %v74
    %v83 = vmul.f32 %v75, %v75
    %v84 = vmul.f32 %v76, %v76
    %v85 = vmul.f32 %v77, %v77
    %v86 = vmul.f32 %v78, %v78
    %v87 = vmul.f32 %v79, %v79
    %v88 = vmul.f32 %v80, %v80
    %v89 = vmul.f32 %v81, %v81
    %v90 = vadd.f32 %v82, %v83
    %91 = vadd.xlane.f32.xlu0 %v90
    %v92 = vpop.xlane.xlu0 %91
    %v93 = vadd.f32 %v84, %v85
    %94 = vadd.xlane.f32.xlu0 %v93
    %v95 = vpop.xlane.xlu0 %94
    %v96 = vadd.f32 %v86, %v87
    %97 = vadd.xlane.f32.xlu0 %v96
    %v98 = vpop.xlane.xlu0 %97
    %v99 = vadd.f32 %v88, %v89
    %100 = vadd.xlane.f32.xlu0 %v99
    %v101 = vpop.xlane.xlu0 %100
    %v102 = vrcp.pop 255.0
    %v103 = vmul.f32 255.0, %v102
    %v104 = vsub.f32 1.0, %v103
    %v105 = vmul.f32 %v102, %v104
    %v106 = vadd.f32 %v102, %v105
    %vm107 = vweird.f32 %v102
    %v108 = vsel %vm107, %v102, %v106
    %v109 = vmul.f32 %v92, %v108
    %v110 = vmul.f32 %v95, %v108
    %v111 = vmul.f32 %v98, %v108
    %v112 = vmul.f32 %v101, %v108
    %v113 = vadd.f32 %v109, 1e-05
    %v114 = vadd.f32 %v110, 1e-05
    %v115 = vadd.f32 %v111, 1e-05
    %v116 = vadd.f32 %v112, 1e-05
    %v117 = vrsqrt.pop %v113
    %v118 = vmul.f32 %v117, %v113
    %v119 = vmul.f32 %v118, %v117
    %v120 = vmul.f32 0.5, %v119
    %v121 = vsub.f32 1.5, %v120
    %v122 = vmul.f32 %v117, %v121
    %v123 = vmul.f32 %v113, %v122
    %vm124 = vcmp.eq.f32.partialorder %v113, inf
    %v125 = vsel %vm124, %v113, %v123
    %vm126 = vcmp.eq.f32.partialorder %v113, 0.0
    %v127 = vand.u32 %v113, 2147483648
    %v128 = vsel %vm126, %v127, %v125
    %v129 = vrsqrt.pop %v114
    %v130 = vmul.f32 %v129, %v114
    %v131 = vmul.f32 %v130, %v129
    %v132 = vmul.f32 0.5, %v131
    %v133 = vsub.f32 1.5, %v132
    %v134 = vmul.f32 %v129, %v133
    %v135 = vmul.f32 %v114, %v134
    %vm136 = vcmp.eq.f32.partialorder %v114, inf
    %v137 = vsel %vm136, %v114, %v135
    %vm138 = vcmp.eq.f32.partialorder %v114, 0.0
    %v139 = vand.u32 %v114, 2147483648
    %v140 = vsel %vm138, %v139, %v137
    %v141 = vrsqrt.pop %v115
    %v142 = vmul.f32 %v141, %v115
    %v143 = vmul.f32 %v142, %v141
    %v144 = vmul.f32 0.5, %v143
    %v145 = vsub.f32 1.5, %v144
    %v146 = vmul.f32 %v141, %v145
    %v147 = vmul.f32 %v115, %v146
    %vm148 = vcmp.eq.f32.partialorder %v115, inf
    %v149 = vsel %vm148, %v115, %v147
    %vm150 = vcmp.eq.f32.partialorder %v115, 0.0
    %v151 = vand.u32 %v115, 2147483648
    %v152 = vsel %vm150, %v151, %v149
    %v153 = vrsqrt.pop %v116
    %v154 = vmul.f32 %v153, %v116
    %v155 = vmul.f32 %v154, %v153
    %v156 = vmul.f32 0.5, %v155
    %v157 = vsub.f32 1.5, %v156
    %v158 = vmul.f32 %v153, %v157
    %v159 = vmul.f32 %v116, %v158
    %vm160 = vcmp.eq.f32.partialorder %v116, inf
    %v161 = vsel %vm160, %v116, %v159
    %vm162 = vcmp.eq.f32.partialorder %v116, 0.0
    %v163 = vand.u32 %v116, 2147483648
    %v164 = vsel %vm162, %v163, %v161
    %v165 = vld [vmem:[%s1] sm:$0xff]
    %v166 = vld [vmem:[%s1 + $0x8] sm:$0xff]
    %v167 = vld [vmem:[%s1 + $0x10] sm:$0xff]
    %v168 = vld [vmem:[%s1 + $0x18] sm:$0xff]
    %v169 = vld [vmem:[%s1 + $0x20] sm:$0xff]
    %v170 = vld [vmem:[%s1 + $0x28] sm:$0xff]
    %v171 = vld [vmem:[%s1 + $0x30] sm:$0xff]
    %v172 = vld [vmem:[%s1 + $0x38] sm:$0xff]
    %v173 = vadd.f32 %v165, %v166
    %174 = vadd.xlane.f32.xlu0 %v173
    %v175 = vpop.xlane.xlu0 %174
    %v176 = vadd.f32 %v167, %v168
    %177 = vadd.xlane.f32.xlu0 %v176
    %v178 = vpop.xlane.xlu0 %177
    %v179 = vadd.f32 %v169, %v170
    %180 = vadd.xlane.f32.xlu0 %v179
    %v181 = vpop.xlane.xlu0 %180
    %v182 = vadd.f32 %v171, %v172
    %183 = vadd.xlane.f32.xlu0 %v182
    %v184 = vpop.xlane.xlu0 %183
    %v185 = vmul.f32 %v175, %v69
    %v186 = vmul.f32 %v178, %v69
    %v187 = vmul.f32 %v181, %v69
    %v188 = vmul.f32 %v184, %v69
    %v189 = vsub.f32 %v165, %v185
    %v190 = vsub.f32 %v166, %v185
    %v191 = vsub.f32 %v167, %v186
    %v192 = vsub.f32 %v168, %v186
    %v193 = vsub.f32 %v169, %v187
    %v194 = vsub.f32 %v170, %v187
    %v195 = vsub.f32 %v171, %v188
    %v196 = vsub.f32 %v172, %v188
    %v197 = vmul.f32 %v189, %v189
    %v198 = vmul.f32 %v190, %v190
    %v199 = vmul.f32 %v191, %v191
    %v200 = vmul.f32 %v192, %v192
    %v201 = vmul.f32 %v193, %v193
    %v202 = vmul.f32 %v194, %v194
    %v203 = vmul.f32 %v195, %v195
    %v204 = vmul.f32 %v196, %v196
    %v205 = vadd.f32 %v197, %v198
    %206 = vadd.xlane.f32.xlu0 %v205
    %v207 = vpop.xlane.xlu0 %206
    %v208 = vadd.f32 %v199, %v200
    %209 = vadd.xlane.f32.xlu0 %v208
    %v210 = vpop.xlane.xlu0 %209
    %v211 = vadd.f32 %v201, %v202
    %212 = vadd.xlane.f32.xlu0 %v211
    %v213 = vpop.xlane.xlu0 %212
    %v214 = vadd.f32 %v203, %v204
    %215 = vadd.xlane.f32.xlu0 %v214
    %v216 = vpop.xlane.xlu0 %215
    %v217 = vmul.f32 %v207, %v108
    %v218 = vmul.f32 %v210, %v108
    %v219 = vmul.f32 %v213, %v108
    %v220 = vmul.f32 %v216, %v108
    %v221 = vadd.f32 %v217, 1e-05
    %v222 = vadd.f32 %v218, 1e-05
    %v223 = vadd.f32 %v219, 1e-05
    %v224 = vadd.f32 %v220, 1e-05
    %v225 = vrsqrt.pop %v221
    %v226 = vmul.f32 %v225, %v221
    %v227 = vmul.f32 %v226, %v225
    %v228 = vmul.f32 0.5, %v227
    %v229 = vsub.f32 1.5, %v228
    %v230 = vmul.f32 %v225, %v229
    %v231 = vmul.f32 %v221, %v230
    %vm232 = vcmp.eq.f32.partialorder %v221, inf
    %v233 = vsel %vm232, %v221, %v231
    %vm234 = vcmp.eq.f32.partialorder %v221, 0.0
    %v235 = vand.u32 %v221, 2147483648
    %v236 = vsel %vm234, %v235, %v233
    %v237 = vrsqrt.pop %v222
    %v238 = vmul.f32 %v237, %v222
    %v239 = vmul.f32 %v238, %v237
    %v240 = vmul.f32 0.5, %v239
    %v241 = vsub.f32 1.5, %v240
    %v242 = vmul.f32 %v237, %v241
    %v243 = vmul.f32 %v222, %v242
    %vm244 = vcmp.eq.f32.partialorder %v222, inf
    %v245 = vsel %vm244, %v222, %v243
    %vm246 = vcmp.eq.f32.partialorder %v222, 0.0
    %v247 = vand.u32 %v222, 2147483648
    %v248 = vsel %vm246, %v247, %v245
    %v249 = vrsqrt.pop %v223
    %v250 = vmul.f32 %v249, %v223
    %v251 = vmul.f32 %v250, %v249
    %v252 = vmul.f32 0.5, %v251
    %v253 = vsub.f32 1.5, %v252
    %v254 = vmul.f32 %v249, %v253
    %v255 = vmul.f32 %v223, %v254
    %vm256 = vcmp.eq.f32.partialorder %v223, inf
    %v257 = vsel %vm256, %v223, %v255
    %vm258 = vcmp.eq.f32.partialorder %v223, 0.0
    %v259 = vand.u32 %v223, 2147483648
    %v260 = vsel %vm258, %v259, %v257
    %v261 = vrsqrt.pop %v224
    %v262 = vmul.f32 %v261, %v224
    %v263 = vmul.f32 %v262, %v261
    %v264 = vmul.f32 0.5, %v263
    %v265 = vsub.f32 1.5, %v264
    %v266 = vmul.f32 %v261, %v265
    %v267 = vmul.f32 %v224, %v266
    %vm268 = vcmp.eq.f32.partialorder %v224, inf
    %v269 = vsel %vm268, %v224, %v267
    %vm270 = vcmp.eq.f32.partialorder %v224, 0.0
    %v271 = vand.u32 %v224, 2147483648
    %v272 = vsel %vm270, %v271, %v269
    %v273 = vsub.f32 %v70, %v185
    %v274 = vsub.f32 %v71, %v186
    %v275 = vsub.f32 %v72, %v187
    %v276 = vsub.f32 %v73, %v188
    %v277 = vmul.f32 %v273, %v273
    %v278 = vmul.f32 %v274, %v274
    %v279 = vmul.f32 %v275, %v275
    %v280 = vmul.f32 %v276, %v276
    %vm281 = vcmask 7168
    %v282 = vsel %vm281, %v277, 0.0
    %v283 = vsel %vm281, %v278, 0.0
    %v284 = vadd.f32 %v282, %v283
    %v285 = vsel %vm281, %v279, 0.0
    %v286 = vadd.f32 %v284, %v285
    %v287 = vsel %vm281, %v280, 0.0
    %v288 = vadd.f32 %v286, %v287
    %289 = vadd.xlane.f32.xlu0 %v288
    %v290 = vpop.xlane.xlu0 %289
    %v291 = vrot.slane %v290, 4
    %v292 = vadd.f32 %v290, %v291
    %v293 = vrot.slane %v292, 2
    %v294 = vadd.f32 %v292, %v293
    %v295 = vrot.slane %v294, 1
    %v296 = vadd.f32 %v294, %v295
    %s297 = vtos %v296
    %v298 = vrcp.pop 32.0
    %v299 = vmul.f32 32.0, %v298
    %v300 = vsub.f32 1.0, %v299
    %v301 = vmul.f32 %v298, %v300
    %v302 = vadd.f32 %v298, %v301
    %vm303 = vweird.f32 %v298
    %v304 = vsel %vm303, %v298, %v302
    %s305 = vtos %v304
    %s306 = smul.f32 %s297, %s305
    %s307 = sadd.f32 %s306, 0.0
    %v308 = vsub.f32 %v128, %v236
    %v309 = vsub.f32 %v140, %v248
    %v310 = vsub.f32 %v152, %v260
    %v311 = vsub.f32 %v164, %v272
    %v312 = vmul.f32 %v308, %v308
    %v313 = vmul.f32 %v309, %v309
    %v314 = vmul.f32 %v310, %v310
    %v315 = vmul.f32 %v311, %v311
    %v316 = vsel %vm281, %v312, 0.0
    %v317 = vsel %vm281, %v313, 0.0
    %v318 = vadd.f32 %v316, %v317
    %v319 = vsel %vm281, %v314, 0.0
    %v320 = vadd.f32 %v318, %v319
    %v321 = vsel %vm281, %v315, 0.0
    %v322 = vadd.f32 %v320, %v321
    %323 = vadd.xlane.f32.xlu0 %v322
    %v324 = vpop.xlane.xlu0 %323
    %v325 = vrot.slane %v324, 4
    %v326 = vadd.f32 %v324, %v325
    %v327 = vrot.slane %v326, 2
    %v328 = vadd.f32 %v326, %v327
    %v329 = vrot.slane %v328, 1
    %v330 = vadd.f32 %v328, %v329
    %s331 = vtos %v330
    %v332 = vrcp.pop 32.0
    %v333 = vmul.f32 32.0, %v332
    %v334 = vsub.f32 1.0, %v333
    %v335 = vmul.f32 %v332, %v334
    %v336 = vadd.f32 %v332, %v335
    %vm337 = vweird.f32 %v332
    %v338 = vsel %vm337, %v332, %v336
    %s339 = vtos %v338
    %s340 = smul.f32 %s331, %s339
    %s341 = sadd.f32 %s307, %s340
    %v342 = vld [vmem:[%s2] sm:$0xff]
    %v343 = vld [vmem:[%s2 + $0x8] sm:$0xff]
    %v344 = vld [vmem:[%s2 + $0x10] sm:$0xff]
    %v345 = vld [vmem:[%s2 + $0x18] sm:$0xff]
    %v346 = vld [vmem:[%s2 + $0x20] sm:$0xff]
    %v347 = vld [vmem:[%s2 + $0x28] sm:$0xff]
    %v348 = vld [vmem:[%s2 + $0x30] sm:$0xff]
    %v349 = vld [vmem:[%s2 + $0x38] sm:$0xff]
    %vm350 = vcmask 523264
    %v351 = vsel %vm350, %v342, 0.0
    %352 = vadd.xlane.f32.xlu0 %v351
    %v353 = vpop.xlane.xlu0 %352
    %v354 = vsel %vm350, %v343, 0.0
    %355 = vadd.xlane.f32.xlu0 %v354
    %v356 = vpop.xlane.xlu0 %355
    %v357 = vsel %vm350, %v344, 0.0
    %358 = vadd.xlane.f32.xlu0 %v357
    %v359 = vpop.xlane.xlu0 %358
    %v360 = vsel %vm350, %v345, 0.0
    %361 = vadd.xlane.f32.xlu0 %v360
    %v362 = vpop.xlane.xlu0 %361
    %v363 = vsel %vm350, %v346, 0.0
    %364 = vadd.xlane.f32.xlu0 %v363
    %v365 = vpop.xlane.xlu0 %364
    %v366 = vsel %vm350, %v347, 0.0
    %367 = vadd.xlane.f32.xlu0 %v366
    %v368 = vpop.xlane.xlu0 %367
    %v369 = vsel %vm350, %v348, 0.0
    %370 = vadd.xlane.f32.xlu0 %v369
    %v371 = vpop.xlane.xlu0 %370
    %v372 = vsel %vm350, %v349, 0.0
    %373 = vadd.xlane.f32.xlu0 %v372
    %v374 = vpop.xlane.xlu0 %373
    %v375 = vrcp.pop 64.0
    %v376 = vmul.f32 64.0, %v375
    %v377 = vsub.f32 1.0, %v376
    %v378 = vmul.f32 %v375, %v377
    %v379 = vadd.f32 %v375, %v378
    %vm380 = vweird.f32 %v375
    %v381 = vsel %vm380, %v375, %v379
    %v382 = vmul.f32 %v353, %v381
    %v383 = vmul.f32 %v356, %v381
    %v384 = vmul.f32 %v359, %v381
    %v385 = vmul.f32 %v362, %v381
    %v386 = vmul.f32 %v365, %v381
    %v387 = vmul.f32 %v368, %v381
    %v388 = vmul.f32 %v371, %v381
    %v389 = vmul.f32 %v374, %v381
    %v390 = vsub.f32 %v342, %v382
    %v391 = vsub.f32 %v343, %v383
    %v392 = vsub.f32 %v344, %v384
    %v393 = vsub.f32 %v345, %v385
    %v394 = vsub.f32 %v346, %v386
    %v395 = vsub.f32 %v347, %v387
    %v396 = vsub.f32 %v348, %v388
    %v397 = vsub.f32 %v349, %v389
    %v398 = vmul.f32 %v390, %v390
    %v399 = vmul.f32 %v391, %v391
    %v400 = vmul.f32 %v392, %v392
    %v401 = vmul.f32 %v393, %v393
    %v402 = vmul.f32 %v394, %v394
    %v403 = vmul.f32 %v395, %v395
    %v404 = vmul.f32 %v396, %v396
    %v405 = vmul.f32 %v397, %v397
    %v406 = vsel %vm350, %v398, 0.0
    %407 = vadd.xlane.f32.xlu0 %v406
    %v408 = vpop.xlane.xlu0 %407
    %v409 = vsel %vm350, %v399, 0.0
    %410 = vadd.xlane.f32.xlu0 %v409
    %v411 = vpop.xlane.xlu0 %410
    %v412 = vsel %vm350, %v400, 0.0
    %413 = vadd.xlane.f32.xlu0 %v412
    %v414 = vpop.xlane.xlu0 %413
    %v415 = vsel %vm350, %v401, 0.0
    %416 = vadd.xlane.f32.xlu0 %v415
    %v417 = vpop.xlane.xlu0 %416
    %v418 = vsel %vm350, %v402, 0.0
    %419 = vadd.xlane.f32.xlu0 %v418
    %v420 = vpop.xlane.xlu0 %419
    %v421 = vsel %vm350, %v403, 0.0
    %422 = vadd.xlane.f32.xlu0 %v421
    %v423 = vpop.xlane.xlu0 %422
    %v424 = vsel %vm350, %v404, 0.0
    %425 = vadd.xlane.f32.xlu0 %v424
    %v426 = vpop.xlane.xlu0 %425
    %v427 = vsel %vm350, %v405, 0.0
    %428 = vadd.xlane.f32.xlu0 %v427
    %v429 = vpop.xlane.xlu0 %428
    %v430 = vrcp.pop 63.0
    %v431 = vmul.f32 63.0, %v430
    %v432 = vsub.f32 1.0, %v431
    %v433 = vmul.f32 %v430, %v432
    %v434 = vadd.f32 %v430, %v433
    %vm435 = vweird.f32 %v430
    %v436 = vsel %vm435, %v430, %v434
    %v437 = vmul.f32 %v408, %v436
    %v438 = vmul.f32 %v411, %v436
    %v439 = vmul.f32 %v414, %v436
    %v440 = vmul.f32 %v417, %v436
    %v441 = vmul.f32 %v420, %v436
    %v442 = vmul.f32 %v423, %v436
    %v443 = vmul.f32 %v426, %v436
    %v444 = vmul.f32 %v429, %v436
    %v445 = vadd.f32 %v437, 1e-05
    %v446 = vadd.f32 %v438, 1e-05
    %v447 = vadd.f32 %v439, 1e-05
    %v448 = vadd.f32 %v440, 1e-05
    %v449 = vadd.f32 %v441, 1e-05
    %v450 = vadd.f32 %v442, 1e-05
    %v451 = vadd.f32 %v443, 1e-05
    %v452 = vadd.f32 %v444, 1e-05
    %v453 = vrsqrt.pop %v445
    %v454 = vmul.f32 %v453, %v445
    %v455 = vmul.f32 %v454, %v453
    %v456 = vmul.f32 0.5, %v455
    %v457 = vsub.f32 1.5, %v456
    %v458 = vmul.f32 %v453, %v457
    %v459 = vmul.f32 %v445, %v458
    %vm460 = vcmp.eq.f32.partialorder %v445, inf
    %v461 = vsel %vm460, %v445, %v459
    %vm462 = vcmp.eq.f32.partialorder %v445, 0.0
    %v463 = vand.u32 %v445, 2147483648
    %v464 = vsel %vm462, %v463, %v461
    %v465 = vrsqrt.pop %v446
    %v466 = vmul.f32 %v465, %v446
    %v467 = vmul.f32 %v466, %v465
    %v468 = vmul.f32 0.5, %v467
    %v469 = vsub.f32 1.5, %v468
    %v470 = vmul.f32 %v465, %v469
    %v471 = vmul.f32 %v446, %v470
    %vm472 = vcmp.eq.f32.partialorder %v446, inf
    %v473 = vsel %vm472, %v446, %v471
    %vm474 = vcmp.eq.f32.partialorder %v446, 0.0
    %v475 = vand.u32 %v446, 2147483648
    %v476 = vsel %vm474, %v475, %v473
    %v477 = vrsqrt.pop %v447
    %v478 = vmul.f32 %v477, %v447
    %v479 = vmul.f32 %v478, %v477
    %v480 = vmul.f32 0.5, %v479
    %v481 = vsub.f32 1.5, %v480
    %v482 = vmul.f32 %v477, %v481
    %v483 = vmul.f32 %v447, %v482
    %vm484 = vcmp.eq.f32.partialorder %v447, inf
    %v485 = vsel %vm484, %v447, %v483
    %vm486 = vcmp.eq.f32.partialorder %v447, 0.0
    %v487 = vand.u32 %v447, 2147483648
    %v488 = vsel %vm486, %v487, %v485
    %v489 = vrsqrt.pop %v448
    %v490 = vmul.f32 %v489, %v448
    %v491 = vmul.f32 %v490, %v489
    %v492 = vmul.f32 0.5, %v491
    %v493 = vsub.f32 1.5, %v492
    %v494 = vmul.f32 %v489, %v493
    %v495 = vmul.f32 %v448, %v494
    %vm496 = vcmp.eq.f32.partialorder %v448, inf
    %v497 = vsel %vm496, %v448, %v495
    %vm498 = vcmp.eq.f32.partialorder %v448, 0.0
    %v499 = vand.u32 %v448, 2147483648
    %v500 = vsel %vm498, %v499, %v497
    %v501 = vrsqrt.pop %v449
    %v502 = vmul.f32 %v501, %v449
    %v503 = vmul.f32 %v502, %v501
    %v504 = vmul.f32 0.5, %v503
    %v505 = vsub.f32 1.5, %v504
    %v506 = vmul.f32 %v501, %v505
    %v507 = vmul.f32 %v449, %v506
    %vm508 = vcmp.eq.f32.partialorder %v449, inf
    %v509 = vsel %vm508, %v449, %v507
    %vm510 = vcmp.eq.f32.partialorder %v449, 0.0
    %v511 = vand.u32 %v449, 2147483648
    %v512 = vsel %vm510, %v511, %v509
    %v513 = vrsqrt.pop %v450
    %v514 = vmul.f32 %v513, %v450
    %v515 = vmul.f32 %v514, %v513
    %v516 = vmul.f32 0.5, %v515
    %v517 = vsub.f32 1.5, %v516
    %v518 = vmul.f32 %v513, %v517
    %v519 = vmul.f32 %v450, %v518
    %vm520 = vcmp.eq.f32.partialorder %v450, inf
    %v521 = vsel %vm520, %v450, %v519
    %vm522 = vcmp.eq.f32.partialorder %v450, 0.0
    %v523 = vand.u32 %v450, 2147483648
    %v524 = vsel %vm522, %v523, %v521
    %v525 = vrsqrt.pop %v451
    %v526 = vmul.f32 %v525, %v451
    %v527 = vmul.f32 %v526, %v525
    %v528 = vmul.f32 0.5, %v527
    %v529 = vsub.f32 1.5, %v528
    %v530 = vmul.f32 %v525, %v529
    %v531 = vmul.f32 %v451, %v530
    %vm532 = vcmp.eq.f32.partialorder %v451, inf
    %v533 = vsel %vm532, %v451, %v531
    %vm534 = vcmp.eq.f32.partialorder %v451, 0.0
    %v535 = vand.u32 %v451, 2147483648
    %v536 = vsel %vm534, %v535, %v533
    %v537 = vrsqrt.pop %v452
    %v538 = vmul.f32 %v537, %v452
    %v539 = vmul.f32 %v538, %v537
    %v540 = vmul.f32 0.5, %v539
    %v541 = vsub.f32 1.5, %v540
    %v542 = vmul.f32 %v537, %v541
    %v543 = vmul.f32 %v452, %v542
    %vm544 = vcmp.eq.f32.partialorder %v452, inf
    %v545 = vsel %vm544, %v452, %v543
    %vm546 = vcmp.eq.f32.partialorder %v452, 0.0
    %v547 = vand.u32 %v452, 2147483648
    %v548 = vsel %vm546, %v547, %v545
    %v549 = vld [vmem:[%s3] sm:$0xff]
    %v550 = vld [vmem:[%s3 + $0x8] sm:$0xff]
    %v551 = vld [vmem:[%s3 + $0x10] sm:$0xff]
    %v552 = vld [vmem:[%s3 + $0x18] sm:$0xff]
    %v553 = vld [vmem:[%s3 + $0x20] sm:$0xff]
    %v554 = vld [vmem:[%s3 + $0x28] sm:$0xff]
    %v555 = vld [vmem:[%s3 + $0x30] sm:$0xff]
    %v556 = vld [vmem:[%s3 + $0x38] sm:$0xff]
    %v557 = vsel %vm350, %v549, 0.0
    %558 = vadd.xlane.f32.xlu0 %v557
    %v559 = vpop.xlane.xlu0 %558
    %v560 = vsel %vm350, %v550, 0.0
    %561 = vadd.xlane.f32.xlu0 %v560
    %v562 = vpop.xlane.xlu0 %561
    %v563 = vsel %vm350, %v551, 0.0
    %564 = vadd.xlane.f32.xlu0 %v563
    %v565 = vpop.xlane.xlu0 %564
    %v566 = vsel %vm350, %v552, 0.0
    %567 = vadd.xlane.f32.xlu0 %v566
    %v568 = vpop.xlane.xlu0 %567
    %v569 = vsel %vm350, %v553, 0.0
    %570 = vadd.xlane.f32.xlu0 %v569
    %v571 = vpop.xlane.xlu0 %570
    %v572 = vsel %vm350, %v554, 0.0
    %573 = vadd.xlane.f32.xlu0 %v572
    %v574 = vpop.xlane.xlu0 %573
    %v575 = vsel %vm350, %v555, 0.0
    %576 = vadd.xlane.f32.xlu0 %v575
    %v577 = vpop.xlane.xlu0 %576
    %v578 = vsel %vm350, %v556, 0.0
    %579 = vadd.xlane.f32.xlu0 %v578
    %v580 = vpop.xlane.xlu0 %579
    %v581 = vmul.f32 %v559, %v381
    %v582 = vmul.f32 %v562, %v381
    %v583 = vmul.f32 %v565, %v381
    %v584 = vmul.f32 %v568, %v381
    %v585 = vmul.f32 %v571, %v381
    %v586 = vmul.f32 %v574, %v381
    %v587 = vmul.f32 %v577, %v381
    %v588 = vmul.f32 %v580, %v381
    %v589 = vsub.f32 %v549, %v581
    %v590 = vsub.f32 %v550, %v582
    %v591 = vsub.f32 %v551, %v583
    %v592 = vsub.f32 %v552, %v584
    %v593 = vsub.f32 %v553, %v585
    %v594 = vsub.f32 %v554, %v586
    %v595 = vsub.f32 %v555, %v587
    %v596 = vsub.f32 %v556, %v588
    %v597 = vmul.f32 %v589, %v589
    %v598 = vmul.f32 %v590, %v590
    %v599 = vmul.f32 %v591, %v591
    %v600 = vmul.f32 %v592, %v592
    %v601 = vmul.f32 %v593, %v593
    %v602 = vmul.f32 %v594, %v594
    %v603 = vmul.f32 %v595, %v595
    %v604 = vmul.f32 %v596, %v596
    %v605 = vsel %vm350, %v597, 0.0
    %606 = vadd.xlane.f32.xlu0 %v605
    %v607 = vpop.xlane.xlu0 %606
    %v608 = vsel %vm350, %v598, 0.0
    %609 = vadd.xlane.f32.xlu0 %v608
    %v610 = vpop.xlane.xlu0 %609
    %v611 = vsel %vm350, %v599, 0.0
    %612 = vadd.xlane.f32.xlu0 %v611
    %v613 = vpop.xlane.xlu0 %612
    %v614 = vsel %vm350, %v600, 0.0
    %615 = vadd.xlane.f32.xlu0 %v614
    %v616 = vpop.xlane.xlu0 %615
    %v617 = vsel %vm350, %v601, 0.0
    %618 = vadd.xlane.f32.xlu0 %v617
    %v619 = vpop.xlane.xlu0 %618
    %v620 = vsel %vm350, %v602, 0.0
    %621 = vadd.xlane.f32.xlu0 %v620
    %v622 = vpop.xlane.xlu0 %621
    %v623 = vsel %vm350, %v603, 0.0
    %624 = vadd.xlane.f32.xlu0 %v623
    %v625 = vpop.xlane.xlu0 %624
    %v626 = vsel %vm350, %v604, 0.0
    %627 = vadd.xlane.f32.xlu0 %v626
    %v628 = vpop.xlane.xlu0 %627
    %v629 = vmul.f32 %v607, %v436
    %v630 = vmul.f32 %v610, %v436
    %v631 = vmul.f32 %v613, %v436
    %v632 = vmul.f32 %v616, %v436
    %v633 = vmul.f32 %v619, %v436
    %v634 = vmul.f32 %v622, %v436
    %v635 = vmul.f32 %v625, %v436
    %v636 = vmul.f32 %v628, %v436
    %v637 = vadd.f32 %v629, 1e-05
    %v638 = vadd.f32 %v630, 1e-05
    %v639 = vadd.f32 %v631, 1e-05
    %v640 = vadd.f32 %v632, 1e-05
    %v641 = vadd.f32 %v633, 1e-05
    %v642 = vadd.f32 %v634, 1e-05
    %v643 = vadd.f32 %v635, 1e-05
    %v644 = vadd.f32 %v636, 1e-05
    %v645 = vrsqrt.pop %v637
    %v646 = vmul.f32 %v645, %v637
    %v647 = vmul.f32 %v646, %v645
    %v648 = vmul.f32 0.5, %v647
    %v649 = vsub.f32 1.5, %v648
    %v650 = vmul.f32 %v645, %v649
    %v651 = vmul.f32 %v637, %v650
    %vm652 = vcmp.eq.f32.partialorder %v637, inf
    %v653 = vsel %vm652, %v637, %v651
    %vm654 = vcmp.eq.f32.partialorder %v637, 0.0
    %v655 = vand.u32 %v637, 2147483648
    %v656 = vsel %vm654, %v655, %v653
    %v657 = vrsqrt.pop %v638
    %v658 = vmul.f32 %v657, %v638
    %v659 = vmul.f32 %v658, %v657
    %v660 = vmul.f32 0.5, %v659
    %v661 = vsub.f32 1.5, %v660
    %v662 = vmul.f32 %v657, %v661
    %v663 = vmul.f32 %v638, %v662
    %vm664 = vcmp.eq.f32.partialorder %v638, inf
    %v665 = vsel %vm664, %v638, %v663
    %vm666 = vcmp.eq.f32.partialorder %v638, 0.0
    %v667 = vand.u32 %v638, 2147483648
    %v668 = vsel %vm666, %v667, %v665
    %v669 = vrsqrt.pop %v639
    %v670 = vmul.f32 %v669, %v639
    %v671 = vmul.f32 %v670, %v669
    %v672 = vmul.f32 0.5, %v671
    %v673 = vsub.f32 1.5, %v672
    %v674 = vmul.f32 %v669, %v673
    %v675 = vmul.f32 %v639, %v674
    %vm676 = vcmp.eq.f32.partialorder %v639, inf
    %v677 = vsel %vm676, %v639, %v675
    %vm678 = vcmp.eq.f32.partialorder %v639, 0.0
    %v679 = vand.u32 %v639, 2147483648
    %v680 = vsel %vm678, %v679, %v677
    %v681 = vrsqrt.pop %v640
    %v682 = vmul.f32 %v681, %v640
    %v683 = vmul.f32 %v682, %v681
    %v684 = vmul.f32 0.5, %v683
    %v685 = vsub.f32 1.5, %v684
    %v686 = vmul.f32 %v681, %v685
    %v687 = vmul.f32 %v640, %v686
    %vm688 = vcmp.eq.f32.partialorder %v640, inf
    %v689 = vsel %vm688, %v640, %v687
    %vm690 = vcmp.eq.f32.partialorder %v640, 0.0
    %v691 = vand.u32 %v640, 2147483648
    %v692 = vsel %vm690, %v691, %v689
    %v693 = vrsqrt.pop %v641
    %v694 = vmul.f32 %v693, %v641
    %v695 = vmul.f32 %v694, %v693
    %v696 = vmul.f32 0.5, %v695
    %v697 = vsub.f32 1.5, %v696
    %v698 = vmul.f32 %v693, %v697
    %v699 = vmul.f32 %v641, %v698
    %vm700 = vcmp.eq.f32.partialorder %v641, inf
    %v701 = vsel %vm700, %v641, %v699
    %vm702 = vcmp.eq.f32.partialorder %v641, 0.0
    %v703 = vand.u32 %v641, 2147483648
    %v704 = vsel %vm702, %v703, %v701
    %v705 = vrsqrt.pop %v642
    %v706 = vmul.f32 %v705, %v642
    %v707 = vmul.f32 %v706, %v705
    %v708 = vmul.f32 0.5, %v707
    %v709 = vsub.f32 1.5, %v708
    %v710 = vmul.f32 %v705, %v709
    %v711 = vmul.f32 %v642, %v710
    %vm712 = vcmp.eq.f32.partialorder %v642, inf
    %v713 = vsel %vm712, %v642, %v711
    %vm714 = vcmp.eq.f32.partialorder %v642, 0.0
    %v715 = vand.u32 %v642, 2147483648
    %v716 = vsel %vm714, %v715, %v713
    %v717 = vrsqrt.pop %v643
    %v718 = vmul.f32 %v717, %v643
    %v719 = vmul.f32 %v718, %v717
    %v720 = vmul.f32 0.5, %v719
    %v721 = vsub.f32 1.5, %v720
    %v722 = vmul.f32 %v717, %v721
    %v723 = vmul.f32 %v643, %v722
    %vm724 = vcmp.eq.f32.partialorder %v643, inf
    %v725 = vsel %vm724, %v643, %v723
    %vm726 = vcmp.eq.f32.partialorder %v643, 0.0
    %v727 = vand.u32 %v643, 2147483648
    %v728 = vsel %vm726, %v727, %v725
    %v729 = vrsqrt.pop %v644
    %v730 = vmul.f32 %v729, %v644
    %v731 = vmul.f32 %v730, %v729
    %v732 = vmul.f32 0.5, %v731
    %v733 = vsub.f32 1.5, %v732
    %v734 = vmul.f32 %v729, %v733
    %v735 = vmul.f32 %v644, %v734
    %vm736 = vcmp.eq.f32.partialorder %v644, inf
    %v737 = vsel %vm736, %v644, %v735
    %vm738 = vcmp.eq.f32.partialorder %v644, 0.0
    %v739 = vand.u32 %v644, 2147483648
    %v740 = vsel %vm738, %v739, %v737
    %v741 = vsub.f32 %v382, %v581
    %v742 = vsub.f32 %v383, %v582
    %v743 = vsub.f32 %v384, %v583
    %v744 = vsub.f32 %v385, %v584
    %v745 = vsub.f32 %v386, %v585
    %v746 = vsub.f32 %v387, %v586
    %v747 = vsub.f32 %v388, %v587
    %v748 = vsub.f32 %v389, %v588
    %v749 = vmul.f32 %v741, %v741
    %v750 = vmul.f32 %v742, %v742
    %v751 = vmul.f32 %v743, %v743
    %v752 = vmul.f32 %v744, %v744
    %v753 = vmul.f32 %v745, %v745
    %v754 = vmul.f32 %v746, %v746
    %v755 = vmul.f32 %v747, %v747
    %v756 = vmul.f32 %v748, %v748
    %v757 = vsel %vm281, %v749, 0.0
    %v758 = vsel %vm281, %v750, 0.0
    %v759 = vadd.f32 %v757, %v758
    %v760 = vsel %vm281, %v751, 0.0
    %v761 = vadd.f32 %v759, %v760
    %v762 = vsel %vm281, %v752, 0.0
    %v763 = vadd.f32 %v761, %v762
    %v764 = vsel %vm281, %v753, 0.0
    %v765 = vadd.f32 %v763, %v764
    %v766 = vsel %vm281, %v754, 0.0
    %v767 = vadd.f32 %v765, %v766
    %v768 = vsel %vm281, %v755, 0.0
    %v769 = vadd.f32 %v767, %v768
    %v770 = vsel %vm281, %v756, 0.0
    %v771 = vadd.f32 %v769, %v770
    %772 = vadd.xlane.f32.xlu0 %v771
    %v773 = vpop.xlane.xlu0 %772
    %v774 = vrot.slane %v773, 4
    %v775 = vadd.f32 %v773, %v774
    %v776 = vrot.slane %v775, 2
    %v777 = vadd.f32 %v775, %v776
    %v778 = vrot.slane %v777, 1
    %v779 = vadd.f32 %v777, %v778
    %s780 = vtos %v779
    %v781 = vrcp.pop 64.0
    %v782 = vmul.f32 64.0, %v781
    %v783 = vsub.f32 1.0, %v782
    %v784 = vmul.f32 %v781, %v783
    %v785 = vadd.f32 %v781, %v784
    %vm786 = vweird.f32 %v781
    %v787 = vsel %vm786, %v781, %v785
    %s788 = vtos %v787
    %s789 = smul.f32 %s780, %s788
    %s790 = sadd.f32 %s341, %s789
    %v791 = vsub.f32 %v464, %v656
    %v792 = vsub.f32 %v476, %v668
    %v793 = vsub.f32 %v488, %v680
    %v794 = vsub.f32 %v500, %v692
    %v795 = vsub.f32 %v512, %v704
    %v796 = vsub.f32 %v524, %v716
    %v797 = vsub.f32 %v536, %v728
    %v798 = vsub.f32 %v548, %v740
    %v799 = vmul.f32 %v791, %v791
    %v800 = vmul.f32 %v792, %v792
    %v801 = vmul.f32 %v793, %v793
    %v802 = vmul.f32 %v794, %v794
    %v803 = vmul.f32 %v795, %v795
    %v804 = vmul.f32 %v796, %v796
    %v805 = vmul.f32 %v797, %v797
    %v806 = vmul.f32 %v798, %v798
    %v807 = vsel %vm281, %v799, 0.0
    %v808 = vsel %vm281, %v800, 0.0
    %v809 = vadd.f32 %v807, %v808
    %v810 = vsel %vm281, %v801, 0.0
    %v811 = vadd.f32 %v809, %v810
    %v812 = vsel %vm281, %v802, 0.0
    %v813 = vadd.f32 %v811, %v812
    %v814 = vsel %vm281, %v803, 0.0
    %v815 = vadd.f32 %v813, %v814
    %v816 = vsel %vm281, %v804, 0.0
    %v817 = vadd.f32 %v815, %v816
    %v818 = vsel %vm281, %v805, 0.0
    %v819 = vadd.f32 %v817, %v818
    %v820 = vsel %vm281, %v806, 0.0
    %v821 = vadd.f32 %v819, %v820
    %822 = vadd.xlane.f32.xlu0 %v821
    %v823 = vpop.xlane.xlu0 %822
    %v824 = vrot.slane %v823, 4
    %v825 = vadd.f32 %v823, %v824
    %v826 = vrot.slane %v825, 2
    %v827 = vadd.f32 %v825, %v826
    %v828 = vrot.slane %v827, 1
    %v829 = vadd.f32 %v827, %v828
    %s830 = vtos %v829
    %v831 = vrcp.pop 64.0
    %v832 = vmul.f32 64.0, %v831
    %v833 = vsub.f32 1.0, %v832
    %v834 = vmul.f32 %v831, %v833
    %v835 = vadd.f32 %v831, %v834
    %vm836 = vweird.f32 %v831
    %v837 = vsel %vm836, %v831, %v835
    %s838 = vtos %v837
    %s839 = smul.f32 %s830, %s838
    %s840 = sadd.f32 %s790, %s839
    %v841 = vld [vmem:[%s4] sm:$0xff]
    %v842 = vld [vmem:[%s4 + $0x8] sm:$0xff]
    %v843 = vadd.f32 %v841, %v842
    %v844 = vrot.slane %v843, 4
    %v845 = vadd.f32 %v843, %v844
    %v846 = vrot.slane %v845, 2
    %v847 = vadd.f32 %v845, %v846
    %v848 = vrot.slane %v847, 1
    %v849 = vadd.f32 %v847, %v848
    %v850 = vrcp.pop 16.0
    %v851 = vmul.f32 16.0, %v850
    %v852 = vsub.f32 1.0, %v851
    %v853 = vmul.f32 %v850, %v852
    %v854 = vadd.f32 %v850, %v853
    %vm855 = vweird.f32 %v850
    %v856 = vsel %vm855, %v850, %v854
    %v857 = vmul.f32 %v849, %v856
    %v858 = vsub.f32 %v841, %v857
    %v859 = vsub.f32 %v842, %v857
    %v860 = vmul.f32 %v858, %v858
    %v861 = vmul.f32 %v859, %v859
    %v862 = vadd.f32 %v860, %v861
    %v863 = vrot.slane %v862, 4
    %v864 = vadd.f32 %v862, %v863
    %v865 = vrot.slane %v864, 2
    %v866 = vadd.f32 %v864, %v865
    %v867 = vrot.slane %v866, 1
    %v868 = vadd.f32 %v866, %v867
    %v869 = vrcp.pop 15.0
    %v870 = vmul.f32 15.0, %v869
    %v871 = vsub.f32 1.0, %v870
    %v872 = vmul.f32 %v869, %v871
    %v873 = vadd.f32 %v869, %v872
    %vm874 = vweird.f32 %v869
    %v875 = vsel %vm874, %v869, %v873
    %v876 = vmul.f32 %v868, %v875
    %v877 = vadd.f32 %v876, 1e-05
    %v878 = vrsqrt.pop %v877
    %v879 = vmul.f32 %v878, %v877
    %v880 = vmul.f32 %v879, %v878
    %v881 = vmul.f32 0.5, %v880
    %v882 = vsub.f32 1.5, %v881
    %v883 = vmul.f32 %v878, %v882
    %v884 = vmul.f32 %v877, %v883
    %vm885 = vcmp.eq.f32.partialorder %v877, inf
    %v886 = vsel %vm885, %v877, %v884
    %vm887 = vcmp.eq.f32.partialorder %v877, 0.0
    %v888 = vand.u32 %v877, 2147483648
    %v889 = vsel %vm887, %v888, %v886
    %v890 = vld [vmem:[%s5] sm:$0xff]
    %v891 = vld [vmem:[%s5 + $0x8] sm:$0xff]
    %v892 = vadd.f32 %v890, %v891
    %v893 = vrot.slane %v892, 4
    %v894 = vadd.f32 %v892, %v893
    %v895 = vrot.slane %v894, 2
    %v896 = vadd.f32 %v894, %v895
    %v897 = vrot.slane %v896, 1
    %v898 = vadd.f32 %v896, %v897
    %v899 = vmul.f32 %v898, %v856
    %v900 = vsub.f32 %v890, %v899
    %v901 = vsub.f32 %v891, %v899
    %v902 = vmul.f32 %v900, %v900
    %v903 = vmul.f32 %v901, %v901
    %v904 = vadd.f32 %v902, %v903
    %v905 = vrot.slane %v904, 4
    %v906 = vadd.f32 %v904, %v905
    %v907 = vrot.slane %v906, 2
    %v908 = vadd.f32 %v906, %v907
    %v909 = vrot.slane %v908, 1
    %v910 = vadd.f32 %v908, %v909
    %v911 = vmul.f32 %v910, %v875
    %v912 = vadd.f32 %v911, 1e-05
    %v913 = vrsqrt.pop %v912
    %v914 = vmul.f32 %v913, %v912
    %v915 = vmul.f32 %v914, %v913
    %v916 = vmul.f32 0.5, %v915
    %v917 = vsub.f32 1.5, %v916
    %v918 = vmul.f32 %v913, %v917
    %v919 = vmul.f32 %v912, %v918
    %vm920 = vcmp.eq.f32.partialorder %v912, inf
    %v921 = vsel %vm920, %v912, %v919
    %vm922 = vcmp.eq.f32.partialorder %v912, 0.0
    %v923 = vand.u32 %v912, 2147483648
    %v924 = vsel %vm922, %v923, %v921
    %v925 = vsub.f32 %v857, %v899
    %v926 = vmul.f32 %v925, %v925
    %vm927 = vcmask 1040384
    %v928 = vsel %vm927, %v926, 0.0
    %929 = vadd.xlane.f32.xlu0 %v928
    %v930 = vpop.xlane.xlu0 %929
    %v931 = vrot.slane %v930, 4
    %v932 = vadd.f32 %v930, %v931
    %v933 = vrot.slane %v932, 2
    %v934 = vadd.f32 %v932, %v933
    %v935 = vrot.slane %v934, 1
    %v936 = vadd.f32 %v934, %v935
    %s937 = vtos %v936
    %v938 = vrcp.pop 128.0
    %v939 = vmul.f32 128.0, %v938
    %v940 = vsub.f32 1.0, %v939
    %v941 = vmul.f32 %v938, %v940
    %v942 = vadd.f32 %v938, %v941
    %vm943 = vweird.f32 %v938
    %v944 = vsel %vm943, %v938, %v942
    %s945 = vtos %v944
    %s946 = smul.f32 %s937, %s945
    %s947 = sadd.f32 %s840, %s946
    %v948 = vsub.f32 %v889, %v924
    %v949 = vmul.f32 %v948, %v948
    %v950 = vsel %vm927, %v949, 0.0
    %951 = vadd.xlane.f32.xlu0 %v950
    %v952 = vpop.xlane.xlu0 %951
    %v953 = vrot.slane %v952, 4
    %v954 = vadd.f32 %v952, %v953
    %v955 = vrot.slane %v954, 2
    %v956 = vadd.f32 %v954, %v955
    %v957 = vrot.slane %v956, 1
    %v958 = vadd.f32 %v956, %v957
    %s959 = vtos %v958
    %v960 = vrcp.pop 128.0
    %v961 = vmul.f32 128.0, %v960
    %v962 = vsub.f32 1.0, %v961
    %v963 = vmul.f32 %v960, %v962
    %v964 = vadd.f32 %v960, %v963
    %vm965 = vweird.f32 %v960
    %v966 = vsel %vm965, %v960, %v964
    %s967 = vtos %v966
    %s968 = smul.f32 %s959, %s967
    %s969 = sadd.f32 %s947, %s968
    %v970 = vld [vmem:[%s6] sm:$0xf]
    %vm971 = vcmask 1043456
    %v972 = vsel %vm971, %v970, 0.0
    %v973 = vrot.slane %v972, 4
    %v974 = vadd.f32 %v972, %v973
    %v975 = vrot.slane %v974, 2
    %v976 = vadd.f32 %v974, %v975
    %v977 = vrot.slane %v976, 1
    %v978 = vadd.f32 %v976, %v977
    %v979 = vrcp.pop 4.0
    %v980 = vmul.f32 4.0, %v979
    %v981 = vsub.f32 1.0, %v980
    %v982 = vmul.f32 %v979, %v981
    %v983 = vadd.f32 %v979, %v982
    %vm984 = vweird.f32 %v979
    %v985 = vsel %vm984, %v979, %v983
    %v986 = vmul.f32 %v978, %v985
    %v987 = vsub.f32 %v970, %v986
    %v988 = vmul.f32 %v987, %v987
    %v989 = vsel %vm971, %v988, 0.0
    %v990 = vrot.slane %v989, 4
    %v991 = vadd.f32 %v989, %v990
    %v992 = vrot.slane %v991, 2
    %v993 = vadd.f32 %v991, %v992
    %v994 = vrot.slane %v993, 1
    %v995 = vadd.f32 %v993, %v994
    %v996 = vrcp.pop 3.0
    %v997 = vmul.f32 3.0, %v996
    %v998 = vsub.f32 1.0, %v997
    %v999 = vmul.f32 %v996, %v998
    %v1000 = vadd.f32 %v996, %v999
    %vm1001 = vweird.f32 %v996
    %v1002 = vsel %vm1001, %v996, %v1000
    %v1003 = vmul.f32 %v995, %v1002
    %v1004 = vadd.f32 %v1003, 1e-05
    %v1005 = vrsqrt.pop %v1004
    %v1006 = vmul.f32 %v1005, %v1004
    %v1007 = vmul.f32 %v1006, %v1005
    %v1008 = vmul.f32 0.5, %v1007
    %v1009 = vsub.f32 1.5, %v1008
    %v1010 = vmul.f32 %v1005, %v1009
    %v1011 = vmul.f32 %v1004, %v1010
    %vm1012 = vcmp.eq.f32.partialorder %v1004, inf
    %v1013 = vsel %vm1012, %v1004, %v1011
    %vm1014 = vcmp.eq.f32.partialorder %v1004, 0.0
    %v1015 = vand.u32 %v1004, 2147483648
    %v1016 = vsel %vm1014, %v1015, %v1013
    %v1017 = vld [vmem:[%s7] sm:$0xf]
    %v1018 = vsel %vm971, %v1017, 0.0
    %v1019 = vrot.slane %v1018, 4
    %v1020 = vadd.f32 %v1018, %v1019
    %v1021 = vrot.slane %v1020, 2
    %v1022 = vadd.f32 %v1020, %v1021
    %v1023 = vrot.slane %v1022, 1
    %v1024 = vadd.f32 %v1022, %v1023
    %v1025 = vmul.f32 %v1024, %v985
    %v1026 = vsub.f32 %v1017, %v1025
    %v1027 = vmul.f32 %v1026, %v1026
    %v1028 = vsel %vm971, %v1027, 0.0
    %v1029 = vrot.slane %v1028, 4
    %v1030 = vadd.f32 %v1028, %v1029
    %v1031 = vrot.slane %v1030, 2
    %v1032 = vadd.f32 %v1030, %v1031
    %v1033 = vrot.slane %v1032, 1
    %v1034 = vadd.f32 %v1032, %v1033
    %v1035 = vmul.f32 %v1034, %v1002
    %v1036 = vadd.f32 %v1035, 1e-05
    %v1037 = vrsqrt.pop %v1036
    %v1038 = vmul.f32 %v1037, %v1036
    %v1039 = vmul.f32 %v1038, %v1037
    %v1040 = vmul.f32 0.5, %v1039
    %v1041 = vsub.f32 1.5, %v1040
    %v1042 = vmul.f32 %v1037, %v1041
    %v1043 = vmul.f32 %v1036, %v1042
    %vm1044 = vcmp.eq.f32.partialorder %v1036, inf
    %v1045 = vsel %vm1044, %v1036, %v1043
    %vm1046 = vcmp.eq.f32.partialorder %v1036, 0.0
    %v1047 = vand.u32 %v1036, 2147483648
    %v1048 = vsel %vm1046, %v1047, %v1045
    %v1049 = vsub.f32 %v986, %v1025
    %v1050 = vmul.f32 %v1049, %v1049
    %v1051 = vsel %vm927, %v1050, 0.0
    %1052 = vadd.xlane.f32.xlu0 %v1051
    %v1053 = vpop.xlane.xlu0 %1052
    %v1054 = vrot.slane %v1053, 4
    %v1055 = vadd.f32 %v1053, %v1054
    %v1056 = vrot.slane %v1055, 2
    %v1057 = vadd.f32 %v1055, %v1056
    %v1058 = vrot.slane %v1057, 1
    %v1059 = vadd.f32 %v1057, %v1058
    %s1060 = vtos %v1059
    %v1061 = vrcp.pop 128.0
    %v1062 = vmul.f32 128.0, %v1061
    %v1063 = vsub.f32 1.0, %v1062
    %v1064 = vmul.f32 %v1061, %v1063
    %v1065 = vadd.f32 %v1061, %v1064
    %vm1066 = vweird.f32 %v1061
    %v1067 = vsel %vm1066, %v1061, %v1065
    %s1068 = vtos %v1067
    %s1069 = smul.f32 %s1060, %s1068
    %s1070 = sadd.f32 %s969, %s1069
    %v1071 = vsub.f32 %v1016, %v1048
    %v1072 = vmul.f32 %v1071, %v1071
    %v1073 = vsel %vm927, %v1072, 0.0
    %1074 = vadd.xlane.f32.xlu0 %v1073
    %v1075 = vpop.xlane.xlu0 %1074
    %v1076 = vrot.slane %v1075, 4
    %v1077 = vadd.f32 %v1075, %v1076
    %v1078 = vrot.slane %v1077, 2
    %v1079 = vadd.f32 %v1077, %v1078
    %v1080 = vrot.slane %v1079, 1
    %v1081 = vadd.f32 %v1079, %v1080
    %s1082 = vtos %v1081
    %v1083 = vrcp.pop 128.0
    %v1084 = vmul.f32 128.0, %v1083
    %v1085 = vsub.f32 1.0, %v1084
    %v1086 = vmul.f32 %v1083, %v1085
    %v1087 = vadd.f32 %v1083, %v1086
    %vm1088 = vweird.f32 %v1083
    %v1089 = vsel %vm1088, %v1083, %v1087
    %s1090 = vtos %v1089
    %s1091 = smul.f32 %s1082, %s1090
    %s1092 = sadd.f32 %s1070, %s1091
    %v1093 = vstv %s1092
    %vm1094 = vcmask 0
    %1095 = vst.msk [vmem:[#allocation6] sm:$0x1] %vm1094, %v1093
    %v1096 = vld [vmem:[%s10] sm:$0x1]
    %v1097 = vsub.f32 %v1096, %v1025
    %v1098 = vmul.f32 %v1097, %v1097
    %v1099 = vsel %vm927, %v1098, 0.0
    %1100 = vadd.xlane.f32.xlu0 %v1099
    %v1101 = vpop.xlane.xlu0 %1100
    %v1102 = vrot.slane %v1101, 4
    %v1103 = vadd.f32 %v1101, %v1102
    %v1104 = vrot.slane %v1103, 2
    %v1105 = vadd.f32 %v1103, %v1104
    %v1106 = vrot.slane %v1105, 1
    %v1107 = vadd.f32 %v1105, %v1106
    %s1108 = vtos %v1107
    %v1109 = vrcp.pop 128.0
    %v1110 = vmul.f32 128.0, %v1109
    %v1111 = vsub.f32 1.0, %v1110
    %v1112 = vmul.f32 %v1109, %v1111
    %v1113 = vadd.f32 %v1109, %v1112
    %vm1114 = vweird.f32 %v1109
    %v1115 = vsel %vm1114, %v1109, %v1113
    %s1116 = vtos %v1115
    %s1117 = smul.f32 %s1108, %s1116
    %v1118 = vld [vmem:[%s9] sm:$0x1]
    %v1119 = vsub.f32 %v1118, %v1048
    %v1120 = vmul.f32 %v1119, %v1119
    %v1121 = vsel %vm927, %v1120, 0.0
    %1122 = vadd.xlane.f32.xlu0 %v1121
    %v1123 = vpop.xlane.xlu0 %1122
    %v1124 = vrot.slane %v1123, 4
    %v1125 = vadd.f32 %v1123, %v1124
    %v1126 = vrot.slane %v1125, 2
    %v1127 = vadd.f32 %v1125, %v1126
    %v1128 = vrot.slane %v1127, 1
    %v1129 = vadd.f32 %v1127, %v1128
    %s1130 = vtos %v1129
    %v1131 = vrcp.pop 128.0
    %v1132 = vmul.f32 128.0, %v1131
    %v1133 = vsub.f32 1.0, %v1132
    %v1134 = vmul.f32 %v1131, %v1133
    %v1135 = vadd.f32 %v1131, %v1134
    %vm1136 = vweird.f32 %v1131
    %v1137 = vsel %vm1136, %v1131, %v1135
    %s1138 = vtos %v1137
    %s1139 = smul.f32 %s1130, %s1138
    %s1140 = sadd.f32 %s1117, %s1139
    %v1141 = vstv %s1140
    %1142 = vst.msk [vmem:[#allocation2] sm:$0x1] %vm1094, %v1141
    %v1143 = vld [vmem:[%s6] sm:$0xf]
    %v1144 = vld [vmem:[%s8] sm:$0xf]
    %v1145 = vsub.f32 %v1143, %v1144
    %v1146 = vmul.f32 %v1145, %v1145
    %v1147 = vsel %vm971, %v1146, 0.0
    %1148 = vadd.xlane.f32.xlu0 %v1147
    %v1149 = vpop.xlane.xlu0 %1148
    %v1150 = vrot.slane %v1149, 4
    %v1151 = vadd.f32 %v1149, %v1150
    %v1152 = vrot.slane %v1151, 2
    %v1153 = vadd.f32 %v1151, %v1152
    %v1154 = vrot.slane %v1153, 1
    %v1155 = vadd.f32 %v1153, %v1154
    %s1156 = vtos %v1155
    %v1157 = vrcp.pop 512.0
    %v1158 = vmul.f32 512.0, %v1157
    %v1159 = vsub.f32 1.0, %v1158
    %v1160 = vmul.f32 %v1157, %v1159
    %v1161 = vadd.f32 %v1157, %v1160
    %vm1162 = vweird.f32 %v1157
    %v1163 = vsel %vm1162, %v1157, %v1161
    %s1164 = vtos %v1163
    %s1165 = smul.f32 %s1156, %s1164
    %v1166 = vstv %s1165
    %1167 = vst.msk [vmem:[#allocation4] sm:$0x1] %vm1094, %v1166
    // Predicated region
    $region46: #{net_forward.39} parent=1 // pred_check
      _
    $region47: #{net_forward.39} parent=1 // pred_check_branch
      %1169 = sbr.rel (0) target = $region49
    $region48: #{net_forward.39} parent=1 // pred_region
      %1171 = vsyncadd [#allocation3], 0
      %s1173 = sshll.u32 [#allocation2], 4
      %s1174 = int_to_ptr.vmem [resolvable:$true] %s1173
      %s1175 = sshll.u32 %s11, 4
      %s1176 = int_to_ptr.hbm [resolvable:$true] %s1175
      %1178 = dma.vmem_to_hbm [thread:$0]  %s1174, 16, %s1176, [#allocation3]
    $region49: #{net_forward.39} parent=1 // pred_fallthru
      _
    // Predicated region
    $region50: #{net_forward.39} parent=1 // pred_check
      _
    $region51: #{net_forward.39} parent=1 // pred_check_branch
      %1180 = sbr.rel (0) target = $region53
    $region52: #{net_forward.39} parent=1 // pred_region
      %1182 = vsyncadd [#allocation5], 0
      %s1184 = sshll.u32 [#allocation4], 4
      %s1185 = int_to_ptr.vmem [resolvable:$true] %s1184
      %s1186 = sshll.u32 %s12, 4
      %s1187 = int_to_ptr.hbm [resolvable:$true] %s1186
      %1189 = dma.vmem_to_hbm [thread:$0]  %s1185, 16, %s1187, [#allocation5]
    $region53: #{net_forward.39} parent=1 // pred_fallthru
      _
    // Predicated region
    $region54: #{net_forward.39} parent=1 // pred_check
      _
    $region55: #{net_forward.39} parent=1 // pred_check_branch
      %1191 = sbr.rel (0) target = $region57
    $region56: #{net_forward.39} parent=1 // pred_region
      %1193 = vsyncadd [#allocation5], 0
      %s1195 = sshll.u32 [#allocation6], 4
      %s1196 = int_to_ptr.vmem [resolvable:$true] %s1195
      %s1197 = sshll.u32 %s13, 4
      %s1198 = int_to_ptr.hbm [resolvable:$true] %s1197
      %1200 = dma.vmem_to_hbm [thread:$0]  %s1196, 16, %s1198, [#allocation5]
    $region57: #{net_forward.39} parent=1 // pred_fallthru
      _
    // Predicated region
    $region58: #{net_forward.39} parent=1 // pred_check
      _
    $region59: #{net_forward.39} parent=1 // pred_check_branch
      %1202 = sbr.rel (0) target = $region61
    $region60: #{net_forward.39} parent=1 // pred_region
      %1204 = dma.done [#allocation3], 16
    $region61: #{net_forward.39} parent=1 // pred_fallthru
      _
    // Predicated region
    $region62: #{net_forward.39} parent=1 // pred_check
      _
    $region63: #{net_forward.39} parent=1 // pred_check_branch
      %1206 = sbr.rel (0) target = $region65
    $region64: #{net_forward.39} parent=1 // pred_region
      %1208 = dma.done [#allocation5], 16
    $region65: #{net_forward.39} parent=1 // pred_fallthru
      _
    // Predicated region
    $region66: #{net_forward.39} parent=1 // pred_check
      _
    $region67: #{net_forward.39} parent=1 // pred_check_branch
      %1210 = sbr.rel (0) target = $region69
    $region68: #{net_forward.39} parent=1 // pred_region
      %1212 = dma.done [#allocation5], 16
    $region69: #{net_forward.39} parent=1 // pred_fallthru
      _
    %1213 = vsyncpa [#allocation3], 1
    %1214 = vsyncpa [#allocation5], 1

</llo_original>
